<compile_context>
chip_gen: v5e
topology: v5e:2x2
jax: 0.10.0
libtpu: 0.0.40
codegen_flags: <defaults>
</compile_context>

<pallas_src>
import jax
import jax.numpy as jnp
from jax.experimental import pallas as pl
from jax.experimental.pallas import tpu as pltpu

LRELU_SLOPE = 0.2  # downrelu = nn.LeakyReLU(0.2)


# ----------------------------------------------------------------------------
# Fused Pallas matmul kernel:  out = [tanh]( act(x) @ w + b )
# ----------------------------------------------------------------------------
def _make_fused_matmul_kernel(act, tanh_out):
    def kernel(x_ref, w_ref, b_ref, o_ref):
        x = x_ref[...]                               # bf16 patches
        if act == "lrelu":
            x = jnp.where(x > 0, x, x * LRELU_SLOPE)
        elif act == "relu":
            x = jnp.maximum(x, 0.0)
        y = jnp.dot(x, w_ref[...], preferred_element_type=jnp.float32)
        y = y + b_ref[...]                           # f32 bias
        if tanh_out:
            y = jnp.tanh(y)
        o_ref[...] = y.astype(o_ref.dtype)
    return kernel


def _pick_tm(m):
    # grid=2 when it splits into 8-aligned tiles (both v7x TensorCores busy);
    # otherwise one full-array block (no padding copy needed).
    if m >= 16 and m % 2 == 0 and (m // 2) % 8 == 0:
        return m // 2
    return m


def fused_matmul(x, w, b, act=None, tanh_out=False):
    """x (M,K) @ w (K,N) + b (N,), with optional pre-activation / tanh.

    Operands reach the MXU as bf16; accumulation and epilogue are f32."""
    M, K = x.shape
    N = w.shape[1]

    Mp = 8 if M < 8 else M           # only the tiny bottleneck matmuls pad
    if Mp != M:
        x = jnp.pad(x, ((0, Mp - M), (0, 0)))

    tm = _pick_tm(Mp)
    xb = x.astype(jnp.bfloat16)
    wb = w.astype(jnp.bfloat16)
    b2 = b.reshape(1, N).astype(jnp.float32)

    out = pl.pallas_call(
        _make_fused_matmul_kernel(act, tanh_out),
        out_shape=jax.ShapeDtypeStruct((Mp, N), jnp.float32),
        grid=(Mp // tm,),
        in_specs=[
            pl.BlockSpec((tm, K), lambda i: (i, 0)),
            pl.BlockSpec((K, N), lambda i: (0, 0)),
            pl.BlockSpec((1, N), lambda i: (0, 0)),
        ],
        out_specs=pl.BlockSpec((tm, N), lambda i: (i, 0)),
        compiler_params=pltpu.CompilerParams(
            dimension_semantics=("parallel",)),
    )(xb, wb, b2)
    return out[:M] if Mp != M else out


# ----------------------------------------------------------------------------
# Layer wrappers (patch extraction is thin XLA glue, compute is in Pallas)
# ----------------------------------------------------------------------------
def down_conv(x, z, w_mat, b, pre_lrelu):
    """[LeakyReLU(0.2)] -> Conv2d(Cin+nz, Cout, 4, stride=2, padding=1) + bias.

    x: (B,H,W,C) NHWC; z: (B,nz) broadcast and concatenated as constant
    channels (exactly torch.cat([x, z_img], 1)).  The pre-activation is applied
    in-kernel on the patches (lrelu(0)=0, so zero-padding commutes)."""
    B, H, W, _ = x.shape
    if z is not None and z.shape[-1] > 0:
        z_img = jnp.broadcast_to(z[:, None, None, :], (B, H, W, z.shape[-1]))
        x = jnp.concatenate([x, z_img], axis=-1)
    Cin = x.shape[-1]
    Ho, Wo = H // 2, W // 2
    xp = jnp.pad(x, ((0, 0), (1, 1), (1, 1), (0, 0)))
    cols = [xp[:, dy:dy + 2 * Ho:2, dx:dx + 2 * Wo:2, :]
            for dy in range(4) for dx in range(4)]
    patches = jnp.stack(cols, axis=3).reshape(B * Ho * Wo, 16 * Cin)
    y = fused_matmul(patches, w_mat, b, act=("lrelu" if pre_lrelu else None))
    return y.reshape(B, Ho, Wo, w_mat.shape[1])


def up_tconv(x, w_all, b_all, tanh_out):
    """ReLU -> ConvTranspose2d(Cin, Cout, 4, stride=2, padding=1) + bias [-> Tanh].

    One matmul produces all 4 output sub-pixel phases:
        patches (B*H*W, 9*Cin) @ w_all (9*Cin, 4*Cout)
    then phases are interleaved back to (B, 2H, 2W, Cout)."""
    B, H, W, Cin = x.shape
    Cout = w_all.shape[1] // 4
    xp = jnp.pad(x, ((0, 0), (1, 1), (1, 1), (0, 0)))
    cols = [xp[:, 1 + ry:1 + ry + H, 1 + rx:1 + rx + W, :]
            for ry in (-1, 0, 1) for rx in (-1, 0, 1)]
    patches = jnp.stack(cols, axis=3).reshape(B * H * W, 9 * Cin)
    y = fused_matmul(patches, w_all, b_all, act="relu", tanh_out=tanh_out)
    y = y.reshape(B, H, W, 2, 2, Cout)
    y = jnp.transpose(y, (0, 1, 3, 2, 4, 5)).reshape(B, 2 * H, 2 * W, Cout)
    return y


# ----------------------------------------------------------------------------
# Weight layout converters (from PyTorch layouts to the matmul layouts)
# ----------------------------------------------------------------------------
def conv_weight_to_mat(w):
    """Conv2d weight (Cout, Cin, 4, 4) -> (16*Cin, Cout); rows = (dy, dx, cin)."""
    cout, cin = w.shape[0], w.shape[1]
    return jnp.transpose(w, (2, 3, 1, 0)).reshape(16 * cin, cout)


# ConvTranspose2d(k=4,s=2,p=1): output row 2m+py gets contributions from input
# row m+r through kernel row k, for (k, r) in _TCONV_TAPS[py] (same for cols).
_TCONV_TAPS = {0: ((1, 0), (3, -1)), 1: ((2, 0), (0, 1))}


def tconv_weight_to_mat(w):
    """ConvTranspose2d weight (Cin, Cout, 4, 4) -> (9*Cin, 4*Cout).

    Row index = ((ry+1)*3 + (rx+1))*Cin + cin over the 3x3 input neighbourhood;
    col index = (py*2 + px)*Cout + cout over the 4 output sub-pixel phases."""
    cin, cout = w.shape[0], w.shape[1]
    w_all = jnp.zeros((9, cin, 4, cout), w.dtype)
    for py in (0, 1):
        for px in (0, 1):
            p = py * 2 + px
            for ky, ry in _TCONV_TAPS[py]:
                for kx, rx in _TCONV_TAPS[px]:
                    t = (ry + 1) * 3 + (rx + 1)
                    w_all = w_all.at[t, :, p, :].set(w[:, :, ky, kx])
    return w_all.reshape(9 * cin, 4 * cout)


# ----------------------------------------------------------------------------
# Forward pass (iterative form of the recursive UnetBlock_with_z nesting)
# ----------------------------------------------------------------------------
def g_unet_add_all_forward(x, z, params):
    """x: (B,H,W,input_nc) NHWC, z: (B,nz).  Returns (B,H,W,output_nc)."""
    levels = params["levels"]          # index 0 = outermost block
    L = len(levels)
    skips = []
    h = x
    for lvl in range(L):                            # down path
        if lvl > 0:
            skips.append(h)                         # skip = block input (no z)
        p = levels[lvl]
        h = down_conv(h, z, p["dw"], p["db"], pre_lrelu=(lvl > 0))
    for lvl in range(L - 1, -1, -1):                # up path
        p = levels[lvl]
        h = up_tconv(h, p["uw"], p["ub"], tanh_out=(lvl == 0))
        if lvl > 0:                                 # torch.cat([up(x2), x], 1)
            h = jnp.concatenate([h, skips[lvl - 1]], axis=-1)
    return h


# ----------------------------------------------------------------------------
# Deterministic synthetic parameters (shapes match the PyTorch constructor)
# ----------------------------------------------------------------------------
def init_params(key, input_nc=3, output_nc=3, nz=4, num_downs=6, ngf=8):
    cfgs = [(input_nc, output_nc, ngf),             # outermost
            (ngf, ngf, ngf * 2),
            (ngf * 2, ngf * 2, ngf * 4),
            (ngf * 4, ngf * 4, ngf * 8)]
    cfgs += [(ngf * 8, ngf * 8, ngf * 8)] * (max(num_downs - 6, 0) + 2)
    L = len(cfgs)

    keys = iter(jax.random.split(key, 4 * L))
    levels = []
    for lvl, (in_nc, out_nc, inner_nc) in enumerate(cfgs):
        cin_d = in_nc + nz
        wd = jax.random.normal(next(keys), (inner_nc, cin_d, 4, 4),
                               jnp.float32) / jnp.sqrt(16.0 * cin_d)
        bd = jax.random.normal(next(keys), (inner_nc,), jnp.float32) * 0.01
        cin_u = inner_nc if lvl == L - 1 else inner_nc * 2   # innermost: inner_nc
        wu = jax.random.normal(next(keys), (cin_u, out_nc, 4, 4),
                               jnp.float32) / jnp.sqrt(16.0 * cin_u)
        bu = jax.random.normal(next(keys), (out_nc,), jnp.float32) * 0.01
        levels.append({
            "dw": conv_weight_to_mat(wd), "db": bd,
            "uw": tconv_weight_to_mat(wu), "ub": jnp.tile(bu, 4),
        })
    return {"levels": levels}


if __name__ == "__main__":
    key = jax.random.PRNGKey(0)
    k_x, k_z, k_p = jax.random.split(key, 3)

    # G_Unet_add_all(input_nc=3, output_nc=3, nz=4, num_downs=6, ngf=8):
    # 6 levels take spatial 64 -> 32 -> 16 -> 8 -> 4 -> 2 -> 1 and back to 64.
    B, H, W = 2, 64, 64
    INPUT_NC, OUTPUT_NC, NZ, NUM_DOWNS, NGF = 3, 3, 4, 6, 8

    x = jax.random.normal(k_x, (B, H, W, INPUT_NC), jnp.float32)   # NHWC
    z = jax.random.normal(k_z, (B, NZ), jnp.float32)
    params = init_params(k_p, INPUT_NC, OUTPUT_NC, NZ, NUM_DOWNS, NGF)

    fwd = jax.jit(g_unet_add_all_forward)
    out = fwd(x, z, params)
    jax.block_until_ready(out)

    assert out.shape == (B, H, W, OUTPUT_NC), out.shape
    assert bool(jnp.all(jnp.isfinite(out)))
    assert bool(jnp.max(jnp.abs(out)) <= 1.0)       # Tanh output range
    print("KERNEL_OK")
</pallas_src>

<mosaic_0001>
module attributes {stable_mosaic.version = 11 : i64} {
  func.func @kernel(%arg0: i32, %arg1: memref<1024x112xbf16, #tpu.memory_space<vmem>>, %arg2: memref<112x8xbf16, #tpu.memory_space<vmem>>, %arg3: memref<1x8xf32, #tpu.memory_space<vmem>>, %arg4: memref<1024x8xf32, #tpu.memory_space<vmem>>) attributes {dimension_semantics = [#tpu.dimension_semantics<parallel>], iteration_bounds = array<i64: 2>, scalar_prefetch = 0 : i64, scratch_operands = 0 : i64, tpu.core_type = #tpu.core_type<tc>, window_params = [{transform_indices = @transform_0, window_bounds = array<i64: 1024, 112>}, {pipeline_mode = #tpu.pipeline_mode<synchronous>, transform_indices = @transform_1, window_bounds = array<i64: 112, 8>}, {pipeline_mode = #tpu.pipeline_mode<synchronous>, transform_indices = @transform_2, window_bounds = array<i64: 1, 8>}, {transform_indices = @transform_3, window_bounds = array<i64: 1024, 8>}]} {
    %c0 = arith.constant 0 : index
    %c0_0 = arith.constant 0 : index
    %0 = vector.load %arg1[%c0, %c0_0] : memref<1024x112xbf16, #tpu.memory_space<vmem>>, vector<1024x112xbf16>
    %c0_1 = arith.constant 0 : index
    %c0_2 = arith.constant 0 : index
    %1 = vector.load %arg2[%c0_1, %c0_2] : memref<112x8xbf16, #tpu.memory_space<vmem>>, vector<112x8xbf16>
    %cst = arith.constant dense<0.000000e+00> : vector<1024x8xf32>
    %2 = tpu.matmul %0, %1, %cst {dimension_numbers = #tpu.dot_dimension_numbers<[1], [0], [0], [1], [0, 0, 1, 1], [], []>} : vector<1024x112xbf16>, vector<112x8xbf16>, vector<1024x8xf32> -> vector<1024x8xf32>
    %c0_3 = arith.constant 0 : index
    %c0_4 = arith.constant 0 : index
    %3 = vector.load %arg3[%c0_3, %c0_4] : memref<1x8xf32, #tpu.memory_space<vmem>>, vector<1x8xf32>
    %4 = vector.broadcast %3 : vector<1x8xf32> to vector<1024x8xf32>
    %5 = arith.addf %2, %4 : vector<1024x8xf32>
    %c0_5 = arith.constant 0 : index
    %c0_6 = arith.constant 0 : index
    %6 = vector.load %arg4[%c0_5, %c0_6] : memref<1024x8xf32, #tpu.memory_space<vmem>>, vector<1024x8xf32>
    tpu.vector_store %arg4[%c0_5, %c0_6], %5 {strides = array<i32>} : memref<1024x8xf32, #tpu.memory_space<vmem>>, vector<1024x8xf32>,
    return
  }
  func.func @transform_0(%arg0: i32) -> (i32, i32) {
    %c0_i32 = arith.constant 0 : i32
    %c0_i32_0 = arith.constant 0 : i32
    return %arg0, %c0_i32 : i32, i32
  }
  func.func @transform_1(%arg0: i32) -> (i32, i32) {
    %c0_i32 = arith.constant 0 : i32
    %c0_i32_0 = arith.constant 0 : i32
    %c0_i32_1 = arith.constant 0 : i32
    return %c0_i32, %c0_i32_0 : i32, i32
  }
  func.func @transform_2(%arg0: i32) -> (i32, i32) {
    %c0_i32 = arith.constant 0 : i32
    %c0_i32_0 = arith.constant 0 : i32
    %c0_i32_1 = arith.constant 0 : i32
    return %c0_i32, %c0_i32_0 : i32, i32
  }
  func.func @transform_3(%arg0: i32) -> (i32, i32) {
    %c0_i32 = arith.constant 0 : i32
    %c0_i32_0 = arith.constant 0 : i32
    return %arg0, %c0_i32 : i32, i32
  }
}

module attributes {stable_mosaic.version = 11 : i64} {
  func.func @kernel(%arg0: i32, %arg1: memref<256x192xbf16, #tpu.memory_space<vmem>>, %arg2: memref<192x16xbf16, #tpu.memory_space<vmem>>, %arg3: memref<1x16xf32, #tpu.memory_space<vmem>>, %arg4: memref<256x16xf32, #tpu.memory_space<vmem>>) attributes {dimension_semantics = [#tpu.dimension_semantics<parallel>], iteration_bounds = array<i64: 2>, scalar_prefetch = 0 : i64, scratch_operands = 0 : i64, tpu.core_type = #tpu.core_type<tc>, window_params = [{transform_indices = @transform_0, window_bounds = array<i64: 256, 192>}, {pipeline_mode = #tpu.pipeline_mode<synchronous>, transform_indices = @transform_1, window_bounds = array<i64: 192, 16>}, {pipeline_mode = #tpu.pipeline_mode<synchronous>, transform_indices = @transform_2, window_bounds = array<i64: 1, 16>}, {transform_indices = @transform_3, window_bounds = array<i64: 256, 16>}]} {
    %c0 = arith.constant 0 : index
    %c0_0 = arith.constant 0 : index
    %0 = vector.load %arg1[%c0, %c0_0] : memref<256x192xbf16, #tpu.memory_space<vmem>>, vector<256x192xbf16>
    %cst = arith.constant 0.000000e+00 : bf16
    %1 = vector.broadcast %cst : bf16 to vector<256x192xbf16>
    %2 = arith.cmpf ogt, %0, %1 : vector<256x192xbf16>
    %cst_1 = arith.constant 2.001950e-01 : bf16
    %3 = vector.broadcast %cst_1 : bf16 to vector<256x192xbf16>
    %4 = arith.mulf %0, %3 : vector<256x192xbf16>
    %5 = arith.select %2, %0, %4 : vector<256x192xi1>, vector<256x192xbf16>
    %c0_2 = arith.constant 0 : index
    %c0_3 = arith.constant 0 : index
    %6 = vector.load %arg2[%c0_2, %c0_3] : memref<192x16xbf16, #tpu.memory_space<vmem>>, vector<192x16xbf16>
    %cst_4 = arith.constant dense<0.000000e+00> : vector<256x16xf32>
    %7 = tpu.matmul %5, %6, %cst_4 {dimension_numbers = #tpu.dot_dimension_numbers<[1], [0], [0], [1], [0, 0, 1, 1], [], []>} : vector<256x192xbf16>, vector<192x16xbf16>, vector<256x16xf32> -> vector<256x16xf32>
    %c0_5 = arith.constant 0 : index
    %c0_6 = arith.constant 0 : index
    %8 = vector.load %arg3[%c0_5, %c0_6] : memref<1x16xf32, #tpu.memory_space<vmem>>, vector<1x16xf32>
    %9 = vector.broadcast %8 : vector<1x16xf32> to vector<256x16xf32>
    %10 = arith.addf %7, %9 : vector<256x16xf32>
    %c0_7 = arith.constant 0 : index
    %c0_8 = arith.constant 0 : index
    %11 = vector.load %arg4[%c0_7, %c0_8] : memref<256x16xf32, #tpu.memory_space<vmem>>, vector<256x16xf32>
    tpu.vector_store %arg4[%c0_7, %c0_8], %10 {strides = array<i32>} : memref<256x16xf32, #tpu.memory_space<vmem>>, vector<256x16xf32>,
    return
  }
  func.func @transform_0(%arg0: i32) -> (i32, i32) {
    %c0_i32 = arith.constant 0 : i32
    %c0_i32_0 = arith.constant 0 : i32
    return %arg0, %c0_i32 : i32, i32
  }
  func.func @transform_1(%arg0: i32) -> (i32, i32) {
    %c0_i32 = arith.constant 0 : i32
    %c0_i32_0 = arith.constant 0 : i32
    %c0_i32_1 = arith.constant 0 : i32
    return %c0_i32, %c0_i32_0 : i32, i32
  }
  func.func @transform_2(%arg0: i32) -> (i32, i32) {
    %c0_i32 = arith.constant 0 : i32
    %c0_i32_0 = arith.constant 0 : i32
    %c0_i32_1 = arith.constant 0 : i32
    return %c0_i32, %c0_i32_0 : i32, i32
  }
  func.func @transform_3(%arg0: i32) -> (i32, i32) {
    %c0_i32 = arith.constant 0 : i32
    %c0_i32_0 = arith.constant 0 : i32
    return %arg0, %c0_i32 : i32, i32
  }
}

module attributes {stable_mosaic.version = 11 : i64} {
  func.func @kernel(%arg0: i32, %arg1: memref<64x320xbf16, #tpu.memory_space<vmem>>, %arg2: memref<320x32xbf16, #tpu.memory_space<vmem>>, %arg3: memref<1x32xf32, #tpu.memory_space<vmem>>, %arg4: memref<64x32xf32, #tpu.memory_space<vmem>>) attributes {dimension_semantics = [#tpu.dimension_semantics<parallel>], iteration_bounds = array<i64: 2>, scalar_prefetch = 0 : i64, scratch_operands = 0 : i64, tpu.core_type = #tpu.core_type<tc>, window_params = [{transform_indices = @transform_0, window_bounds = array<i64: 64, 320>}, {pipeline_mode = #tpu.pipeline_mode<synchronous>, transform_indices = @transform_1, window_bounds = array<i64: 320, 32>}, {pipeline_mode = #tpu.pipeline_mode<synchronous>, transform_indices = @transform_2, window_bounds = array<i64: 1, 32>}, {transform_indices = @transform_3, window_bounds = array<i64: 64, 32>}]} {
    %c0 = arith.constant 0 : index
    %c0_0 = arith.constant 0 : index
    %0 = vector.load %arg1[%c0, %c0_0] : memref<64x320xbf16, #tpu.memory_space<vmem>>, vector<64x320xbf16>
    %cst = arith.constant 0.000000e+00 : bf16
    %1 = vector.broadcast %cst : bf16 to vector<64x320xbf16>
    %2 = arith.cmpf ogt, %0, %1 : vector<64x320xbf16>
    %cst_1 = arith.constant 2.001950e-01 : bf16
    %3 = vector.broadcast %cst_1 : bf16 to vector<64x320xbf16>
    %4 = arith.mulf %0, %3 : vector<64x320xbf16>
    %5 = arith.select %2, %0, %4 : vector<64x320xi1>, vector<64x320xbf16>
    %c0_2 = arith.constant 0 : index
    %c0_3 = arith.constant 0 : index
    %6 = vector.load %arg2[%c0_2, %c0_3] : memref<320x32xbf16, #tpu.memory_space<vmem>>, vector<320x32xbf16>
    %cst_4 = arith.constant dense<0.000000e+00> : vector<64x32xf32>
    %7 = tpu.matmul %5, %6, %cst_4 {dimension_numbers = #tpu.dot_dimension_numbers<[1], [0], [0], [1], [0, 0, 1, 1], [], []>} : vector<64x320xbf16>, vector<320x32xbf16>, vector<64x32xf32> -> vector<64x32xf32>
    %c0_5 = arith.constant 0 : index
    %c0_6 = arith.constant 0 : index
    %8 = vector.load %arg3[%c0_5, %c0_6] : memref<1x32xf32, #tpu.memory_space<vmem>>, vector<1x32xf32>
    %9 = vector.broadcast %8 : vector<1x32xf32> to vector<64x32xf32>
    %10 = arith.addf %7, %9 : vector<64x32xf32>
    %c0_7 = arith.constant 0 : index
    %c0_8 = arith.constant 0 : index
    %11 = vector.load %arg4[%c0_7, %c0_8] : memref<64x32xf32, #tpu.memory_space<vmem>>, vector<64x32xf32>
    tpu.vector_store %arg4[%c0_7, %c0_8], %10 {strides = array<i32>} : memref<64x32xf32, #tpu.memory_space<vmem>>, vector<64x32xf32>,
    return
  }
  func.func @transform_0(%arg0: i32) -> (i32, i32) {
    %c0_i32 = arith.constant 0 : i32
    %c0_i32_0 = arith.constant 0 : i32
    return %arg0, %c0_i32 : i32, i32
  }
  func.func @transform_1(%arg0: i32) -> (i32, i32) {
    %c0_i32 = arith.constant 0 : i32
    %c0_i32_0 = arith.constant 0 : i32
    %c0_i32_1 = arith.constant 0 : i32
    return %c0_i32, %c0_i32_0 : i32, i32
  }
  func.func @transform_2(%arg0: i32) -> (i32, i32) {
    %c0_i32 = arith.constant 0 : i32
    %c0_i32_0 = arith.constant 0 : i32
    %c0_i32_1 = arith.constant 0 : i32
    return %c0_i32, %c0_i32_0 : i32, i32
  }
  func.func @transform_3(%arg0: i32) -> (i32, i32) {
    %c0_i32 = arith.constant 0 : i32
    %c0_i32_0 = arith.constant 0 : i32
    return %arg0, %c0_i32 : i32, i32
  }
}

module attributes {stable_mosaic.version = 11 : i64} {
  func.func @kernel(%arg0: i32, %arg1: memref<16x576xbf16, #tpu.memory_space<vmem>>, %arg2: memref<576x64xbf16, #tpu.memory_space<vmem>>, %arg3: memref<1x64xf32, #tpu.memory_space<vmem>>, %arg4: memref<16x64xf32, #tpu.memory_space<vmem>>) attributes {dimension_semantics = [#tpu.dimension_semantics<parallel>], iteration_bounds = array<i64: 2>, scalar_prefetch = 0 : i64, scratch_operands = 0 : i64, tpu.core_type = #tpu.core_type<tc>, window_params = [{transform_indices = @transform_0, window_bounds = array<i64: 16, 576>}, {pipeline_mode = #tpu.pipeline_mode<synchronous>, transform_indices = @transform_1, window_bounds = array<i64: 576, 64>}, {pipeline_mode = #tpu.pipeline_mode<synchronous>, transform_indices = @transform_2, window_bounds = array<i64: 1, 64>}, {transform_indices = @transform_3, window_bounds = array<i64: 16, 64>}]} {
    %c0 = arith.constant 0 : index
    %c0_0 = arith.constant 0 : index
    %0 = vector.load %arg1[%c0, %c0_0] : memref<16x576xbf16, #tpu.memory_space<vmem>>, vector<16x576xbf16>
    %cst = arith.constant 0.000000e+00 : bf16
    %1 = vector.broadcast %cst : bf16 to vector<16x576xbf16>
    %2 = arith.cmpf ogt, %0, %1 : vector<16x576xbf16>
    %cst_1 = arith.constant 2.001950e-01 : bf16
    %3 = vector.broadcast %cst_1 : bf16 to vector<16x576xbf16>
    %4 = arith.mulf %0, %3 : vector<16x576xbf16>
    %5 = arith.select %2, %0, %4 : vector<16x576xi1>, vector<16x576xbf16>
    %c0_2 = arith.constant 0 : index
    %c0_3 = arith.constant 0 : index
    %6 = vector.load %arg2[%c0_2, %c0_3] : memref<576x64xbf16, #tpu.memory_space<vmem>>, vector<576x64xbf16>
    %cst_4 = arith.constant dense<0.000000e+00> : vector<16x64xf32>
    %7 = tpu.matmul %5, %6, %cst_4 {dimension_numbers = #tpu.dot_dimension_numbers<[1], [0], [0], [1], [0, 0, 1, 1], [], []>} : vector<16x576xbf16>, vector<576x64xbf16>, vector<16x64xf32> -> vector<16x64xf32>
    %c0_5 = arith.constant 0 : index
    %c0_6 = arith.constant 0 : index
    %8 = vector.load %arg3[%c0_5, %c0_6] : memref<1x64xf32, #tpu.memory_space<vmem>>, vector<1x64xf32>
    %9 = vector.broadcast %8 : vector<1x64xf32> to vector<16x64xf32>
    %10 = arith.addf %7, %9 : vector<16x64xf32>
    %c0_7 = arith.constant 0 : index
    %c0_8 = arith.constant 0 : index
    %11 = vector.load %arg4[%c0_7, %c0_8] : memref<16x64xf32, #tpu.memory_space<vmem>>, vector<16x64xf32>
    tpu.vector_store %arg4[%c0_7, %c0_8], %10 {strides = array<i32>} : memref<16x64xf32, #tpu.memory_space<vmem>>, vector<16x64xf32>,
    return
  }
  func.func @transform_0(%arg0: i32) -> (i32, i32) {
    %c0_i32 = arith.constant 0 : i32
    %c0_i32_0 = arith.constant 0 : i32
    return %arg0, %c0_i32 : i32, i32
  }
  func.func @transform_1(%arg0: i32) -> (i32, i32) {
    %c0_i32 = arith.constant 0 : i32
    %c0_i32_0 = arith.constant 0 : i32
    %c0_i32_1 = arith.constant 0 : i32
    return %c0_i32, %c0_i32_0 : i32, i32
  }
  func.func @transform_2(%arg0: i32) -> (i32, i32) {
    %c0_i32 = arith.constant 0 : i32
    %c0_i32_0 = arith.constant 0 : i32
    %c0_i32_1 = arith.constant 0 : i32
    return %c0_i32, %c0_i32_0 : i32, i32
  }
  func.func @transform_3(%arg0: i32) -> (i32, i32) {
    %c0_i32 = arith.constant 0 : i32
    %c0_i32_0 = arith.constant 0 : i32
    return %arg0, %c0_i32 : i32, i32
  }
}

module attributes {stable_mosaic.version = 11 : i64} {
  func.func @kernel(%arg0: i32, %arg1: memref<8x1088xbf16, #tpu.memory_space<vmem>>, %arg2: memref<1088x64xbf16, #tpu.memory_space<vmem>>, %arg3: memref<1x64xf32, #tpu.memory_space<vmem>>, %arg4: memref<8x64xf32, #tpu.memory_space<vmem>>) attributes {dimension_semantics = [#tpu.dimension_semantics<parallel>], iteration_bounds = array<i64: 1>, scalar_prefetch = 0 : i64, scratch_operands = 0 : i64, tpu.core_type = #tpu.core_type<tc>, window_params = [{transform_indices = @transform_0, window_bounds = array<i64: 8, 1088>}, {pipeline_mode = #tpu.pipeline_mode<synchronous>, transform_indices = @transform_1, window_bounds = array<i64: 1088, 64>}, {pipeline_mode = #tpu.pipeline_mode<synchronous>, transform_indices = @transform_2, window_bounds = array<i64: 1, 64>}, {transform_indices = @transform_3, window_bounds = array<i64: 8, 64>}]} {
    %c0 = arith.constant 0 : index
    %c0_0 = arith.constant 0 : index
    %0 = vector.load %arg1[%c0, %c0_0] : memref<8x1088xbf16, #tpu.memory_space<vmem>>, vector<8x1088xbf16>
    %cst = arith.constant 0.000000e+00 : bf16
    %1 = vector.broadcast %cst : bf16 to vector<8x1088xbf16>
    %2 = arith.cmpf ogt, %0, %1 : vector<8x1088xbf16>
    %cst_1 = arith.constant 2.001950e-01 : bf16
    %3 = vector.broadcast %cst_1 : bf16 to vector<8x1088xbf16>
    %4 = arith.mulf %0, %3 : vector<8x1088xbf16>
    %5 = arith.select %2, %0, %4 : vector<8x1088xi1>, vector<8x1088xbf16>
    %c0_2 = arith.constant 0 : index
    %c0_3 = arith.constant 0 : index
    %6 = vector.load %arg2[%c0_2, %c0_3] : memref<1088x64xbf16, #tpu.memory_space<vmem>>, vector<1088x64xbf16>
    %cst_4 = arith.constant dense<0.000000e+00> : vector<8x64xf32>
    %7 = tpu.matmul %5, %6, %cst_4 {dimension_numbers = #tpu.dot_dimension_numbers<[1], [0], [0], [1], [0, 0, 1, 1], [], []>} : vector<8x1088xbf16>, vector<1088x64xbf16>, vector<8x64xf32> -> vector<8x64xf32>
    %c0_5 = arith.constant 0 : index
    %c0_6 = arith.constant 0 : index
    %8 = vector.load %arg3[%c0_5, %c0_6] : memref<1x64xf32, #tpu.memory_space<vmem>>, vector<1x64xf32>
    %9 = vector.broadcast %8 : vector<1x64xf32> to vector<8x64xf32>
    %10 = arith.addf %7, %9 : vector<8x64xf32>
    %c0_7 = arith.constant 0 : index
    %c0_8 = arith.constant 0 : index
    %11 = vector.load %arg4[%c0_7, %c0_8] : memref<8x64xf32, #tpu.memory_space<vmem>>, vector<8x64xf32>
    tpu.vector_store %arg4[%c0_7, %c0_8], %10 {strides = array<i32>} : memref<8x64xf32, #tpu.memory_space<vmem>>, vector<8x64xf32>,
    return
  }
  func.func @transform_0(%arg0: i32) -> (i32, i32) {
    %c0_i32 = arith.constant 0 : i32
    %c0_i32_0 = arith.constant 0 : i32
    return %arg0, %c0_i32 : i32, i32
  }
  func.func @transform_1(%arg0: i32) -> (i32, i32) {
    %c0_i32 = arith.constant 0 : i32
    %c0_i32_0 = arith.constant 0 : i32
    %c0_i32_1 = arith.constant 0 : i32
    return %c0_i32, %c0_i32_0 : i32, i32
  }
  func.func @transform_2(%arg0: i32) -> (i32, i32) {
    %c0_i32 = arith.constant 0 : i32
    %c0_i32_0 = arith.constant 0 : i32
    %c0_i32_1 = arith.constant 0 : i32
    return %c0_i32, %c0_i32_0 : i32, i32
  }
  func.func @transform_3(%arg0: i32) -> (i32, i32) {
    %c0_i32 = arith.constant 0 : i32
    %c0_i32_0 = arith.constant 0 : i32
    return %arg0, %c0_i32 : i32, i32
  }
}

module attributes {stable_mosaic.version = 11 : i64} {
  func.func @kernel(%arg0: i32, %arg1: memref<8x576xbf16, #tpu.memory_space<vmem>>, %arg2: memref<576x256xbf16, #tpu.memory_space<vmem>>, %arg3: memref<1x256xf32, #tpu.memory_space<vmem>>, %arg4: memref<8x256xf32, #tpu.memory_space<vmem>>) attributes {dimension_semantics = [#tpu.dimension_semantics<parallel>], iteration_bounds = array<i64: 1>, scalar_prefetch = 0 : i64, scratch_operands = 0 : i64, tpu.core_type = #tpu.core_type<tc>, window_params = [{transform_indices = @transform_0, window_bounds = array<i64: 8, 576>}, {pipeline_mode = #tpu.pipeline_mode<synchronous>, transform_indices = @transform_1, window_bounds = array<i64: 576, 256>}, {pipeline_mode = #tpu.pipeline_mode<synchronous>, transform_indices = @transform_2, window_bounds = array<i64: 1, 256>}, {transform_indices = @transform_3, window_bounds = array<i64: 8, 256>}]} {
    %c0 = arith.constant 0 : index
    %c0_0 = arith.constant 0 : index
    %0 = vector.load %arg1[%c0, %c0_0] : memref<8x576xbf16, #tpu.memory_space<vmem>>, vector<8x576xbf16>
    %cst = arith.constant 0.000000e+00 : bf16
    %1 = vector.broadcast %cst : bf16 to vector<8x576xbf16>
    %2 = arith.maximumf %0, %1 : vector<8x576xbf16>
    %c0_1 = arith.constant 0 : index
    %c0_2 = arith.constant 0 : index
    %3 = vector.load %arg2[%c0_1, %c0_2] : memref<576x256xbf16, #tpu.memory_space<vmem>>, vector<576x256xbf16>
    %cst_3 = arith.constant dense<0.000000e+00> : vector<8x256xf32>
    %4 = tpu.matmul %2, %3, %cst_3 {dimension_numbers = #tpu.dot_dimension_numbers<[1], [0], [0], [1], [0, 0, 1, 1], [], []>} : vector<8x576xbf16>, vector<576x256xbf16>, vector<8x256xf32> -> vector<8x256xf32>
    %c0_4 = arith.constant 0 : index
    %c0_5 = arith.constant 0 : index
    %5 = vector.load %arg3[%c0_4, %c0_5] : memref<1x256xf32, #tpu.memory_space<vmem>>, vector<1x256xf32>
    %6 = vector.broadcast %5 : vector<1x256xf32> to vector<8x256xf32>
    %7 = arith.addf %4, %6 : vector<8x256xf32>
    %c0_6 = arith.constant 0 : index
    %c0_7 = arith.constant 0 : index
    %8 = vector.load %arg4[%c0_6, %c0_7] : memref<8x256xf32, #tpu.memory_space<vmem>>, vector<8x256xf32>
    tpu.vector_store %arg4[%c0_6, %c0_7], %7 {strides = array<i32>} : memref<8x256xf32, #tpu.memory_space<vmem>>, vector<8x256xf32>,
    return
  }
  func.func @transform_0(%arg0: i32) -> (i32, i32) {
    %c0_i32 = arith.constant 0 : i32
    %c0_i32_0 = arith.constant 0 : i32
    return %arg0, %c0_i32 : i32, i32
  }
  func.func @transform_1(%arg0: i32) -> (i32, i32) {
    %c0_i32 = arith.constant 0 : i32
    %c0_i32_0 = arith.constant 0 : i32
    %c0_i32_1 = arith.constant 0 : i32
    return %c0_i32, %c0_i32_0 : i32, i32
  }
  func.func @transform_2(%arg0: i32) -> (i32, i32) {
    %c0_i32 = arith.constant 0 : i32
    %c0_i32_0 = arith.constant 0 : i32
    %c0_i32_1 = arith.constant 0 : i32
    return %c0_i32, %c0_i32_0 : i32, i32
  }
  func.func @transform_3(%arg0: i32) -> (i32, i32) {
    %c0_i32 = arith.constant 0 : i32
    %c0_i32_0 = arith.constant 0 : i32
    return %arg0, %c0_i32 : i32, i32
  }
}

module attributes {stable_mosaic.version = 11 : i64} {
  func.func @kernel(%arg0: i32, %arg1: memref<8x1152xbf16, #tpu.memory_space<vmem>>, %arg2: memref<1152x256xbf16, #tpu.memory_space<vmem>>, %arg3: memref<1x256xf32, #tpu.memory_space<vmem>>, %arg4: memref<8x256xf32, #tpu.memory_space<vmem>>) attributes {dimension_semantics = [#tpu.dimension_semantics<parallel>], iteration_bounds = array<i64: 1>, scalar_prefetch = 0 : i64, scratch_operands = 0 : i64, tpu.core_type = #tpu.core_type<tc>, window_params = [{transform_indices = @transform_0, window_bounds = array<i64: 8, 1152>}, {pipeline_mode = #tpu.pipeline_mode<synchronous>, transform_indices = @transform_1, window_bounds = array<i64: 1152, 256>}, {pipeline_mode = #tpu.pipeline_mode<synchronous>, transform_indices = @transform_2, window_bounds = array<i64: 1, 256>}, {transform_indices = @transform_3, window_bounds = array<i64: 8, 256>}]} {
    %c0 = arith.constant 0 : index
    %c0_0 = arith.constant 0 : index
    %0 = vector.load %arg1[%c0, %c0_0] : memref<8x1152xbf16, #tpu.memory_space<vmem>>, vector<8x1152xbf16>
    %cst = arith.constant 0.000000e+00 : bf16
    %1 = vector.broadcast %cst : bf16 to vector<8x1152xbf16>
    %2 = arith.maximumf %0, %1 : vector<8x1152xbf16>
    %c0_1 = arith.constant 0 : index
    %c0_2 = arith.constant 0 : index
    %3 = vector.load %arg2[%c0_1, %c0_2] : memref<1152x256xbf16, #tpu.memory_space<vmem>>, vector<1152x256xbf16>
    %cst_3 = arith.constant dense<0.000000e+00> : vector<8x256xf32>
    %4 = tpu.matmul %2, %3, %cst_3 {dimension_numbers = #tpu.dot_dimension_numbers<[1], [0], [0], [1], [0, 0, 1, 1], [], []>} : vector<8x1152xbf16>, vector<1152x256xbf16>, vector<8x256xf32> -> vector<8x256xf32>
    %c0_4 = arith.constant 0 : index
    %c0_5 = arith.constant 0 : index
    %5 = vector.load %arg3[%c0_4, %c0_5] : memref<1x256xf32, #tpu.memory_space<vmem>>, vector<1x256xf32>
    %6 = vector.broadcast %5 : vector<1x256xf32> to vector<8x256xf32>
    %7 = arith.addf %4, %6 : vector<8x256xf32>
    %c0_6 = arith.constant 0 : index
    %c0_7 = arith.constant 0 : index
    %8 = vector.load %arg4[%c0_6, %c0_7] : memref<8x256xf32, #tpu.memory_space<vmem>>, vector<8x256xf32>
    tpu.vector_store %arg4[%c0_6, %c0_7], %7 {strides = array<i32>} : memref<8x256xf32, #tpu.memory_space<vmem>>, vector<8x256xf32>,
    return
  }
  func.func @transform_0(%arg0: i32) -> (i32, i32) {
    %c0_i32 = arith.constant 0 : i32
    %c0_i32_0 = arith.constant 0 : i32
    return %arg0, %c0_i32 : i32, i32
  }
  func.func @transform_1(%arg0: i32) -> (i32, i32) {
    %c0_i32 = arith.constant 0 : i32
    %c0_i32_0 = arith.constant 0 : i32
    %c0_i32_1 = arith.constant 0 : i32
    return %c0_i32, %c0_i32_0 : i32, i32
  }
  func.func @transform_2(%arg0: i32) -> (i32, i32) {
    %c0_i32 = arith.constant 0 : i32
    %c0_i32_0 = arith.constant 0 : i32
    %c0_i32_1 = arith.constant 0 : i32
    return %c0_i32, %c0_i32_0 : i32, i32
  }
  func.func @transform_3(%arg0: i32) -> (i32, i32) {
    %c0_i32 = arith.constant 0 : i32
    %c0_i32_0 = arith.constant 0 : i32
    return %arg0, %c0_i32 : i32, i32
  }
}

module attributes {stable_mosaic.version = 11 : i64} {
  func.func @kernel(%arg0: i32, %arg1: memref<16x1152xbf16, #tpu.memory_space<vmem>>, %arg2: memref<1152x128xbf16, #tpu.memory_space<vmem>>, %arg3: memref<1x128xf32, #tpu.memory_space<vmem>>, %arg4: memref<16x128xf32, #tpu.memory_space<vmem>>) attributes {dimension_semantics = [#tpu.dimension_semantics<parallel>], iteration_bounds = array<i64: 2>, scalar_prefetch = 0 : i64, scratch_operands = 0 : i64, tpu.core_type = #tpu.core_type<tc>, window_params = [{transform_indices = @transform_0, window_bounds = array<i64: 16, 1152>}, {pipeline_mode = #tpu.pipeline_mode<synchronous>, transform_indices = @transform_1, window_bounds = array<i64: 1152, 128>}, {pipeline_mode = #tpu.pipeline_mode<synchronous>, transform_indices = @transform_2, window_bounds = array<i64: 1, 128>}, {transform_indices = @transform_3, window_bounds = array<i64: 16, 128>}]} {
    %c0 = arith.constant 0 : index
    %c0_0 = arith.constant 0 : index
    %0 = vector.load %arg1[%c0, %c0_0] : memref<16x1152xbf16, #tpu.memory_space<vmem>>, vector<16x1152xbf16>
    %cst = arith.constant 0.000000e+00 : bf16
    %1 = vector.broadcast %cst : bf16 to vector<16x1152xbf16>
    %2 = arith.maximumf %0, %1 : vector<16x1152xbf16>
    %c0_1 = arith.constant 0 : index
    %c0_2 = arith.constant 0 : index
    %3 = vector.load %arg2[%c0_1, %c0_2] : memref<1152x128xbf16, #tpu.memory_space<vmem>>, vector<1152x128xbf16>
    %cst_3 = arith.constant dense<0.000000e+00> : vector<16x128xf32>
    %4 = tpu.matmul %2, %3, %cst_3 {dimension_numbers = #tpu.dot_dimension_numbers<[1], [0], [0], [1], [0, 0, 1, 1], [], []>} : vector<16x1152xbf16>, vector<1152x128xbf16>, vector<16x128xf32> -> vector<16x128xf32>
    %c0_4 = arith.constant 0 : index
    %c0_5 = arith.constant 0 : index
    %5 = vector.load %arg3[%c0_4, %c0_5] : memref<1x128xf32, #tpu.memory_space<vmem>>, vector<1x128xf32>
    %6 = vector.broadcast %5 : vector<1x128xf32> to vector<16x128xf32>
    %7 = arith.addf %4, %6 : vector<16x128xf32>
    %c0_6 = arith.constant 0 : index
    %c0_7 = arith.constant 0 : index
    %8 = vector.load %arg4[%c0_6, %c0_7] : memref<16x128xf32, #tpu.memory_space<vmem>>, vector<16x128xf32>
    tpu.vector_store %arg4[%c0_6, %c0_7], %7 {strides = array<i32>} : memref<16x128xf32, #tpu.memory_space<vmem>>, vector<16x128xf32>,
    return
  }
  func.func @transform_0(%arg0: i32) -> (i32, i32) {
    %c0_i32 = arith.constant 0 : i32
    %c0_i32_0 = arith.constant 0 : i32
    return %arg0, %c0_i32 : i32, i32
  }
  func.func @transform_1(%arg0: i32) -> (i32, i32) {
    %c0_i32 = arith.constant 0 : i32
    %c0_i32_0 = arith.constant 0 : i32
    %c0_i32_1 = arith.constant 0 : i32
    return %c0_i32, %c0_i32_0 : i32, i32
  }
  func.func @transform_2(%arg0: i32) -> (i32, i32) {
    %c0_i32 = arith.constant 0 : i32
    %c0_i32_0 = arith.constant 0 : i32
    %c0_i32_1 = arith.constant 0 : i32
    return %c0_i32, %c0_i32_0 : i32, i32
  }
  func.func @transform_3(%arg0: i32) -> (i32, i32) {
    %c0_i32 = arith.constant 0 : i32
    %c0_i32_0 = arith.constant 0 : i32
    return %arg0, %c0_i32 : i32, i32
  }
}

module attributes {stable_mosaic.version = 11 : i64} {
  func.func @kernel(%arg0: i32, %arg1: memref<64x576xbf16, #tpu.memory_space<vmem>>, %arg2: memref<576x64xbf16, #tpu.memory_space<vmem>>, %arg3: memref<1x64xf32, #tpu.memory_space<vmem>>, %arg4: memref<64x64xf32, #tpu.memory_space<vmem>>) attributes {dimension_semantics = [#tpu.dimension_semantics<parallel>], iteration_bounds = array<i64: 2>, scalar_prefetch = 0 : i64, scratch_operands = 0 : i64, tpu.core_type = #tpu.core_type<tc>, window_params = [{transform_indices = @transform_0, window_bounds = array<i64: 64, 576>}, {pipeline_mode = #tpu.pipeline_mode<synchronous>, transform_indices = @transform_1, window_bounds = array<i64: 576, 64>}, {pipeline_mode = #tpu.pipeline_mode<synchronous>, transform_indices = @transform_2, window_bounds = array<i64: 1, 64>}, {transform_indices = @transform_3, window_bounds = array<i64: 64, 64>}]} {
    %c0 = arith.constant 0 : index
    %c0_0 = arith.constant 0 : index
    %0 = vector.load %arg1[%c0, %c0_0] : memref<64x576xbf16, #tpu.memory_space<vmem>>, vector<64x576xbf16>
    %cst = arith.constant 0.000000e+00 : bf16
    %1 = vector.broadcast %cst : bf16 to vector<64x576xbf16>
    %2 = arith.maximumf %0, %1 : vector<64x576xbf16>
    %c0_1 = arith.constant 0 : index
    %c0_2 = arith.constant 0 : index
    %3 = vector.load %arg2[%c0_1, %c0_2] : memref<576x64xbf16, #tpu.memory_space<vmem>>, vector<576x64xbf16>
    %cst_3 = arith.constant dense<0.000000e+00> : vector<64x64xf32>
    %4 = tpu.matmul %2, %3, %cst_3 {dimension_numbers = #tpu.dot_dimension_numbers<[1], [0], [0], [1], [0, 0, 1, 1], [], []>} : vector<64x576xbf16>, vector<576x64xbf16>, vector<64x64xf32> -> vector<64x64xf32>
    %c0_4 = arith.constant 0 : index
    %c0_5 = arith.constant 0 : index
    %5 = vector.load %arg3[%c0_4, %c0_5] : memref<1x64xf32, #tpu.memory_space<vmem>>, vector<1x64xf32>
    %6 = vector.broadcast %5 : vector<1x64xf32> to vector<64x64xf32>
    %7 = arith.addf %4, %6 : vector<64x64xf32>
    %c0_6 = arith.constant 0 : index
    %c0_7 = arith.constant 0 : index
    %8 = vector.load %arg4[%c0_6, %c0_7] : memref<64x64xf32, #tpu.memory_space<vmem>>, vector<64x64xf32>
    tpu.vector_store %arg4[%c0_6, %c0_7], %7 {strides = array<i32>} : memref<64x64xf32, #tpu.memory_space<vmem>>, vector<64x64xf32>,
    return
  }
  func.func @transform_0(%arg0: i32) -> (i32, i32) {
    %c0_i32 = arith.constant 0 : i32
    %c0_i32_0 = arith.constant 0 : i32
    return %arg0, %c0_i32 : i32, i32
  }
  func.func @transform_1(%arg0: i32) -> (i32, i32) {
    %c0_i32 = arith.constant 0 : i32
    %c0_i32_0 = arith.constant 0 : i32
    %c0_i32_1 = arith.constant 0 : i32
    return %c0_i32, %c0_i32_0 : i32, i32
  }
  func.func @transform_2(%arg0: i32) -> (i32, i32) {
    %c0_i32 = arith.constant 0 : i32
    %c0_i32_0 = arith.constant 0 : i32
    %c0_i32_1 = arith.constant 0 : i32
    return %c0_i32, %c0_i32_0 : i32, i32
  }
  func.func @transform_3(%arg0: i32) -> (i32, i32) {
    %c0_i32 = arith.constant 0 : i32
    %c0_i32_0 = arith.constant 0 : i32
    return %arg0, %c0_i32 : i32, i32
  }
}

module attributes {stable_mosaic.version = 11 : i64} {
  func.func @kernel(%arg0: i32, %arg1: memref<256x288xbf16, #tpu.memory_space<vmem>>, %arg2: memref<288x32xbf16, #tpu.memory_space<vmem>>, %arg3: memref<1x32xf32, #tpu.memory_space<vmem>>, %arg4: memref<256x32xf32, #tpu.memory_space<vmem>>) attributes {dimension_semantics = [#tpu.dimension_semantics<parallel>], iteration_bounds = array<i64: 2>, scalar_prefetch = 0 : i64, scratch_operands = 0 : i64, tpu.core_type = #tpu.core_type<tc>, window_params = [{transform_indices = @transform_0, window_bounds = array<i64: 256, 288>}, {pipeline_mode = #tpu.pipeline_mode<synchronous>, transform_indices = @transform_1, window_bounds = array<i64: 288, 32>}, {pipeline_mode = #tpu.pipeline_mode<synchronous>, transform_indices = @transform_2, window_bounds = array<i64: 1, 32>}, {transform_indices = @transform_3, window_bounds = array<i64: 256, 32>}]} {
    %c0 = arith.constant 0 : index
    %c0_0 = arith.constant 0 : index
    %0 = vector.load %arg1[%c0, %c0_0] : memref<256x288xbf16, #tpu.memory_space<vmem>>, vector<256x288xbf16>
    %cst = arith.constant 0.000000e+00 : bf16
    %1 = vector.broadcast %cst : bf16 to vector<256x288xbf16>
    %2 = arith.maximumf %0, %1 : vector<256x288xbf16>
    %c0_1 = arith.constant 0 : index
    %c0_2 = arith.constant 0 : index
    %3 = vector.load %arg2[%c0_1, %c0_2] : memref<288x32xbf16, #tpu.memory_space<vmem>>, vector<288x32xbf16>
    %cst_3 = arith.constant dense<0.000000e+00> : vector<256x32xf32>
    %4 = tpu.matmul %2, %3, %cst_3 {dimension_numbers = #tpu.dot_dimension_numbers<[1], [0], [0], [1], [0, 0, 1, 1], [], []>} : vector<256x288xbf16>, vector<288x32xbf16>, vector<256x32xf32> -> vector<256x32xf32>
    %c0_4 = arith.constant 0 : index
    %c0_5 = arith.constant 0 : index
    %5 = vector.load %arg3[%c0_4, %c0_5] : memref<1x32xf32, #tpu.memory_space<vmem>>, vector<1x32xf32>
    %6 = vector.broadcast %5 : vector<1x32xf32> to vector<256x32xf32>
    %7 = arith.addf %4, %6 : vector<256x32xf32>
    %c0_6 = arith.constant 0 : index
    %c0_7 = arith.constant 0 : index
    %8 = vector.load %arg4[%c0_6, %c0_7] : memref<256x32xf32, #tpu.memory_space<vmem>>, vector<256x32xf32>
    tpu.vector_store %arg4[%c0_6, %c0_7], %7 {strides = array<i32>} : memref<256x32xf32, #tpu.memory_space<vmem>>, vector<256x32xf32>,
    return
  }
  func.func @transform_0(%arg0: i32) -> (i32, i32) {
    %c0_i32 = arith.constant 0 : i32
    %c0_i32_0 = arith.constant 0 : i32
    return %arg0, %c0_i32 : i32, i32
  }
  func.func @transform_1(%arg0: i32) -> (i32, i32) {
    %c0_i32 = arith.constant 0 : i32
    %c0_i32_0 = arith.constant 0 : i32
    %c0_i32_1 = arith.constant 0 : i32
    return %c0_i32, %c0_i32_0 : i32, i32
  }
  func.func @transform_2(%arg0: i32) -> (i32, i32) {
    %c0_i32 = arith.constant 0 : i32
    %c0_i32_0 = arith.constant 0 : i32
    %c0_i32_1 = arith.constant 0 : i32
    return %c0_i32, %c0_i32_0 : i32, i32
  }
  func.func @transform_3(%arg0: i32) -> (i32, i32) {
    %c0_i32 = arith.constant 0 : i32
    %c0_i32_0 = arith.constant 0 : i32
    return %arg0, %c0_i32 : i32, i32
  }
}

module attributes {stable_mosaic.version = 11 : i64} {
  func.func @kernel(%arg0: i32, %arg1: memref<1024x144xbf16, #tpu.memory_space<vmem>>, %arg2: memref<144x12xbf16, #tpu.memory_space<vmem>>, %arg3: memref<1x12xf32, #tpu.memory_space<vmem>>, %arg4: memref<1024x12xf32, #tpu.memory_space<vmem>>) attributes {dimension_semantics = [#tpu.dimension_semantics<parallel>], iteration_bounds = array<i64: 2>, scalar_prefetch = 0 : i64, scratch_operands = 0 : i64, tpu.core_type = #tpu.core_type<tc>, window_params = [{transform_indices = @transform_0, window_bounds = array<i64: 1024, 144>}, {pipeline_mode = #tpu.pipeline_mode<synchronous>, transform_indices = @transform_1, window_bounds = array<i64: 144, 12>}, {pipeline_mode = #tpu.pipeline_mode<synchronous>, transform_indices = @transform_2, window_bounds = array<i64: 1, 12>}, {transform_indices = @transform_3, window_bounds = array<i64: 1024, 12>}]} {
    %c0 = arith.constant 0 : index
    %c0_0 = arith.constant 0 : index
    %0 = vector.load %arg1[%c0, %c0_0] : memref<1024x144xbf16, #tpu.memory_space<vmem>>, vector<1024x144xbf16>
    %cst = arith.constant 0.000000e+00 : bf16
    %1 = vector.broadcast %cst : bf16 to vector<1024x144xbf16>
    %2 = arith.maximumf %0, %1 : vector<1024x144xbf16>
    %c0_1 = arith.constant 0 : index
    %c0_2 = arith.constant 0 : index
    %3 = vector.load %arg2[%c0_1, %c0_2] : memref<144x12xbf16, #tpu.memory_space<vmem>>, vector<144x12xbf16>
    %cst_3 = arith.constant dense<0.000000e+00> : vector<1024x12xf32>
    %4 = tpu.matmul %2, %3, %cst_3 {dimension_numbers = #tpu.dot_dimension_numbers<[1], [0], [0], [1], [0, 0, 1, 1], [], []>} : vector<1024x144xbf16>, vector<144x12xbf16>, vector<1024x12xf32> -> vector<1024x12xf32>
    %c0_4 = arith.constant 0 : index
    %c0_5 = arith.constant 0 : index
    %5 = vector.load %arg3[%c0_4, %c0_5] : memref<1x12xf32, #tpu.memory_space<vmem>>, vector<1x12xf32>
    %6 = vector.broadcast %5 : vector<1x12xf32> to vector<1024x12xf32>
    %7 = arith.addf %4, %6 : vector<1024x12xf32>
    %8 = math.tanh %7 : vector<1024x12xf32>
    %c0_6 = arith.constant 0 : index
    %c0_7 = arith.constant 0 : index
    %9 = vector.load %arg4[%c0_6, %c0_7] : memref<1024x12xf32, #tpu.memory_space<vmem>>, vector<1024x12xf32>
    tpu.vector_store %arg4[%c0_6, %c0_7], %8 {strides = array<i32>} : memref<1024x12xf32, #tpu.memory_space<vmem>>, vector<1024x12xf32>,
    return
  }
  func.func @transform_0(%arg0: i32) -> (i32, i32) {
    %c0_i32 = arith.constant 0 : i32
    %c0_i32_0 = arith.constant 0 : i32
    return %arg0, %c0_i32 : i32, i32
  }
  func.func @transform_1(%arg0: i32) -> (i32, i32) {
    %c0_i32 = arith.constant 0 : i32
    %c0_i32_0 = arith.constant 0 : i32
    %c0_i32_1 = arith.constant 0 : i32
    return %c0_i32, %c0_i32_0 : i32, i32
  }
  func.func @transform_2(%arg0: i32) -> (i32, i32) {
    %c0_i32 = arith.constant 0 : i32
    %c0_i32_0 = arith.constant 0 : i32
    %c0_i32_1 = arith.constant 0 : i32
    return %c0_i32, %c0_i32_0 : i32, i32
  }
  func.func @transform_3(%arg0: i32) -> (i32, i32) {
    %c0_i32 = arith.constant 0 : i32
    %c0_i32_0 = arith.constant 0 : i32
    return %arg0, %c0_i32 : i32, i32
  }
}

</mosaic_0001>

<llo_original>
// kernel: g_unet_add_all_forward.12
$region0: #{g_unet_add_all_forward.12}
  #allocation0 [shape = 'u32[]', space=smem, size = 0x4, offset = 0x4, fixed_abs, tag = 'smem constant byte address 0x4 - core index']
  #allocation1 [shape = 'u32[72,128]{1,0:T(1,128)}', space=vmem, size = 0x9000, scoped, tag = 'internal scratch']
  %s0 = inlined_call_operand.vmem [shape: bf16[2048,112], index: 0, kind: input, shape index: {}]
  %s1 = inlined_call_operand.vmem [shape: bf16[112,8], index: 1, kind: input, shape index: {}]
  %s2 = inlined_call_operand.vmem [shape: f32[1,8], index: 2, kind: input, shape index: {}]
  %s3 = inlined_call_operand.vmem [shape: f32[2048,8], index: 3, kind: output, shape index: {}]
  %s4 = sld [smem:[#allocation0]]
  $region45: #{g_unet_add_all_forward.12} parent=0
    _
  %s6 = ssub.s32 1, %s4
  %s7 = scalar_select 0, %s6, %s4
  loop: start=0, step=1, limit=4
  $region2: #{g_unet_add_all_forward.12} parent=0 // loop_pre_header
    _
  $region3: #{g_unet_add_all_forward.12} parent=0 // loop_header
    %s9 = sphi 0, %s13
    %p10 = scmp.ge.s32.totalorder %s9, 4
    %s19 = sphi 0, %s21
    %s22 = sphi 0, %s19
    %s23 = sphi 0, %s22
    %s39 = sphi 0, %s23
    %s43 = sphi 0, %s43
    %s45 = sphi 0, %s43
    %s46 = sphi 0, %s45
    %s60 = sphi 0, %s46
    %s64 = sphi 0, %s64
    %s66 = sphi 0, %s64
    %s67 = sphi 0, %s66
    %s81 = sphi 0, %s67
    %s87 = sphi 0, %s89
    %s90 = sphi 0, %s87
    %s91 = sphi 0, %s90
    %s107 = sphi 0, %s91
  $region4: #{g_unet_add_all_forward.12} parent=0 // loop_header_branch
    %12 = sbr.rel (%p10) target = $region8
  $region5: #{g_unet_add_all_forward.12} parent=0 // loop_body
    %s14 = ssub.s32 %s9, 1
    %s15 = ssub.s32 %s9, 2
    %s16 = sadd.s32 %s9, 1
    %s17 = ssub.s32 %s9, %s16
    %p18 = scmp.eq.s32.totalorder %s17, 0
    %s20 = sadd.s32 %s19, 1
    %s21 = scalar_select %p18, %s19, %s20
    %p24 = pneg %p18
    %p25 = scmp.eq.s32.totalorder %s9, 1
    %p26 = por %p24, %p25
    %p27 = scmp.ne.s32.totalorder %s19, %s22
    %p28 = scmp.eq.s32.totalorder %s9, 0
    %p29 = por %p27, %p28
    %p30 = scmp.ne.s32.totalorder %s19, %s22
    %p31 = scmp.eq.s32.totalorder %s14, 1
    %p32 = por %p30, %p31
    %p33 = scmp.ne.s32.totalorder %s22, %s23
    %p34 = scmp.eq.s32.totalorder %s14, 0
    %p35 = por %p33, %p34
    %p36 = scmp.ne.s32.totalorder %s22, %s23
    %p37 = scmp.eq.s32.totalorder %s15, 1
    %p38 = por %p36, %p37
    %p40 = scmp.ne.s32.totalorder %s23, %s39
    %p41 = scmp.eq.s32.totalorder %s15, 0
    %p42 = por %p40, %p41
    %s44 = sadd.s32 %s43, 1
    %p47 = scmp.eq.s32.totalorder %s9, 1
    %p48 = scmp.ne.s32.totalorder %s43, %s45
    %p49 = scmp.eq.s32.totalorder %s9, 0
    %p50 = por %p48, %p49
    %p51 = scmp.ne.s32.totalorder %s43, %s45
    %p52 = scmp.eq.s32.totalorder %s14, 1
    %p53 = por %p51, %p52
    %p54 = scmp.ne.s32.totalorder %s45, %s46
    %p55 = scmp.eq.s32.totalorder %s14, 0
    %p56 = por %p54, %p55
    %p57 = scmp.ne.s32.totalorder %s45, %s46
    %p58 = scmp.eq.s32.totalorder %s15, 1
    %p59 = por %p57, %p58
    %p61 = scmp.ne.s32.totalorder %s46, %s60
    %p62 = scmp.eq.s32.totalorder %s15, 0
    %p63 = por %p61, %p62
    %s65 = sadd.s32 %s64, 1
    %p68 = scmp.eq.s32.totalorder %s9, 1
    %p69 = scmp.ne.s32.totalorder %s64, %s66
    %p70 = scmp.eq.s32.totalorder %s9, 0
    %p71 = por %p69, %p70
    %p72 = scmp.ne.s32.totalorder %s64, %s66
    %p73 = scmp.eq.s32.totalorder %s14, 1
    %p74 = por %p72, %p73
    %p75 = scmp.ne.s32.totalorder %s66, %s67
    %p76 = scmp.eq.s32.totalorder %s14, 0
    %p77 = por %p75, %p76
    %p78 = scmp.ne.s32.totalorder %s66, %s67
    %p79 = scmp.eq.s32.totalorder %s15, 1
    %p80 = por %p78, %p79
    %p82 = scmp.ne.s32.totalorder %s67, %s81
    %p83 = scmp.eq.s32.totalorder %s15, 0
    %p84 = por %p82, %p83
    %s85 = ssub.s32 %s9, %s16
    %p86 = scmp.eq.s32.totalorder %s85, 0
    %s88 = sadd.s32 %s87, 1
    %s89 = scalar_select %p86, %s87, %s88
    %p92 = pneg %p86
    %p93 = scmp.eq.s32.totalorder %s9, 1
    %p94 = por %p92, %p93
    %p95 = scmp.ne.s32.totalorder %s87, %s90
    %p96 = scmp.eq.s32.totalorder %s9, 0
    %p97 = por %p95, %p96
    %p98 = scmp.ne.s32.totalorder %s87, %s90
    %p99 = scmp.eq.s32.totalorder %s14, 1
    %p100 = por %p98, %p99
    %p101 = scmp.ne.s32.totalorder %s90, %s91
    %p102 = scmp.eq.s32.totalorder %s14, 0
    %p103 = por %p101, %p102
    %p104 = scmp.ne.s32.totalorder %s90, %s91
    %p105 = scmp.eq.s32.totalorder %s15, 1
    %p106 = por %p104, %p105
    %p108 = scmp.ne.s32.totalorder %s91, %s107
    %p109 = scmp.eq.s32.totalorder %s15, 0
    %p110 = por %p108, %p109
    %p111 = scmp.le.s32.totalorder 1, %s9
    %p112 = scmp.lt.s32.totalorder %s9, 3
    %p113 = pnand %p111, %p112
    %p114 = pneg %p113
    // Predicated region
    $region9: #{g_unet_add_all_forward.12} parent=5 // pred_check
      _
    $region10: #{g_unet_add_all_forward.12} parent=5 // pred_check_branch
      %116 = sbr.rel (%p113) target = $region12
    $region11: #{g_unet_add_all_forward.12} parent=5 // pred_region
      %s117 = ssub.s32 %s9, 1
      // Predicated region
      $region13: #{g_unet_add_all_forward.12} parent=11 // pred_check
        %p118 = pneg %p56
      $region14: #{g_unet_add_all_forward.12} parent=11 // pred_check_branch
        %120 = sbr.rel (%p118) target = $region16
      $region15: #{g_unet_add_all_forward.12} parent=11 // pred_region
        _
      $region16: #{g_unet_add_all_forward.12} parent=11 // pred_fallthru
        _
      // Predicated region
      $region17: #{g_unet_add_all_forward.12} parent=11 // pred_check
        %p121 = pneg %p77
      $region18: #{g_unet_add_all_forward.12} parent=11 // pred_check_branch
        %123 = sbr.rel (%p121) target = $region20
      $region19: #{g_unet_add_all_forward.12} parent=11 // pred_region
        _
      $region20: #{g_unet_add_all_forward.12} parent=11 // pred_fallthru
        _
    $region12: #{g_unet_add_all_forward.12} parent=5 // pred_fallthru
      _
    %p124 = scmp.lt.s32.totalorder %s9, 2
    // Predicated region
    $region21: #{g_unet_add_all_forward.12} parent=5 // pred_check
      %p125 = pneg %p124
    $region22: #{g_unet_add_all_forward.12} parent=5 // pred_check_branch
      %127 = sbr.rel (%p125) target = $region24
    $region23: #{g_unet_add_all_forward.12} parent=5 // pred_region
      // Predicated region
      $region25: #{g_unet_add_all_forward.12} parent=23 // pred_check
        %p128 = pneg %p29
      $region26: #{g_unet_add_all_forward.12} parent=23 // pred_check_branch
        %130 = sbr.rel (%p128) target = $region28
      $region27: #{g_unet_add_all_forward.12} parent=23 // pred_region
        %s131 = smul.u32 128, %s9
        %p132 = scmp.lt.s32.totalorder %s131, 255
        %s133 = scalar_select %p132, %s131, 255
        %s134 = smul.addr %s133, 4
        %s135 = scalar_lea.vmem %s0, %s134
        %s136 = smul.u32 128, %s9
      $region28: #{g_unet_add_all_forward.12} parent=23 // pred_fallthru
        _
    $region24: #{g_unet_add_all_forward.12} parent=5 // pred_fallthru
      _
    %p137 = scmp.le.s32.totalorder 1, %s9
    %p138 = scmp.lt.s32.totalorder %s9, 3
    %p139 = pnand %p137, %p138
    %p140 = pneg %p139
    // Predicated region
    $region29: #{g_unet_add_all_forward.12} parent=5 // pred_check
      _
    $region30: #{g_unet_add_all_forward.12} parent=5 // pred_check_branch
      %142 = sbr.rel (%p139) target = $region32
    $region31: #{g_unet_add_all_forward.12} parent=5 // pred_region
      %s143 = ssub.s32 %s9, 1
      %s144 = smul.u32 128, %s14
      %p145 = scmp.lt.s32.totalorder %s144, 255
      %s146 = scalar_select %p145, %s144, 255
      %s147 = smul.addr %s146, 4
      %s148 = scalar_lea.vmem %s0, %s147
      %p149 = pneg %p35
      %p150 = pneg %p32
      %p151 = pneg %p56
      %p152 = pneg %p53
      %p153 = pneg %p77
      %p154 = pneg %p74
      %p155 = pneg %p103
      %p156 = pneg %p100
      %s157 = smul.u32 128, %s14
      %p158 = scmp.lt.s32.totalorder %s157, 255
      %s159 = scalar_select %p158, %s157, 255
      %s160 = smul.addr %s159, 8
      %s161 = scalar_lea.vmem %s3, %s160
      %s162 = smul.u32 128, %s14
      %p163 = scmp.lt.s32.totalorder %s162, 255
      %s164 = scalar_select %p163, %s162, 255
      %s165 = smul.addr %s164, 4
      %s166 = scalar_lea.vmem %s0, %s165
      %s167 = smul.u32 128, %s14
      %s168 = smul.u32 128, %s14
      %p169 = scmp.lt.s32.totalorder %s168, 255
      %s170 = scalar_select %p169, %s168, 255
      %s171 = smul.addr %s170, 8
      %s172 = scalar_lea.vmem %s3, %s171
      %s173 = smul.u32 128, %s14
      %v175 = vld [vmem:[%s166] sm:$0xf]
      %v176 = vld [vmem:[%s166 + $0x4] sm:$0xf]
      %v177 = vld [vmem:[%s166 + $0x8] sm:$0xf]
      %v178 = vld [vmem:[%s166 + $0xc] sm:$0xf]
      %v179 = vld [vmem:[%s166 + $0x10] sm:$0xf]
      %v180 = vld [vmem:[%s166 + $0x14] sm:$0xf]
      %v181 = vld [vmem:[%s166 + $0x18] sm:$0xf]
      %v182 = vld [vmem:[%s166 + $0x1c] sm:$0xf]
      %v183 = vld [vmem:[%s166 + $0x20] sm:$0xf]
      %v184 = vld [vmem:[%s166 + $0x24] sm:$0xf]
      %v185 = vld [vmem:[%s166 + $0x28] sm:$0xf]
      %v186 = vld [vmem:[%s166 + $0x2c] sm:$0xf]
      %v187 = vld [vmem:[%s166 + $0x30] sm:$0xf]
      %v188 = vld [vmem:[%s166 + $0x34] sm:$0xf]
      %v189 = vld [vmem:[%s166 + $0x38] sm:$0xf]
      %v190 = vld [vmem:[%s166 + $0x3c] sm:$0xf]
      %v191 = vld [vmem:[%s166 + $0x40] sm:$0xf]
      %v192 = vld [vmem:[%s166 + $0x44] sm:$0xf]
      %v193 = vld [vmem:[%s166 + $0x48] sm:$0xf]
      %v194 = vld [vmem:[%s166 + $0x4c] sm:$0xf]
      %v195 = vld [vmem:[%s166 + $0x50] sm:$0xf]
      %v196 = vld [vmem:[%s166 + $0x54] sm:$0xf]
      %v197 = vld [vmem:[%s166 + $0x58] sm:$0xf]
      %v198 = vld [vmem:[%s166 + $0x5c] sm:$0xf]
      %v199 = vld [vmem:[%s166 + $0x60] sm:$0xf]
      %v200 = vld [vmem:[%s166 + $0x64] sm:$0xf]
      %v201 = vld [vmem:[%s166 + $0x68] sm:$0xf]
      %v202 = vld [vmem:[%s166 + $0x6c] sm:$0xf]
      %v203 = vld [vmem:[%s166 + $0x70] sm:$0xf]
      %v204 = vld [vmem:[%s166 + $0x74] sm:$0xf]
      %v205 = vld [vmem:[%s166 + $0x78] sm:$0xf]
      %v206 = vld [vmem:[%s166 + $0x7c] sm:$0xf]
      %v207 = vld [vmem:[%s166 + $0x80] sm:$0xf]
      %v208 = vld [vmem:[%s166 + $0x84] sm:$0xf]
      %v209 = vld [vmem:[%s166 + $0x88] sm:$0xf]
      %v210 = vld [vmem:[%s166 + $0x8c] sm:$0xf]
      %v211 = vld [vmem:[%s166 + $0x90] sm:$0xf]
      %v212 = vld [vmem:[%s166 + $0x94] sm:$0xf]
      %v213 = vld [vmem:[%s166 + $0x98] sm:$0xf]
      %v214 = vld [vmem:[%s166 + $0x9c] sm:$0xf]
      %v215 = vld [vmem:[%s166 + $0xa0] sm:$0xf]
      %v216 = vld [vmem:[%s166 + $0xa4] sm:$0xf]
      %v217 = vld [vmem:[%s166 + $0xa8] sm:$0xf]
      %v218 = vld [vmem:[%s166 + $0xac] sm:$0xf]
      %v219 = vld [vmem:[%s166 + $0xb0] sm:$0xf]
      %v220 = vld [vmem:[%s166 + $0xb4] sm:$0xf]
      %v221 = vld [vmem:[%s166 + $0xb8] sm:$0xf]
      %v222 = vld [vmem:[%s166 + $0xbc] sm:$0xf]
      %v223 = vld [vmem:[%s166 + $0xc0] sm:$0xf]
      %v224 = vld [vmem:[%s166 + $0xc4] sm:$0xf]
      %v225 = vld [vmem:[%s166 + $0xc8] sm:$0xf]
      %v226 = vld [vmem:[%s166 + $0xcc] sm:$0xf]
      %v227 = vld [vmem:[%s166 + $0xd0] sm:$0xf]
      %v228 = vld [vmem:[%s166 + $0xd4] sm:$0xf]
      %v229 = vld [vmem:[%s166 + $0xd8] sm:$0xf]
      %v230 = vld [vmem:[%s166 + $0xdc] sm:$0xf]
      %v231 = vld [vmem:[%s166 + $0xe0] sm:$0xf]
      %v232 = vld [vmem:[%s166 + $0xe4] sm:$0xf]
      %v233 = vld [vmem:[%s166 + $0xe8] sm:$0xf]
      %v234 = vld [vmem:[%s166 + $0xec] sm:$0xf]
      %v235 = vld [vmem:[%s166 + $0xf0] sm:$0xf]
      %v236 = vld [vmem:[%s166 + $0xf4] sm:$0xf]
      %v237 = vld [vmem:[%s166 + $0xf8] sm:$0xf]
      %v238 = vld [vmem:[%s166 + $0xfc] sm:$0xf]
      %v239 = vld [vmem:[%s166 + $0x100] sm:$0xf]
      %v240 = vld [vmem:[%s166 + $0x104] sm:$0xf]
      %v241 = vld [vmem:[%s166 + $0x108] sm:$0xf]
      %v242 = vld [vmem:[%s166 + $0x10c] sm:$0xf]
      %v243 = vld [vmem:[%s166 + $0x110] sm:$0xf]
      %v244 = vld [vmem:[%s166 + $0x114] sm:$0xf]
      %v245 = vld [vmem:[%s166 + $0x118] sm:$0xf]
      %v246 = vld [vmem:[%s166 + $0x11c] sm:$0xf]
      %v247 = vld [vmem:[%s166 + $0x120] sm:$0xf]
      %v248 = vld [vmem:[%s166 + $0x124] sm:$0xf]
      %v249 = vld [vmem:[%s166 + $0x128] sm:$0xf]
      %v250 = vld [vmem:[%s166 + $0x12c] sm:$0xf]
      %v251 = vld [vmem:[%s166 + $0x130] sm:$0xf]
      %v252 = vld [vmem:[%s166 + $0x134] sm:$0xf]
      %v253 = vld [vmem:[%s166 + $0x138] sm:$0xf]
      %v254 = vld [vmem:[%s166 + $0x13c] sm:$0xf]
      %v255 = vld [vmem:[%s166 + $0x140] sm:$0xf]
      %v256 = vld [vmem:[%s166 + $0x144] sm:$0xf]
      %v257 = vld [vmem:[%s166 + $0x148] sm:$0xf]
      %v258 = vld [vmem:[%s166 + $0x14c] sm:$0xf]
      %v259 = vld [vmem:[%s166 + $0x150] sm:$0xf]
      %v260 = vld [vmem:[%s166 + $0x154] sm:$0xf]
      %v261 = vld [vmem:[%s166 + $0x158] sm:$0xf]
      %v262 = vld [vmem:[%s166 + $0x15c] sm:$0xf]
      %v263 = vld [vmem:[%s166 + $0x160] sm:$0xf]
      %v264 = vld [vmem:[%s166 + $0x164] sm:$0xf]
      %v265 = vld [vmem:[%s166 + $0x168] sm:$0xf]
      %v266 = vld [vmem:[%s166 + $0x16c] sm:$0xf]
      %v267 = vld [vmem:[%s166 + $0x170] sm:$0xf]
      %v268 = vld [vmem:[%s166 + $0x174] sm:$0xf]
      %v269 = vld [vmem:[%s166 + $0x178] sm:$0xf]
      %v270 = vld [vmem:[%s166 + $0x17c] sm:$0xf]
      %v271 = vld [vmem:[%s166 + $0x180] sm:$0xf]
      %v272 = vld [vmem:[%s166 + $0x184] sm:$0xf]
      %v273 = vld [vmem:[%s166 + $0x188] sm:$0xf]
      %v274 = vld [vmem:[%s166 + $0x18c] sm:$0xf]
      %v275 = vld [vmem:[%s166 + $0x190] sm:$0xf]
      %v276 = vld [vmem:[%s166 + $0x194] sm:$0xf]
      %v277 = vld [vmem:[%s166 + $0x198] sm:$0xf]
      %v278 = vld [vmem:[%s166 + $0x19c] sm:$0xf]
      %v279 = vld [vmem:[%s166 + $0x1a0] sm:$0xf]
      %v280 = vld [vmem:[%s166 + $0x1a4] sm:$0xf]
      %v281 = vld [vmem:[%s166 + $0x1a8] sm:$0xf]
      %v282 = vld [vmem:[%s166 + $0x1ac] sm:$0xf]
      %v283 = vld [vmem:[%s166 + $0x1b0] sm:$0xf]
      %v284 = vld [vmem:[%s166 + $0x1b4] sm:$0xf]
      %v285 = vld [vmem:[%s166 + $0x1b8] sm:$0xf]
      %v286 = vld [vmem:[%s166 + $0x1bc] sm:$0xf]
      %v287 = vld [vmem:[%s166 + $0x1c0] sm:$0xf]
      %v288 = vld [vmem:[%s166 + $0x1c4] sm:$0xf]
      %v289 = vld [vmem:[%s166 + $0x1c8] sm:$0xf]
      %v290 = vld [vmem:[%s166 + $0x1cc] sm:$0xf]
      %v291 = vld [vmem:[%s166 + $0x1d0] sm:$0xf]
      %v292 = vld [vmem:[%s166 + $0x1d4] sm:$0xf]
      %v293 = vld [vmem:[%s166 + $0x1d8] sm:$0xf]
      %v294 = vld [vmem:[%s166 + $0x1dc] sm:$0xf]
      %v295 = vld [vmem:[%s166 + $0x1e0] sm:$0xf]
      %v296 = vld [vmem:[%s166 + $0x1e4] sm:$0xf]
      %v297 = vld [vmem:[%s166 + $0x1e8] sm:$0xf]
      %v298 = vld [vmem:[%s166 + $0x1ec] sm:$0xf]
      %v299 = vld [vmem:[%s166 + $0x1f0] sm:$0xf]
      %v300 = vld [vmem:[%s166 + $0x1f4] sm:$0xf]
      %v301 = vld [vmem:[%s166 + $0x1f8] sm:$0xf]
      %v302 = vld [vmem:[%s166 + $0x1fc] sm:$0xf]
      %v303 = vld [vmem:[%s1] sm:$0xf]
      %v304 = vld [vmem:[%s1 + $0x4] sm:$0xf]
      %v305 = vld [vmem:[%s1 + $0x8] sm:$0xf]
      %v306 = vld [vmem:[%s1 + $0xc] sm:$0xf]
      %v307 = vld [vmem:[%s1 + $0x10] sm:$0xf]
      %v308 = vld [vmem:[%s1 + $0x14] sm:$0xf]
      %v309 = vld [vmem:[%s1 + $0x18] sm:$0xf]
      %v310 = vld [vmem:[%s1 + $0x1c] sm:$0xf]
      %v311 = vld [vmem:[%s1 + $0x20] sm:$0xf]
      %v312 = vld [vmem:[%s1 + $0x24] sm:$0xf]
      %v313 = vld [vmem:[%s1 + $0x28] sm:$0xf]
      %v314 = vld [vmem:[%s1 + $0x2c] sm:$0xf]
      %v315 = vld [vmem:[%s1 + $0x30] sm:$0xf]
      %v316 = vld [vmem:[%s1 + $0x34] sm:$0xf]
      %v317 = vld [vmem:[%s2] sm:$0x1]
      %v319 = vperm.slane %v317, 0
      %v449 = vunpack.c.l.b16 %v175
      %v450 = vunpack.c.l.b16 %v176
      %v451 = vunpack.c.l.b16 %v177
      %v452 = vunpack.c.l.b16 %v178
      %v453 = vunpack.c.l.b16 %v179
      %v454 = vunpack.c.l.b16 %v180
      %v455 = vunpack.c.l.b16 %v181
      %v456 = vunpack.c.l.b16 %v182
      %v457 = vunpack.c.l.b16 %v183
      %v458 = vunpack.c.l.b16 %v184
      %v459 = vunpack.c.l.b16 %v185
      %v460 = vunpack.c.l.b16 %v186
      %v461 = vunpack.c.l.b16 %v187
      %v462 = vunpack.c.l.b16 %v188
      %v463 = vunpack.c.l.b16 %v189
      %v464 = vunpack.c.l.b16 %v190
      %v465 = vunpack.c.l.b16 %v191
      %v466 = vunpack.c.l.b16 %v192
      %v467 = vunpack.c.l.b16 %v193
      %v468 = vunpack.c.l.b16 %v194
      %v469 = vunpack.c.l.b16 %v195
      %v470 = vunpack.c.l.b16 %v196
      %v471 = vunpack.c.l.b16 %v197
      %v472 = vunpack.c.l.b16 %v198
      %v473 = vunpack.c.l.b16 %v199
      %v474 = vunpack.c.l.b16 %v200
      %v475 = vunpack.c.l.b16 %v201
      %v476 = vunpack.c.l.b16 %v202
      %v477 = vunpack.c.l.b16 %v203
      %v478 = vunpack.c.l.b16 %v204
      %v479 = vunpack.c.l.b16 %v205
      %v480 = vunpack.c.l.b16 %v206
      %v481 = vunpack.c.l.b16 %v207
      %v482 = vunpack.c.l.b16 %v208
      %v483 = vunpack.c.l.b16 %v209
      %v484 = vunpack.c.l.b16 %v210
      %v485 = vunpack.c.l.b16 %v211
      %v486 = vunpack.c.l.b16 %v212
      %v487 = vunpack.c.l.b16 %v213
      %v488 = vunpack.c.l.b16 %v214
      %v489 = vunpack.c.l.b16 %v215
      %v490 = vunpack.c.l.b16 %v216
      %v491 = vunpack.c.l.b16 %v217
      %v492 = vunpack.c.l.b16 %v218
      %v493 = vunpack.c.l.b16 %v219
      %v494 = vunpack.c.l.b16 %v220
      %v495 = vunpack.c.l.b16 %v221
      %v496 = vunpack.c.l.b16 %v222
      %v497 = vunpack.c.l.b16 %v223
      %v498 = vunpack.c.l.b16 %v224
      %v499 = vunpack.c.l.b16 %v225
      %v500 = vunpack.c.l.b16 %v226
      %v501 = vunpack.c.l.b16 %v227
      %v502 = vunpack.c.l.b16 %v228
      %v503 = vunpack.c.l.b16 %v229
      %v504 = vunpack.c.l.b16 %v230
      %v505 = vunpack.c.l.b16 %v231
      %v506 = vunpack.c.l.b16 %v232
      %v507 = vunpack.c.l.b16 %v233
      %v508 = vunpack.c.l.b16 %v234
      %v509 = vunpack.c.l.b16 %v235
      %v510 = vunpack.c.l.b16 %v236
      %v511 = vunpack.c.l.b16 %v237
      %v512 = vunpack.c.l.b16 %v238
      %v513 = vunpack.c.l.b16 %v239
      %v514 = vunpack.c.l.b16 %v240
      %v515 = vunpack.c.l.b16 %v241
      %v516 = vunpack.c.l.b16 %v242
      %v517 = vunpack.c.l.b16 %v243
      %v518 = vunpack.c.l.b16 %v244
      %v519 = vunpack.c.l.b16 %v245
      %v520 = vunpack.c.l.b16 %v246
      %v521 = vunpack.c.l.b16 %v247
      %v522 = vunpack.c.l.b16 %v248
      %v523 = vunpack.c.l.b16 %v249
      %v524 = vunpack.c.l.b16 %v250
      %v525 = vunpack.c.l.b16 %v251
      %v526 = vunpack.c.l.b16 %v252
      %v527 = vunpack.c.l.b16 %v253
      %v528 = vunpack.c.l.b16 %v254
      %v529 = vunpack.c.l.b16 %v255
      %v530 = vunpack.c.l.b16 %v256
      %v531 = vunpack.c.l.b16 %v257
      %v532 = vunpack.c.l.b16 %v258
      %v533 = vunpack.c.l.b16 %v259
      %v534 = vunpack.c.l.b16 %v260
      %v535 = vunpack.c.l.b16 %v261
      %v536 = vunpack.c.l.b16 %v262
      %v537 = vunpack.c.l.b16 %v263
      %v538 = vunpack.c.l.b16 %v264
      %v539 = vunpack.c.l.b16 %v265
      %v540 = vunpack.c.l.b16 %v266
      %v541 = vunpack.c.l.b16 %v267
      %v542 = vunpack.c.l.b16 %v268
      %v543 = vunpack.c.l.b16 %v269
      %v544 = vunpack.c.l.b16 %v270
      %v545 = vunpack.c.l.b16 %v271
      %v546 = vunpack.c.l.b16 %v272
      %v547 = vunpack.c.l.b16 %v273
      %v548 = vunpack.c.l.b16 %v274
      %v549 = vunpack.c.l.b16 %v275
      %v550 = vunpack.c.l.b16 %v276
      %v551 = vunpack.c.l.b16 %v277
      %v552 = vunpack.c.l.b16 %v278
      %v553 = vunpack.c.l.b16 %v279
      %v554 = vunpack.c.l.b16 %v280
      %v555 = vunpack.c.l.b16 %v281
      %v556 = vunpack.c.l.b16 %v282
      %v557 = vunpack.c.l.b16 %v283
      %v558 = vunpack.c.l.b16 %v284
      %v559 = vunpack.c.l.b16 %v285
      %v560 = vunpack.c.l.b16 %v286
      %v561 = vunpack.c.l.b16 %v287
      %v562 = vunpack.c.l.b16 %v288
      %v563 = vunpack.c.l.b16 %v289
      %v564 = vunpack.c.l.b16 %v290
      %v565 = vunpack.c.l.b16 %v291
      %v566 = vunpack.c.l.b16 %v292
      %v567 = vunpack.c.l.b16 %v293
      %v568 = vunpack.c.l.b16 %v294
      %v569 = vunpack.c.l.b16 %v295
      %v570 = vunpack.c.l.b16 %v296
      %v571 = vunpack.c.l.b16 %v297
      %v572 = vunpack.c.l.b16 %v298
      %v573 = vunpack.c.l.b16 %v299
      %v574 = vunpack.c.l.b16 %v300
      %v575 = vunpack.c.l.b16 %v301
      %v576 = vunpack.c.l.b16 %v302
      %v577 = vpack.c.b16 %v450, %v449
      %v578 = vpack.c.b16 %v452, %v451
      %v579 = vpack.c.b16 %v454, %v453
      %v580 = vpack.c.b16 %v456, %v455
      %v581 = vpack.c.b16 %v458, %v457
      %v582 = vpack.c.b16 %v460, %v459
      %v583 = vpack.c.b16 %v462, %v461
      %v584 = vpack.c.b16 %v464, %v463
      %v585 = vpack.c.b16 %v466, %v465
      %v586 = vpack.c.b16 %v468, %v467
      %v587 = vpack.c.b16 %v470, %v469
      %v588 = vpack.c.b16 %v472, %v471
      %v589 = vpack.c.b16 %v474, %v473
      %v590 = vpack.c.b16 %v476, %v475
      %v591 = vpack.c.b16 %v478, %v477
      %v592 = vpack.c.b16 %v480, %v479
      %v593 = vpack.c.b16 %v482, %v481
      %v594 = vpack.c.b16 %v484, %v483
      %v595 = vpack.c.b16 %v486, %v485
      %v596 = vpack.c.b16 %v488, %v487
      %v597 = vpack.c.b16 %v490, %v489
      %v598 = vpack.c.b16 %v492, %v491
      %v599 = vpack.c.b16 %v494, %v493
      %v600 = vpack.c.b16 %v496, %v495
      %v601 = vpack.c.b16 %v498, %v497
      %v602 = vpack.c.b16 %v500, %v499
      %v603 = vpack.c.b16 %v502, %v501
      %v604 = vpack.c.b16 %v504, %v503
      %v605 = vpack.c.b16 %v506, %v505
      %v606 = vpack.c.b16 %v508, %v507
      %v607 = vpack.c.b16 %v510, %v509
      %v608 = vpack.c.b16 %v512, %v511
      %v609 = vpack.c.b16 %v514, %v513
      %v610 = vpack.c.b16 %v516, %v515
      %v611 = vpack.c.b16 %v518, %v517
      %v612 = vpack.c.b16 %v520, %v519
      %v613 = vpack.c.b16 %v522, %v521
      %v614 = vpack.c.b16 %v524, %v523
      %v615 = vpack.c.b16 %v526, %v525
      %v616 = vpack.c.b16 %v528, %v527
      %v617 = vpack.c.b16 %v530, %v529
      %v618 = vpack.c.b16 %v532, %v531
      %v619 = vpack.c.b16 %v534, %v533
      %v620 = vpack.c.b16 %v536, %v535
      %v621 = vpack.c.b16 %v538, %v537
      %v622 = vpack.c.b16 %v540, %v539
      %v623 = vpack.c.b16 %v542, %v541
      %v624 = vpack.c.b16 %v544, %v543
      %v625 = vpack.c.b16 %v546, %v545
      %v626 = vpack.c.b16 %v548, %v547
      %v627 = vpack.c.b16 %v550, %v549
      %v628 = vpack.c.b16 %v552, %v551
      %v629 = vpack.c.b16 %v554, %v553
      %v630 = vpack.c.b16 %v556, %v555
      %v631 = vpack.c.b16 %v558, %v557
      %v632 = vpack.c.b16 %v560, %v559
      %v633 = vpack.c.b16 %v562, %v561
      %v634 = vpack.c.b16 %v564, %v563
      %v635 = vpack.c.b16 %v566, %v565
      %v636 = vpack.c.b16 %v568, %v567
      %v637 = vpack.c.b16 %v570, %v569
      %v638 = vpack.c.b16 %v572, %v571
      %v639 = vpack.c.b16 %v574, %v573
      %v640 = vpack.c.b16 %v576, %v575
      %v655 = vunpack.c.l.b16 %v303
      %v656 = vunpack.c.l.b16 %v304
      %v657 = vunpack.c.l.b16 %v305
      %v658 = vunpack.c.l.b16 %v306
      %v659 = vunpack.c.l.b16 %v307
      %v660 = vunpack.c.l.b16 %v308
      %v661 = vunpack.c.l.b16 %v309
      %v662 = vunpack.c.l.b16 %v310
      %v663 = vunpack.c.l.b16 %v311
      %v664 = vunpack.c.l.b16 %v312
      %v665 = vunpack.c.l.b16 %v313
      %v666 = vunpack.c.l.b16 %v314
      %v667 = vunpack.c.l.b16 %v315
      %v668 = vunpack.c.l.b16 %v316
      %v669 = vpack.c.b16 %v656, %v655
      %v670 = vpack.c.b16 %v658, %v657
      %v671 = vpack.c.b16 %v660, %v659
      %v672 = vpack.c.b16 %v662, %v661
      %v673 = vpack.c.b16 %v664, %v663
      %v674 = vpack.c.b16 %v666, %v665
      %v675 = vpack.c.b16 %v668, %v667
      %vm683 = vcmask 916480
      %v685 = vsel %vm683, %v577, 0
      %v688 = vsel %vm683, %v578, 0
      %v691 = vsel %vm683, %v579, 0
      %v694 = vsel %vm683, %v580, 0
      %v697 = vsel %vm683, %v581, 0
      %v700 = vsel %vm683, %v582, 0
      %v703 = vsel %vm683, %v583, 0
      %v706 = vsel %vm683, %v584, 0
      %v709 = vsel %vm683, %v585, 0
      %v712 = vsel %vm683, %v586, 0
      %v715 = vsel %vm683, %v587, 0
      %v718 = vsel %vm683, %v588, 0
      %v721 = vsel %vm683, %v589, 0
      %v724 = vsel %vm683, %v590, 0
      %v727 = vsel %vm683, %v591, 0
      %v730 = vsel %vm683, %v592, 0
      %v733 = vsel %vm683, %v593, 0
      %v736 = vsel %vm683, %v594, 0
      %v739 = vsel %vm683, %v595, 0
      %v742 = vsel %vm683, %v596, 0
      %v745 = vsel %vm683, %v597, 0
      %v748 = vsel %vm683, %v598, 0
      %v751 = vsel %vm683, %v599, 0
      %v754 = vsel %vm683, %v600, 0
      %v757 = vsel %vm683, %v601, 0
      %v760 = vsel %vm683, %v602, 0
      %v763 = vsel %vm683, %v603, 0
      %v766 = vsel %vm683, %v604, 0
      %v769 = vsel %vm683, %v605, 0
      %v772 = vsel %vm683, %v606, 0
      %v775 = vsel %vm683, %v607, 0
      %v778 = vsel %vm683, %v608, 0
      %v781 = vsel %vm683, %v609, 0
      %v784 = vsel %vm683, %v610, 0
      %v787 = vsel %vm683, %v611, 0
      %v790 = vsel %vm683, %v612, 0
      %v793 = vsel %vm683, %v613, 0
      %v796 = vsel %vm683, %v614, 0
      %v799 = vsel %vm683, %v615, 0
      %v802 = vsel %vm683, %v616, 0
      %v805 = vsel %vm683, %v617, 0
      %v808 = vsel %vm683, %v618, 0
      %v811 = vsel %vm683, %v619, 0
      %v814 = vsel %vm683, %v620, 0
      %v817 = vsel %vm683, %v621, 0
      %v820 = vsel %vm683, %v622, 0
      %v823 = vsel %vm683, %v623, 0
      %v826 = vsel %vm683, %v624, 0
      %v829 = vsel %vm683, %v625, 0
      %v832 = vsel %vm683, %v626, 0
      %v835 = vsel %vm683, %v627, 0
      %v838 = vsel %vm683, %v628, 0
      %v841 = vsel %vm683, %v629, 0
      %v844 = vsel %vm683, %v630, 0
      %v847 = vsel %vm683, %v631, 0
      %v850 = vsel %vm683, %v632, 0
      %v853 = vsel %vm683, %v633, 0
      %v856 = vsel %vm683, %v634, 0
      %v859 = vsel %vm683, %v635, 0
      %v862 = vsel %vm683, %v636, 0
      %v865 = vsel %vm683, %v637, 0
      %v868 = vsel %vm683, %v638, 0
      %v871 = vsel %vm683, %v639, 0
      %v874 = vsel %vm683, %v640, 0
      %876 = vmatpush.bf16.msra.mxu0 0
      %877 = vmatpush.bf16.msra.mxu0 %v675
      %878 = vmatpush.bf16.msra.mxu0 %v674
      %879 = vmatpush.bf16.msra.mxu0 %v673
      %880 = vmatpush.bf16.msra.mxu0 %v672
      %881 = vmatpush.bf16.msra.mxu0 %v671
      %882 = vmatpush.bf16.msra.mxu0 %v670
      %883 = vmatpush.bf16.msra.mxu0 %v669
      %884 = vmatmul.bf16.gmra.mxu0 %v685
      %v885 = vpop.f32.mrf.mxu0
      %v886 = vadd.f32 %v319, %v885
      %v887 = vpop.f32.mrf.mxu0
      %v888 = vadd.f32 %v319, %v887
      %889 = vmatmul.bf16.gmra.mxu0 %v688
      %v890 = vpop.f32.mrf.mxu0
      %v891 = vadd.f32 %v319, %v890
      %v892 = vpop.f32.mrf.mxu0
      %v893 = vadd.f32 %v319, %v892
      %894 = vmatmul.bf16.gmra.mxu0 %v691
      %v895 = vpop.f32.mrf.mxu0
      %v896 = vadd.f32 %v319, %v895
      %v897 = vpop.f32.mrf.mxu0
      %v898 = vadd.f32 %v319, %v897
      %899 = vmatmul.bf16.gmra.mxu0 %v694
      %v900 = vpop.f32.mrf.mxu0
      %v901 = vadd.f32 %v319, %v900
      %v902 = vpop.f32.mrf.mxu0
      %v903 = vadd.f32 %v319, %v902
      %904 = vmatmul.bf16.gmra.mxu0 %v697
      %v905 = vpop.f32.mrf.mxu0
      %v906 = vadd.f32 %v319, %v905
      %v907 = vpop.f32.mrf.mxu0
      %v908 = vadd.f32 %v319, %v907
      %909 = vmatmul.bf16.gmra.mxu0 %v700
      %v910 = vpop.f32.mrf.mxu0
      %v911 = vadd.f32 %v319, %v910
      %v912 = vpop.f32.mrf.mxu0
      %v913 = vadd.f32 %v319, %v912
      %914 = vmatmul.bf16.gmra.mxu0 %v703
      %v915 = vpop.f32.mrf.mxu0
      %v916 = vadd.f32 %v319, %v915
      %v917 = vpop.f32.mrf.mxu0
      %v918 = vadd.f32 %v319, %v917
      %919 = vmatmul.bf16.gmra.mxu0 %v706
      %v920 = vpop.f32.mrf.mxu0
      %v921 = vadd.f32 %v319, %v920
      %v922 = vpop.f32.mrf.mxu0
      %v923 = vadd.f32 %v319, %v922
      %924 = vmatmul.bf16.gmra.mxu0 %v709
      %v925 = vpop.f32.mrf.mxu0
      %v926 = vadd.f32 %v319, %v925
      %v927 = vpop.f32.mrf.mxu0
      %v928 = vadd.f32 %v319, %v927
      %929 = vmatmul.bf16.gmra.mxu0 %v712
      %v930 = vpop.f32.mrf.mxu0
      %v931 = vadd.f32 %v319, %v930
      %v932 = vpop.f32.mrf.mxu0
      %v933 = vadd.f32 %v319, %v932
      %934 = vmatmul.bf16.gmra.mxu0 %v715
      %v935 = vpop.f32.mrf.mxu0
      %v936 = vadd.f32 %v319, %v935
      %v937 = vpop.f32.mrf.mxu0
      %v938 = vadd.f32 %v319, %v937
      %939 = vmatmul.bf16.gmra.mxu0 %v718
      %v940 = vpop.f32.mrf.mxu0
      %v941 = vadd.f32 %v319, %v940
      %v942 = vpop.f32.mrf.mxu0
      %v943 = vadd.f32 %v319, %v942
      %944 = vmatmul.bf16.gmra.mxu0 %v721
      %v945 = vpop.f32.mrf.mxu0
      %v946 = vadd.f32 %v319, %v945
      %v947 = vpop.f32.mrf.mxu0
      %v948 = vadd.f32 %v319, %v947
      %949 = vmatmul.bf16.gmra.mxu0 %v724
      %v950 = vpop.f32.mrf.mxu0
      %v951 = vadd.f32 %v319, %v950
      %v952 = vpop.f32.mrf.mxu0
      %v953 = vadd.f32 %v319, %v952
      %954 = vmatmul.bf16.gmra.mxu0 %v727
      %v955 = vpop.f32.mrf.mxu0
      %v956 = vadd.f32 %v319, %v955
      %v957 = vpop.f32.mrf.mxu0
      %v958 = vadd.f32 %v319, %v957
      %959 = vmatmul.bf16.gmra.mxu0 %v730
      %v960 = vpop.f32.mrf.mxu0
      %v961 = vadd.f32 %v319, %v960
      %v962 = vpop.f32.mrf.mxu0
      %v963 = vadd.f32 %v319, %v962
      %964 = vmatmul.bf16.gmra.mxu0 %v733
      %v965 = vpop.f32.mrf.mxu0
      %v966 = vadd.f32 %v319, %v965
      %v967 = vpop.f32.mrf.mxu0
      %v968 = vadd.f32 %v319, %v967
      %969 = vmatmul.bf16.gmra.mxu0 %v736
      %v970 = vpop.f32.mrf.mxu0
      %v971 = vadd.f32 %v319, %v970
      %v972 = vpop.f32.mrf.mxu0
      %v973 = vadd.f32 %v319, %v972
      %974 = vmatmul.bf16.gmra.mxu0 %v739
      %v975 = vpop.f32.mrf.mxu0
      %v976 = vadd.f32 %v319, %v975
      %v977 = vpop.f32.mrf.mxu0
      %v978 = vadd.f32 %v319, %v977
      %979 = vmatmul.bf16.gmra.mxu0 %v742
      %v980 = vpop.f32.mrf.mxu0
      %v981 = vadd.f32 %v319, %v980
      %v982 = vpop.f32.mrf.mxu0
      %v983 = vadd.f32 %v319, %v982
      %984 = vmatmul.bf16.gmra.mxu0 %v745
      %v985 = vpop.f32.mrf.mxu0
      %v986 = vadd.f32 %v319, %v985
      %v987 = vpop.f32.mrf.mxu0
      %v988 = vadd.f32 %v319, %v987
      %989 = vmatmul.bf16.gmra.mxu0 %v748
      %v990 = vpop.f32.mrf.mxu0
      %v991 = vadd.f32 %v319, %v990
      %v992 = vpop.f32.mrf.mxu0
      %v993 = vadd.f32 %v319, %v992
      %994 = vmatmul.bf16.gmra.mxu0 %v751
      %v995 = vpop.f32.mrf.mxu0
      %v996 = vadd.f32 %v319, %v995
      %v997 = vpop.f32.mrf.mxu0
      %v998 = vadd.f32 %v319, %v997
      %999 = vmatmul.bf16.gmra.mxu0 %v754
      %v1000 = vpop.f32.mrf.mxu0
      %v1001 = vadd.f32 %v319, %v1000
      %v1002 = vpop.f32.mrf.mxu0
      %v1003 = vadd.f32 %v319, %v1002
      %1004 = vmatmul.bf16.gmra.mxu0 %v757
      %v1005 = vpop.f32.mrf.mxu0
      %v1006 = vadd.f32 %v319, %v1005
      %v1007 = vpop.f32.mrf.mxu0
      %v1008 = vadd.f32 %v319, %v1007
      %1009 = vmatmul.bf16.gmra.mxu0 %v760
      %v1010 = vpop.f32.mrf.mxu0
      %v1011 = vadd.f32 %v319, %v1010
      %v1012 = vpop.f32.mrf.mxu0
      %v1013 = vadd.f32 %v319, %v1012
      %1014 = vmatmul.bf16.gmra.mxu0 %v763
      %v1015 = vpop.f32.mrf.mxu0
      %v1016 = vadd.f32 %v319, %v1015
      %v1017 = vpop.f32.mrf.mxu0
      %v1018 = vadd.f32 %v319, %v1017
      %1019 = vmatmul.bf16.gmra.mxu0 %v766
      %v1020 = vpop.f32.mrf.mxu0
      %v1021 = vadd.f32 %v319, %v1020
      %v1022 = vpop.f32.mrf.mxu0
      %v1023 = vadd.f32 %v319, %v1022
      %1024 = vmatmul.bf16.gmra.mxu0 %v769
      %v1025 = vpop.f32.mrf.mxu0
      %v1026 = vadd.f32 %v319, %v1025
      %v1027 = vpop.f32.mrf.mxu0
      %v1028 = vadd.f32 %v319, %v1027
      %1029 = vmatmul.bf16.gmra.mxu0 %v772
      %v1030 = vpop.f32.mrf.mxu0
      %v1031 = vadd.f32 %v319, %v1030
      %v1032 = vpop.f32.mrf.mxu0
      %v1033 = vadd.f32 %v319, %v1032
      %1034 = vmatmul.bf16.gmra.mxu0 %v775
      %v1035 = vpop.f32.mrf.mxu0
      %v1036 = vadd.f32 %v319, %v1035
      %v1037 = vpop.f32.mrf.mxu0
      %v1038 = vadd.f32 %v319, %v1037
      %1039 = vmatmul.bf16.gmra.mxu0 %v778
      %v1040 = vpop.f32.mrf.mxu0
      %v1041 = vadd.f32 %v319, %v1040
      %v1042 = vpop.f32.mrf.mxu0
      %v1043 = vadd.f32 %v319, %v1042
      %1044 = vmatmul.bf16.gmra.mxu0 %v781
      %v1045 = vpop.f32.mrf.mxu0
      %v1046 = vadd.f32 %v319, %v1045
      %v1047 = vpop.f32.mrf.mxu0
      %v1048 = vadd.f32 %v319, %v1047
      %1049 = vmatmul.bf16.gmra.mxu0 %v784
      %v1050 = vpop.f32.mrf.mxu0
      %v1051 = vadd.f32 %v319, %v1050
      %v1052 = vpop.f32.mrf.mxu0
      %v1053 = vadd.f32 %v319, %v1052
      %1054 = vmatmul.bf16.gmra.mxu0 %v787
      %v1055 = vpop.f32.mrf.mxu0
      %v1056 = vadd.f32 %v319, %v1055
      %v1057 = vpop.f32.mrf.mxu0
      %v1058 = vadd.f32 %v319, %v1057
      %1059 = vmatmul.bf16.gmra.mxu0 %v790
      %v1060 = vpop.f32.mrf.mxu0
      %v1061 = vadd.f32 %v319, %v1060
      %v1062 = vpop.f32.mrf.mxu0
      %v1063 = vadd.f32 %v319, %v1062
      %1064 = vmatmul.bf16.gmra.mxu0 %v793
      %v1065 = vpop.f32.mrf.mxu0
      %v1066 = vadd.f32 %v319, %v1065
      %v1067 = vpop.f32.mrf.mxu0
      %v1068 = vadd.f32 %v319, %v1067
      %1069 = vmatmul.bf16.gmra.mxu0 %v796
      %v1070 = vpop.f32.mrf.mxu0
      %v1071 = vadd.f32 %v319, %v1070
      %v1072 = vpop.f32.mrf.mxu0
      %v1073 = vadd.f32 %v319, %v1072
      %1074 = vmatmul.bf16.gmra.mxu0 %v799
      %v1075 = vpop.f32.mrf.mxu0
      %v1076 = vadd.f32 %v319, %v1075
      %v1077 = vpop.f32.mrf.mxu0
      %v1078 = vadd.f32 %v319, %v1077
      %1079 = vmatmul.bf16.gmra.mxu0 %v802
      %v1080 = vpop.f32.mrf.mxu0
      %v1081 = vadd.f32 %v319, %v1080
      %v1082 = vpop.f32.mrf.mxu0
      %v1083 = vadd.f32 %v319, %v1082
      %1084 = vmatmul.bf16.gmra.mxu0 %v805
      %v1085 = vpop.f32.mrf.mxu0
      %v1086 = vadd.f32 %v319, %v1085
      %v1087 = vpop.f32.mrf.mxu0
      %v1088 = vadd.f32 %v319, %v1087
      %1089 = vmatmul.bf16.gmra.mxu0 %v808
      %v1090 = vpop.f32.mrf.mxu0
      %v1091 = vadd.f32 %v319, %v1090
      %v1092 = vpop.f32.mrf.mxu0
      %v1093 = vadd.f32 %v319, %v1092
      %1094 = vmatmul.bf16.gmra.mxu0 %v811
      %v1095 = vpop.f32.mrf.mxu0
      %v1096 = vadd.f32 %v319, %v1095
      %v1097 = vpop.f32.mrf.mxu0
      %v1098 = vadd.f32 %v319, %v1097
      %1099 = vmatmul.bf16.gmra.mxu0 %v814
      %v1100 = vpop.f32.mrf.mxu0
      %v1101 = vadd.f32 %v319, %v1100
      %v1102 = vpop.f32.mrf.mxu0
      %v1103 = vadd.f32 %v319, %v1102
      %1104 = vmatmul.bf16.gmra.mxu0 %v817
      %v1105 = vpop.f32.mrf.mxu0
      %v1106 = vadd.f32 %v319, %v1105
      %v1107 = vpop.f32.mrf.mxu0
      %v1108 = vadd.f32 %v319, %v1107
      %1109 = vmatmul.bf16.gmra.mxu0 %v820
      %v1110 = vpop.f32.mrf.mxu0
      %v1111 = vadd.f32 %v319, %v1110
      %v1112 = vpop.f32.mrf.mxu0
      %v1113 = vadd.f32 %v319, %v1112
      %1114 = vmatmul.bf16.gmra.mxu0 %v823
      %v1115 = vpop.f32.mrf.mxu0
      %v1116 = vadd.f32 %v319, %v1115
      %v1117 = vpop.f32.mrf.mxu0
      %v1118 = vadd.f32 %v319, %v1117
      %1119 = vmatmul.bf16.gmra.mxu0 %v826
      %v1120 = vpop.f32.mrf.mxu0
      %v1121 = vadd.f32 %v319, %v1120
      %v1122 = vpop.f32.mrf.mxu0
      %v1123 = vadd.f32 %v319, %v1122
      %1124 = vmatmul.bf16.gmra.mxu0 %v829
      %v1125 = vpop.f32.mrf.mxu0
      %v1126 = vadd.f32 %v319, %v1125
      %v1127 = vpop.f32.mrf.mxu0
      %v1128 = vadd.f32 %v319, %v1127
      %1129 = vmatmul.bf16.gmra.mxu0 %v832
      %v1130 = vpop.f32.mrf.mxu0
      %v1131 = vadd.f32 %v319, %v1130
      %v1132 = vpop.f32.mrf.mxu0
      %v1133 = vadd.f32 %v319, %v1132
      %1134 = vmatmul.bf16.gmra.mxu0 %v835
      %v1135 = vpop.f32.mrf.mxu0
      %v1136 = vadd.f32 %v319, %v1135
      %v1137 = vpop.f32.mrf.mxu0
      %v1138 = vadd.f32 %v319, %v1137
      %1139 = vmatmul.bf16.gmra.mxu0 %v838
      %v1140 = vpop.f32.mrf.mxu0
      %v1141 = vadd.f32 %v319, %v1140
      %v1142 = vpop.f32.mrf.mxu0
      %v1143 = vadd.f32 %v319, %v1142
      %1144 = vmatmul.bf16.gmra.mxu0 %v841
      %v1145 = vpop.f32.mrf.mxu0
      %v1146 = vadd.f32 %v319, %v1145
      %v1147 = vpop.f32.mrf.mxu0
      %v1148 = vadd.f32 %v319, %v1147
      %1149 = vmatmul.bf16.gmra.mxu0 %v844
      %v1150 = vpop.f32.mrf.mxu0
      %v1151 = vadd.f32 %v319, %v1150
      %v1152 = vpop.f32.mrf.mxu0
      %v1153 = vadd.f32 %v319, %v1152
      %1154 = vmatmul.bf16.gmra.mxu0 %v847
      %v1155 = vpop.f32.mrf.mxu0
      %v1156 = vadd.f32 %v319, %v1155
      %v1157 = vpop.f32.mrf.mxu0
      %v1158 = vadd.f32 %v319, %v1157
      %1159 = vmatmul.bf16.gmra.mxu0 %v850
      %v1160 = vpop.f32.mrf.mxu0
      %v1161 = vadd.f32 %v319, %v1160
      %v1162 = vpop.f32.mrf.mxu0
      %v1163 = vadd.f32 %v319, %v1162
      %1164 = vmatmul.bf16.gmra.mxu0 %v853
      %v1165 = vpop.f32.mrf.mxu0
      %v1166 = vadd.f32 %v319, %v1165
      %v1167 = vpop.f32.mrf.mxu0
      %v1168 = vadd.f32 %v319, %v1167
      %1169 = vmatmul.bf16.gmra.mxu0 %v856
      %v1170 = vpop.f32.mrf.mxu0
      %v1171 = vadd.f32 %v319, %v1170
      %v1172 = vpop.f32.mrf.mxu0
      %v1173 = vadd.f32 %v319, %v1172
      %1174 = vmatmul.bf16.gmra.mxu0 %v859
      %v1175 = vpop.f32.mrf.mxu0
      %v1176 = vadd.f32 %v319, %v1175
      %v1177 = vpop.f32.mrf.mxu0
      %v1178 = vadd.f32 %v319, %v1177
      %1179 = vmatmul.bf16.gmra.mxu0 %v862
      %v1180 = vpop.f32.mrf.mxu0
      %v1181 = vadd.f32 %v319, %v1180
      %v1182 = vpop.f32.mrf.mxu0
      %v1183 = vadd.f32 %v319, %v1182
      %1184 = vmatmul.bf16.gmra.mxu0 %v865
      %v1185 = vpop.f32.mrf.mxu0
      %v1186 = vadd.f32 %v319, %v1185
      %v1187 = vpop.f32.mrf.mxu0
      %v1188 = vadd.f32 %v319, %v1187
      %1189 = vmatmul.bf16.gmra.mxu0 %v868
      %v1190 = vpop.f32.mrf.mxu0
      %v1191 = vadd.f32 %v319, %v1190
      %v1192 = vpop.f32.mrf.mxu0
      %v1193 = vadd.f32 %v319, %v1192
      %1194 = vmatmul.bf16.gmra.mxu0 %v871
      %v1195 = vpop.f32.mrf.mxu0
      %v1196 = vadd.f32 %v319, %v1195
      %v1197 = vpop.f32.mrf.mxu0
      %v1198 = vadd.f32 %v319, %v1197
      %1199 = vmatmul.bf16.gmra.mxu0 %v874
      %v1200 = vpop.f32.mrf.mxu0
      %v1201 = vadd.f32 %v319, %v1200
      %v1202 = vpop.f32.mrf.mxu0
      %v1203 = vadd.f32 %v319, %v1202
      %1204 = vdwg.mxu0
      %vm1205 = vcmask 64512
      %1206 = vst.msk [vmem:[%s172] sm:$0xff] %vm1205, %v886
      %1207 = vst.msk [vmem:[%s172 + $0x8] sm:$0xff] %vm1205, %v888
      %1208 = vst.msk [vmem:[%s172 + $0x10] sm:$0xff] %vm1205, %v891
      %1209 = vst.msk [vmem:[%s172 + $0x18] sm:$0xff] %vm1205, %v893
      %1210 = vst.msk [vmem:[%s172 + $0x20] sm:$0xff] %vm1205, %v896
      %1211 = vst.msk [vmem:[%s172 + $0x28] sm:$0xff] %vm1205, %v898
      %1212 = vst.msk [vmem:[%s172 + $0x30] sm:$0xff] %vm1205, %v901
      %1213 = vst.msk [vmem:[%s172 + $0x38] sm:$0xff] %vm1205, %v903
      %1214 = vst.msk [vmem:[%s172 + $0x40] sm:$0xff] %vm1205, %v906
      %1215 = vst.msk [vmem:[%s172 + $0x48] sm:$0xff] %vm1205, %v908
      %1216 = vst.msk [vmem:[%s172 + $0x50] sm:$0xff] %vm1205, %v911
      %1217 = vst.msk [vmem:[%s172 + $0x58] sm:$0xff] %vm1205, %v913
      %1218 = vst.msk [vmem:[%s172 + $0x60] sm:$0xff] %vm1205, %v916
      %1219 = vst.msk [vmem:[%s172 + $0x68] sm:$0xff] %vm1205, %v918
      %1220 = vst.msk [vmem:[%s172 + $0x70] sm:$0xff] %vm1205, %v921
      %1221 = vst.msk [vmem:[%s172 + $0x78] sm:$0xff] %vm1205, %v923
      %1222 = vst.msk [vmem:[%s172 + $0x80] sm:$0xff] %vm1205, %v926
      %1223 = vst.msk [vmem:[%s172 + $0x88] sm:$0xff] %vm1205, %v928
      %1224 = vst.msk [vmem:[%s172 + $0x90] sm:$0xff] %vm1205, %v931
      %1225 = vst.msk [vmem:[%s172 + $0x98] sm:$0xff] %vm1205, %v933
      %1226 = vst.msk [vmem:[%s172 + $0xa0] sm:$0xff] %vm1205, %v936
      %1227 = vst.msk [vmem:[%s172 + $0xa8] sm:$0xff] %vm1205, %v938
      %1228 = vst.msk [vmem:[%s172 + $0xb0] sm:$0xff] %vm1205, %v941
      %1229 = vst.msk [vmem:[%s172 + $0xb8] sm:$0xff] %vm1205, %v943
      %1230 = vst.msk [vmem:[%s172 + $0xc0] sm:$0xff] %vm1205, %v946
      %1231 = vst.msk [vmem:[%s172 + $0xc8] sm:$0xff] %vm1205, %v948
      %1232 = vst.msk [vmem:[%s172 + $0xd0] sm:$0xff] %vm1205, %v951
      %1233 = vst.msk [vmem:[%s172 + $0xd8] sm:$0xff] %vm1205, %v953
      %1234 = vst.msk [vmem:[%s172 + $0xe0] sm:$0xff] %vm1205, %v956
      %1235 = vst.msk [vmem:[%s172 + $0xe8] sm:$0xff] %vm1205, %v958
      %1236 = vst.msk [vmem:[%s172 + $0xf0] sm:$0xff] %vm1205, %v961
      %1237 = vst.msk [vmem:[%s172 + $0xf8] sm:$0xff] %vm1205, %v963
      %1238 = vst.msk [vmem:[%s172 + $0x100] sm:$0xff] %vm1205, %v966
      %1239 = vst.msk [vmem:[%s172 + $0x108] sm:$0xff] %vm1205, %v968
      %1240 = vst.msk [vmem:[%s172 + $0x110] sm:$0xff] %vm1205, %v971
      %1241 = vst.msk [vmem:[%s172 + $0x118] sm:$0xff] %vm1205, %v973
      %1242 = vst.msk [vmem:[%s172 + $0x120] sm:$0xff] %vm1205, %v976
      %1243 = vst.msk [vmem:[%s172 + $0x128] sm:$0xff] %vm1205, %v978
      %1244 = vst.msk [vmem:[%s172 + $0x130] sm:$0xff] %vm1205, %v981
      %1245 = vst.msk [vmem:[%s172 + $0x138] sm:$0xff] %vm1205, %v983
      %1246 = vst.msk [vmem:[%s172 + $0x140] sm:$0xff] %vm1205, %v986
      %1247 = vst.msk [vmem:[%s172 + $0x148] sm:$0xff] %vm1205, %v988
      %1248 = vst.msk [vmem:[%s172 + $0x150] sm:$0xff] %vm1205, %v991
      %1249 = vst.msk [vmem:[%s172 + $0x158] sm:$0xff] %vm1205, %v993
      %1250 = vst.msk [vmem:[%s172 + $0x160] sm:$0xff] %vm1205, %v996
      %1251 = vst.msk [vmem:[%s172 + $0x168] sm:$0xff] %vm1205, %v998
      %1252 = vst.msk [vmem:[%s172 + $0x170] sm:$0xff] %vm1205, %v1001
      %1253 = vst.msk [vmem:[%s172 + $0x178] sm:$0xff] %vm1205, %v1003
      %1254 = vst.msk [vmem:[%s172 + $0x180] sm:$0xff] %vm1205, %v1006
      %1255 = vst.msk [vmem:[%s172 + $0x188] sm:$0xff] %vm1205, %v1008
      %1256 = vst.msk [vmem:[%s172 + $0x190] sm:$0xff] %vm1205, %v1011
      %1257 = vst.msk [vmem:[%s172 + $0x198] sm:$0xff] %vm1205, %v1013
      %1258 = vst.msk [vmem:[%s172 + $0x1a0] sm:$0xff] %vm1205, %v1016
      %1259 = vst.msk [vmem:[%s172 + $0x1a8] sm:$0xff] %vm1205, %v1018
      %1260 = vst.msk [vmem:[%s172 + $0x1b0] sm:$0xff] %vm1205, %v1021
      %1261 = vst.msk [vmem:[%s172 + $0x1b8] sm:$0xff] %vm1205, %v1023
      %1262 = vst.msk [vmem:[%s172 + $0x1c0] sm:$0xff] %vm1205, %v1026
      %1263 = vst.msk [vmem:[%s172 + $0x1c8] sm:$0xff] %vm1205, %v1028
      %1264 = vst.msk [vmem:[%s172 + $0x1d0] sm:$0xff] %vm1205, %v1031
      %1265 = vst.msk [vmem:[%s172 + $0x1d8] sm:$0xff] %vm1205, %v1033
      %1266 = vst.msk [vmem:[%s172 + $0x1e0] sm:$0xff] %vm1205, %v1036
      %1267 = vst.msk [vmem:[%s172 + $0x1e8] sm:$0xff] %vm1205, %v1038
      %1268 = vst.msk [vmem:[%s172 + $0x1f0] sm:$0xff] %vm1205, %v1041
      %1269 = vst.msk [vmem:[%s172 + $0x1f8] sm:$0xff] %vm1205, %v1043
      %1270 = vst.msk [vmem:[%s172 + $0x200] sm:$0xff] %vm1205, %v1046
      %1271 = vst.msk [vmem:[%s172 + $0x208] sm:$0xff] %vm1205, %v1048
      %1272 = vst.msk [vmem:[%s172 + $0x210] sm:$0xff] %vm1205, %v1051
      %1273 = vst.msk [vmem:[%s172 + $0x218] sm:$0xff] %vm1205, %v1053
      %1274 = vst.msk [vmem:[%s172 + $0x220] sm:$0xff] %vm1205, %v1056
      %1275 = vst.msk [vmem:[%s172 + $0x228] sm:$0xff] %vm1205, %v1058
      %1276 = vst.msk [vmem:[%s172 + $0x230] sm:$0xff] %vm1205, %v1061
      %1277 = vst.msk [vmem:[%s172 + $0x238] sm:$0xff] %vm1205, %v1063
      %1278 = vst.msk [vmem:[%s172 + $0x240] sm:$0xff] %vm1205, %v1066
      %1279 = vst.msk [vmem:[%s172 + $0x248] sm:$0xff] %vm1205, %v1068
      %1280 = vst.msk [vmem:[%s172 + $0x250] sm:$0xff] %vm1205, %v1071
      %1281 = vst.msk [vmem:[%s172 + $0x258] sm:$0xff] %vm1205, %v1073
      %1282 = vst.msk [vmem:[%s172 + $0x260] sm:$0xff] %vm1205, %v1076
      %1283 = vst.msk [vmem:[%s172 + $0x268] sm:$0xff] %vm1205, %v1078
      %1284 = vst.msk [vmem:[%s172 + $0x270] sm:$0xff] %vm1205, %v1081
      %1285 = vst.msk [vmem:[%s172 + $0x278] sm:$0xff] %vm1205, %v1083
      %1286 = vst.msk [vmem:[%s172 + $0x280] sm:$0xff] %vm1205, %v1086
      %1287 = vst.msk [vmem:[%s172 + $0x288] sm:$0xff] %vm1205, %v1088
      %1288 = vst.msk [vmem:[%s172 + $0x290] sm:$0xff] %vm1205, %v1091
      %1289 = vst.msk [vmem:[%s172 + $0x298] sm:$0xff] %vm1205, %v1093
      %1290 = vst.msk [vmem:[%s172 + $0x2a0] sm:$0xff] %vm1205, %v1096
      %1291 = vst.msk [vmem:[%s172 + $0x2a8] sm:$0xff] %vm1205, %v1098
      %1292 = vst.msk [vmem:[%s172 + $0x2b0] sm:$0xff] %vm1205, %v1101
      %1293 = vst.msk [vmem:[%s172 + $0x2b8] sm:$0xff] %vm1205, %v1103
      %1294 = vst.msk [vmem:[%s172 + $0x2c0] sm:$0xff] %vm1205, %v1106
      %1295 = vst.msk [vmem:[%s172 + $0x2c8] sm:$0xff] %vm1205, %v1108
      %1296 = vst.msk [vmem:[%s172 + $0x2d0] sm:$0xff] %vm1205, %v1111
      %1297 = vst.msk [vmem:[%s172 + $0x2d8] sm:$0xff] %vm1205, %v1113
      %1298 = vst.msk [vmem:[%s172 + $0x2e0] sm:$0xff] %vm1205, %v1116
      %1299 = vst.msk [vmem:[%s172 + $0x2e8] sm:$0xff] %vm1205, %v1118
      %1300 = vst.msk [vmem:[%s172 + $0x2f0] sm:$0xff] %vm1205, %v1121
      %1301 = vst.msk [vmem:[%s172 + $0x2f8] sm:$0xff] %vm1205, %v1123
      %1302 = vst.msk [vmem:[%s172 + $0x300] sm:$0xff] %vm1205, %v1126
      %1303 = vst.msk [vmem:[%s172 + $0x308] sm:$0xff] %vm1205, %v1128
      %1304 = vst.msk [vmem:[%s172 + $0x310] sm:$0xff] %vm1205, %v1131
      %1305 = vst.msk [vmem:[%s172 + $0x318] sm:$0xff] %vm1205, %v1133
      %1306 = vst.msk [vmem:[%s172 + $0x320] sm:$0xff] %vm1205, %v1136
      %1307 = vst.msk [vmem:[%s172 + $0x328] sm:$0xff] %vm1205, %v1138
      %1308 = vst.msk [vmem:[%s172 + $0x330] sm:$0xff] %vm1205, %v1141
      %1309 = vst.msk [vmem:[%s172 + $0x338] sm:$0xff] %vm1205, %v1143
      %1310 = vst.msk [vmem:[%s172 + $0x340] sm:$0xff] %vm1205, %v1146
      %1311 = vst.msk [vmem:[%s172 + $0x348] sm:$0xff] %vm1205, %v1148
      %1312 = vst.msk [vmem:[%s172 + $0x350] sm:$0xff] %vm1205, %v1151
      %1313 = vst.msk [vmem:[%s172 + $0x358] sm:$0xff] %vm1205, %v1153
      %1314 = vst.msk [vmem:[%s172 + $0x360] sm:$0xff] %vm1205, %v1156
      %1315 = vst.msk [vmem:[%s172 + $0x368] sm:$0xff] %vm1205, %v1158
      %1316 = vst.msk [vmem:[%s172 + $0x370] sm:$0xff] %vm1205, %v1161
      %1317 = vst.msk [vmem:[%s172 + $0x378] sm:$0xff] %vm1205, %v1163
      %1318 = vst.msk [vmem:[%s172 + $0x380] sm:$0xff] %vm1205, %v1166
      %1319 = vst.msk [vmem:[%s172 + $0x388] sm:$0xff] %vm1205, %v1168
      %1320 = vst.msk [vmem:[%s172 + $0x390] sm:$0xff] %vm1205, %v1171
      %1321 = vst.msk [vmem:[%s172 + $0x398] sm:$0xff] %vm1205, %v1173
      %1322 = vst.msk [vmem:[%s172 + $0x3a0] sm:$0xff] %vm1205, %v1176
      %1323 = vst.msk [vmem:[%s172 + $0x3a8] sm:$0xff] %vm1205, %v1178
      %1324 = vst.msk [vmem:[%s172 + $0x3b0] sm:$0xff] %vm1205, %v1181
      %1325 = vst.msk [vmem:[%s172 + $0x3b8] sm:$0xff] %vm1205, %v1183
      %1326 = vst.msk [vmem:[%s172 + $0x3c0] sm:$0xff] %vm1205, %v1186
      %1327 = vst.msk [vmem:[%s172 + $0x3c8] sm:$0xff] %vm1205, %v1188
      %1328 = vst.msk [vmem:[%s172 + $0x3d0] sm:$0xff] %vm1205, %v1191
      %1329 = vst.msk [vmem:[%s172 + $0x3d8] sm:$0xff] %vm1205, %v1193
      %1330 = vst.msk [vmem:[%s172 + $0x3e0] sm:$0xff] %vm1205, %v1196
      %1331 = vst.msk [vmem:[%s172 + $0x3e8] sm:$0xff] %vm1205, %v1198
      %1332 = vst.msk [vmem:[%s172 + $0x3f0] sm:$0xff] %vm1205, %v1201
      %1333 = vst.msk [vmem:[%s172 + $0x3f8] sm:$0xff] %vm1205, %v1203
      %s1334 = smul.u32 128, %s14
      %p1335 = scmp.lt.s32.totalorder %s1334, 255
      %s1336 = scalar_select %p1335, %s1334, 255
      %s1337 = smul.addr %s1336, 8
      %s1338 = scalar_lea.vmem %s3, %s1337
      // Predicated region
      $region33: #{g_unet_add_all_forward.12} parent=31 // pred_check
        %p1339 = pneg %p100
      $region34: #{g_unet_add_all_forward.12} parent=31 // pred_check_branch
        %1341 = sbr.rel (%p1339) target = $region36
      $region35: #{g_unet_add_all_forward.12} parent=31 // pred_region
        %s1342 = smul.u32 128, %s14
      $region36: #{g_unet_add_all_forward.12} parent=31 // pred_fallthru
        _
    $region32: #{g_unet_add_all_forward.12} parent=5 // pred_fallthru
      _
    %p1343 = scmp.le.s32.totalorder 2, %s9
    // Predicated region
    $region37: #{g_unet_add_all_forward.12} parent=5 // pred_check
      %p1344 = pneg %p1343
    $region38: #{g_unet_add_all_forward.12} parent=5 // pred_check_branch
      %1346 = sbr.rel (%p1344) target = $region40
    $region39: #{g_unet_add_all_forward.12} parent=5 // pred_region
      %s1347 = ssub.s32 %s9, 2
      // Predicated region
      $region41: #{g_unet_add_all_forward.12} parent=39 // pred_check
        %p1348 = pneg %p106
      $region42: #{g_unet_add_all_forward.12} parent=39 // pred_check_branch
        %1350 = sbr.rel (%p1348) target = $region44
      $region43: #{g_unet_add_all_forward.12} parent=39 // pred_region
        %s1351 = smul.u32 128, %s15
        %p1352 = scmp.lt.s32.totalorder %s1351, 255
        %s1353 = scalar_select %p1352, %s1351, 255
        %s1354 = smul.addr %s1353, 8
        %s1355 = scalar_lea.vmem %s3, %s1354
      $region44: #{g_unet_add_all_forward.12} parent=39 // pred_fallthru
        _
    $region40: #{g_unet_add_all_forward.12} parent=5 // pred_fallthru
      _
  $region6: #{g_unet_add_all_forward.12} parent=0 // loop_footer
    %s13 = sadd.s32 1, %s9
  $region7: #{g_unet_add_all_forward.12} parent=0 // loop_footer_branch
    %8 = sbr.rel target = $region3
  $region8: #{g_unet_add_all_forward.12} parent=0 // loop_exit
    _

// kernel: g_unet_add_all_forward.13
$region0: #{g_unet_add_all_forward.13}
  #allocation0 [shape = 'u32[]', space=smem, size = 0x4, offset = 0x4, fixed_abs, tag = 'smem constant byte address 0x4 - core index']
  #allocation1 [shape = 'u32[72,128]{1,0:T(1,128)}', space=vmem, size = 0x9000, scoped, tag = 'internal scratch']
  %s0 = inlined_call_operand.vmem [shape: bf16[512,192], index: 0, kind: input, shape index: {}]
  %s1 = inlined_call_operand.vmem [shape: bf16[192,16], index: 1, kind: input, shape index: {}]
  %s2 = inlined_call_operand.vmem [shape: f32[1,16], index: 2, kind: input, shape index: {}]
  %s3 = inlined_call_operand.vmem [shape: f32[512,16], index: 3, kind: output, shape index: {}]
  %s4 = sld [smem:[#allocation0]]
  $region45: #{g_unet_add_all_forward.13} parent=0
    _
  %s6 = ssub.s32 1, %s4
  %s7 = scalar_select 0, %s6, %s4
  loop: start=0, step=1, limit=4
  $region2: #{g_unet_add_all_forward.13} parent=0 // loop_pre_header
    _
  $region3: #{g_unet_add_all_forward.13} parent=0 // loop_header
    %s9 = sphi 0, %s13
    %p10 = scmp.ge.s32.totalorder %s9, 4
    %s19 = sphi 0, %s21
    %s22 = sphi 0, %s19
    %s23 = sphi 0, %s22
    %s39 = sphi 0, %s23
    %s43 = sphi 0, %s43
    %s45 = sphi 0, %s43
    %s46 = sphi 0, %s45
    %s60 = sphi 0, %s46
    %s64 = sphi 0, %s64
    %s66 = sphi 0, %s64
    %s67 = sphi 0, %s66
    %s81 = sphi 0, %s67
    %s87 = sphi 0, %s89
    %s90 = sphi 0, %s87
    %s91 = sphi 0, %s90
    %s107 = sphi 0, %s91
  $region4: #{g_unet_add_all_forward.13} parent=0 // loop_header_branch
    %12 = sbr.rel (%p10) target = $region8
  $region5: #{g_unet_add_all_forward.13} parent=0 // loop_body
    %s14 = ssub.s32 %s9, 1
    %s15 = ssub.s32 %s9, 2
    %s16 = sadd.s32 %s9, 1
    %s17 = ssub.s32 %s9, %s16
    %p18 = scmp.eq.s32.totalorder %s17, 0
    %s20 = sadd.s32 %s19, 1
    %s21 = scalar_select %p18, %s19, %s20
    %p24 = pneg %p18
    %p25 = scmp.eq.s32.totalorder %s9, 1
    %p26 = por %p24, %p25
    %p27 = scmp.ne.s32.totalorder %s19, %s22
    %p28 = scmp.eq.s32.totalorder %s9, 0
    %p29 = por %p27, %p28
    %p30 = scmp.ne.s32.totalorder %s19, %s22
    %p31 = scmp.eq.s32.totalorder %s14, 1
    %p32 = por %p30, %p31
    %p33 = scmp.ne.s32.totalorder %s22, %s23
    %p34 = scmp.eq.s32.totalorder %s14, 0
    %p35 = por %p33, %p34
    %p36 = scmp.ne.s32.totalorder %s22, %s23
    %p37 = scmp.eq.s32.totalorder %s15, 1
    %p38 = por %p36, %p37
    %p40 = scmp.ne.s32.totalorder %s23, %s39
    %p41 = scmp.eq.s32.totalorder %s15, 0
    %p42 = por %p40, %p41
    %s44 = sadd.s32 %s43, 1
    %p47 = scmp.eq.s32.totalorder %s9, 1
    %p48 = scmp.ne.s32.totalorder %s43, %s45
    %p49 = scmp.eq.s32.totalorder %s9, 0
    %p50 = por %p48, %p49
    %p51 = scmp.ne.s32.totalorder %s43, %s45
    %p52 = scmp.eq.s32.totalorder %s14, 1
    %p53 = por %p51, %p52
    %p54 = scmp.ne.s32.totalorder %s45, %s46
    %p55 = scmp.eq.s32.totalorder %s14, 0
    %p56 = por %p54, %p55
    %p57 = scmp.ne.s32.totalorder %s45, %s46
    %p58 = scmp.eq.s32.totalorder %s15, 1
    %p59 = por %p57, %p58
    %p61 = scmp.ne.s32.totalorder %s46, %s60
    %p62 = scmp.eq.s32.totalorder %s15, 0
    %p63 = por %p61, %p62
    %s65 = sadd.s32 %s64, 1
    %p68 = scmp.eq.s32.totalorder %s9, 1
    %p69 = scmp.ne.s32.totalorder %s64, %s66
    %p70 = scmp.eq.s32.totalorder %s9, 0
    %p71 = por %p69, %p70
    %p72 = scmp.ne.s32.totalorder %s64, %s66
    %p73 = scmp.eq.s32.totalorder %s14, 1
    %p74 = por %p72, %p73
    %p75 = scmp.ne.s32.totalorder %s66, %s67
    %p76 = scmp.eq.s32.totalorder %s14, 0
    %p77 = por %p75, %p76
    %p78 = scmp.ne.s32.totalorder %s66, %s67
    %p79 = scmp.eq.s32.totalorder %s15, 1
    %p80 = por %p78, %p79
    %p82 = scmp.ne.s32.totalorder %s67, %s81
    %p83 = scmp.eq.s32.totalorder %s15, 0
    %p84 = por %p82, %p83
    %s85 = ssub.s32 %s9, %s16
    %p86 = scmp.eq.s32.totalorder %s85, 0
    %s88 = sadd.s32 %s87, 1
    %s89 = scalar_select %p86, %s87, %s88
    %p92 = pneg %p86
    %p93 = scmp.eq.s32.totalorder %s9, 1
    %p94 = por %p92, %p93
    %p95 = scmp.ne.s32.totalorder %s87, %s90
    %p96 = scmp.eq.s32.totalorder %s9, 0
    %p97 = por %p95, %p96
    %p98 = scmp.ne.s32.totalorder %s87, %s90
    %p99 = scmp.eq.s32.totalorder %s14, 1
    %p100 = por %p98, %p99
    %p101 = scmp.ne.s32.totalorder %s90, %s91
    %p102 = scmp.eq.s32.totalorder %s14, 0
    %p103 = por %p101, %p102
    %p104 = scmp.ne.s32.totalorder %s90, %s91
    %p105 = scmp.eq.s32.totalorder %s15, 1
    %p106 = por %p104, %p105
    %p108 = scmp.ne.s32.totalorder %s91, %s107
    %p109 = scmp.eq.s32.totalorder %s15, 0
    %p110 = por %p108, %p109
    %p111 = scmp.le.s32.totalorder 1, %s9
    %p112 = scmp.lt.s32.totalorder %s9, 3
    %p113 = pnand %p111, %p112
    %p114 = pneg %p113
    // Predicated region
    $region9: #{g_unet_add_all_forward.13} parent=5 // pred_check
      _
    $region10: #{g_unet_add_all_forward.13} parent=5 // pred_check_branch
      %116 = sbr.rel (%p113) target = $region12
    $region11: #{g_unet_add_all_forward.13} parent=5 // pred_region
      %s117 = ssub.s32 %s9, 1
      // Predicated region
      $region13: #{g_unet_add_all_forward.13} parent=11 // pred_check
        %p118 = pneg %p56
      $region14: #{g_unet_add_all_forward.13} parent=11 // pred_check_branch
        %120 = sbr.rel (%p118) target = $region16
      $region15: #{g_unet_add_all_forward.13} parent=11 // pred_region
        _
      $region16: #{g_unet_add_all_forward.13} parent=11 // pred_fallthru
        _
      // Predicated region
      $region17: #{g_unet_add_all_forward.13} parent=11 // pred_check
        %p121 = pneg %p77
      $region18: #{g_unet_add_all_forward.13} parent=11 // pred_check_branch
        %123 = sbr.rel (%p121) target = $region20
      $region19: #{g_unet_add_all_forward.13} parent=11 // pred_region
        _
      $region20: #{g_unet_add_all_forward.13} parent=11 // pred_fallthru
        _
    $region12: #{g_unet_add_all_forward.13} parent=5 // pred_fallthru
      _
    %p124 = scmp.lt.s32.totalorder %s9, 2
    // Predicated region
    $region21: #{g_unet_add_all_forward.13} parent=5 // pred_check
      %p125 = pneg %p124
    $region22: #{g_unet_add_all_forward.13} parent=5 // pred_check_branch
      %127 = sbr.rel (%p125) target = $region24
    $region23: #{g_unet_add_all_forward.13} parent=5 // pred_region
      // Predicated region
      $region25: #{g_unet_add_all_forward.13} parent=23 // pred_check
        %p128 = pneg %p29
      $region26: #{g_unet_add_all_forward.13} parent=23 // pred_check_branch
        %130 = sbr.rel (%p128) target = $region28
      $region27: #{g_unet_add_all_forward.13} parent=23 // pred_region
        %s131 = smul.u32 32, %s9
        %p132 = scmp.lt.s32.totalorder %s131, 63
        %s133 = scalar_select %p132, %s131, 63
        %s134 = smul.addr %s133, 2
        %s135 = smul.addr %s134, 4
        %s136 = scalar_lea.vmem %s0, %s135
        %s137 = smul.u32 32, %s9
      $region28: #{g_unet_add_all_forward.13} parent=23 // pred_fallthru
        _
    $region24: #{g_unet_add_all_forward.13} parent=5 // pred_fallthru
      _
    %p138 = scmp.le.s32.totalorder 1, %s9
    %p139 = scmp.lt.s32.totalorder %s9, 3
    %p140 = pnand %p138, %p139
    %p141 = pneg %p140
    // Predicated region
    $region29: #{g_unet_add_all_forward.13} parent=5 // pred_check
      _
    $region30: #{g_unet_add_all_forward.13} parent=5 // pred_check_branch
      %143 = sbr.rel (%p140) target = $region32
    $region31: #{g_unet_add_all_forward.13} parent=5 // pred_region
      %s144 = ssub.s32 %s9, 1
      %s145 = smul.u32 32, %s14
      %p146 = scmp.lt.s32.totalorder %s145, 63
      %s147 = scalar_select %p146, %s145, 63
      %s148 = smul.addr %s147, 2
      %s149 = smul.addr %s148, 4
      %s150 = scalar_lea.vmem %s0, %s149
      %p151 = pneg %p35
      %p152 = pneg %p32
      %p153 = pneg %p56
      %p154 = pneg %p53
      %p155 = pneg %p77
      %p156 = pneg %p74
      %p157 = pneg %p103
      %p158 = pneg %p100
      %s159 = smul.u32 32, %s14
      %p160 = scmp.lt.s32.totalorder %s159, 63
      %s161 = scalar_select %p160, %s159, 63
      %s162 = smul.addr %s161, 8
      %s163 = scalar_lea.vmem %s3, %s162
      %s164 = smul.u32 32, %s14
      %p165 = scmp.lt.s32.totalorder %s164, 63
      %s166 = scalar_select %p165, %s164, 63
      %s167 = smul.addr %s166, 2
      %s168 = smul.addr %s167, 4
      %s169 = scalar_lea.vmem %s0, %s168
      %s170 = smul.u32 32, %s14
      %s171 = smul.u32 32, %s14
      %p172 = scmp.lt.s32.totalorder %s171, 63
      %s173 = scalar_select %p172, %s171, 63
      %s174 = smul.addr %s173, 8
      %s175 = scalar_lea.vmem %s3, %s174
      %s176 = smul.u32 32, %s14
      %v178 = vld [vmem:[%s169] sm:$0xff]
      %v179 = vld [vmem:[%s169 + $0x8] sm:$0xff]
      %v180 = vld [vmem:[%s169 + $0x10] sm:$0xff]
      %v181 = vld [vmem:[%s169 + $0x18] sm:$0xff]
      %v182 = vld [vmem:[%s169 + $0x20] sm:$0xff]
      %v183 = vld [vmem:[%s169 + $0x28] sm:$0xff]
      %v184 = vld [vmem:[%s169 + $0x30] sm:$0xff]
      %v185 = vld [vmem:[%s169 + $0x38] sm:$0xff]
      %v186 = vld [vmem:[%s169 + $0x40] sm:$0xff]
      %v187 = vld [vmem:[%s169 + $0x48] sm:$0xff]
      %v188 = vld [vmem:[%s169 + $0x50] sm:$0xff]
      %v189 = vld [vmem:[%s169 + $0x58] sm:$0xff]
      %v190 = vld [vmem:[%s169 + $0x60] sm:$0xff]
      %v191 = vld [vmem:[%s169 + $0x68] sm:$0xff]
      %v192 = vld [vmem:[%s169 + $0x70] sm:$0xff]
      %v193 = vld [vmem:[%s169 + $0x78] sm:$0xff]
      %v194 = vld [vmem:[%s169 + $0x80] sm:$0xff]
      %v195 = vld [vmem:[%s169 + $0x88] sm:$0xff]
      %v196 = vld [vmem:[%s169 + $0x90] sm:$0xff]
      %v197 = vld [vmem:[%s169 + $0x98] sm:$0xff]
      %v198 = vld [vmem:[%s169 + $0xa0] sm:$0xff]
      %v199 = vld [vmem:[%s169 + $0xa8] sm:$0xff]
      %v200 = vld [vmem:[%s169 + $0xb0] sm:$0xff]
      %v201 = vld [vmem:[%s169 + $0xb8] sm:$0xff]
      %v202 = vld [vmem:[%s169 + $0xc0] sm:$0xff]
      %v203 = vld [vmem:[%s169 + $0xc8] sm:$0xff]
      %v204 = vld [vmem:[%s169 + $0xd0] sm:$0xff]
      %v205 = vld [vmem:[%s169 + $0xd8] sm:$0xff]
      %v206 = vld [vmem:[%s169 + $0xe0] sm:$0xff]
      %v207 = vld [vmem:[%s169 + $0xe8] sm:$0xff]
      %v208 = vld [vmem:[%s169 + $0xf0] sm:$0xff]
      %v209 = vld [vmem:[%s169 + $0xf8] sm:$0xff]
      %v210 = vunpack.c.l.bf16 %v178
      %v211 = vunpack.c.h.bf16 %v178
      %v212 = vunpack.c.l.bf16 %v179
      %v213 = vunpack.c.h.bf16 %v179
      %v214 = vunpack.c.l.bf16 %v180
      %v215 = vunpack.c.h.bf16 %v180
      %v216 = vunpack.c.l.bf16 %v181
      %v217 = vunpack.c.h.bf16 %v181
      %v218 = vunpack.c.l.bf16 %v182
      %v219 = vunpack.c.h.bf16 %v182
      %v220 = vunpack.c.l.bf16 %v183
      %v221 = vunpack.c.h.bf16 %v183
      %v222 = vunpack.c.l.bf16 %v184
      %v223 = vunpack.c.h.bf16 %v184
      %v224 = vunpack.c.l.bf16 %v185
      %v225 = vunpack.c.h.bf16 %v185
      %v226 = vunpack.c.l.bf16 %v186
      %v227 = vunpack.c.h.bf16 %v186
      %v228 = vunpack.c.l.bf16 %v187
      %v229 = vunpack.c.h.bf16 %v187
      %v230 = vunpack.c.l.bf16 %v188
      %v231 = vunpack.c.h.bf16 %v188
      %v232 = vunpack.c.l.bf16 %v189
      %v233 = vunpack.c.h.bf16 %v189
      %v234 = vunpack.c.l.bf16 %v190
      %v235 = vunpack.c.h.bf16 %v190
      %v236 = vunpack.c.l.bf16 %v191
      %v237 = vunpack.c.h.bf16 %v191
      %v238 = vunpack.c.l.bf16 %v192
      %v239 = vunpack.c.h.bf16 %v192
      %v240 = vunpack.c.l.bf16 %v193
      %v241 = vunpack.c.h.bf16 %v193
      %v242 = vunpack.c.l.bf16 %v194
      %v243 = vunpack.c.h.bf16 %v194
      %v244 = vunpack.c.l.bf16 %v195
      %v245 = vunpack.c.h.bf16 %v195
      %v246 = vunpack.c.l.bf16 %v196
      %v247 = vunpack.c.h.bf16 %v196
      %v248 = vunpack.c.l.bf16 %v197
      %v249 = vunpack.c.h.bf16 %v197
      %v250 = vunpack.c.l.bf16 %v198
      %v251 = vunpack.c.h.bf16 %v198
      %v252 = vunpack.c.l.bf16 %v199
      %v253 = vunpack.c.h.bf16 %v199
      %v254 = vunpack.c.l.bf16 %v200
      %v255 = vunpack.c.h.bf16 %v200
      %v256 = vunpack.c.l.bf16 %v201
      %v257 = vunpack.c.h.bf16 %v201
      %v258 = vunpack.c.l.bf16 %v202
      %v259 = vunpack.c.h.bf16 %v202
      %v260 = vunpack.c.l.bf16 %v203
      %v261 = vunpack.c.h.bf16 %v203
      %v262 = vunpack.c.l.bf16 %v204
      %v263 = vunpack.c.h.bf16 %v204
      %v264 = vunpack.c.l.bf16 %v205
      %v265 = vunpack.c.h.bf16 %v205
      %v266 = vunpack.c.l.bf16 %v206
      %v267 = vunpack.c.h.bf16 %v206
      %v268 = vunpack.c.l.bf16 %v207
      %v269 = vunpack.c.h.bf16 %v207
      %v270 = vunpack.c.l.bf16 %v208
      %v271 = vunpack.c.h.bf16 %v208
      %v272 = vunpack.c.l.bf16 %v209
      %v273 = vunpack.c.h.bf16 %v209
      %vm274 = vcmp.gt.f32.partialorder %v210, 0.0
      %vm275 = vcmp.gt.f32.partialorder %v211, 0.0
      %vm276 = vcmp.gt.f32.partialorder %v212, 0.0
      %vm277 = vcmp.gt.f32.partialorder %v213, 0.0
      %vm278 = vcmp.gt.f32.partialorder %v214, 0.0
      %vm279 = vcmp.gt.f32.partialorder %v215, 0.0
      %vm280 = vcmp.gt.f32.partialorder %v216, 0.0
      %vm281 = vcmp.gt.f32.partialorder %v217, 0.0
      %vm282 = vcmp.gt.f32.partialorder %v218, 0.0
      %vm283 = vcmp.gt.f32.partialorder %v219, 0.0
      %vm284 = vcmp.gt.f32.partialorder %v220, 0.0
      %vm285 = vcmp.gt.f32.partialorder %v221, 0.0
      %vm286 = vcmp.gt.f32.partialorder %v222, 0.0
      %vm287 = vcmp.gt.f32.partialorder %v223, 0.0
      %vm288 = vcmp.gt.f32.partialorder %v224, 0.0
      %vm289 = vcmp.gt.f32.partialorder %v225, 0.0
      %vm290 = vcmp.gt.f32.partialorder %v226, 0.0
      %vm291 = vcmp.gt.f32.partialorder %v227, 0.0
      %vm292 = vcmp.gt.f32.partialorder %v228, 0.0
      %vm293 = vcmp.gt.f32.partialorder %v229, 0.0
      %vm294 = vcmp.gt.f32.partialorder %v230, 0.0
      %vm295 = vcmp.gt.f32.partialorder %v231, 0.0
      %vm296 = vcmp.gt.f32.partialorder %v232, 0.0
      %vm297 = vcmp.gt.f32.partialorder %v233, 0.0
      %vm298 = vcmp.gt.f32.partialorder %v234, 0.0
      %vm299 = vcmp.gt.f32.partialorder %v235, 0.0
      %vm300 = vcmp.gt.f32.partialorder %v236, 0.0
      %vm301 = vcmp.gt.f32.partialorder %v237, 0.0
      %vm302 = vcmp.gt.f32.partialorder %v238, 0.0
      %vm303 = vcmp.gt.f32.partialorder %v239, 0.0
      %vm304 = vcmp.gt.f32.partialorder %v240, 0.0
      %vm305 = vcmp.gt.f32.partialorder %v241, 0.0
      %vm306 = vcmp.gt.f32.partialorder %v242, 0.0
      %vm307 = vcmp.gt.f32.partialorder %v243, 0.0
      %vm308 = vcmp.gt.f32.partialorder %v244, 0.0
      %vm309 = vcmp.gt.f32.partialorder %v245, 0.0
      %vm310 = vcmp.gt.f32.partialorder %v246, 0.0
      %vm311 = vcmp.gt.f32.partialorder %v247, 0.0
      %vm312 = vcmp.gt.f32.partialorder %v248, 0.0
      %vm313 = vcmp.gt.f32.partialorder %v249, 0.0
      %vm314 = vcmp.gt.f32.partialorder %v250, 0.0
      %vm315 = vcmp.gt.f32.partialorder %v251, 0.0
      %vm316 = vcmp.gt.f32.partialorder %v252, 0.0
      %vm317 = vcmp.gt.f32.partialorder %v253, 0.0
      %vm318 = vcmp.gt.f32.partialorder %v254, 0.0
      %vm319 = vcmp.gt.f32.partialorder %v255, 0.0
      %vm320 = vcmp.gt.f32.partialorder %v256, 0.0
      %vm321 = vcmp.gt.f32.partialorder %v257, 0.0
      %vm322 = vcmp.gt.f32.partialorder %v258, 0.0
      %vm323 = vcmp.gt.f32.partialorder %v259, 0.0
      %vm324 = vcmp.gt.f32.partialorder %v260, 0.0
      %vm325 = vcmp.gt.f32.partialorder %v261, 0.0
      %vm326 = vcmp.gt.f32.partialorder %v262, 0.0
      %vm327 = vcmp.gt.f32.partialorder %v263, 0.0
      %vm328 = vcmp.gt.f32.partialorder %v264, 0.0
      %vm329 = vcmp.gt.f32.partialorder %v265, 0.0
      %vm330 = vcmp.gt.f32.partialorder %v266, 0.0
      %vm331 = vcmp.gt.f32.partialorder %v267, 0.0
      %vm332 = vcmp.gt.f32.partialorder %v268, 0.0
      %vm333 = vcmp.gt.f32.partialorder %v269, 0.0
      %vm334 = vcmp.gt.f32.partialorder %v270, 0.0
      %vm335 = vcmp.gt.f32.partialorder %v271, 0.0
      %vm336 = vcmp.gt.f32.partialorder %v272, 0.0
      %vm337 = vcmp.gt.f32.partialorder %v273, 0.0
      %v338 = vmul.f32 %v210, 0.20019531
      %v339 = vmul.f32 %v211, 0.20019531
      %v340 = vmul.f32 %v212, 0.20019531
      %v341 = vmul.f32 %v213, 0.20019531
      %v342 = vmul.f32 %v214, 0.20019531
      %v343 = vmul.f32 %v215, 0.20019531
      %v344 = vmul.f32 %v216, 0.20019531
      %v345 = vmul.f32 %v217, 0.20019531
      %v346 = vmul.f32 %v218, 0.20019531
      %v347 = vmul.f32 %v219, 0.20019531
      %v348 = vmul.f32 %v220, 0.20019531
      %v349 = vmul.f32 %v221, 0.20019531
      %v350 = vmul.f32 %v222, 0.20019531
      %v351 = vmul.f32 %v223, 0.20019531
      %v352 = vmul.f32 %v224, 0.20019531
      %v353 = vmul.f32 %v225, 0.20019531
      %v354 = vmul.f32 %v226, 0.20019531
      %v355 = vmul.f32 %v227, 0.20019531
      %v356 = vmul.f32 %v228, 0.20019531
      %v357 = vmul.f32 %v229, 0.20019531
      %v358 = vmul.f32 %v230, 0.20019531
      %v359 = vmul.f32 %v231, 0.20019531
      %v360 = vmul.f32 %v232, 0.20019531
      %v361 = vmul.f32 %v233, 0.20019531
      %v362 = vmul.f32 %v234, 0.20019531
      %v363 = vmul.f32 %v235, 0.20019531
      %v364 = vmul.f32 %v236, 0.20019531
      %v365 = vmul.f32 %v237, 0.20019531
      %v366 = vmul.f32 %v238, 0.20019531
      %v367 = vmul.f32 %v239, 0.20019531
      %v368 = vmul.f32 %v240, 0.20019531
      %v369 = vmul.f32 %v241, 0.20019531
      %v370 = vmul.f32 %v242, 0.20019531
      %v371 = vmul.f32 %v243, 0.20019531
      %v372 = vmul.f32 %v244, 0.20019531
      %v373 = vmul.f32 %v245, 0.20019531
      %v374 = vmul.f32 %v246, 0.20019531
      %v375 = vmul.f32 %v247, 0.20019531
      %v376 = vmul.f32 %v248, 0.20019531
      %v377 = vmul.f32 %v249, 0.20019531
      %v378 = vmul.f32 %v250, 0.20019531
      %v379 = vmul.f32 %v251, 0.20019531
      %v380 = vmul.f32 %v252, 0.20019531
      %v381 = vmul.f32 %v253, 0.20019531
      %v382 = vmul.f32 %v254, 0.20019531
      %v383 = vmul.f32 %v255, 0.20019531
      %v384 = vmul.f32 %v256, 0.20019531
      %v385 = vmul.f32 %v257, 0.20019531
      %v386 = vmul.f32 %v258, 0.20019531
      %v387 = vmul.f32 %v259, 0.20019531
      %v388 = vmul.f32 %v260, 0.20019531
      %v389 = vmul.f32 %v261, 0.20019531
      %v390 = vmul.f32 %v262, 0.20019531
      %v391 = vmul.f32 %v263, 0.20019531
      %v392 = vmul.f32 %v264, 0.20019531
      %v393 = vmul.f32 %v265, 0.20019531
      %v394 = vmul.f32 %v266, 0.20019531
      %v395 = vmul.f32 %v267, 0.20019531
      %v396 = vmul.f32 %v268, 0.20019531
      %v397 = vmul.f32 %v269, 0.20019531
      %v398 = vmul.f32 %v270, 0.20019531
      %v399 = vmul.f32 %v271, 0.20019531
      %v400 = vmul.f32 %v272, 0.20019531
      %v401 = vmul.f32 %v273, 0.20019531
      %v402 = vpack.c.bf16 %v339, %v338
      %v403 = vpack.c.bf16 %v341, %v340
      %v404 = vpack.c.bf16 %v343, %v342
      %v405 = vpack.c.bf16 %v345, %v344
      %v406 = vpack.c.bf16 %v347, %v346
      %v407 = vpack.c.bf16 %v349, %v348
      %v408 = vpack.c.bf16 %v351, %v350
      %v409 = vpack.c.bf16 %v353, %v352
      %v410 = vpack.c.bf16 %v355, %v354
      %v411 = vpack.c.bf16 %v357, %v356
      %v412 = vpack.c.bf16 %v359, %v358
      %v413 = vpack.c.bf16 %v361, %v360
      %v414 = vpack.c.bf16 %v363, %v362
      %v415 = vpack.c.bf16 %v365, %v364
      %v416 = vpack.c.bf16 %v367, %v366
      %v417 = vpack.c.bf16 %v369, %v368
      %v418 = vpack.c.bf16 %v371, %v370
      %v419 = vpack.c.bf16 %v373, %v372
      %v420 = vpack.c.bf16 %v375, %v374
      %v421 = vpack.c.bf16 %v377, %v376
      %v422 = vpack.c.bf16 %v379, %v378
      %v423 = vpack.c.bf16 %v381, %v380
      %v424 = vpack.c.bf16 %v383, %v382
      %v425 = vpack.c.bf16 %v385, %v384
      %v426 = vpack.c.bf16 %v387, %v386
      %v427 = vpack.c.bf16 %v389, %v388
      %v428 = vpack.c.bf16 %v391, %v390
      %v429 = vpack.c.bf16 %v393, %v392
      %v430 = vpack.c.bf16 %v395, %v394
      %v431 = vpack.c.bf16 %v397, %v396
      %v432 = vpack.c.bf16 %v399, %v398
      %v433 = vpack.c.bf16 %v401, %v400
      %vm434 = vmpackc.low %vm275, %vm274
      %vm435 = vmpackc.low %vm277, %vm276
      %vm436 = vmpackc.low %vm279, %vm278
      %vm437 = vmpackc.low %vm281, %vm280
      %vm438 = vmpackc.low %vm283, %vm282
      %vm439 = vmpackc.low %vm285, %vm284
      %vm440 = vmpackc.low %vm287, %vm286
      %vm441 = vmpackc.low %vm289, %vm288
      %vm442 = vmpackc.low %vm291, %vm290
      %vm443 = vmpackc.low %vm293, %vm292
      %vm444 = vmpackc.low %vm295, %vm294
      %vm445 = vmpackc.low %vm297, %vm296
      %vm446 = vmpackc.low %vm299, %vm298
      %vm447 = vmpackc.low %vm301, %vm300
      %vm448 = vmpackc.low %vm303, %vm302
      %vm449 = vmpackc.low %vm305, %vm304
      %vm450 = vmpackc.low %vm307, %vm306
      %vm451 = vmpackc.low %vm309, %vm308
      %vm452 = vmpackc.low %vm311, %vm310
      %vm453 = vmpackc.low %vm313, %vm312
      %vm454 = vmpackc.low %vm315, %vm314
      %vm455 = vmpackc.low %vm317, %vm316
      %vm456 = vmpackc.low %vm319, %vm318
      %vm457 = vmpackc.low %vm321, %vm320
      %vm458 = vmpackc.low %vm323, %vm322
      %vm459 = vmpackc.low %vm325, %vm324
      %vm460 = vmpackc.low %vm327, %vm326
      %vm461 = vmpackc.low %vm329, %vm328
      %vm462 = vmpackc.low %vm331, %vm330
      %vm463 = vmpackc.low %vm333, %vm332
      %vm464 = vmpackc.low %vm335, %vm334
      %vm465 = vmpackc.low %vm337, %vm336
      %v466 = vsel %vm434, %v178, %v402
      %v467 = vsel %vm435, %v179, %v403
      %v468 = vsel %vm436, %v180, %v404
      %v469 = vsel %vm437, %v181, %v405
      %v470 = vsel %vm438, %v182, %v406
      %v471 = vsel %vm439, %v183, %v407
      %v472 = vsel %vm440, %v184, %v408
      %v473 = vsel %vm441, %v185, %v409
      %v474 = vsel %vm442, %v186, %v410
      %v475 = vsel %vm443, %v187, %v411
      %v476 = vsel %vm444, %v188, %v412
      %v477 = vsel %vm445, %v189, %v413
      %v478 = vsel %vm446, %v190, %v414
      %v479 = vsel %vm447, %v191, %v415
      %v480 = vsel %vm448, %v192, %v416
      %v481 = vsel %vm449, %v193, %v417
      %v482 = vsel %vm450, %v194, %v418
      %v483 = vsel %vm451, %v195, %v419
      %v484 = vsel %vm452, %v196, %v420
      %v485 = vsel %vm453, %v197, %v421
      %v486 = vsel %vm454, %v198, %v422
      %v487 = vsel %vm455, %v199, %v423
      %v488 = vsel %vm456, %v200, %v424
      %v489 = vsel %vm457, %v201, %v425
      %v490 = vsel %vm458, %v202, %v426
      %v491 = vsel %vm459, %v203, %v427
      %v492 = vsel %vm460, %v204, %v428
      %v493 = vsel %vm461, %v205, %v429
      %v494 = vsel %vm462, %v206, %v430
      %v495 = vsel %vm463, %v207, %v431
      %v496 = vsel %vm464, %v208, %v432
      %v497 = vsel %vm465, %v209, %v433
      %v498 = vld [vmem:[%s1] sm:$0xf]
      %v499 = vld [vmem:[%s1 + $0x4] sm:$0xf]
      %v500 = vld [vmem:[%s1 + $0x8] sm:$0xf]
      %v501 = vld [vmem:[%s1 + $0xc] sm:$0xf]
      %v502 = vld [vmem:[%s1 + $0x10] sm:$0xf]
      %v503 = vld [vmem:[%s1 + $0x14] sm:$0xf]
      %v504 = vld [vmem:[%s1 + $0x18] sm:$0xf]
      %v505 = vld [vmem:[%s1 + $0x1c] sm:$0xf]
      %v506 = vld [vmem:[%s1 + $0x20] sm:$0xf]
      %v507 = vld [vmem:[%s1 + $0x24] sm:$0xf]
      %v508 = vld [vmem:[%s1 + $0x28] sm:$0xf]
      %v509 = vld [vmem:[%s1 + $0x2c] sm:$0xf]
      %v510 = vld [vmem:[%s1 + $0x30] sm:$0xf]
      %v511 = vld [vmem:[%s1 + $0x34] sm:$0xf]
      %v512 = vld [vmem:[%s1 + $0x38] sm:$0xf]
      %v513 = vld [vmem:[%s1 + $0x3c] sm:$0xf]
      %v514 = vld [vmem:[%s1 + $0x40] sm:$0xf]
      %v515 = vld [vmem:[%s1 + $0x44] sm:$0xf]
      %v516 = vld [vmem:[%s1 + $0x48] sm:$0xf]
      %v517 = vld [vmem:[%s1 + $0x4c] sm:$0xf]
      %v518 = vld [vmem:[%s1 + $0x50] sm:$0xf]
      %v519 = vld [vmem:[%s1 + $0x54] sm:$0xf]
      %v520 = vld [vmem:[%s1 + $0x58] sm:$0xf]
      %v521 = vld [vmem:[%s1 + $0x5c] sm:$0xf]
      %v522 = vld [vmem:[%s2] sm:$0x1]
      %v524 = vperm.slane %v522, 0
      %v558 = vunpack.c.l.b16 %v466
      %v559 = vunpack.c.h.b16 %v466
      %v560 = vunpack.c.l.b16 %v467
      %v561 = vunpack.c.h.b16 %v467
      %v562 = vunpack.c.l.b16 %v468
      %v563 = vunpack.c.h.b16 %v468
      %v564 = vunpack.c.l.b16 %v469
      %v565 = vunpack.c.h.b16 %v469
      %v566 = vunpack.c.l.b16 %v470
      %v567 = vunpack.c.h.b16 %v470
      %v568 = vunpack.c.l.b16 %v471
      %v569 = vunpack.c.h.b16 %v471
      %v570 = vunpack.c.l.b16 %v472
      %v571 = vunpack.c.h.b16 %v472
      %v572 = vunpack.c.l.b16 %v473
      %v573 = vunpack.c.h.b16 %v473
      %v574 = vunpack.c.l.b16 %v474
      %v575 = vunpack.c.h.b16 %v474
      %v576 = vunpack.c.l.b16 %v475
      %v577 = vunpack.c.h.b16 %v475
      %v578 = vunpack.c.l.b16 %v476
      %v579 = vunpack.c.h.b16 %v476
      %v580 = vunpack.c.l.b16 %v477
      %v581 = vunpack.c.h.b16 %v477
      %v582 = vunpack.c.l.b16 %v478
      %v583 = vunpack.c.h.b16 %v478
      %v584 = vunpack.c.l.b16 %v479
      %v585 = vunpack.c.h.b16 %v479
      %v586 = vunpack.c.l.b16 %v480
      %v587 = vunpack.c.h.b16 %v480
      %v588 = vunpack.c.l.b16 %v481
      %v589 = vunpack.c.h.b16 %v481
      %v590 = vunpack.c.l.b16 %v482
      %v591 = vunpack.c.h.b16 %v482
      %v592 = vunpack.c.l.b16 %v483
      %v593 = vunpack.c.h.b16 %v483
      %v594 = vunpack.c.l.b16 %v484
      %v595 = vunpack.c.h.b16 %v484
      %v596 = vunpack.c.l.b16 %v485
      %v597 = vunpack.c.h.b16 %v485
      %v598 = vunpack.c.l.b16 %v486
      %v599 = vunpack.c.h.b16 %v486
      %v600 = vunpack.c.l.b16 %v487
      %v601 = vunpack.c.h.b16 %v487
      %v602 = vunpack.c.l.b16 %v488
      %v603 = vunpack.c.h.b16 %v488
      %v604 = vunpack.c.l.b16 %v489
      %v605 = vunpack.c.h.b16 %v489
      %v606 = vunpack.c.l.b16 %v490
      %v607 = vunpack.c.h.b16 %v490
      %v608 = vunpack.c.l.b16 %v491
      %v609 = vunpack.c.h.b16 %v491
      %v610 = vunpack.c.l.b16 %v492
      %v611 = vunpack.c.h.b16 %v492
      %v612 = vunpack.c.l.b16 %v493
      %v613 = vunpack.c.h.b16 %v493
      %v614 = vunpack.c.l.b16 %v494
      %v615 = vunpack.c.h.b16 %v494
      %v616 = vunpack.c.l.b16 %v495
      %v617 = vunpack.c.h.b16 %v495
      %v618 = vunpack.c.l.b16 %v496
      %v619 = vunpack.c.h.b16 %v496
      %v620 = vunpack.c.l.b16 %v497
      %v621 = vunpack.c.h.b16 %v497
      %v622 = vpack.c.b16 %v560, %v558
      %v623 = vpack.c.b16 %v561, %v559
      %v624 = vpack.c.b16 %v564, %v562
      %v625 = vpack.c.b16 %v565, %v563
      %v626 = vpack.c.b16 %v568, %v566
      %v627 = vpack.c.b16 %v569, %v567
      %v628 = vpack.c.b16 %v572, %v570
      %v629 = vpack.c.b16 %v573, %v571
      %v630 = vpack.c.b16 %v576, %v574
      %v631 = vpack.c.b16 %v577, %v575
      %v632 = vpack.c.b16 %v580, %v578
      %v633 = vpack.c.b16 %v581, %v579
      %v634 = vpack.c.b16 %v584, %v582
      %v635 = vpack.c.b16 %v585, %v583
      %v636 = vpack.c.b16 %v588, %v586
      %v637 = vpack.c.b16 %v589, %v587
      %v638 = vpack.c.b16 %v592, %v590
      %v639 = vpack.c.b16 %v593, %v591
      %v640 = vpack.c.b16 %v596, %v594
      %v641 = vpack.c.b16 %v597, %v595
      %v642 = vpack.c.b16 %v600, %v598
      %v643 = vpack.c.b16 %v601, %v599
      %v644 = vpack.c.b16 %v604, %v602
      %v645 = vpack.c.b16 %v605, %v603
      %v646 = vpack.c.b16 %v608, %v606
      %v647 = vpack.c.b16 %v609, %v607
      %v648 = vpack.c.b16 %v612, %v610
      %v649 = vpack.c.b16 %v613, %v611
      %v650 = vpack.c.b16 %v616, %v614
      %v651 = vpack.c.b16 %v617, %v615
      %v652 = vpack.c.b16 %v620, %v618
      %v653 = vpack.c.b16 %v621, %v619
      %v694 = vunpack.c.l.b16 %v498
      %v695 = vunpack.c.l.b16 %v499
      %v696 = vunpack.c.l.b16 %v500
      %v697 = vunpack.c.l.b16 %v501
      %v698 = vunpack.c.l.b16 %v502
      %v699 = vunpack.c.l.b16 %v503
      %v700 = vunpack.c.l.b16 %v504
      %v701 = vunpack.c.l.b16 %v505
      %v702 = vunpack.c.l.b16 %v506
      %v703 = vunpack.c.l.b16 %v507
      %v704 = vunpack.c.l.b16 %v508
      %v705 = vunpack.c.l.b16 %v509
      %v706 = vunpack.c.l.b16 %v510
      %v707 = vunpack.c.l.b16 %v511
      %v708 = vunpack.c.l.b16 %v512
      %v709 = vunpack.c.l.b16 %v513
      %v710 = vunpack.c.l.b16 %v514
      %v711 = vunpack.c.l.b16 %v515
      %v712 = vunpack.c.l.b16 %v516
      %v713 = vunpack.c.l.b16 %v517
      %v714 = vunpack.c.l.b16 %v518
      %v715 = vunpack.c.l.b16 %v519
      %v716 = vunpack.c.l.b16 %v520
      %v717 = vunpack.c.l.b16 %v521
      %v718 = vpack.c.b16 %v695, %v694
      %v719 = vpack.c.b16 %v697, %v696
      %v720 = vpack.c.b16 %v699, %v698
      %v721 = vpack.c.b16 %v701, %v700
      %v722 = vpack.c.b16 %v703, %v702
      %v723 = vpack.c.b16 %v705, %v704
      %v724 = vpack.c.b16 %v707, %v706
      %v725 = vpack.c.b16 %v709, %v708
      %v726 = vpack.c.b16 %v711, %v710
      %v727 = vpack.c.b16 %v713, %v712
      %v728 = vpack.c.b16 %v715, %v714
      %v729 = vpack.c.b16 %v717, %v716
      %vm742 = vcmask 523264
      %v744 = vsel %vm742, %v623, 0
      %v747 = vsel %vm742, %v625, 0
      %v750 = vsel %vm742, %v627, 0
      %v753 = vsel %vm742, %v629, 0
      %v756 = vsel %vm742, %v631, 0
      %v759 = vsel %vm742, %v633, 0
      %v762 = vsel %vm742, %v635, 0
      %v765 = vsel %vm742, %v637, 0
      %v768 = vsel %vm742, %v639, 0
      %v771 = vsel %vm742, %v641, 0
      %v774 = vsel %vm742, %v643, 0
      %v777 = vsel %vm742, %v645, 0
      %v780 = vsel %vm742, %v647, 0
      %v783 = vsel %vm742, %v649, 0
      %v786 = vsel %vm742, %v651, 0
      %v789 = vsel %vm742, %v653, 0
      %791 = vmatpush.bf16.msra.mxu0 %v725
      %792 = vmatpush.bf16.msra.mxu0 %v724
      %793 = vmatpush.bf16.msra.mxu0 %v723
      %794 = vmatpush.bf16.msra.mxu0 %v722
      %795 = vmatpush.bf16.msra.mxu0 %v721
      %796 = vmatpush.bf16.msra.mxu0 %v720
      %797 = vmatpush.bf16.msra.mxu0 %v719
      %798 = vmatpush.bf16.msra.mxu0 %v718
      %799 = vmatmul.bf16.gmra.mxu0 %v622
      %v800 = vpop.f32.mrf.mxu0
      %v801 = vadd.f32 %v524, %v800
      %v802 = vpop.f32.mrf.mxu0
      %v803 = vadd.f32 %v524, %v802
      %804 = vmatmul.bf16.gmra.mxu0 %v624
      %v805 = vpop.f32.mrf.mxu0
      %v806 = vadd.f32 %v524, %v805
      %v807 = vpop.f32.mrf.mxu0
      %v808 = vadd.f32 %v524, %v807
      %809 = vmatmul.bf16.gmra.mxu0 %v626
      %v810 = vpop.f32.mrf.mxu0
      %v811 = vadd.f32 %v524, %v810
      %v812 = vpop.f32.mrf.mxu0
      %v813 = vadd.f32 %v524, %v812
      %814 = vmatmul.bf16.gmra.mxu0 %v628
      %v815 = vpop.f32.mrf.mxu0
      %v816 = vadd.f32 %v524, %v815
      %v817 = vpop.f32.mrf.mxu0
      %v818 = vadd.f32 %v524, %v817
      %819 = vmatmul.bf16.gmra.mxu0 %v630
      %v820 = vpop.f32.mrf.mxu0
      %v821 = vadd.f32 %v524, %v820
      %v822 = vpop.f32.mrf.mxu0
      %v823 = vadd.f32 %v524, %v822
      %824 = vmatmul.bf16.gmra.mxu0 %v632
      %v825 = vpop.f32.mrf.mxu0
      %v826 = vadd.f32 %v524, %v825
      %v827 = vpop.f32.mrf.mxu0
      %v828 = vadd.f32 %v524, %v827
      %829 = vmatmul.bf16.gmra.mxu0 %v634
      %v830 = vpop.f32.mrf.mxu0
      %v831 = vadd.f32 %v524, %v830
      %v832 = vpop.f32.mrf.mxu0
      %v833 = vadd.f32 %v524, %v832
      %834 = vmatmul.bf16.gmra.mxu0 %v636
      %v835 = vpop.f32.mrf.mxu0
      %v836 = vadd.f32 %v524, %v835
      %v837 = vpop.f32.mrf.mxu0
      %v838 = vadd.f32 %v524, %v837
      %839 = vmatmul.bf16.gmra.mxu0 %v638
      %v840 = vpop.f32.mrf.mxu0
      %v841 = vadd.f32 %v524, %v840
      %v842 = vpop.f32.mrf.mxu0
      %v843 = vadd.f32 %v524, %v842
      %844 = vmatmul.bf16.gmra.mxu0 %v640
      %v845 = vpop.f32.mrf.mxu0
      %v846 = vadd.f32 %v524, %v845
      %v847 = vpop.f32.mrf.mxu0
      %v848 = vadd.f32 %v524, %v847
      %849 = vmatmul.bf16.gmra.mxu0 %v642
      %v850 = vpop.f32.mrf.mxu0
      %v851 = vadd.f32 %v524, %v850
      %v852 = vpop.f32.mrf.mxu0
      %v853 = vadd.f32 %v524, %v852
      %854 = vmatmul.bf16.gmra.mxu0 %v644
      %v855 = vpop.f32.mrf.mxu0
      %v856 = vadd.f32 %v524, %v855
      %v857 = vpop.f32.mrf.mxu0
      %v858 = vadd.f32 %v524, %v857
      %859 = vmatmul.bf16.gmra.mxu0 %v646
      %v860 = vpop.f32.mrf.mxu0
      %v861 = vadd.f32 %v524, %v860
      %v862 = vpop.f32.mrf.mxu0
      %v863 = vadd.f32 %v524, %v862
      %864 = vmatmul.bf16.gmra.mxu0 %v648
      %v865 = vpop.f32.mrf.mxu0
      %v866 = vadd.f32 %v524, %v865
      %v867 = vpop.f32.mrf.mxu0
      %v868 = vadd.f32 %v524, %v867
      %869 = vmatmul.bf16.gmra.mxu0 %v650
      %v870 = vpop.f32.mrf.mxu0
      %v871 = vadd.f32 %v524, %v870
      %v872 = vpop.f32.mrf.mxu0
      %v873 = vadd.f32 %v524, %v872
      %874 = vmatmul.bf16.gmra.mxu0 %v652
      %v875 = vpop.f32.mrf.mxu0
      %v876 = vadd.f32 %v524, %v875
      %v877 = vpop.f32.mrf.mxu0
      %v878 = vadd.f32 %v524, %v877
      %879 = vdwg.mxu0
      %880 = vmatpush.bf16.msra.mxu0 0
      %881 = vmatpush.bf16.msra.mxu0 0
      %882 = vmatpush.bf16.msra.mxu0 0
      %883 = vmatpush.bf16.msra.mxu0 0
      %884 = vmatpush.bf16.msra.mxu0 %v729
      %885 = vmatpush.bf16.msra.mxu0 %v728
      %886 = vmatpush.bf16.msra.mxu0 %v727
      %887 = vmatpush.bf16.msra.mxu0 %v726
      %888 = vmatmul.bf16.gmra.mxu0 %v744
      %v889 = vpop.f32.mrf.mxu0
      %v890 = vadd.f32 %v801, %v889
      %v891 = vpop.f32.mrf.mxu0
      %v892 = vadd.f32 %v803, %v891
      %893 = vmatmul.bf16.gmra.mxu0 %v747
      %v894 = vpop.f32.mrf.mxu0
      %v895 = vadd.f32 %v806, %v894
      %v896 = vpop.f32.mrf.mxu0
      %v897 = vadd.f32 %v808, %v896
      %898 = vmatmul.bf16.gmra.mxu0 %v750
      %v899 = vpop.f32.mrf.mxu0
      %v900 = vadd.f32 %v811, %v899
      %v901 = vpop.f32.mrf.mxu0
      %v902 = vadd.f32 %v813, %v901
      %903 = vmatmul.bf16.gmra.mxu0 %v753
      %v904 = vpop.f32.mrf.mxu0
      %v905 = vadd.f32 %v816, %v904
      %v906 = vpop.f32.mrf.mxu0
      %v907 = vadd.f32 %v818, %v906
      %908 = vmatmul.bf16.gmra.mxu0 %v756
      %v909 = vpop.f32.mrf.mxu0
      %v910 = vadd.f32 %v821, %v909
      %v911 = vpop.f32.mrf.mxu0
      %v912 = vadd.f32 %v823, %v911
      %913 = vmatmul.bf16.gmra.mxu0 %v759
      %v914 = vpop.f32.mrf.mxu0
      %v915 = vadd.f32 %v826, %v914
      %v916 = vpop.f32.mrf.mxu0
      %v917 = vadd.f32 %v828, %v916
      %918 = vmatmul.bf16.gmra.mxu0 %v762
      %v919 = vpop.f32.mrf.mxu0
      %v920 = vadd.f32 %v831, %v919
      %v921 = vpop.f32.mrf.mxu0
      %v922 = vadd.f32 %v833, %v921
      %923 = vmatmul.bf16.gmra.mxu0 %v765
      %v924 = vpop.f32.mrf.mxu0
      %v925 = vadd.f32 %v836, %v924
      %v926 = vpop.f32.mrf.mxu0
      %v927 = vadd.f32 %v838, %v926
      %928 = vmatmul.bf16.gmra.mxu0 %v768
      %v929 = vpop.f32.mrf.mxu0
      %v930 = vadd.f32 %v841, %v929
      %v931 = vpop.f32.mrf.mxu0
      %v932 = vadd.f32 %v843, %v931
      %933 = vmatmul.bf16.gmra.mxu0 %v771
      %v934 = vpop.f32.mrf.mxu0
      %v935 = vadd.f32 %v846, %v934
      %v936 = vpop.f32.mrf.mxu0
      %v937 = vadd.f32 %v848, %v936
      %938 = vmatmul.bf16.gmra.mxu0 %v774
      %v939 = vpop.f32.mrf.mxu0
      %v940 = vadd.f32 %v851, %v939
      %v941 = vpop.f32.mrf.mxu0
      %v942 = vadd.f32 %v853, %v941
      %943 = vmatmul.bf16.gmra.mxu0 %v777
      %v944 = vpop.f32.mrf.mxu0
      %v945 = vadd.f32 %v856, %v944
      %v946 = vpop.f32.mrf.mxu0
      %v947 = vadd.f32 %v858, %v946
      %948 = vmatmul.bf16.gmra.mxu0 %v780
      %v949 = vpop.f32.mrf.mxu0
      %v950 = vadd.f32 %v861, %v949
      %v951 = vpop.f32.mrf.mxu0
      %v952 = vadd.f32 %v863, %v951
      %953 = vmatmul.bf16.gmra.mxu0 %v783
      %v954 = vpop.f32.mrf.mxu0
      %v955 = vadd.f32 %v866, %v954
      %v956 = vpop.f32.mrf.mxu0
      %v957 = vadd.f32 %v868, %v956
      %958 = vmatmul.bf16.gmra.mxu0 %v786
      %v959 = vpop.f32.mrf.mxu0
      %v960 = vadd.f32 %v871, %v959
      %v961 = vpop.f32.mrf.mxu0
      %v962 = vadd.f32 %v873, %v961
      %963 = vmatmul.bf16.gmra.mxu0 %v789
      %v964 = vpop.f32.mrf.mxu0
      %v965 = vadd.f32 %v876, %v964
      %v966 = vpop.f32.mrf.mxu0
      %v967 = vadd.f32 %v878, %v966
      %968 = vdwg.mxu0
      %vm969 = vcmask 130048
      %970 = vst.msk [vmem:[%s175] sm:$0xff] %vm969, %v890
      %971 = vst.msk [vmem:[%s175 + $0x8] sm:$0xff] %vm969, %v892
      %972 = vst.msk [vmem:[%s175 + $0x10] sm:$0xff] %vm969, %v895
      %973 = vst.msk [vmem:[%s175 + $0x18] sm:$0xff] %vm969, %v897
      %974 = vst.msk [vmem:[%s175 + $0x20] sm:$0xff] %vm969, %v900
      %975 = vst.msk [vmem:[%s175 + $0x28] sm:$0xff] %vm969, %v902
      %976 = vst.msk [vmem:[%s175 + $0x30] sm:$0xff] %vm969, %v905
      %977 = vst.msk [vmem:[%s175 + $0x38] sm:$0xff] %vm969, %v907
      %978 = vst.msk [vmem:[%s175 + $0x40] sm:$0xff] %vm969, %v910
      %979 = vst.msk [vmem:[%s175 + $0x48] sm:$0xff] %vm969, %v912
      %980 = vst.msk [vmem:[%s175 + $0x50] sm:$0xff] %vm969, %v915
      %981 = vst.msk [vmem:[%s175 + $0x58] sm:$0xff] %vm969, %v917
      %982 = vst.msk [vmem:[%s175 + $0x60] sm:$0xff] %vm969, %v920
      %983 = vst.msk [vmem:[%s175 + $0x68] sm:$0xff] %vm969, %v922
      %984 = vst.msk [vmem:[%s175 + $0x70] sm:$0xff] %vm969, %v925
      %985 = vst.msk [vmem:[%s175 + $0x78] sm:$0xff] %vm969, %v927
      %986 = vst.msk [vmem:[%s175 + $0x80] sm:$0xff] %vm969, %v930
      %987 = vst.msk [vmem:[%s175 + $0x88] sm:$0xff] %vm969, %v932
      %988 = vst.msk [vmem:[%s175 + $0x90] sm:$0xff] %vm969, %v935
      %989 = vst.msk [vmem:[%s175 + $0x98] sm:$0xff] %vm969, %v937
      %990 = vst.msk [vmem:[%s175 + $0xa0] sm:$0xff] %vm969, %v940
      %991 = vst.msk [vmem:[%s175 + $0xa8] sm:$0xff] %vm969, %v942
      %992 = vst.msk [vmem:[%s175 + $0xb0] sm:$0xff] %vm969, %v945
      %993 = vst.msk [vmem:[%s175 + $0xb8] sm:$0xff] %vm969, %v947
      %994 = vst.msk [vmem:[%s175 + $0xc0] sm:$0xff] %vm969, %v950
      %995 = vst.msk [vmem:[%s175 + $0xc8] sm:$0xff] %vm969, %v952
      %996 = vst.msk [vmem:[%s175 + $0xd0] sm:$0xff] %vm969, %v955
      %997 = vst.msk [vmem:[%s175 + $0xd8] sm:$0xff] %vm969, %v957
      %998 = vst.msk [vmem:[%s175 + $0xe0] sm:$0xff] %vm969, %v960
      %999 = vst.msk [vmem:[%s175 + $0xe8] sm:$0xff] %vm969, %v962
      %1000 = vst.msk [vmem:[%s175 + $0xf0] sm:$0xff] %vm969, %v965
      %1001 = vst.msk [vmem:[%s175 + $0xf8] sm:$0xff] %vm969, %v967
      %s1002 = smul.u32 32, %s14
      %p1003 = scmp.lt.s32.totalorder %s1002, 63
      %s1004 = scalar_select %p1003, %s1002, 63
      %s1005 = smul.addr %s1004, 8
      %s1006 = scalar_lea.vmem %s3, %s1005
      // Predicated region
      $region33: #{g_unet_add_all_forward.13} parent=31 // pred_check
        %p1007 = pneg %p100
      $region34: #{g_unet_add_all_forward.13} parent=31 // pred_check_branch
        %1009 = sbr.rel (%p1007) target = $region36
      $region35: #{g_unet_add_all_forward.13} parent=31 // pred_region
        %s1010 = smul.u32 32, %s14
      $region36: #{g_unet_add_all_forward.13} parent=31 // pred_fallthru
        _
    $region32: #{g_unet_add_all_forward.13} parent=5 // pred_fallthru
      _
    %p1011 = scmp.le.s32.totalorder 2, %s9
    // Predicated region
    $region37: #{g_unet_add_all_forward.13} parent=5 // pred_check
      %p1012 = pneg %p1011
    $region38: #{g_unet_add_all_forward.13} parent=5 // pred_check_branch
      %1014 = sbr.rel (%p1012) target = $region40
    $region39: #{g_unet_add_all_forward.13} parent=5 // pred_region
      %s1015 = ssub.s32 %s9, 2
      // Predicated region
      $region41: #{g_unet_add_all_forward.13} parent=39 // pred_check
        %p1016 = pneg %p106
      $region42: #{g_unet_add_all_forward.13} parent=39 // pred_check_branch
        %1018 = sbr.rel (%p1016) target = $region44
      $region43: #{g_unet_add_all_forward.13} parent=39 // pred_region
        %s1019 = smul.u32 32, %s15
        %p1020 = scmp.lt.s32.totalorder %s1019, 63
        %s1021 = scalar_select %p1020, %s1019, 63
        %s1022 = smul.addr %s1021, 8
        %s1023 = scalar_lea.vmem %s3, %s1022
      $region44: #{g_unet_add_all_forward.13} parent=39 // pred_fallthru
        _
    $region40: #{g_unet_add_all_forward.13} parent=5 // pred_fallthru
      _
  $region6: #{g_unet_add_all_forward.13} parent=0 // loop_footer
    %s13 = sadd.s32 1, %s9
  $region7: #{g_unet_add_all_forward.13} parent=0 // loop_footer_branch
    %8 = sbr.rel target = $region3
  $region8: #{g_unet_add_all_forward.13} parent=0 // loop_exit
    _

// kernel: g_unet_add_all_forward.14
$region0: #{g_unet_add_all_forward.14}
  #allocation0 [shape = 'u32[]', space=smem, size = 0x4, offset = 0x4, fixed_abs, tag = 'smem constant byte address 0x4 - core index']
  #allocation1 [shape = 'u32[72,128]{1,0:T(1,128)}', space=vmem, size = 0x9000, scoped, tag = 'internal scratch']
  %s0 = inlined_call_operand.vmem [shape: bf16[128,320], index: 0, kind: input, shape index: {}]
  %s1 = inlined_call_operand.vmem [shape: bf16[320,32], index: 1, kind: input, shape index: {}]
  %s2 = inlined_call_operand.vmem [shape: f32[1,32], index: 2, kind: input, shape index: {}]
  %s3 = inlined_call_operand.vmem [shape: f32[128,32], index: 3, kind: output, shape index: {}]
  %s4 = sld [smem:[#allocation0]]
  $region45: #{g_unet_add_all_forward.14} parent=0
    _
  %s6 = ssub.s32 1, %s4
  %s7 = scalar_select 0, %s6, %s4
  loop: start=0, step=1, limit=4
  $region2: #{g_unet_add_all_forward.14} parent=0 // loop_pre_header
    _
  $region3: #{g_unet_add_all_forward.14} parent=0 // loop_header
    %s9 = sphi 0, %s13
    %p10 = scmp.ge.s32.totalorder %s9, 4
    %s19 = sphi 0, %s21
    %s22 = sphi 0, %s19
    %s23 = sphi 0, %s22
    %s39 = sphi 0, %s23
    %s43 = sphi 0, %s43
    %s45 = sphi 0, %s43
    %s46 = sphi 0, %s45
    %s60 = sphi 0, %s46
    %s64 = sphi 0, %s64
    %s66 = sphi 0, %s64
    %s67 = sphi 0, %s66
    %s81 = sphi 0, %s67
    %s87 = sphi 0, %s89
    %s90 = sphi 0, %s87
    %s91 = sphi 0, %s90
    %s107 = sphi 0, %s91
  $region4: #{g_unet_add_all_forward.14} parent=0 // loop_header_branch
    %12 = sbr.rel (%p10) target = $region8
  $region5: #{g_unet_add_all_forward.14} parent=0 // loop_body
    %s14 = ssub.s32 %s9, 1
    %s15 = ssub.s32 %s9, 2
    %s16 = sadd.s32 %s9, 1
    %s17 = ssub.s32 %s9, %s16
    %p18 = scmp.eq.s32.totalorder %s17, 0
    %s20 = sadd.s32 %s19, 1
    %s21 = scalar_select %p18, %s19, %s20
    %p24 = pneg %p18
    %p25 = scmp.eq.s32.totalorder %s9, 1
    %p26 = por %p24, %p25
    %p27 = scmp.ne.s32.totalorder %s19, %s22
    %p28 = scmp.eq.s32.totalorder %s9, 0
    %p29 = por %p27, %p28
    %p30 = scmp.ne.s32.totalorder %s19, %s22
    %p31 = scmp.eq.s32.totalorder %s14, 1
    %p32 = por %p30, %p31
    %p33 = scmp.ne.s32.totalorder %s22, %s23
    %p34 = scmp.eq.s32.totalorder %s14, 0
    %p35 = por %p33, %p34
    %p36 = scmp.ne.s32.totalorder %s22, %s23
    %p37 = scmp.eq.s32.totalorder %s15, 1
    %p38 = por %p36, %p37
    %p40 = scmp.ne.s32.totalorder %s23, %s39
    %p41 = scmp.eq.s32.totalorder %s15, 0
    %p42 = por %p40, %p41
    %s44 = sadd.s32 %s43, 1
    %p47 = scmp.eq.s32.totalorder %s9, 1
    %p48 = scmp.ne.s32.totalorder %s43, %s45
    %p49 = scmp.eq.s32.totalorder %s9, 0
    %p50 = por %p48, %p49
    %p51 = scmp.ne.s32.totalorder %s43, %s45
    %p52 = scmp.eq.s32.totalorder %s14, 1
    %p53 = por %p51, %p52
    %p54 = scmp.ne.s32.totalorder %s45, %s46
    %p55 = scmp.eq.s32.totalorder %s14, 0
    %p56 = por %p54, %p55
    %p57 = scmp.ne.s32.totalorder %s45, %s46
    %p58 = scmp.eq.s32.totalorder %s15, 1
    %p59 = por %p57, %p58
    %p61 = scmp.ne.s32.totalorder %s46, %s60
    %p62 = scmp.eq.s32.totalorder %s15, 0
    %p63 = por %p61, %p62
    %s65 = sadd.s32 %s64, 1
    %p68 = scmp.eq.s32.totalorder %s9, 1
    %p69 = scmp.ne.s32.totalorder %s64, %s66
    %p70 = scmp.eq.s32.totalorder %s9, 0
    %p71 = por %p69, %p70
    %p72 = scmp.ne.s32.totalorder %s64, %s66
    %p73 = scmp.eq.s32.totalorder %s14, 1
    %p74 = por %p72, %p73
    %p75 = scmp.ne.s32.totalorder %s66, %s67
    %p76 = scmp.eq.s32.totalorder %s14, 0
    %p77 = por %p75, %p76
    %p78 = scmp.ne.s32.totalorder %s66, %s67
    %p79 = scmp.eq.s32.totalorder %s15, 1
    %p80 = por %p78, %p79
    %p82 = scmp.ne.s32.totalorder %s67, %s81
    %p83 = scmp.eq.s32.totalorder %s15, 0
    %p84 = por %p82, %p83
    %s85 = ssub.s32 %s9, %s16
    %p86 = scmp.eq.s32.totalorder %s85, 0
    %s88 = sadd.s32 %s87, 1
    %s89 = scalar_select %p86, %s87, %s88
    %p92 = pneg %p86
    %p93 = scmp.eq.s32.totalorder %s9, 1
    %p94 = por %p92, %p93
    %p95 = scmp.ne.s32.totalorder %s87, %s90
    %p96 = scmp.eq.s32.totalorder %s9, 0
    %p97 = por %p95, %p96
    %p98 = scmp.ne.s32.totalorder %s87, %s90
    %p99 = scmp.eq.s32.totalorder %s14, 1
    %p100 = por %p98, %p99
    %p101 = scmp.ne.s32.totalorder %s90, %s91
    %p102 = scmp.eq.s32.totalorder %s14, 0
    %p103 = por %p101, %p102
    %p104 = scmp.ne.s32.totalorder %s90, %s91
    %p105 = scmp.eq.s32.totalorder %s15, 1
    %p106 = por %p104, %p105
    %p108 = scmp.ne.s32.totalorder %s91, %s107
    %p109 = scmp.eq.s32.totalorder %s15, 0
    %p110 = por %p108, %p109
    %p111 = scmp.le.s32.totalorder 1, %s9
    %p112 = scmp.lt.s32.totalorder %s9, 3
    %p113 = pnand %p111, %p112
    %p114 = pneg %p113
    // Predicated region
    $region9: #{g_unet_add_all_forward.14} parent=5 // pred_check
      _
    $region10: #{g_unet_add_all_forward.14} parent=5 // pred_check_branch
      %116 = sbr.rel (%p113) target = $region12
    $region11: #{g_unet_add_all_forward.14} parent=5 // pred_region
      %s117 = ssub.s32 %s9, 1
      // Predicated region
      $region13: #{g_unet_add_all_forward.14} parent=11 // pred_check
        %p118 = pneg %p56
      $region14: #{g_unet_add_all_forward.14} parent=11 // pred_check_branch
        %120 = sbr.rel (%p118) target = $region16
      $region15: #{g_unet_add_all_forward.14} parent=11 // pred_region
        _
      $region16: #{g_unet_add_all_forward.14} parent=11 // pred_fallthru
        _
      // Predicated region
      $region17: #{g_unet_add_all_forward.14} parent=11 // pred_check
        %p121 = pneg %p77
      $region18: #{g_unet_add_all_forward.14} parent=11 // pred_check_branch
        %123 = sbr.rel (%p121) target = $region20
      $region19: #{g_unet_add_all_forward.14} parent=11 // pred_region
        _
      $region20: #{g_unet_add_all_forward.14} parent=11 // pred_fallthru
        _
    $region12: #{g_unet_add_all_forward.14} parent=5 // pred_fallthru
      _
    %p124 = scmp.lt.s32.totalorder %s9, 2
    // Predicated region
    $region21: #{g_unet_add_all_forward.14} parent=5 // pred_check
      %p125 = pneg %p124
    $region22: #{g_unet_add_all_forward.14} parent=5 // pred_check_branch
      %127 = sbr.rel (%p125) target = $region24
    $region23: #{g_unet_add_all_forward.14} parent=5 // pred_region
      // Predicated region
      $region25: #{g_unet_add_all_forward.14} parent=23 // pred_check
        %p128 = pneg %p29
      $region26: #{g_unet_add_all_forward.14} parent=23 // pred_check_branch
        %130 = sbr.rel (%p128) target = $region28
      $region27: #{g_unet_add_all_forward.14} parent=23 // pred_region
        %s131 = smul.u32 8, %s9
        %p132 = scmp.lt.s32.totalorder %s131, 15
        %s133 = scalar_select %p132, %s131, 15
        %s134 = smul.addr %s133, 3
        %s135 = smul.addr %s134, 4
        %s136 = scalar_lea.vmem %s0, %s135
        %s137 = smul.u32 8, %s9
      $region28: #{g_unet_add_all_forward.14} parent=23 // pred_fallthru
        _
    $region24: #{g_unet_add_all_forward.14} parent=5 // pred_fallthru
      _
    %p138 = scmp.le.s32.totalorder 1, %s9
    %p139 = scmp.lt.s32.totalorder %s9, 3
    %p140 = pnand %p138, %p139
    %p141 = pneg %p140
    // Predicated region
    $region29: #{g_unet_add_all_forward.14} parent=5 // pred_check
      _
    $region30: #{g_unet_add_all_forward.14} parent=5 // pred_check_branch
      %143 = sbr.rel (%p140) target = $region32
    $region31: #{g_unet_add_all_forward.14} parent=5 // pred_region
      %s144 = ssub.s32 %s9, 1
      %s145 = smul.u32 8, %s14
      %p146 = scmp.lt.s32.totalorder %s145, 15
      %s147 = scalar_select %p146, %s145, 15
      %s148 = smul.addr %s147, 3
      %s149 = smul.addr %s148, 4
      %s150 = scalar_lea.vmem %s0, %s149
      %p151 = pneg %p35
      %p152 = pneg %p32
      %p153 = pneg %p56
      %p154 = pneg %p53
      %p155 = pneg %p77
      %p156 = pneg %p74
      %p157 = pneg %p103
      %p158 = pneg %p100
      %s159 = smul.u32 8, %s14
      %p160 = scmp.lt.s32.totalorder %s159, 15
      %s161 = scalar_select %p160, %s159, 15
      %s162 = smul.addr %s161, 8
      %s163 = scalar_lea.vmem %s3, %s162
      %s164 = smul.u32 8, %s14
      %p165 = scmp.lt.s32.totalorder %s164, 15
      %s166 = scalar_select %p165, %s164, 15
      %s167 = smul.addr %s166, 3
      %s168 = smul.addr %s167, 4
      %s169 = scalar_lea.vmem %s0, %s168
      %s170 = smul.u32 8, %s14
      %s171 = smul.u32 8, %s14
      %p172 = scmp.lt.s32.totalorder %s171, 15
      %s173 = scalar_select %p172, %s171, 15
      %s174 = smul.addr %s173, 8
      %s175 = scalar_lea.vmem %s3, %s174
      %s176 = smul.u32 8, %s14
      %v178 = vld [vmem:[%s169] sm:$0xff]
      %v179 = vld [vmem:[%s169 + $0x8] sm:$0xf]
      %v180 = vld [vmem:[%s169 + $0xc] sm:$0xff]
      %v181 = vld [vmem:[%s169 + $0x14] sm:$0xf]
      %v182 = vld [vmem:[%s169 + $0x18] sm:$0xff]
      %v183 = vld [vmem:[%s169 + $0x20] sm:$0xf]
      %v184 = vld [vmem:[%s169 + $0x24] sm:$0xff]
      %v185 = vld [vmem:[%s169 + $0x2c] sm:$0xf]
      %v186 = vld [vmem:[%s169 + $0x30] sm:$0xff]
      %v187 = vld [vmem:[%s169 + $0x38] sm:$0xf]
      %v188 = vld [vmem:[%s169 + $0x3c] sm:$0xff]
      %v189 = vld [vmem:[%s169 + $0x44] sm:$0xf]
      %v190 = vld [vmem:[%s169 + $0x48] sm:$0xff]
      %v191 = vld [vmem:[%s169 + $0x50] sm:$0xf]
      %v192 = vld [vmem:[%s169 + $0x54] sm:$0xff]
      %v193 = vld [vmem:[%s169 + $0x5c] sm:$0xf]
      %v194 = vunpack.c.l.bf16 %v178
      %v195 = vunpack.c.h.bf16 %v178
      %v196 = vunpack.c.l.bf16 %v179
      %v197 = vunpack.c.l.bf16 %v180
      %v198 = vunpack.c.h.bf16 %v180
      %v199 = vunpack.c.l.bf16 %v181
      %v200 = vunpack.c.l.bf16 %v182
      %v201 = vunpack.c.h.bf16 %v182
      %v202 = vunpack.c.l.bf16 %v183
      %v203 = vunpack.c.l.bf16 %v184
      %v204 = vunpack.c.h.bf16 %v184
      %v205 = vunpack.c.l.bf16 %v185
      %v206 = vunpack.c.l.bf16 %v186
      %v207 = vunpack.c.h.bf16 %v186
      %v208 = vunpack.c.l.bf16 %v187
      %v209 = vunpack.c.l.bf16 %v188
      %v210 = vunpack.c.h.bf16 %v188
      %v211 = vunpack.c.l.bf16 %v189
      %v212 = vunpack.c.l.bf16 %v190
      %v213 = vunpack.c.h.bf16 %v190
      %v214 = vunpack.c.l.bf16 %v191
      %v215 = vunpack.c.l.bf16 %v192
      %v216 = vunpack.c.h.bf16 %v192
      %v217 = vunpack.c.l.bf16 %v193
      %vm218 = vcmp.gt.f32.partialorder %v194, 0.0
      %vm219 = vcmp.gt.f32.partialorder %v195, 0.0
      %vm220 = vcmp.gt.f32.partialorder %v196, 0.0
      %vm221 = vcmp.gt.f32.partialorder %v197, 0.0
      %vm222 = vcmp.gt.f32.partialorder %v198, 0.0
      %vm223 = vcmp.gt.f32.partialorder %v199, 0.0
      %vm224 = vcmp.gt.f32.partialorder %v200, 0.0
      %vm225 = vcmp.gt.f32.partialorder %v201, 0.0
      %vm226 = vcmp.gt.f32.partialorder %v202, 0.0
      %vm227 = vcmp.gt.f32.partialorder %v203, 0.0
      %vm228 = vcmp.gt.f32.partialorder %v204, 0.0
      %vm229 = vcmp.gt.f32.partialorder %v205, 0.0
      %vm230 = vcmp.gt.f32.partialorder %v206, 0.0
      %vm231 = vcmp.gt.f32.partialorder %v207, 0.0
      %vm232 = vcmp.gt.f32.partialorder %v208, 0.0
      %vm233 = vcmp.gt.f32.partialorder %v209, 0.0
      %vm234 = vcmp.gt.f32.partialorder %v210, 0.0
      %vm235 = vcmp.gt.f32.partialorder %v211, 0.0
      %vm236 = vcmp.gt.f32.partialorder %v212, 0.0
      %vm237 = vcmp.gt.f32.partialorder %v213, 0.0
      %vm238 = vcmp.gt.f32.partialorder %v214, 0.0
      %vm239 = vcmp.gt.f32.partialorder %v215, 0.0
      %vm240 = vcmp.gt.f32.partialorder %v216, 0.0
      %vm241 = vcmp.gt.f32.partialorder %v217, 0.0
      %v242 = vmul.f32 %v194, 0.20019531
      %v243 = vmul.f32 %v195, 0.20019531
      %v244 = vmul.f32 %v196, 0.20019531
      %v245 = vmul.f32 %v197, 0.20019531
      %v246 = vmul.f32 %v198, 0.20019531
      %v247 = vmul.f32 %v199, 0.20019531
      %v248 = vmul.f32 %v200, 0.20019531
      %v249 = vmul.f32 %v201, 0.20019531
      %v250 = vmul.f32 %v202, 0.20019531
      %v251 = vmul.f32 %v203, 0.20019531
      %v252 = vmul.f32 %v204, 0.20019531
      %v253 = vmul.f32 %v205, 0.20019531
      %v254 = vmul.f32 %v206, 0.20019531
      %v255 = vmul.f32 %v207, 0.20019531
      %v256 = vmul.f32 %v208, 0.20019531
      %v257 = vmul.f32 %v209, 0.20019531
      %v258 = vmul.f32 %v210, 0.20019531
      %v259 = vmul.f32 %v211, 0.20019531
      %v260 = vmul.f32 %v212, 0.20019531
      %v261 = vmul.f32 %v213, 0.20019531
      %v262 = vmul.f32 %v214, 0.20019531
      %v263 = vmul.f32 %v215, 0.20019531
      %v264 = vmul.f32 %v216, 0.20019531
      %v265 = vmul.f32 %v217, 0.20019531
      %v266 = vpack.c.bf16 %v243, %v242
      %v267 = vpack.c.bf16 %v244, %v244
      %v268 = vpack.c.bf16 %v246, %v245
      %v269 = vpack.c.bf16 %v247, %v247
      %v270 = vpack.c.bf16 %v249, %v248
      %v271 = vpack.c.bf16 %v250, %v250
      %v272 = vpack.c.bf16 %v252, %v251
      %v273 = vpack.c.bf16 %v253, %v253
      %v274 = vpack.c.bf16 %v255, %v254
      %v275 = vpack.c.bf16 %v256, %v256
      %v276 = vpack.c.bf16 %v258, %v257
      %v277 = vpack.c.bf16 %v259, %v259
      %v278 = vpack.c.bf16 %v261, %v260
      %v279 = vpack.c.bf16 %v262, %v262
      %v280 = vpack.c.bf16 %v264, %v263
      %v281 = vpack.c.bf16 %v265, %v265
      %vm282 = vmpackc.low %vm219, %vm218
      %vm283 = vmpackc.low %vm220, %vm220
      %vm284 = vmpackc.low %vm222, %vm221
      %vm285 = vmpackc.low %vm223, %vm223
      %vm286 = vmpackc.low %vm225, %vm224
      %vm287 = vmpackc.low %vm226, %vm226
      %vm288 = vmpackc.low %vm228, %vm227
      %vm289 = vmpackc.low %vm229, %vm229
      %vm290 = vmpackc.low %vm231, %vm230
      %vm291 = vmpackc.low %vm232, %vm232
      %vm292 = vmpackc.low %vm234, %vm233
      %vm293 = vmpackc.low %vm235, %vm235
      %vm294 = vmpackc.low %vm237, %vm236
      %vm295 = vmpackc.low %vm238, %vm238
      %vm296 = vmpackc.low %vm240, %vm239
      %vm297 = vmpackc.low %vm241, %vm241
      %v298 = vsel %vm282, %v178, %v266
      %v299 = vsel %vm283, %v179, %v267
      %v300 = vsel %vm284, %v180, %v268
      %v301 = vsel %vm285, %v181, %v269
      %v302 = vsel %vm286, %v182, %v270
      %v303 = vsel %vm287, %v183, %v271
      %v304 = vsel %vm288, %v184, %v272
      %v305 = vsel %vm289, %v185, %v273
      %v306 = vsel %vm290, %v186, %v274
      %v307 = vsel %vm291, %v187, %v275
      %v308 = vsel %vm292, %v188, %v276
      %v309 = vsel %vm293, %v189, %v277
      %v310 = vsel %vm294, %v190, %v278
      %v311 = vsel %vm295, %v191, %v279
      %v312 = vsel %vm296, %v192, %v280
      %v313 = vsel %vm297, %v193, %v281
      %v314 = vld [vmem:[%s1] sm:$0xf]
      %v315 = vld [vmem:[%s1 + $0x4] sm:$0xf]
      %v316 = vld [vmem:[%s1 + $0x8] sm:$0xf]
      %v317 = vld [vmem:[%s1 + $0xc] sm:$0xf]
      %v318 = vld [vmem:[%s1 + $0x10] sm:$0xf]
      %v319 = vld [vmem:[%s1 + $0x14] sm:$0xf]
      %v320 = vld [vmem:[%s1 + $0x18] sm:$0xf]
      %v321 = vld [vmem:[%s1 + $0x1c] sm:$0xf]
      %v322 = vld [vmem:[%s1 + $0x20] sm:$0xf]
      %v323 = vld [vmem:[%s1 + $0x24] sm:$0xf]
      %v324 = vld [vmem:[%s1 + $0x28] sm:$0xf]
      %v325 = vld [vmem:[%s1 + $0x2c] sm:$0xf]
      %v326 = vld [vmem:[%s1 + $0x30] sm:$0xf]
      %v327 = vld [vmem:[%s1 + $0x34] sm:$0xf]
      %v328 = vld [vmem:[%s1 + $0x38] sm:$0xf]
      %v329 = vld [vmem:[%s1 + $0x3c] sm:$0xf]
      %v330 = vld [vmem:[%s1 + $0x40] sm:$0xf]
      %v331 = vld [vmem:[%s1 + $0x44] sm:$0xf]
      %v332 = vld [vmem:[%s1 + $0x48] sm:$0xf]
      %v333 = vld [vmem:[%s1 + $0x4c] sm:$0xf]
      %v334 = vld [vmem:[%s1 + $0x50] sm:$0xf]
      %v335 = vld [vmem:[%s1 + $0x54] sm:$0xf]
      %v336 = vld [vmem:[%s1 + $0x58] sm:$0xf]
      %v337 = vld [vmem:[%s1 + $0x5c] sm:$0xf]
      %v338 = vld [vmem:[%s1 + $0x60] sm:$0xf]
      %v339 = vld [vmem:[%s1 + $0x64] sm:$0xf]
      %v340 = vld [vmem:[%s1 + $0x68] sm:$0xf]
      %v341 = vld [vmem:[%s1 + $0x6c] sm:$0xf]
      %v342 = vld [vmem:[%s1 + $0x70] sm:$0xf]
      %v343 = vld [vmem:[%s1 + $0x74] sm:$0xf]
      %v344 = vld [vmem:[%s1 + $0x78] sm:$0xf]
      %v345 = vld [vmem:[%s1 + $0x7c] sm:$0xf]
      %v346 = vld [vmem:[%s1 + $0x80] sm:$0xf]
      %v347 = vld [vmem:[%s1 + $0x84] sm:$0xf]
      %v348 = vld [vmem:[%s1 + $0x88] sm:$0xf]
      %v349 = vld [vmem:[%s1 + $0x8c] sm:$0xf]
      %v350 = vld [vmem:[%s1 + $0x90] sm:$0xf]
      %v351 = vld [vmem:[%s1 + $0x94] sm:$0xf]
      %v352 = vld [vmem:[%s1 + $0x98] sm:$0xf]
      %v353 = vld [vmem:[%s1 + $0x9c] sm:$0xf]
      %v354 = vld [vmem:[%s2] sm:$0x1]
      %v356 = vperm.slane %v354, 0
      %v374 = vunpack.c.l.b16 %v298
      %v375 = vunpack.c.h.b16 %v298
      %v376 = vunpack.c.l.b16 %v299
      %v377 = vunpack.c.l.b16 %v300
      %v378 = vunpack.c.h.b16 %v300
      %v379 = vunpack.c.l.b16 %v301
      %v380 = vunpack.c.l.b16 %v302
      %v381 = vunpack.c.h.b16 %v302
      %v382 = vunpack.c.l.b16 %v303
      %v383 = vunpack.c.l.b16 %v304
      %v384 = vunpack.c.h.b16 %v304
      %v385 = vunpack.c.l.b16 %v305
      %v386 = vunpack.c.l.b16 %v306
      %v387 = vunpack.c.h.b16 %v306
      %v388 = vunpack.c.l.b16 %v307
      %v389 = vunpack.c.l.b16 %v308
      %v390 = vunpack.c.h.b16 %v308
      %v391 = vunpack.c.l.b16 %v309
      %v392 = vunpack.c.l.b16 %v310
      %v393 = vunpack.c.h.b16 %v310
      %v394 = vunpack.c.l.b16 %v311
      %v395 = vunpack.c.l.b16 %v312
      %v396 = vunpack.c.h.b16 %v312
      %v397 = vunpack.c.l.b16 %v313
      %v398 = vpack.c.b16 %v377, %v374
      %v399 = vpack.c.b16 %v378, %v375
      %v400 = vpack.c.b16 %v379, %v376
      %v401 = vpack.c.b16 %v383, %v380
      %v402 = vpack.c.b16 %v384, %v381
      %v403 = vpack.c.b16 %v385, %v382
      %v404 = vpack.c.b16 %v389, %v386
      %v405 = vpack.c.b16 %v390, %v387
      %v406 = vpack.c.b16 %v391, %v388
      %v407 = vpack.c.b16 %v395, %v392
      %v408 = vpack.c.b16 %v396, %v393
      %v409 = vpack.c.b16 %v397, %v394
      %v458 = vunpack.c.l.b16 %v314
      %v459 = vunpack.c.l.b16 %v315
      %v460 = vunpack.c.l.b16 %v316
      %v461 = vunpack.c.l.b16 %v317
      %v462 = vunpack.c.l.b16 %v318
      %v463 = vunpack.c.l.b16 %v319
      %v464 = vunpack.c.l.b16 %v320
      %v465 = vunpack.c.l.b16 %v321
      %v466 = vunpack.c.l.b16 %v322
      %v467 = vunpack.c.l.b16 %v323
      %v468 = vunpack.c.l.b16 %v324
      %v469 = vunpack.c.l.b16 %v325
      %v470 = vunpack.c.l.b16 %v326
      %v471 = vunpack.c.l.b16 %v327
      %v472 = vunpack.c.l.b16 %v328
      %v473 = vunpack.c.l.b16 %v329
      %v474 = vunpack.c.l.b16 %v330
      %v475 = vunpack.c.l.b16 %v331
      %v476 = vunpack.c.l.b16 %v332
      %v477 = vunpack.c.l.b16 %v333
      %v478 = vunpack.c.l.b16 %v334
      %v479 = vunpack.c.l.b16 %v335
      %v480 = vunpack.c.l.b16 %v336
      %v481 = vunpack.c.l.b16 %v337
      %v482 = vunpack.c.l.b16 %v338
      %v483 = vunpack.c.l.b16 %v339
      %v484 = vunpack.c.l.b16 %v340
      %v485 = vunpack.c.l.b16 %v341
      %v486 = vunpack.c.l.b16 %v342
      %v487 = vunpack.c.l.b16 %v343
      %v488 = vunpack.c.l.b16 %v344
      %v489 = vunpack.c.l.b16 %v345
      %v490 = vunpack.c.l.b16 %v346
      %v491 = vunpack.c.l.b16 %v347
      %v492 = vunpack.c.l.b16 %v348
      %v493 = vunpack.c.l.b16 %v349
      %v494 = vunpack.c.l.b16 %v350
      %v495 = vunpack.c.l.b16 %v351
      %v496 = vunpack.c.l.b16 %v352
      %v497 = vunpack.c.l.b16 %v353
      %v498 = vpack.c.b16 %v459, %v458
      %v499 = vpack.c.b16 %v461, %v460
      %v500 = vpack.c.b16 %v463, %v462
      %v501 = vpack.c.b16 %v465, %v464
      %v502 = vpack.c.b16 %v467, %v466
      %v503 = vpack.c.b16 %v469, %v468
      %v504 = vpack.c.b16 %v471, %v470
      %v505 = vpack.c.b16 %v473, %v472
      %v506 = vpack.c.b16 %v475, %v474
      %v507 = vpack.c.b16 %v477, %v476
      %v508 = vpack.c.b16 %v479, %v478
      %v509 = vpack.c.b16 %v481, %v480
      %v510 = vpack.c.b16 %v483, %v482
      %v511 = vpack.c.b16 %v485, %v484
      %v512 = vpack.c.b16 %v487, %v486
      %v513 = vpack.c.b16 %v489, %v488
      %v514 = vpack.c.b16 %v491, %v490
      %v515 = vpack.c.b16 %v493, %v492
      %v516 = vpack.c.b16 %v495, %v494
      %v517 = vpack.c.b16 %v497, %v496
      %vm538 = vcmask 523264
      %v540 = vsel %vm538, %v400, 0
      %v543 = vsel %vm538, %v403, 0
      %v546 = vsel %vm538, %v406, 0
      %v549 = vsel %vm538, %v409, 0
      %551 = vmatpush.bf16.msra.mxu0 %v505
      %552 = vmatpush.bf16.msra.mxu0 %v504
      %553 = vmatpush.bf16.msra.mxu0 %v503
      %554 = vmatpush.bf16.msra.mxu0 %v502
      %555 = vmatpush.bf16.msra.mxu0 %v501
      %556 = vmatpush.bf16.msra.mxu0 %v500
      %557 = vmatpush.bf16.msra.mxu0 %v499
      %558 = vmatpush.bf16.msra.mxu0 %v498
      %559 = vmatmul.bf16.gmra.mxu0 %v398
      %v560 = vpop.f32.mrf.mxu0
      %v561 = vadd.f32 %v356, %v560
      %v562 = vpop.f32.mrf.mxu0
      %v563 = vadd.f32 %v356, %v562
      %564 = vmatmul.bf16.gmra.mxu0 %v401
      %v565 = vpop.f32.mrf.mxu0
      %v566 = vadd.f32 %v356, %v565
      %v567 = vpop.f32.mrf.mxu0
      %v568 = vadd.f32 %v356, %v567
      %569 = vmatmul.bf16.gmra.mxu0 %v404
      %v570 = vpop.f32.mrf.mxu0
      %v571 = vadd.f32 %v356, %v570
      %v572 = vpop.f32.mrf.mxu0
      %v573 = vadd.f32 %v356, %v572
      %574 = vmatmul.bf16.gmra.mxu0 %v407
      %v575 = vpop.f32.mrf.mxu0
      %v576 = vadd.f32 %v356, %v575
      %v577 = vpop.f32.mrf.mxu0
      %v578 = vadd.f32 %v356, %v577
      %579 = vdwg.mxu0
      %580 = vmatpush.bf16.msra.mxu0 %v513
      %581 = vmatpush.bf16.msra.mxu0 %v512
      %582 = vmatpush.bf16.msra.mxu0 %v511
      %583 = vmatpush.bf16.msra.mxu0 %v510
      %584 = vmatpush.bf16.msra.mxu0 %v509
      %585 = vmatpush.bf16.msra.mxu0 %v508
      %586 = vmatpush.bf16.msra.mxu0 %v507
      %587 = vmatpush.bf16.msra.mxu0 %v506
      %588 = vmatmul.bf16.gmra.mxu0 %v399
      %v589 = vpop.f32.mrf.mxu0
      %v590 = vadd.f32 %v561, %v589
      %v591 = vpop.f32.mrf.mxu0
      %v592 = vadd.f32 %v563, %v591
      %593 = vmatmul.bf16.gmra.mxu0 %v402
      %v594 = vpop.f32.mrf.mxu0
      %v595 = vadd.f32 %v566, %v594
      %v596 = vpop.f32.mrf.mxu0
      %v597 = vadd.f32 %v568, %v596
      %598 = vmatmul.bf16.gmra.mxu0 %v405
      %v599 = vpop.f32.mrf.mxu0
      %v600 = vadd.f32 %v571, %v599
      %v601 = vpop.f32.mrf.mxu0
      %v602 = vadd.f32 %v573, %v601
      %603 = vmatmul.bf16.gmra.mxu0 %v408
      %v604 = vpop.f32.mrf.mxu0
      %v605 = vadd.f32 %v576, %v604
      %v606 = vpop.f32.mrf.mxu0
      %v607 = vadd.f32 %v578, %v606
      %608 = vdwg.mxu0
      %609 = vmatpush.bf16.msra.mxu0 0
      %610 = vmatpush.bf16.msra.mxu0 0
      %611 = vmatpush.bf16.msra.mxu0 0
      %612 = vmatpush.bf16.msra.mxu0 0
      %613 = vmatpush.bf16.msra.mxu0 %v517
      %614 = vmatpush.bf16.msra.mxu0 %v516
      %615 = vmatpush.bf16.msra.mxu0 %v515
      %616 = vmatpush.bf16.msra.mxu0 %v514
      %617 = vmatmul.bf16.gmra.mxu0 %v540
      %v618 = vpop.f32.mrf.mxu0
      %v619 = vadd.f32 %v590, %v618
      %v620 = vpop.f32.mrf.mxu0
      %v621 = vadd.f32 %v592, %v620
      %622 = vmatmul.bf16.gmra.mxu0 %v543
      %v623 = vpop.f32.mrf.mxu0
      %v624 = vadd.f32 %v595, %v623
      %v625 = vpop.f32.mrf.mxu0
      %v626 = vadd.f32 %v597, %v625
      %627 = vmatmul.bf16.gmra.mxu0 %v546
      %v628 = vpop.f32.mrf.mxu0
      %v629 = vadd.f32 %v600, %v628
      %v630 = vpop.f32.mrf.mxu0
      %v631 = vadd.f32 %v602, %v630
      %632 = vmatmul.bf16.gmra.mxu0 %v549
      %v633 = vpop.f32.mrf.mxu0
      %v634 = vadd.f32 %v605, %v633
      %v635 = vpop.f32.mrf.mxu0
      %v636 = vadd.f32 %v607, %v635
      %637 = vdwg.mxu0
      %vm638 = vcmask 261120
      %639 = vst.msk [vmem:[%s175] sm:$0xff] %vm638, %v619
      %640 = vst.msk [vmem:[%s175 + $0x8] sm:$0xff] %vm638, %v621
      %641 = vst.msk [vmem:[%s175 + $0x10] sm:$0xff] %vm638, %v624
      %642 = vst.msk [vmem:[%s175 + $0x18] sm:$0xff] %vm638, %v626
      %643 = vst.msk [vmem:[%s175 + $0x20] sm:$0xff] %vm638, %v629
      %644 = vst.msk [vmem:[%s175 + $0x28] sm:$0xff] %vm638, %v631
      %645 = vst.msk [vmem:[%s175 + $0x30] sm:$0xff] %vm638, %v634
      %646 = vst.msk [vmem:[%s175 + $0x38] sm:$0xff] %vm638, %v636
      %s647 = smul.u32 8, %s14
      %p648 = scmp.lt.s32.totalorder %s647, 15
      %s649 = scalar_select %p648, %s647, 15
      %s650 = smul.addr %s649, 8
      %s651 = scalar_lea.vmem %s3, %s650
      // Predicated region
      $region33: #{g_unet_add_all_forward.14} parent=31 // pred_check
        %p652 = pneg %p100
      $region34: #{g_unet_add_all_forward.14} parent=31 // pred_check_branch
        %654 = sbr.rel (%p652) target = $region36
      $region35: #{g_unet_add_all_forward.14} parent=31 // pred_region
        %s655 = smul.u32 8, %s14
      $region36: #{g_unet_add_all_forward.14} parent=31 // pred_fallthru
        _
    $region32: #{g_unet_add_all_forward.14} parent=5 // pred_fallthru
      _
    %p656 = scmp.le.s32.totalorder 2, %s9
    // Predicated region
    $region37: #{g_unet_add_all_forward.14} parent=5 // pred_check
      %p657 = pneg %p656
    $region38: #{g_unet_add_all_forward.14} parent=5 // pred_check_branch
      %659 = sbr.rel (%p657) target = $region40
    $region39: #{g_unet_add_all_forward.14} parent=5 // pred_region
      %s660 = ssub.s32 %s9, 2
      // Predicated region
      $region41: #{g_unet_add_all_forward.14} parent=39 // pred_check
        %p661 = pneg %p106
      $region42: #{g_unet_add_all_forward.14} parent=39 // pred_check_branch
        %663 = sbr.rel (%p661) target = $region44
      $region43: #{g_unet_add_all_forward.14} parent=39 // pred_region
        %s664 = smul.u32 8, %s15
        %p665 = scmp.lt.s32.totalorder %s664, 15
        %s666 = scalar_select %p665, %s664, 15
        %s667 = smul.addr %s666, 8
        %s668 = scalar_lea.vmem %s3, %s667
      $region44: #{g_unet_add_all_forward.14} parent=39 // pred_fallthru
        _
    $region40: #{g_unet_add_all_forward.14} parent=5 // pred_fallthru
      _
  $region6: #{g_unet_add_all_forward.14} parent=0 // loop_footer
    %s13 = sadd.s32 1, %s9
  $region7: #{g_unet_add_all_forward.14} parent=0 // loop_footer_branch
    %8 = sbr.rel target = $region3
  $region8: #{g_unet_add_all_forward.14} parent=0 // loop_exit
    _

// kernel: g_unet_add_all_forward.15
$region0: #{g_unet_add_all_forward.15}
  #allocation0 [shape = 'u32[]', space=smem, size = 0x4, offset = 0x4, fixed_abs, tag = 'smem constant byte address 0x4 - core index']
  #allocation1 [shape = 'u32[72,128]{1,0:T(1,128)}', space=vmem, size = 0x9000, scoped, tag = 'internal scratch']
  %s0 = inlined_call_operand.vmem [shape: bf16[32,576], index: 0, kind: input, shape index: {}]
  %s1 = inlined_call_operand.vmem [shape: bf16[576,64], index: 1, kind: input, shape index: {}]
  %s2 = inlined_call_operand.vmem [shape: f32[1,64], index: 2, kind: input, shape index: {}]
  %s3 = inlined_call_operand.vmem [shape: f32[32,64], index: 3, kind: output, shape index: {}]
  %s4 = sld [smem:[#allocation0]]
  $region45: #{g_unet_add_all_forward.15} parent=0
    _
  %s6 = ssub.s32 1, %s4
  %s7 = scalar_select 0, %s6, %s4
  loop: start=0, step=1, limit=4
  $region2: #{g_unet_add_all_forward.15} parent=0 // loop_pre_header
    _
  $region3: #{g_unet_add_all_forward.15} parent=0 // loop_header
    %s9 = sphi 0, %s13
    %p10 = scmp.ge.s32.totalorder %s9, 4
    %s19 = sphi 0, %s21
    %s22 = sphi 0, %s19
    %s23 = sphi 0, %s22
    %s39 = sphi 0, %s23
    %s43 = sphi 0, %s43
    %s45 = sphi 0, %s43
    %s46 = sphi 0, %s45
    %s60 = sphi 0, %s46
    %s64 = sphi 0, %s64
    %s66 = sphi 0, %s64
    %s67 = sphi 0, %s66
    %s81 = sphi 0, %s67
    %s87 = sphi 0, %s89
    %s90 = sphi 0, %s87
    %s91 = sphi 0, %s90
    %s107 = sphi 0, %s91
  $region4: #{g_unet_add_all_forward.15} parent=0 // loop_header_branch
    %12 = sbr.rel (%p10) target = $region8
  $region5: #{g_unet_add_all_forward.15} parent=0 // loop_body
    %s14 = ssub.s32 %s9, 1
    %s15 = ssub.s32 %s9, 2
    %s16 = sadd.s32 %s9, 1
    %s17 = ssub.s32 %s9, %s16
    %p18 = scmp.eq.s32.totalorder %s17, 0
    %s20 = sadd.s32 %s19, 1
    %s21 = scalar_select %p18, %s19, %s20
    %p24 = pneg %p18
    %p25 = scmp.eq.s32.totalorder %s9, 1
    %p26 = por %p24, %p25
    %p27 = scmp.ne.s32.totalorder %s19, %s22
    %p28 = scmp.eq.s32.totalorder %s9, 0
    %p29 = por %p27, %p28
    %p30 = scmp.ne.s32.totalorder %s19, %s22
    %p31 = scmp.eq.s32.totalorder %s14, 1
    %p32 = por %p30, %p31
    %p33 = scmp.ne.s32.totalorder %s22, %s23
    %p34 = scmp.eq.s32.totalorder %s14, 0
    %p35 = por %p33, %p34
    %p36 = scmp.ne.s32.totalorder %s22, %s23
    %p37 = scmp.eq.s32.totalorder %s15, 1
    %p38 = por %p36, %p37
    %p40 = scmp.ne.s32.totalorder %s23, %s39
    %p41 = scmp.eq.s32.totalorder %s15, 0
    %p42 = por %p40, %p41
    %s44 = sadd.s32 %s43, 1
    %p47 = scmp.eq.s32.totalorder %s9, 1
    %p48 = scmp.ne.s32.totalorder %s43, %s45
    %p49 = scmp.eq.s32.totalorder %s9, 0
    %p50 = por %p48, %p49
    %p51 = scmp.ne.s32.totalorder %s43, %s45
    %p52 = scmp.eq.s32.totalorder %s14, 1
    %p53 = por %p51, %p52
    %p54 = scmp.ne.s32.totalorder %s45, %s46
    %p55 = scmp.eq.s32.totalorder %s14, 0
    %p56 = por %p54, %p55
    %p57 = scmp.ne.s32.totalorder %s45, %s46
    %p58 = scmp.eq.s32.totalorder %s15, 1
    %p59 = por %p57, %p58
    %p61 = scmp.ne.s32.totalorder %s46, %s60
    %p62 = scmp.eq.s32.totalorder %s15, 0
    %p63 = por %p61, %p62
    %s65 = sadd.s32 %s64, 1
    %p68 = scmp.eq.s32.totalorder %s9, 1
    %p69 = scmp.ne.s32.totalorder %s64, %s66
    %p70 = scmp.eq.s32.totalorder %s9, 0
    %p71 = por %p69, %p70
    %p72 = scmp.ne.s32.totalorder %s64, %s66
    %p73 = scmp.eq.s32.totalorder %s14, 1
    %p74 = por %p72, %p73
    %p75 = scmp.ne.s32.totalorder %s66, %s67
    %p76 = scmp.eq.s32.totalorder %s14, 0
    %p77 = por %p75, %p76
    %p78 = scmp.ne.s32.totalorder %s66, %s67
    %p79 = scmp.eq.s32.totalorder %s15, 1
    %p80 = por %p78, %p79
    %p82 = scmp.ne.s32.totalorder %s67, %s81
    %p83 = scmp.eq.s32.totalorder %s15, 0
    %p84 = por %p82, %p83
    %s85 = ssub.s32 %s9, %s16
    %p86 = scmp.eq.s32.totalorder %s85, 0
    %s88 = sadd.s32 %s87, 1
    %s89 = scalar_select %p86, %s87, %s88
    %p92 = pneg %p86
    %p93 = scmp.eq.s32.totalorder %s9, 1
    %p94 = por %p92, %p93
    %p95 = scmp.ne.s32.totalorder %s87, %s90
    %p96 = scmp.eq.s32.totalorder %s9, 0
    %p97 = por %p95, %p96
    %p98 = scmp.ne.s32.totalorder %s87, %s90
    %p99 = scmp.eq.s32.totalorder %s14, 1
    %p100 = por %p98, %p99
    %p101 = scmp.ne.s32.totalorder %s90, %s91
    %p102 = scmp.eq.s32.totalorder %s14, 0
    %p103 = por %p101, %p102
    %p104 = scmp.ne.s32.totalorder %s90, %s91
    %p105 = scmp.eq.s32.totalorder %s15, 1
    %p106 = por %p104, %p105
    %p108 = scmp.ne.s32.totalorder %s91, %s107
    %p109 = scmp.eq.s32.totalorder %s15, 0
    %p110 = por %p108, %p109
    %p111 = scmp.le.s32.totalorder 1, %s9
    %p112 = scmp.lt.s32.totalorder %s9, 3
    %p113 = pnand %p111, %p112
    %p114 = pneg %p113
    // Predicated region
    $region9: #{g_unet_add_all_forward.15} parent=5 // pred_check
      _
    $region10: #{g_unet_add_all_forward.15} parent=5 // pred_check_branch
      %116 = sbr.rel (%p113) target = $region12
    $region11: #{g_unet_add_all_forward.15} parent=5 // pred_region
      %s117 = ssub.s32 %s9, 1
      // Predicated region
      $region13: #{g_unet_add_all_forward.15} parent=11 // pred_check
        %p118 = pneg %p56
      $region14: #{g_unet_add_all_forward.15} parent=11 // pred_check_branch
        %120 = sbr.rel (%p118) target = $region16
      $region15: #{g_unet_add_all_forward.15} parent=11 // pred_region
        _
      $region16: #{g_unet_add_all_forward.15} parent=11 // pred_fallthru
        _
      // Predicated region
      $region17: #{g_unet_add_all_forward.15} parent=11 // pred_check
        %p121 = pneg %p77
      $region18: #{g_unet_add_all_forward.15} parent=11 // pred_check_branch
        %123 = sbr.rel (%p121) target = $region20
      $region19: #{g_unet_add_all_forward.15} parent=11 // pred_region
        _
      $region20: #{g_unet_add_all_forward.15} parent=11 // pred_fallthru
        _
    $region12: #{g_unet_add_all_forward.15} parent=5 // pred_fallthru
      _
    %p124 = scmp.lt.s32.totalorder %s9, 2
    // Predicated region
    $region21: #{g_unet_add_all_forward.15} parent=5 // pred_check
      %p125 = pneg %p124
    $region22: #{g_unet_add_all_forward.15} parent=5 // pred_check_branch
      %127 = sbr.rel (%p125) target = $region24
    $region23: #{g_unet_add_all_forward.15} parent=5 // pred_region
      // Predicated region
      $region25: #{g_unet_add_all_forward.15} parent=23 // pred_check
        %p128 = pneg %p29
      $region26: #{g_unet_add_all_forward.15} parent=23 // pred_check_branch
        %130 = sbr.rel (%p128) target = $region28
      $region27: #{g_unet_add_all_forward.15} parent=23 // pred_region
        %s131 = smul.u32 2, %s9
        %p132 = scmp.lt.s32.totalorder %s131, 3
        %s133 = scalar_select %p132, %s131, 3
        %s134 = smul.addr %s133, 5
        %s135 = smul.addr %s134, 4
        %s136 = scalar_lea.vmem %s0, %s135
        %s137 = smul.u32 2, %s9
      $region28: #{g_unet_add_all_forward.15} parent=23 // pred_fallthru
        _
    $region24: #{g_unet_add_all_forward.15} parent=5 // pred_fallthru
      _
    %p138 = scmp.le.s32.totalorder 1, %s9
    %p139 = scmp.lt.s32.totalorder %s9, 3
    %p140 = pnand %p138, %p139
    %p141 = pneg %p140
    // Predicated region
    $region29: #{g_unet_add_all_forward.15} parent=5 // pred_check
      _
    $region30: #{g_unet_add_all_forward.15} parent=5 // pred_check_branch
      %143 = sbr.rel (%p140) target = $region32
    $region31: #{g_unet_add_all_forward.15} parent=5 // pred_region
      %s144 = ssub.s32 %s9, 1
      %s145 = smul.u32 2, %s14
      %p146 = scmp.lt.s32.totalorder %s145, 3
      %s147 = scalar_select %p146, %s145, 3
      %s148 = smul.addr %s147, 5
      %s149 = smul.addr %s148, 4
      %s150 = scalar_lea.vmem %s0, %s149
      %p151 = pneg %p35
      %p152 = pneg %p32
      %p153 = pneg %p56
      %p154 = pneg %p53
      %p155 = pneg %p77
      %p156 = pneg %p74
      %p157 = pneg %p103
      %p158 = pneg %p100
      %s159 = smul.u32 2, %s14
      %p160 = scmp.lt.s32.totalorder %s159, 3
      %s161 = scalar_select %p160, %s159, 3
      %s162 = smul.addr %s161, 8
      %s163 = scalar_lea.vmem %s3, %s162
      %s164 = smul.u32 2, %s14
      %p165 = scmp.lt.s32.totalorder %s164, 3
      %s166 = scalar_select %p165, %s164, 3
      %s167 = smul.addr %s166, 5
      %s168 = smul.addr %s167, 4
      %s169 = scalar_lea.vmem %s0, %s168
      %s170 = smul.u32 2, %s14
      %s171 = smul.u32 2, %s14
      %p172 = scmp.lt.s32.totalorder %s171, 3
      %s173 = scalar_select %p172, %s171, 3
      %s174 = smul.addr %s173, 8
      %s175 = scalar_lea.vmem %s3, %s174
      %s176 = smul.u32 2, %s14
      %v178 = vld [vmem:[%s169] sm:$0xff]
      %v179 = vld [vmem:[%s169 + $0x8] sm:$0xff]
      %v180 = vld [vmem:[%s169 + $0x10] sm:$0xf]
      %v181 = vld [vmem:[%s169 + $0x14] sm:$0xff]
      %v182 = vld [vmem:[%s169 + $0x1c] sm:$0xff]
      %v183 = vld [vmem:[%s169 + $0x24] sm:$0xf]
      %v184 = vunpack.c.l.bf16 %v178
      %v185 = vunpack.c.h.bf16 %v178
      %v186 = vunpack.c.l.bf16 %v179
      %v187 = vunpack.c.h.bf16 %v179
      %v188 = vunpack.c.l.bf16 %v180
      %v189 = vunpack.c.l.bf16 %v181
      %v190 = vunpack.c.h.bf16 %v181
      %v191 = vunpack.c.l.bf16 %v182
      %v192 = vunpack.c.h.bf16 %v182
      %v193 = vunpack.c.l.bf16 %v183
      %vm194 = vcmp.gt.f32.partialorder %v184, 0.0
      %vm195 = vcmp.gt.f32.partialorder %v185, 0.0
      %vm196 = vcmp.gt.f32.partialorder %v186, 0.0
      %vm197 = vcmp.gt.f32.partialorder %v187, 0.0
      %vm198 = vcmp.gt.f32.partialorder %v188, 0.0
      %vm199 = vcmp.gt.f32.partialorder %v189, 0.0
      %vm200 = vcmp.gt.f32.partialorder %v190, 0.0
      %vm201 = vcmp.gt.f32.partialorder %v191, 0.0
      %vm202 = vcmp.gt.f32.partialorder %v192, 0.0
      %vm203 = vcmp.gt.f32.partialorder %v193, 0.0
      %v204 = vmul.f32 %v184, 0.20019531
      %v205 = vmul.f32 %v185, 0.20019531
      %v206 = vmul.f32 %v186, 0.20019531
      %v207 = vmul.f32 %v187, 0.20019531
      %v208 = vmul.f32 %v188, 0.20019531
      %v209 = vmul.f32 %v189, 0.20019531
      %v210 = vmul.f32 %v190, 0.20019531
      %v211 = vmul.f32 %v191, 0.20019531
      %v212 = vmul.f32 %v192, 0.20019531
      %v213 = vmul.f32 %v193, 0.20019531
      %v214 = vpack.c.bf16 %v205, %v204
      %v215 = vpack.c.bf16 %v207, %v206
      %v216 = vpack.c.bf16 %v208, %v208
      %v217 = vpack.c.bf16 %v210, %v209
      %v218 = vpack.c.bf16 %v212, %v211
      %v219 = vpack.c.bf16 %v213, %v213
      %vm220 = vmpackc.low %vm195, %vm194
      %vm221 = vmpackc.low %vm197, %vm196
      %vm222 = vmpackc.low %vm198, %vm198
      %vm223 = vmpackc.low %vm200, %vm199
      %vm224 = vmpackc.low %vm202, %vm201
      %vm225 = vmpackc.low %vm203, %vm203
      %v226 = vsel %vm220, %v178, %v214
      %v227 = vsel %vm221, %v179, %v215
      %v228 = vsel %vm222, %v180, %v216
      %v229 = vsel %vm223, %v181, %v217
      %v230 = vsel %vm224, %v182, %v218
      %v231 = vsel %vm225, %v183, %v219
      %v232 = vld [vmem:[%s1] sm:$0xf]
      %v233 = vld [vmem:[%s1 + $0x4] sm:$0xf]
      %v234 = vld [vmem:[%s1 + $0x8] sm:$0xf]
      %v235 = vld [vmem:[%s1 + $0xc] sm:$0xf]
      %v236 = vld [vmem:[%s1 + $0x10] sm:$0xf]
      %v237 = vld [vmem:[%s1 + $0x14] sm:$0xf]
      %v238 = vld [vmem:[%s1 + $0x18] sm:$0xf]
      %v239 = vld [vmem:[%s1 + $0x1c] sm:$0xf]
      %v240 = vld [vmem:[%s1 + $0x20] sm:$0xf]
      %v241 = vld [vmem:[%s1 + $0x24] sm:$0xf]
      %v242 = vld [vmem:[%s1 + $0x28] sm:$0xf]
      %v243 = vld [vmem:[%s1 + $0x2c] sm:$0xf]
      %v244 = vld [vmem:[%s1 + $0x30] sm:$0xf]
      %v245 = vld [vmem:[%s1 + $0x34] sm:$0xf]
      %v246 = vld [vmem:[%s1 + $0x38] sm:$0xf]
      %v247 = vld [vmem:[%s1 + $0x3c] sm:$0xf]
      %v248 = vld [vmem:[%s1 + $0x40] sm:$0xf]
      %v249 = vld [vmem:[%s1 + $0x44] sm:$0xf]
      %v250 = vld [vmem:[%s1 + $0x48] sm:$0xf]
      %v251 = vld [vmem:[%s1 + $0x4c] sm:$0xf]
      %v252 = vld [vmem:[%s1 + $0x50] sm:$0xf]
      %v253 = vld [vmem:[%s1 + $0x54] sm:$0xf]
      %v254 = vld [vmem:[%s1 + $0x58] sm:$0xf]
      %v255 = vld [vmem:[%s1 + $0x5c] sm:$0xf]
      %v256 = vld [vmem:[%s1 + $0x60] sm:$0xf]
      %v257 = vld [vmem:[%s1 + $0x64] sm:$0xf]
      %v258 = vld [vmem:[%s1 + $0x68] sm:$0xf]
      %v259 = vld [vmem:[%s1 + $0x6c] sm:$0xf]
      %v260 = vld [vmem:[%s1 + $0x70] sm:$0xf]
      %v261 = vld [vmem:[%s1 + $0x74] sm:$0xf]
      %v262 = vld [vmem:[%s1 + $0x78] sm:$0xf]
      %v263 = vld [vmem:[%s1 + $0x7c] sm:$0xf]
      %v264 = vld [vmem:[%s1 + $0x80] sm:$0xf]
      %v265 = vld [vmem:[%s1 + $0x84] sm:$0xf]
      %v266 = vld [vmem:[%s1 + $0x88] sm:$0xf]
      %v267 = vld [vmem:[%s1 + $0x8c] sm:$0xf]
      %v268 = vld [vmem:[%s1 + $0x90] sm:$0xf]
      %v269 = vld [vmem:[%s1 + $0x94] sm:$0xf]
      %v270 = vld [vmem:[%s1 + $0x98] sm:$0xf]
      %v271 = vld [vmem:[%s1 + $0x9c] sm:$0xf]
      %v272 = vld [vmem:[%s1 + $0xa0] sm:$0xf]
      %v273 = vld [vmem:[%s1 + $0xa4] sm:$0xf]
      %v274 = vld [vmem:[%s1 + $0xa8] sm:$0xf]
      %v275 = vld [vmem:[%s1 + $0xac] sm:$0xf]
      %v276 = vld [vmem:[%s1 + $0xb0] sm:$0xf]
      %v277 = vld [vmem:[%s1 + $0xb4] sm:$0xf]
      %v278 = vld [vmem:[%s1 + $0xb8] sm:$0xf]
      %v279 = vld [vmem:[%s1 + $0xbc] sm:$0xf]
      %v280 = vld [vmem:[%s1 + $0xc0] sm:$0xf]
      %v281 = vld [vmem:[%s1 + $0xc4] sm:$0xf]
      %v282 = vld [vmem:[%s1 + $0xc8] sm:$0xf]
      %v283 = vld [vmem:[%s1 + $0xcc] sm:$0xf]
      %v284 = vld [vmem:[%s1 + $0xd0] sm:$0xf]
      %v285 = vld [vmem:[%s1 + $0xd4] sm:$0xf]
      %v286 = vld [vmem:[%s1 + $0xd8] sm:$0xf]
      %v287 = vld [vmem:[%s1 + $0xdc] sm:$0xf]
      %v288 = vld [vmem:[%s1 + $0xe0] sm:$0xf]
      %v289 = vld [vmem:[%s1 + $0xe4] sm:$0xf]
      %v290 = vld [vmem:[%s1 + $0xe8] sm:$0xf]
      %v291 = vld [vmem:[%s1 + $0xec] sm:$0xf]
      %v292 = vld [vmem:[%s1 + $0xf0] sm:$0xf]
      %v293 = vld [vmem:[%s1 + $0xf4] sm:$0xf]
      %v294 = vld [vmem:[%s1 + $0xf8] sm:$0xf]
      %v295 = vld [vmem:[%s1 + $0xfc] sm:$0xf]
      %v296 = vld [vmem:[%s1 + $0x100] sm:$0xf]
      %v297 = vld [vmem:[%s1 + $0x104] sm:$0xf]
      %v298 = vld [vmem:[%s1 + $0x108] sm:$0xf]
      %v299 = vld [vmem:[%s1 + $0x10c] sm:$0xf]
      %v300 = vld [vmem:[%s1 + $0x110] sm:$0xf]
      %v301 = vld [vmem:[%s1 + $0x114] sm:$0xf]
      %v302 = vld [vmem:[%s1 + $0x118] sm:$0xf]
      %v303 = vld [vmem:[%s1 + $0x11c] sm:$0xf]
      %v304 = vld [vmem:[%s2] sm:$0x1]
      %v306 = vperm.slane %v304, 0
      %v314 = vunpack.c.l.b16 %v226
      %v315 = vunpack.c.h.b16 %v226
      %v316 = vunpack.c.l.b16 %v227
      %v317 = vunpack.c.h.b16 %v227
      %v318 = vunpack.c.l.b16 %v228
      %v319 = vunpack.c.l.b16 %v229
      %v320 = vunpack.c.h.b16 %v229
      %v321 = vunpack.c.l.b16 %v230
      %v322 = vunpack.c.h.b16 %v230
      %v323 = vunpack.c.l.b16 %v231
      %v324 = vpack.c.b16 %v319, %v314
      %v325 = vpack.c.b16 %v320, %v315
      %v326 = vpack.c.b16 %v321, %v316
      %v327 = vpack.c.b16 %v322, %v317
      %v328 = vpack.c.b16 %v323, %v318
      %v405 = vunpack.c.l.b16 %v232
      %v406 = vunpack.c.l.b16 %v233
      %v407 = vunpack.c.l.b16 %v234
      %v408 = vunpack.c.l.b16 %v235
      %v409 = vunpack.c.l.b16 %v236
      %v410 = vunpack.c.l.b16 %v237
      %v411 = vunpack.c.l.b16 %v238
      %v412 = vunpack.c.l.b16 %v239
      %v413 = vunpack.c.l.b16 %v240
      %v414 = vunpack.c.l.b16 %v241
      %v415 = vunpack.c.l.b16 %v242
      %v416 = vunpack.c.l.b16 %v243
      %v417 = vunpack.c.l.b16 %v244
      %v418 = vunpack.c.l.b16 %v245
      %v419 = vunpack.c.l.b16 %v246
      %v420 = vunpack.c.l.b16 %v247
      %v421 = vunpack.c.l.b16 %v248
      %v422 = vunpack.c.l.b16 %v249
      %v423 = vunpack.c.l.b16 %v250
      %v424 = vunpack.c.l.b16 %v251
      %v425 = vunpack.c.l.b16 %v252
      %v426 = vunpack.c.l.b16 %v253
      %v427 = vunpack.c.l.b16 %v254
      %v428 = vunpack.c.l.b16 %v255
      %v429 = vunpack.c.l.b16 %v256
      %v430 = vunpack.c.l.b16 %v257
      %v431 = vunpack.c.l.b16 %v258
      %v432 = vunpack.c.l.b16 %v259
      %v433 = vunpack.c.l.b16 %v260
      %v434 = vunpack.c.l.b16 %v261
      %v435 = vunpack.c.l.b16 %v262
      %v436 = vunpack.c.l.b16 %v263
      %v437 = vunpack.c.l.b16 %v264
      %v438 = vunpack.c.l.b16 %v265
      %v439 = vunpack.c.l.b16 %v266
      %v440 = vunpack.c.l.b16 %v267
      %v441 = vunpack.c.l.b16 %v268
      %v442 = vunpack.c.l.b16 %v269
      %v443 = vunpack.c.l.b16 %v270
      %v444 = vunpack.c.l.b16 %v271
      %v445 = vunpack.c.l.b16 %v272
      %v446 = vunpack.c.l.b16 %v273
      %v447 = vunpack.c.l.b16 %v274
      %v448 = vunpack.c.l.b16 %v275
      %v449 = vunpack.c.l.b16 %v276
      %v450 = vunpack.c.l.b16 %v277
      %v451 = vunpack.c.l.b16 %v278
      %v452 = vunpack.c.l.b16 %v279
      %v453 = vunpack.c.l.b16 %v280
      %v454 = vunpack.c.l.b16 %v281
      %v455 = vunpack.c.l.b16 %v282
      %v456 = vunpack.c.l.b16 %v283
      %v457 = vunpack.c.l.b16 %v284
      %v458 = vunpack.c.l.b16 %v285
      %v459 = vunpack.c.l.b16 %v286
      %v460 = vunpack.c.l.b16 %v287
      %v461 = vunpack.c.l.b16 %v288
      %v462 = vunpack.c.l.b16 %v289
      %v463 = vunpack.c.l.b16 %v290
      %v464 = vunpack.c.l.b16 %v291
      %v465 = vunpack.c.l.b16 %v292
      %v466 = vunpack.c.l.b16 %v293
      %v467 = vunpack.c.l.b16 %v294
      %v468 = vunpack.c.l.b16 %v295
      %v469 = vunpack.c.l.b16 %v296
      %v470 = vunpack.c.l.b16 %v297
      %v471 = vunpack.c.l.b16 %v298
      %v472 = vunpack.c.l.b16 %v299
      %v473 = vunpack.c.l.b16 %v300
      %v474 = vunpack.c.l.b16 %v301
      %v475 = vunpack.c.l.b16 %v302
      %v476 = vunpack.c.l.b16 %v303
      %v477 = vpack.c.b16 %v406, %v405
      %v478 = vpack.c.b16 %v408, %v407
      %v479 = vpack.c.b16 %v410, %v409
      %v480 = vpack.c.b16 %v412, %v411
      %v481 = vpack.c.b16 %v414, %v413
      %v482 = vpack.c.b16 %v416, %v415
      %v483 = vpack.c.b16 %v418, %v417
      %v484 = vpack.c.b16 %v420, %v419
      %v485 = vpack.c.b16 %v422, %v421
      %v486 = vpack.c.b16 %v424, %v423
      %v487 = vpack.c.b16 %v426, %v425
      %v488 = vpack.c.b16 %v428, %v427
      %v489 = vpack.c.b16 %v430, %v429
      %v490 = vpack.c.b16 %v432, %v431
      %v491 = vpack.c.b16 %v434, %v433
      %v492 = vpack.c.b16 %v436, %v435
      %v493 = vpack.c.b16 %v438, %v437
      %v494 = vpack.c.b16 %v440, %v439
      %v495 = vpack.c.b16 %v442, %v441
      %v496 = vpack.c.b16 %v444, %v443
      %v497 = vpack.c.b16 %v446, %v445
      %v498 = vpack.c.b16 %v448, %v447
      %v499 = vpack.c.b16 %v450, %v449
      %v500 = vpack.c.b16 %v452, %v451
      %v501 = vpack.c.b16 %v454, %v453
      %v502 = vpack.c.b16 %v456, %v455
      %v503 = vpack.c.b16 %v458, %v457
      %v504 = vpack.c.b16 %v460, %v459
      %v505 = vpack.c.b16 %v462, %v461
      %v506 = vpack.c.b16 %v464, %v463
      %v507 = vpack.c.b16 %v466, %v465
      %v508 = vpack.c.b16 %v468, %v467
      %v509 = vpack.c.b16 %v470, %v469
      %v510 = vpack.c.b16 %v472, %v471
      %v511 = vpack.c.b16 %v474, %v473
      %v512 = vpack.c.b16 %v476, %v475
      %vm549 = vcmask 523264
      %v551 = vsel %vm549, %v328, 0
      %553 = vmatpush.bf16.msra.mxu0 %v484
      %554 = vmatpush.bf16.msra.mxu0 %v483
      %555 = vmatpush.bf16.msra.mxu0 %v482
      %556 = vmatpush.bf16.msra.mxu0 %v481
      %557 = vmatpush.bf16.msra.mxu0 %v480
      %558 = vmatpush.bf16.msra.mxu0 %v479
      %559 = vmatpush.bf16.msra.mxu0 %v478
      %560 = vmatpush.bf16.msra.mxu0 %v477
      %561 = vmatmul.bf16.gmra.mxu0 %v324
      %v562 = vpop.f32.mrf.mxu0
      %v563 = vadd.f32 %v306, %v562
      %v564 = vpop.f32.mrf.mxu0
      %v565 = vadd.f32 %v306, %v564
      %566 = vdwg.mxu0
      %567 = vmatpush.bf16.msra.mxu0 %v492
      %568 = vmatpush.bf16.msra.mxu0 %v491
      %569 = vmatpush.bf16.msra.mxu0 %v490
      %570 = vmatpush.bf16.msra.mxu0 %v489
      %571 = vmatpush.bf16.msra.mxu0 %v488
      %572 = vmatpush.bf16.msra.mxu0 %v487
      %573 = vmatpush.bf16.msra.mxu0 %v486
      %574 = vmatpush.bf16.msra.mxu0 %v485
      %575 = vmatmul.bf16.gmra.mxu0 %v325
      %v576 = vpop.f32.mrf.mxu0
      %v577 = vadd.f32 %v563, %v576
      %v578 = vpop.f32.mrf.mxu0
      %v579 = vadd.f32 %v565, %v578
      %580 = vdwg.mxu0
      %581 = vmatpush.bf16.msra.mxu0 %v500
      %582 = vmatpush.bf16.msra.mxu0 %v499
      %583 = vmatpush.bf16.msra.mxu0 %v498
      %584 = vmatpush.bf16.msra.mxu0 %v497
      %585 = vmatpush.bf16.msra.mxu0 %v496
      %586 = vmatpush.bf16.msra.mxu0 %v495
      %587 = vmatpush.bf16.msra.mxu0 %v494
      %588 = vmatpush.bf16.msra.mxu0 %v493
      %589 = vmatmul.bf16.gmra.mxu0 %v326
      %v590 = vpop.f32.mrf.mxu0
      %v591 = vadd.f32 %v577, %v590
      %v592 = vpop.f32.mrf.mxu0
      %v593 = vadd.f32 %v579, %v592
      %594 = vdwg.mxu0
      %595 = vmatpush.bf16.msra.mxu0 %v508
      %596 = vmatpush.bf16.msra.mxu0 %v507
      %597 = vmatpush.bf16.msra.mxu0 %v506
      %598 = vmatpush.bf16.msra.mxu0 %v505
      %599 = vmatpush.bf16.msra.mxu0 %v504
      %600 = vmatpush.bf16.msra.mxu0 %v503
      %601 = vmatpush.bf16.msra.mxu0 %v502
      %602 = vmatpush.bf16.msra.mxu0 %v501
      %603 = vmatmul.bf16.gmra.mxu0 %v327
      %v604 = vpop.f32.mrf.mxu0
      %v605 = vadd.f32 %v591, %v604
      %v606 = vpop.f32.mrf.mxu0
      %v607 = vadd.f32 %v593, %v606
      %608 = vdwg.mxu0
      %609 = vmatpush.bf16.msra.mxu0 0
      %610 = vmatpush.bf16.msra.mxu0 0
      %611 = vmatpush.bf16.msra.mxu0 0
      %612 = vmatpush.bf16.msra.mxu0 0
      %613 = vmatpush.bf16.msra.mxu0 %v512
      %614 = vmatpush.bf16.msra.mxu0 %v511
      %615 = vmatpush.bf16.msra.mxu0 %v510
      %616 = vmatpush.bf16.msra.mxu0 %v509
      %617 = vmatmul.bf16.gmra.mxu0 %v551
      %v618 = vpop.f32.mrf.mxu0
      %v619 = vadd.f32 %v605, %v618
      %v620 = vpop.f32.mrf.mxu0
      %v621 = vadd.f32 %v607, %v620
      %622 = vdwg.mxu0
      %623 = vst.msk [vmem:[%s175] sm:$0xff] %vm549, %v619
      %624 = vst.msk [vmem:[%s175 + $0x8] sm:$0xff] %vm549, %v621
      %s625 = smul.u32 2, %s14
      %p626 = scmp.lt.s32.totalorder %s625, 3
      %s627 = scalar_select %p626, %s625, 3
      %s628 = smul.addr %s627, 8
      %s629 = scalar_lea.vmem %s3, %s628
      // Predicated region
      $region33: #{g_unet_add_all_forward.15} parent=31 // pred_check
        %p630 = pneg %p100
      $region34: #{g_unet_add_all_forward.15} parent=31 // pred_check_branch
        %632 = sbr.rel (%p630) target = $region36
      $region35: #{g_unet_add_all_forward.15} parent=31 // pred_region
        %s633 = smul.u32 2, %s14
      $region36: #{g_unet_add_all_forward.15} parent=31 // pred_fallthru
        _
    $region32: #{g_unet_add_all_forward.15} parent=5 // pred_fallthru
      _
    %p634 = scmp.le.s32.totalorder 2, %s9
    // Predicated region
    $region37: #{g_unet_add_all_forward.15} parent=5 // pred_check
      %p635 = pneg %p634
    $region38: #{g_unet_add_all_forward.15} parent=5 // pred_check_branch
      %637 = sbr.rel (%p635) target = $region40
    $region39: #{g_unet_add_all_forward.15} parent=5 // pred_region
      %s638 = ssub.s32 %s9, 2
      // Predicated region
      $region41: #{g_unet_add_all_forward.15} parent=39 // pred_check
        %p639 = pneg %p106
      $region42: #{g_unet_add_all_forward.15} parent=39 // pred_check_branch
        %641 = sbr.rel (%p639) target = $region44
      $region43: #{g_unet_add_all_forward.15} parent=39 // pred_region
        %s642 = smul.u32 2, %s15
        %p643 = scmp.lt.s32.totalorder %s642, 3
        %s644 = scalar_select %p643, %s642, 3
        %s645 = smul.addr %s644, 8
        %s646 = scalar_lea.vmem %s3, %s645
      $region44: #{g_unet_add_all_forward.15} parent=39 // pred_fallthru
        _
    $region40: #{g_unet_add_all_forward.15} parent=5 // pred_fallthru
      _
  $region6: #{g_unet_add_all_forward.15} parent=0 // loop_footer
    %s13 = sadd.s32 1, %s9
  $region7: #{g_unet_add_all_forward.15} parent=0 // loop_footer_branch
    %8 = sbr.rel target = $region3
  $region8: #{g_unet_add_all_forward.15} parent=0 // loop_exit
    _

// kernel: g_unet_add_all_forward.16
$region0: #{g_unet_add_all_forward.16}
  #allocation0 [shape = 'u32[]', space=smem, size = 0x4, offset = 0x4, fixed_abs, tag = 'smem constant byte address 0x4 - core index']
  #allocation1 [shape = 'u32[72,128]{1,0:T(1,128)}', space=vmem, size = 0x9000, scoped, tag = 'internal scratch']
  %s0 = inlined_call_operand.vmem [shape: bf16[8,1088], index: 0, kind: input, shape index: {}]
  %s1 = inlined_call_operand.vmem [shape: bf16[1088,64], index: 1, kind: input, shape index: {}]
  %s2 = inlined_call_operand.vmem [shape: f32[1,64], index: 2, kind: input, shape index: {}]
  %s3 = inlined_call_operand.vmem [shape: f32[8,64], index: 3, kind: output, shape index: {}]
  %s4 = sld [smem:[#allocation0]]
  $region22: #{g_unet_add_all_forward.16} parent=0
    _
  %s6 = ssub.s32 1, %s4
  %s7 = scalar_select 0, %s6, %s4
  // Predicated region
  $region2: #{g_unet_add_all_forward.16} parent=0 // pred_check
    _
  $region3: #{g_unet_add_all_forward.16} parent=0 // pred_check_branch
    %9 = sbr.rel (0) target = $region5
  $region4: #{g_unet_add_all_forward.16} parent=0 // pred_region
    _
  $region5: #{g_unet_add_all_forward.16} parent=0 // pred_fallthru
    _
  // Predicated region
  $region6: #{g_unet_add_all_forward.16} parent=0 // pred_check
    _
  $region7: #{g_unet_add_all_forward.16} parent=0 // pred_check_branch
    %11 = sbr.rel (0) target = $region9
  $region8: #{g_unet_add_all_forward.16} parent=0 // pred_region
    _
  $region9: #{g_unet_add_all_forward.16} parent=0 // pred_fallthru
    _
  // Predicated region
  $region10: #{g_unet_add_all_forward.16} parent=0 // pred_check
    _
  $region11: #{g_unet_add_all_forward.16} parent=0 // pred_check_branch
    %13 = sbr.rel (0) target = $region13
  $region12: #{g_unet_add_all_forward.16} parent=0 // pred_region
    _
  $region13: #{g_unet_add_all_forward.16} parent=0 // pred_fallthru
    _
  %v15 = vld [vmem:[%s0] sm:$0xff]
  %v16 = vld [vmem:[%s0 + $0x8] sm:$0xff]
  %v17 = vld [vmem:[%s0 + $0x10] sm:$0xff]
  %v18 = vld [vmem:[%s0 + $0x18] sm:$0xff]
  %v19 = vld [vmem:[%s0 + $0x20] sm:$0xf]
  %v20 = vunpack.c.l.bf16 %v15
  %v21 = vunpack.c.h.bf16 %v15
  %v22 = vunpack.c.l.bf16 %v16
  %v23 = vunpack.c.h.bf16 %v16
  %v24 = vunpack.c.l.bf16 %v17
  %v25 = vunpack.c.h.bf16 %v17
  %v26 = vunpack.c.l.bf16 %v18
  %v27 = vunpack.c.h.bf16 %v18
  %v28 = vunpack.c.l.bf16 %v19
  %vm29 = vcmp.gt.f32.partialorder %v20, 0.0
  %vm30 = vcmp.gt.f32.partialorder %v21, 0.0
  %vm31 = vcmp.gt.f32.partialorder %v22, 0.0
  %vm32 = vcmp.gt.f32.partialorder %v23, 0.0
  %vm33 = vcmp.gt.f32.partialorder %v24, 0.0
  %vm34 = vcmp.gt.f32.partialorder %v25, 0.0
  %vm35 = vcmp.gt.f32.partialorder %v26, 0.0
  %vm36 = vcmp.gt.f32.partialorder %v27, 0.0
  %vm37 = vcmp.gt.f32.partialorder %v28, 0.0
  %v38 = vmul.f32 %v20, 0.20019531
  %v39 = vmul.f32 %v21, 0.20019531
  %v40 = vmul.f32 %v22, 0.20019531
  %v41 = vmul.f32 %v23, 0.20019531
  %v42 = vmul.f32 %v24, 0.20019531
  %v43 = vmul.f32 %v25, 0.20019531
  %v44 = vmul.f32 %v26, 0.20019531
  %v45 = vmul.f32 %v27, 0.20019531
  %v46 = vmul.f32 %v28, 0.20019531
  %v47 = vpack.c.bf16 %v39, %v38
  %v48 = vpack.c.bf16 %v41, %v40
  %v49 = vpack.c.bf16 %v43, %v42
  %v50 = vpack.c.bf16 %v45, %v44
  %v51 = vpack.c.bf16 %v46, %v46
  %vm52 = vmpackc.low %vm30, %vm29
  %vm53 = vmpackc.low %vm32, %vm31
  %vm54 = vmpackc.low %vm34, %vm33
  %vm55 = vmpackc.low %vm36, %vm35
  %vm56 = vmpackc.low %vm37, %vm37
  %v57 = vsel %vm52, %v15, %v47
  %v58 = vsel %vm53, %v16, %v48
  %v59 = vsel %vm54, %v17, %v49
  %v60 = vsel %vm55, %v18, %v50
  %v61 = vsel %vm56, %v19, %v51
  %v62 = vld [vmem:[%s1] sm:$0xf]
  %v63 = vld [vmem:[%s1 + $0x4] sm:$0xf]
  %v64 = vld [vmem:[%s1 + $0x8] sm:$0xf]
  %v65 = vld [vmem:[%s1 + $0xc] sm:$0xf]
  %v66 = vld [vmem:[%s1 + $0x10] sm:$0xf]
  %v67 = vld [vmem:[%s1 + $0x14] sm:$0xf]
  %v68 = vld [vmem:[%s1 + $0x18] sm:$0xf]
  %v69 = vld [vmem:[%s1 + $0x1c] sm:$0xf]
  %v70 = vld [vmem:[%s1 + $0x20] sm:$0xf]
  %v71 = vld [vmem:[%s1 + $0x24] sm:$0xf]
  %v72 = vld [vmem:[%s1 + $0x28] sm:$0xf]
  %v73 = vld [vmem:[%s1 + $0x2c] sm:$0xf]
  %v74 = vld [vmem:[%s1 + $0x30] sm:$0xf]
  %v75 = vld [vmem:[%s1 + $0x34] sm:$0xf]
  %v76 = vld [vmem:[%s1 + $0x38] sm:$0xf]
  %v77 = vld [vmem:[%s1 + $0x3c] sm:$0xf]
  %v78 = vld [vmem:[%s1 + $0x40] sm:$0xf]
  %v79 = vld [vmem:[%s1 + $0x44] sm:$0xf]
  %v80 = vld [vmem:[%s1 + $0x48] sm:$0xf]
  %v81 = vld [vmem:[%s1 + $0x4c] sm:$0xf]
  %v82 = vld [vmem:[%s1 + $0x50] sm:$0xf]
  %v83 = vld [vmem:[%s1 + $0x54] sm:$0xf]
  %v84 = vld [vmem:[%s1 + $0x58] sm:$0xf]
  %v85 = vld [vmem:[%s1 + $0x5c] sm:$0xf]
  %v86 = vld [vmem:[%s1 + $0x60] sm:$0xf]
  %v87 = vld [vmem:[%s1 + $0x64] sm:$0xf]
  %v88 = vld [vmem:[%s1 + $0x68] sm:$0xf]
  %v89 = vld [vmem:[%s1 + $0x6c] sm:$0xf]
  %v90 = vld [vmem:[%s1 + $0x70] sm:$0xf]
  %v91 = vld [vmem:[%s1 + $0x74] sm:$0xf]
  %v92 = vld [vmem:[%s1 + $0x78] sm:$0xf]
  %v93 = vld [vmem:[%s1 + $0x7c] sm:$0xf]
  %v94 = vld [vmem:[%s1 + $0x80] sm:$0xf]
  %v95 = vld [vmem:[%s1 + $0x84] sm:$0xf]
  %v96 = vld [vmem:[%s1 + $0x88] sm:$0xf]
  %v97 = vld [vmem:[%s1 + $0x8c] sm:$0xf]
  %v98 = vld [vmem:[%s1 + $0x90] sm:$0xf]
  %v99 = vld [vmem:[%s1 + $0x94] sm:$0xf]
  %v100 = vld [vmem:[%s1 + $0x98] sm:$0xf]
  %v101 = vld [vmem:[%s1 + $0x9c] sm:$0xf]
  %v102 = vld [vmem:[%s1 + $0xa0] sm:$0xf]
  %v103 = vld [vmem:[%s1 + $0xa4] sm:$0xf]
  %v104 = vld [vmem:[%s1 + $0xa8] sm:$0xf]
  %v105 = vld [vmem:[%s1 + $0xac] sm:$0xf]
  %v106 = vld [vmem:[%s1 + $0xb0] sm:$0xf]
  %v107 = vld [vmem:[%s1 + $0xb4] sm:$0xf]
  %v108 = vld [vmem:[%s1 + $0xb8] sm:$0xf]
  %v109 = vld [vmem:[%s1 + $0xbc] sm:$0xf]
  %v110 = vld [vmem:[%s1 + $0xc0] sm:$0xf]
  %v111 = vld [vmem:[%s1 + $0xc4] sm:$0xf]
  %v112 = vld [vmem:[%s1 + $0xc8] sm:$0xf]
  %v113 = vld [vmem:[%s1 + $0xcc] sm:$0xf]
  %v114 = vld [vmem:[%s1 + $0xd0] sm:$0xf]
  %v115 = vld [vmem:[%s1 + $0xd4] sm:$0xf]
  %v116 = vld [vmem:[%s1 + $0xd8] sm:$0xf]
  %v117 = vld [vmem:[%s1 + $0xdc] sm:$0xf]
  %v118 = vld [vmem:[%s1 + $0xe0] sm:$0xf]
  %v119 = vld [vmem:[%s1 + $0xe4] sm:$0xf]
  %v120 = vld [vmem:[%s1 + $0xe8] sm:$0xf]
  %v121 = vld [vmem:[%s1 + $0xec] sm:$0xf]
  %v122 = vld [vmem:[%s1 + $0xf0] sm:$0xf]
  %v123 = vld [vmem:[%s1 + $0xf4] sm:$0xf]
  %v124 = vld [vmem:[%s1 + $0xf8] sm:$0xf]
  %v125 = vld [vmem:[%s1 + $0xfc] sm:$0xf]
  %v126 = vld [vmem:[%s1 + $0x100] sm:$0xf]
  %v127 = vld [vmem:[%s1 + $0x104] sm:$0xf]
  %v128 = vld [vmem:[%s1 + $0x108] sm:$0xf]
  %v129 = vld [vmem:[%s1 + $0x10c] sm:$0xf]
  %v130 = vld [vmem:[%s1 + $0x110] sm:$0xf]
  %v131 = vld [vmem:[%s1 + $0x114] sm:$0xf]
  %v132 = vld [vmem:[%s1 + $0x118] sm:$0xf]
  %v133 = vld [vmem:[%s1 + $0x11c] sm:$0xf]
  %v134 = vld [vmem:[%s1 + $0x120] sm:$0xf]
  %v135 = vld [vmem:[%s1 + $0x124] sm:$0xf]
  %v136 = vld [vmem:[%s1 + $0x128] sm:$0xf]
  %v137 = vld [vmem:[%s1 + $0x12c] sm:$0xf]
  %v138 = vld [vmem:[%s1 + $0x130] sm:$0xf]
  %v139 = vld [vmem:[%s1 + $0x134] sm:$0xf]
  %v140 = vld [vmem:[%s1 + $0x138] sm:$0xf]
  %v141 = vld [vmem:[%s1 + $0x13c] sm:$0xf]
  %v142 = vld [vmem:[%s1 + $0x140] sm:$0xf]
  %v143 = vld [vmem:[%s1 + $0x144] sm:$0xf]
  %v144 = vld [vmem:[%s1 + $0x148] sm:$0xf]
  %v145 = vld [vmem:[%s1 + $0x14c] sm:$0xf]
  %v146 = vld [vmem:[%s1 + $0x150] sm:$0xf]
  %v147 = vld [vmem:[%s1 + $0x154] sm:$0xf]
  %v148 = vld [vmem:[%s1 + $0x158] sm:$0xf]
  %v149 = vld [vmem:[%s1 + $0x15c] sm:$0xf]
  %v150 = vld [vmem:[%s1 + $0x160] sm:$0xf]
  %v151 = vld [vmem:[%s1 + $0x164] sm:$0xf]
  %v152 = vld [vmem:[%s1 + $0x168] sm:$0xf]
  %v153 = vld [vmem:[%s1 + $0x16c] sm:$0xf]
  %v154 = vld [vmem:[%s1 + $0x170] sm:$0xf]
  %v155 = vld [vmem:[%s1 + $0x174] sm:$0xf]
  %v156 = vld [vmem:[%s1 + $0x178] sm:$0xf]
  %v157 = vld [vmem:[%s1 + $0x17c] sm:$0xf]
  %v158 = vld [vmem:[%s1 + $0x180] sm:$0xf]
  %v159 = vld [vmem:[%s1 + $0x184] sm:$0xf]
  %v160 = vld [vmem:[%s1 + $0x188] sm:$0xf]
  %v161 = vld [vmem:[%s1 + $0x18c] sm:$0xf]
  %v162 = vld [vmem:[%s1 + $0x190] sm:$0xf]
  %v163 = vld [vmem:[%s1 + $0x194] sm:$0xf]
  %v164 = vld [vmem:[%s1 + $0x198] sm:$0xf]
  %v165 = vld [vmem:[%s1 + $0x19c] sm:$0xf]
  %v166 = vld [vmem:[%s1 + $0x1a0] sm:$0xf]
  %v167 = vld [vmem:[%s1 + $0x1a4] sm:$0xf]
  %v168 = vld [vmem:[%s1 + $0x1a8] sm:$0xf]
  %v169 = vld [vmem:[%s1 + $0x1ac] sm:$0xf]
  %v170 = vld [vmem:[%s1 + $0x1b0] sm:$0xf]
  %v171 = vld [vmem:[%s1 + $0x1b4] sm:$0xf]
  %v172 = vld [vmem:[%s1 + $0x1b8] sm:$0xf]
  %v173 = vld [vmem:[%s1 + $0x1bc] sm:$0xf]
  %v174 = vld [vmem:[%s1 + $0x1c0] sm:$0xf]
  %v175 = vld [vmem:[%s1 + $0x1c4] sm:$0xf]
  %v176 = vld [vmem:[%s1 + $0x1c8] sm:$0xf]
  %v177 = vld [vmem:[%s1 + $0x1cc] sm:$0xf]
  %v178 = vld [vmem:[%s1 + $0x1d0] sm:$0xf]
  %v179 = vld [vmem:[%s1 + $0x1d4] sm:$0xf]
  %v180 = vld [vmem:[%s1 + $0x1d8] sm:$0xf]
  %v181 = vld [vmem:[%s1 + $0x1dc] sm:$0xf]
  %v182 = vld [vmem:[%s1 + $0x1e0] sm:$0xf]
  %v183 = vld [vmem:[%s1 + $0x1e4] sm:$0xf]
  %v184 = vld [vmem:[%s1 + $0x1e8] sm:$0xf]
  %v185 = vld [vmem:[%s1 + $0x1ec] sm:$0xf]
  %v186 = vld [vmem:[%s1 + $0x1f0] sm:$0xf]
  %v187 = vld [vmem:[%s1 + $0x1f4] sm:$0xf]
  %v188 = vld [vmem:[%s1 + $0x1f8] sm:$0xf]
  %v189 = vld [vmem:[%s1 + $0x1fc] sm:$0xf]
  %v190 = vld [vmem:[%s1 + $0x200] sm:$0xf]
  %v191 = vld [vmem:[%s1 + $0x204] sm:$0xf]
  %v192 = vld [vmem:[%s1 + $0x208] sm:$0xf]
  %v193 = vld [vmem:[%s1 + $0x20c] sm:$0xf]
  %v194 = vld [vmem:[%s1 + $0x210] sm:$0xf]
  %v195 = vld [vmem:[%s1 + $0x214] sm:$0xf]
  %v196 = vld [vmem:[%s1 + $0x218] sm:$0xf]
  %v197 = vld [vmem:[%s1 + $0x21c] sm:$0xf]
  %v198 = vld [vmem:[%s2] sm:$0x1]
  %v200 = vperm.slane %v198, 0
  %v207 = vunpack.c.l.b16 %v57
  %v208 = vunpack.c.h.b16 %v57
  %v209 = vunpack.c.l.b16 %v58
  %v210 = vunpack.c.h.b16 %v58
  %v211 = vunpack.c.l.b16 %v59
  %v212 = vunpack.c.h.b16 %v59
  %v213 = vunpack.c.l.b16 %v60
  %v214 = vunpack.c.h.b16 %v60
  %v215 = vunpack.c.l.b16 %v61
  %v216 = vpack.c.b16 %v207, %v207
  %v217 = vpack.c.b16 %v208, %v208
  %v218 = vpack.c.b16 %v209, %v209
  %v219 = vpack.c.b16 %v210, %v210
  %v220 = vpack.c.b16 %v211, %v211
  %v221 = vpack.c.b16 %v212, %v212
  %v222 = vpack.c.b16 %v213, %v213
  %v223 = vpack.c.b16 %v214, %v214
  %v224 = vpack.c.b16 %v215, %v215
  %v369 = vunpack.c.l.b16 %v62
  %v370 = vunpack.c.l.b16 %v63
  %v371 = vunpack.c.l.b16 %v64
  %v372 = vunpack.c.l.b16 %v65
  %v373 = vunpack.c.l.b16 %v66
  %v374 = vunpack.c.l.b16 %v67
  %v375 = vunpack.c.l.b16 %v68
  %v376 = vunpack.c.l.b16 %v69
  %v377 = vunpack.c.l.b16 %v70
  %v378 = vunpack.c.l.b16 %v71
  %v379 = vunpack.c.l.b16 %v72
  %v380 = vunpack.c.l.b16 %v73
  %v381 = vunpack.c.l.b16 %v74
  %v382 = vunpack.c.l.b16 %v75
  %v383 = vunpack.c.l.b16 %v76
  %v384 = vunpack.c.l.b16 %v77
  %v385 = vunpack.c.l.b16 %v78
  %v386 = vunpack.c.l.b16 %v79
  %v387 = vunpack.c.l.b16 %v80
  %v388 = vunpack.c.l.b16 %v81
  %v389 = vunpack.c.l.b16 %v82
  %v390 = vunpack.c.l.b16 %v83
  %v391 = vunpack.c.l.b16 %v84
  %v392 = vunpack.c.l.b16 %v85
  %v393 = vunpack.c.l.b16 %v86
  %v394 = vunpack.c.l.b16 %v87
  %v395 = vunpack.c.l.b16 %v88
  %v396 = vunpack.c.l.b16 %v89
  %v397 = vunpack.c.l.b16 %v90
  %v398 = vunpack.c.l.b16 %v91
  %v399 = vunpack.c.l.b16 %v92
  %v400 = vunpack.c.l.b16 %v93
  %v401 = vunpack.c.l.b16 %v94
  %v402 = vunpack.c.l.b16 %v95
  %v403 = vunpack.c.l.b16 %v96
  %v404 = vunpack.c.l.b16 %v97
  %v405 = vunpack.c.l.b16 %v98
  %v406 = vunpack.c.l.b16 %v99
  %v407 = vunpack.c.l.b16 %v100
  %v408 = vunpack.c.l.b16 %v101
  %v409 = vunpack.c.l.b16 %v102
  %v410 = vunpack.c.l.b16 %v103
  %v411 = vunpack.c.l.b16 %v104
  %v412 = vunpack.c.l.b16 %v105
  %v413 = vunpack.c.l.b16 %v106
  %v414 = vunpack.c.l.b16 %v107
  %v415 = vunpack.c.l.b16 %v108
  %v416 = vunpack.c.l.b16 %v109
  %v417 = vunpack.c.l.b16 %v110
  %v418 = vunpack.c.l.b16 %v111
  %v419 = vunpack.c.l.b16 %v112
  %v420 = vunpack.c.l.b16 %v113
  %v421 = vunpack.c.l.b16 %v114
  %v422 = vunpack.c.l.b16 %v115
  %v423 = vunpack.c.l.b16 %v116
  %v424 = vunpack.c.l.b16 %v117
  %v425 = vunpack.c.l.b16 %v118
  %v426 = vunpack.c.l.b16 %v119
  %v427 = vunpack.c.l.b16 %v120
  %v428 = vunpack.c.l.b16 %v121
  %v429 = vunpack.c.l.b16 %v122
  %v430 = vunpack.c.l.b16 %v123
  %v431 = vunpack.c.l.b16 %v124
  %v432 = vunpack.c.l.b16 %v125
  %v433 = vunpack.c.l.b16 %v126
  %v434 = vunpack.c.l.b16 %v127
  %v435 = vunpack.c.l.b16 %v128
  %v436 = vunpack.c.l.b16 %v129
  %v437 = vunpack.c.l.b16 %v130
  %v438 = vunpack.c.l.b16 %v131
  %v439 = vunpack.c.l.b16 %v132
  %v440 = vunpack.c.l.b16 %v133
  %v441 = vunpack.c.l.b16 %v134
  %v442 = vunpack.c.l.b16 %v135
  %v443 = vunpack.c.l.b16 %v136
  %v444 = vunpack.c.l.b16 %v137
  %v445 = vunpack.c.l.b16 %v138
  %v446 = vunpack.c.l.b16 %v139
  %v447 = vunpack.c.l.b16 %v140
  %v448 = vunpack.c.l.b16 %v141
  %v449 = vunpack.c.l.b16 %v142
  %v450 = vunpack.c.l.b16 %v143
  %v451 = vunpack.c.l.b16 %v144
  %v452 = vunpack.c.l.b16 %v145
  %v453 = vunpack.c.l.b16 %v146
  %v454 = vunpack.c.l.b16 %v147
  %v455 = vunpack.c.l.b16 %v148
  %v456 = vunpack.c.l.b16 %v149
  %v457 = vunpack.c.l.b16 %v150
  %v458 = vunpack.c.l.b16 %v151
  %v459 = vunpack.c.l.b16 %v152
  %v460 = vunpack.c.l.b16 %v153
  %v461 = vunpack.c.l.b16 %v154
  %v462 = vunpack.c.l.b16 %v155
  %v463 = vunpack.c.l.b16 %v156
  %v464 = vunpack.c.l.b16 %v157
  %v465 = vunpack.c.l.b16 %v158
  %v466 = vunpack.c.l.b16 %v159
  %v467 = vunpack.c.l.b16 %v160
  %v468 = vunpack.c.l.b16 %v161
  %v469 = vunpack.c.l.b16 %v162
  %v470 = vunpack.c.l.b16 %v163
  %v471 = vunpack.c.l.b16 %v164
  %v472 = vunpack.c.l.b16 %v165
  %v473 = vunpack.c.l.b16 %v166
  %v474 = vunpack.c.l.b16 %v167
  %v475 = vunpack.c.l.b16 %v168
  %v476 = vunpack.c.l.b16 %v169
  %v477 = vunpack.c.l.b16 %v170
  %v478 = vunpack.c.l.b16 %v171
  %v479 = vunpack.c.l.b16 %v172
  %v480 = vunpack.c.l.b16 %v173
  %v481 = vunpack.c.l.b16 %v174
  %v482 = vunpack.c.l.b16 %v175
  %v483 = vunpack.c.l.b16 %v176
  %v484 = vunpack.c.l.b16 %v177
  %v485 = vunpack.c.l.b16 %v178
  %v486 = vunpack.c.l.b16 %v179
  %v487 = vunpack.c.l.b16 %v180
  %v488 = vunpack.c.l.b16 %v181
  %v489 = vunpack.c.l.b16 %v182
  %v490 = vunpack.c.l.b16 %v183
  %v491 = vunpack.c.l.b16 %v184
  %v492 = vunpack.c.l.b16 %v185
  %v493 = vunpack.c.l.b16 %v186
  %v494 = vunpack.c.l.b16 %v187
  %v495 = vunpack.c.l.b16 %v188
  %v496 = vunpack.c.l.b16 %v189
  %v497 = vunpack.c.l.b16 %v190
  %v498 = vunpack.c.l.b16 %v191
  %v499 = vunpack.c.l.b16 %v192
  %v500 = vunpack.c.l.b16 %v193
  %v501 = vunpack.c.l.b16 %v194
  %v502 = vunpack.c.l.b16 %v195
  %v503 = vunpack.c.l.b16 %v196
  %v504 = vunpack.c.l.b16 %v197
  %v505 = vpack.c.b16 %v370, %v369
  %v506 = vpack.c.b16 %v372, %v371
  %v507 = vpack.c.b16 %v374, %v373
  %v508 = vpack.c.b16 %v376, %v375
  %v509 = vpack.c.b16 %v378, %v377
  %v510 = vpack.c.b16 %v380, %v379
  %v511 = vpack.c.b16 %v382, %v381
  %v512 = vpack.c.b16 %v384, %v383
  %v513 = vpack.c.b16 %v386, %v385
  %v514 = vpack.c.b16 %v388, %v387
  %v515 = vpack.c.b16 %v390, %v389
  %v516 = vpack.c.b16 %v392, %v391
  %v517 = vpack.c.b16 %v394, %v393
  %v518 = vpack.c.b16 %v396, %v395
  %v519 = vpack.c.b16 %v398, %v397
  %v520 = vpack.c.b16 %v400, %v399
  %v521 = vpack.c.b16 %v402, %v401
  %v522 = vpack.c.b16 %v404, %v403
  %v523 = vpack.c.b16 %v406, %v405
  %v524 = vpack.c.b16 %v408, %v407
  %v525 = vpack.c.b16 %v410, %v409
  %v526 = vpack.c.b16 %v412, %v411
  %v527 = vpack.c.b16 %v414, %v413
  %v528 = vpack.c.b16 %v416, %v415
  %v529 = vpack.c.b16 %v418, %v417
  %v530 = vpack.c.b16 %v420, %v419
  %v531 = vpack.c.b16 %v422, %v421
  %v532 = vpack.c.b16 %v424, %v423
  %v533 = vpack.c.b16 %v426, %v425
  %v534 = vpack.c.b16 %v428, %v427
  %v535 = vpack.c.b16 %v430, %v429
  %v536 = vpack.c.b16 %v432, %v431
  %v537 = vpack.c.b16 %v434, %v433
  %v538 = vpack.c.b16 %v436, %v435
  %v539 = vpack.c.b16 %v438, %v437
  %v540 = vpack.c.b16 %v440, %v439
  %v541 = vpack.c.b16 %v442, %v441
  %v542 = vpack.c.b16 %v444, %v443
  %v543 = vpack.c.b16 %v446, %v445
  %v544 = vpack.c.b16 %v448, %v447
  %v545 = vpack.c.b16 %v450, %v449
  %v546 = vpack.c.b16 %v452, %v451
  %v547 = vpack.c.b16 %v454, %v453
  %v548 = vpack.c.b16 %v456, %v455
  %v549 = vpack.c.b16 %v458, %v457
  %v550 = vpack.c.b16 %v460, %v459
  %v551 = vpack.c.b16 %v462, %v461
  %v552 = vpack.c.b16 %v464, %v463
  %v553 = vpack.c.b16 %v466, %v465
  %v554 = vpack.c.b16 %v468, %v467
  %v555 = vpack.c.b16 %v470, %v469
  %v556 = vpack.c.b16 %v472, %v471
  %v557 = vpack.c.b16 %v474, %v473
  %v558 = vpack.c.b16 %v476, %v475
  %v559 = vpack.c.b16 %v478, %v477
  %v560 = vpack.c.b16 %v480, %v479
  %v561 = vpack.c.b16 %v482, %v481
  %v562 = vpack.c.b16 %v484, %v483
  %v563 = vpack.c.b16 %v486, %v485
  %v564 = vpack.c.b16 %v488, %v487
  %v565 = vpack.c.b16 %v490, %v489
  %v566 = vpack.c.b16 %v492, %v491
  %v567 = vpack.c.b16 %v494, %v493
  %v568 = vpack.c.b16 %v496, %v495
  %v569 = vpack.c.b16 %v498, %v497
  %v570 = vpack.c.b16 %v500, %v499
  %v571 = vpack.c.b16 %v502, %v501
  %v572 = vpack.c.b16 %v504, %v503
  %vm641 = vcmask 523264
  %v643 = vsel %vm641, %v224, 0
  %645 = vmatpush.bf16.msra.mxu0 %v512
  %646 = vmatpush.bf16.msra.mxu0 %v511
  %647 = vmatpush.bf16.msra.mxu0 %v510
  %648 = vmatpush.bf16.msra.mxu0 %v509
  %649 = vmatpush.bf16.msra.mxu0 %v508
  %650 = vmatpush.bf16.msra.mxu0 %v507
  %651 = vmatpush.bf16.msra.mxu0 %v506
  %652 = vmatpush.bf16.msra.mxu0 %v505
  %653 = vmatmul.bf16.gmra.mxu0 %v216
  %v654 = vpop.f32.mrf.mxu0
  %v655 = vadd.f32 %v200, %v654
  %v656 = vpop.f32.mrf.mxu0
  %657 = vdwg.mxu0
  %658 = vmatpush.bf16.msra.mxu0 %v520
  %659 = vmatpush.bf16.msra.mxu0 %v519
  %660 = vmatpush.bf16.msra.mxu0 %v518
  %661 = vmatpush.bf16.msra.mxu0 %v517
  %662 = vmatpush.bf16.msra.mxu0 %v516
  %663 = vmatpush.bf16.msra.mxu0 %v515
  %664 = vmatpush.bf16.msra.mxu0 %v514
  %665 = vmatpush.bf16.msra.mxu0 %v513
  %666 = vmatmul.bf16.gmra.mxu0 %v217
  %v667 = vpop.f32.mrf.mxu0
  %v668 = vadd.f32 %v655, %v667
  %v669 = vpop.f32.mrf.mxu0
  %670 = vdwg.mxu0
  %671 = vmatpush.bf16.msra.mxu0 %v528
  %672 = vmatpush.bf16.msra.mxu0 %v527
  %673 = vmatpush.bf16.msra.mxu0 %v526
  %674 = vmatpush.bf16.msra.mxu0 %v525
  %675 = vmatpush.bf16.msra.mxu0 %v524
  %676 = vmatpush.bf16.msra.mxu0 %v523
  %677 = vmatpush.bf16.msra.mxu0 %v522
  %678 = vmatpush.bf16.msra.mxu0 %v521
  %679 = vmatmul.bf16.gmra.mxu0 %v218
  %v680 = vpop.f32.mrf.mxu0
  %v681 = vadd.f32 %v668, %v680
  %v682 = vpop.f32.mrf.mxu0
  %683 = vdwg.mxu0
  %684 = vmatpush.bf16.msra.mxu0 %v536
  %685 = vmatpush.bf16.msra.mxu0 %v535
  %686 = vmatpush.bf16.msra.mxu0 %v534
  %687 = vmatpush.bf16.msra.mxu0 %v533
  %688 = vmatpush.bf16.msra.mxu0 %v532
  %689 = vmatpush.bf16.msra.mxu0 %v531
  %690 = vmatpush.bf16.msra.mxu0 %v530
  %691 = vmatpush.bf16.msra.mxu0 %v529
  %692 = vmatmul.bf16.gmra.mxu0 %v219
  %v693 = vpop.f32.mrf.mxu0
  %v694 = vadd.f32 %v681, %v693
  %v695 = vpop.f32.mrf.mxu0
  %696 = vdwg.mxu0
  %697 = vmatpush.bf16.msra.mxu0 %v544
  %698 = vmatpush.bf16.msra.mxu0 %v543
  %699 = vmatpush.bf16.msra.mxu0 %v542
  %700 = vmatpush.bf16.msra.mxu0 %v541
  %701 = vmatpush.bf16.msra.mxu0 %v540
  %702 = vmatpush.bf16.msra.mxu0 %v539
  %703 = vmatpush.bf16.msra.mxu0 %v538
  %704 = vmatpush.bf16.msra.mxu0 %v537
  %705 = vmatmul.bf16.gmra.mxu0 %v220
  %v706 = vpop.f32.mrf.mxu0
  %v707 = vadd.f32 %v694, %v706
  %v708 = vpop.f32.mrf.mxu0
  %709 = vdwg.mxu0
  %710 = vmatpush.bf16.msra.mxu0 %v552
  %711 = vmatpush.bf16.msra.mxu0 %v551
  %712 = vmatpush.bf16.msra.mxu0 %v550
  %713 = vmatpush.bf16.msra.mxu0 %v549
  %714 = vmatpush.bf16.msra.mxu0 %v548
  %715 = vmatpush.bf16.msra.mxu0 %v547
  %716 = vmatpush.bf16.msra.mxu0 %v546
  %717 = vmatpush.bf16.msra.mxu0 %v545
  %718 = vmatmul.bf16.gmra.mxu0 %v221
  %v719 = vpop.f32.mrf.mxu0
  %v720 = vadd.f32 %v707, %v719
  %v721 = vpop.f32.mrf.mxu0
  %722 = vdwg.mxu0
  %723 = vmatpush.bf16.msra.mxu0 %v560
  %724 = vmatpush.bf16.msra.mxu0 %v559
  %725 = vmatpush.bf16.msra.mxu0 %v558
  %726 = vmatpush.bf16.msra.mxu0 %v557
  %727 = vmatpush.bf16.msra.mxu0 %v556
  %728 = vmatpush.bf16.msra.mxu0 %v555
  %729 = vmatpush.bf16.msra.mxu0 %v554
  %730 = vmatpush.bf16.msra.mxu0 %v553
  %731 = vmatmul.bf16.gmra.mxu0 %v222
  %v732 = vpop.f32.mrf.mxu0
  %v733 = vadd.f32 %v720, %v732
  %v734 = vpop.f32.mrf.mxu0
  %735 = vdwg.mxu0
  %736 = vmatpush.bf16.msra.mxu0 %v568
  %737 = vmatpush.bf16.msra.mxu0 %v567
  %738 = vmatpush.bf16.msra.mxu0 %v566
  %739 = vmatpush.bf16.msra.mxu0 %v565
  %740 = vmatpush.bf16.msra.mxu0 %v564
  %741 = vmatpush.bf16.msra.mxu0 %v563
  %742 = vmatpush.bf16.msra.mxu0 %v562
  %743 = vmatpush.bf16.msra.mxu0 %v561
  %744 = vmatmul.bf16.gmra.mxu0 %v223
  %v745 = vpop.f32.mrf.mxu0
  %v746 = vadd.f32 %v733, %v745
  %v747 = vpop.f32.mrf.mxu0
  %748 = vdwg.mxu0
  %749 = vmatpush.bf16.msra.mxu0 0
  %750 = vmatpush.bf16.msra.mxu0 0
  %751 = vmatpush.bf16.msra.mxu0 0
  %752 = vmatpush.bf16.msra.mxu0 0
  %753 = vmatpush.bf16.msra.mxu0 %v572
  %754 = vmatpush.bf16.msra.mxu0 %v571
  %755 = vmatpush.bf16.msra.mxu0 %v570
  %756 = vmatpush.bf16.msra.mxu0 %v569
  %757 = vmatmul.bf16.gmra.mxu0 %v643
  %v758 = vpop.f32.mrf.mxu0
  %v759 = vadd.f32 %v746, %v758
  %v760 = vpop.f32.mrf.mxu0
  %761 = vdwg.mxu0
  %762 = vst.msk [vmem:[%s3] sm:$0xff] %vm641, %v759
  // Predicated region
  $region14: #{g_unet_add_all_forward.16} parent=0 // pred_check
    _
  $region15: #{g_unet_add_all_forward.16} parent=0 // pred_check_branch
    %764 = sbr.rel (0) target = $region17
  $region16: #{g_unet_add_all_forward.16} parent=0 // pred_region
    _
  $region17: #{g_unet_add_all_forward.16} parent=0 // pred_fallthru
    _
  // Predicated region
  $region18: #{g_unet_add_all_forward.16} parent=0 // pred_check
    _
  $region19: #{g_unet_add_all_forward.16} parent=0 // pred_check_branch
    %766 = sbr.rel (0) target = $region21
  $region20: #{g_unet_add_all_forward.16} parent=0 // pred_region
    _
  $region21: #{g_unet_add_all_forward.16} parent=0 // pred_fallthru
    _

// kernel: g_unet_add_all_forward.18
$region0: #{g_unet_add_all_forward.18}
  #allocation0 [shape = 'u32[]', space=smem, size = 0x4, offset = 0x4, fixed_abs, tag = 'smem constant byte address 0x4 - core index']
  #allocation1 [shape = 'u32[72,128]{1,0:T(1,128)}', space=vmem, size = 0x9000, scoped, tag = 'internal scratch']
  %s0 = inlined_call_operand.vmem [shape: bf16[8,576], index: 0, kind: input, shape index: {}]
  %s1 = inlined_call_operand.vmem [shape: bf16[576,256], index: 1, kind: input, shape index: {}]
  %s2 = inlined_call_operand.vmem [shape: f32[1,256], index: 2, kind: input, shape index: {}]
  %s3 = inlined_call_operand.vmem [shape: f32[8,256], index: 3, kind: output, shape index: {}]
  %s4 = sld [smem:[#allocation0]]
  $region22: #{g_unet_add_all_forward.18} parent=0
    _
  %s6 = ssub.s32 1, %s4
  %s7 = scalar_select 0, %s6, %s4
  // Predicated region
  $region2: #{g_unet_add_all_forward.18} parent=0 // pred_check
    _
  $region3: #{g_unet_add_all_forward.18} parent=0 // pred_check_branch
    %9 = sbr.rel (0) target = $region5
  $region4: #{g_unet_add_all_forward.18} parent=0 // pred_region
    _
  $region5: #{g_unet_add_all_forward.18} parent=0 // pred_fallthru
    _
  // Predicated region
  $region6: #{g_unet_add_all_forward.18} parent=0 // pred_check
    _
  $region7: #{g_unet_add_all_forward.18} parent=0 // pred_check_branch
    %11 = sbr.rel (0) target = $region9
  $region8: #{g_unet_add_all_forward.18} parent=0 // pred_region
    _
  $region9: #{g_unet_add_all_forward.18} parent=0 // pred_fallthru
    _
  // Predicated region
  $region10: #{g_unet_add_all_forward.18} parent=0 // pred_check
    _
  $region11: #{g_unet_add_all_forward.18} parent=0 // pred_check_branch
    %13 = sbr.rel (0) target = $region13
  $region12: #{g_unet_add_all_forward.18} parent=0 // pred_region
    _
  $region13: #{g_unet_add_all_forward.18} parent=0 // pred_fallthru
    _
  %v15 = vld [vmem:[%s0] sm:$0xff]
  %v16 = vld [vmem:[%s0 + $0x8] sm:$0xff]
  %v17 = vld [vmem:[%s0 + $0x10] sm:$0xf]
  %v18 = vunpack.c.l.bf16 %v15
  %v19 = vunpack.c.h.bf16 %v15
  %v20 = vunpack.c.l.bf16 %v16
  %v21 = vunpack.c.h.bf16 %v16
  %v22 = vunpack.c.l.bf16 %v17
  %v23 = vmax.f32 %v18, 0.0
  %v24 = vmax.f32 %v19, 0.0
  %v25 = vmax.f32 %v20, 0.0
  %v26 = vmax.f32 %v21, 0.0
  %v27 = vmax.f32 %v22, 0.0
  %v28 = vpack.c.bf16 %v23, %v23
  %v29 = vpack.c.bf16 %v24, %v24
  %v30 = vpack.c.bf16 %v25, %v25
  %v31 = vpack.c.bf16 %v26, %v26
  %v32 = vpack.c.bf16 %v27, %v27
  %v33 = vld [vmem:[%s1] sm:$0xff]
  %v34 = vld [vmem:[%s1 + $0x8] sm:$0xff]
  %v35 = vld [vmem:[%s1 + $0x10] sm:$0xff]
  %v36 = vld [vmem:[%s1 + $0x18] sm:$0xff]
  %v37 = vld [vmem:[%s1 + $0x20] sm:$0xff]
  %v38 = vld [vmem:[%s1 + $0x28] sm:$0xff]
  %v39 = vld [vmem:[%s1 + $0x30] sm:$0xff]
  %v40 = vld [vmem:[%s1 + $0x38] sm:$0xff]
  %v41 = vld [vmem:[%s1 + $0x40] sm:$0xff]
  %v42 = vld [vmem:[%s1 + $0x48] sm:$0xff]
  %v43 = vld [vmem:[%s1 + $0x50] sm:$0xff]
  %v44 = vld [vmem:[%s1 + $0x58] sm:$0xff]
  %v45 = vld [vmem:[%s1 + $0x60] sm:$0xff]
  %v46 = vld [vmem:[%s1 + $0x68] sm:$0xff]
  %v47 = vld [vmem:[%s1 + $0x70] sm:$0xff]
  %v48 = vld [vmem:[%s1 + $0x78] sm:$0xff]
  %v49 = vld [vmem:[%s1 + $0x80] sm:$0xff]
  %v50 = vld [vmem:[%s1 + $0x88] sm:$0xff]
  %v51 = vld [vmem:[%s1 + $0x90] sm:$0xff]
  %v52 = vld [vmem:[%s1 + $0x98] sm:$0xff]
  %v53 = vld [vmem:[%s1 + $0xa0] sm:$0xff]
  %v54 = vld [vmem:[%s1 + $0xa8] sm:$0xff]
  %v55 = vld [vmem:[%s1 + $0xb0] sm:$0xff]
  %v56 = vld [vmem:[%s1 + $0xb8] sm:$0xff]
  %v57 = vld [vmem:[%s1 + $0xc0] sm:$0xff]
  %v58 = vld [vmem:[%s1 + $0xc8] sm:$0xff]
  %v59 = vld [vmem:[%s1 + $0xd0] sm:$0xff]
  %v60 = vld [vmem:[%s1 + $0xd8] sm:$0xff]
  %v61 = vld [vmem:[%s1 + $0xe0] sm:$0xff]
  %v62 = vld [vmem:[%s1 + $0xe8] sm:$0xff]
  %v63 = vld [vmem:[%s1 + $0xf0] sm:$0xff]
  %v64 = vld [vmem:[%s1 + $0xf8] sm:$0xff]
  %v65 = vld [vmem:[%s1 + $0x100] sm:$0xff]
  %v66 = vld [vmem:[%s1 + $0x108] sm:$0xff]
  %v67 = vld [vmem:[%s1 + $0x110] sm:$0xff]
  %v68 = vld [vmem:[%s1 + $0x118] sm:$0xff]
  %v69 = vld [vmem:[%s1 + $0x120] sm:$0xff]
  %v70 = vld [vmem:[%s1 + $0x128] sm:$0xff]
  %v71 = vld [vmem:[%s1 + $0x130] sm:$0xff]
  %v72 = vld [vmem:[%s1 + $0x138] sm:$0xff]
  %v73 = vld [vmem:[%s1 + $0x140] sm:$0xff]
  %v74 = vld [vmem:[%s1 + $0x148] sm:$0xff]
  %v75 = vld [vmem:[%s1 + $0x150] sm:$0xff]
  %v76 = vld [vmem:[%s1 + $0x158] sm:$0xff]
  %v77 = vld [vmem:[%s1 + $0x160] sm:$0xff]
  %v78 = vld [vmem:[%s1 + $0x168] sm:$0xff]
  %v79 = vld [vmem:[%s1 + $0x170] sm:$0xff]
  %v80 = vld [vmem:[%s1 + $0x178] sm:$0xff]
  %v81 = vld [vmem:[%s1 + $0x180] sm:$0xff]
  %v82 = vld [vmem:[%s1 + $0x188] sm:$0xff]
  %v83 = vld [vmem:[%s1 + $0x190] sm:$0xff]
  %v84 = vld [vmem:[%s1 + $0x198] sm:$0xff]
  %v85 = vld [vmem:[%s1 + $0x1a0] sm:$0xff]
  %v86 = vld [vmem:[%s1 + $0x1a8] sm:$0xff]
  %v87 = vld [vmem:[%s1 + $0x1b0] sm:$0xff]
  %v88 = vld [vmem:[%s1 + $0x1b8] sm:$0xff]
  %v89 = vld [vmem:[%s1 + $0x1c0] sm:$0xff]
  %v90 = vld [vmem:[%s1 + $0x1c8] sm:$0xff]
  %v91 = vld [vmem:[%s1 + $0x1d0] sm:$0xff]
  %v92 = vld [vmem:[%s1 + $0x1d8] sm:$0xff]
  %v93 = vld [vmem:[%s1 + $0x1e0] sm:$0xff]
  %v94 = vld [vmem:[%s1 + $0x1e8] sm:$0xff]
  %v95 = vld [vmem:[%s1 + $0x1f0] sm:$0xff]
  %v96 = vld [vmem:[%s1 + $0x1f8] sm:$0xff]
  %v97 = vld [vmem:[%s1 + $0x200] sm:$0xff]
  %v98 = vld [vmem:[%s1 + $0x208] sm:$0xff]
  %v99 = vld [vmem:[%s1 + $0x210] sm:$0xff]
  %v100 = vld [vmem:[%s1 + $0x218] sm:$0xff]
  %v101 = vld [vmem:[%s1 + $0x220] sm:$0xff]
  %v102 = vld [vmem:[%s1 + $0x228] sm:$0xff]
  %v103 = vld [vmem:[%s1 + $0x230] sm:$0xff]
  %v104 = vld [vmem:[%s1 + $0x238] sm:$0xff]
  %v105 = vld [vmem:[%s2] sm:$0x3]
  %v107 = vperm.slane %v105, 0
  %v108 = vperm.slane %v105, 1
  %v183 = vunpack.c.l.b16 %v33
  %v184 = vunpack.c.h.b16 %v33
  %v185 = vunpack.c.l.b16 %v34
  %v186 = vunpack.c.h.b16 %v34
  %v187 = vunpack.c.l.b16 %v35
  %v188 = vunpack.c.h.b16 %v35
  %v189 = vunpack.c.l.b16 %v36
  %v190 = vunpack.c.h.b16 %v36
  %v191 = vunpack.c.l.b16 %v37
  %v192 = vunpack.c.h.b16 %v37
  %v193 = vunpack.c.l.b16 %v38
  %v194 = vunpack.c.h.b16 %v38
  %v195 = vunpack.c.l.b16 %v39
  %v196 = vunpack.c.h.b16 %v39
  %v197 = vunpack.c.l.b16 %v40
  %v198 = vunpack.c.h.b16 %v40
  %v199 = vunpack.c.l.b16 %v41
  %v200 = vunpack.c.h.b16 %v41
  %v201 = vunpack.c.l.b16 %v42
  %v202 = vunpack.c.h.b16 %v42
  %v203 = vunpack.c.l.b16 %v43
  %v204 = vunpack.c.h.b16 %v43
  %v205 = vunpack.c.l.b16 %v44
  %v206 = vunpack.c.h.b16 %v44
  %v207 = vunpack.c.l.b16 %v45
  %v208 = vunpack.c.h.b16 %v45
  %v209 = vunpack.c.l.b16 %v46
  %v210 = vunpack.c.h.b16 %v46
  %v211 = vunpack.c.l.b16 %v47
  %v212 = vunpack.c.h.b16 %v47
  %v213 = vunpack.c.l.b16 %v48
  %v214 = vunpack.c.h.b16 %v48
  %v215 = vunpack.c.l.b16 %v49
  %v216 = vunpack.c.h.b16 %v49
  %v217 = vunpack.c.l.b16 %v50
  %v218 = vunpack.c.h.b16 %v50
  %v219 = vunpack.c.l.b16 %v51
  %v220 = vunpack.c.h.b16 %v51
  %v221 = vunpack.c.l.b16 %v52
  %v222 = vunpack.c.h.b16 %v52
  %v223 = vunpack.c.l.b16 %v53
  %v224 = vunpack.c.h.b16 %v53
  %v225 = vunpack.c.l.b16 %v54
  %v226 = vunpack.c.h.b16 %v54
  %v227 = vunpack.c.l.b16 %v55
  %v228 = vunpack.c.h.b16 %v55
  %v229 = vunpack.c.l.b16 %v56
  %v230 = vunpack.c.h.b16 %v56
  %v231 = vunpack.c.l.b16 %v57
  %v232 = vunpack.c.h.b16 %v57
  %v233 = vunpack.c.l.b16 %v58
  %v234 = vunpack.c.h.b16 %v58
  %v235 = vunpack.c.l.b16 %v59
  %v236 = vunpack.c.h.b16 %v59
  %v237 = vunpack.c.l.b16 %v60
  %v238 = vunpack.c.h.b16 %v60
  %v239 = vunpack.c.l.b16 %v61
  %v240 = vunpack.c.h.b16 %v61
  %v241 = vunpack.c.l.b16 %v62
  %v242 = vunpack.c.h.b16 %v62
  %v243 = vunpack.c.l.b16 %v63
  %v244 = vunpack.c.h.b16 %v63
  %v245 = vunpack.c.l.b16 %v64
  %v246 = vunpack.c.h.b16 %v64
  %v247 = vunpack.c.l.b16 %v65
  %v248 = vunpack.c.h.b16 %v65
  %v249 = vunpack.c.l.b16 %v66
  %v250 = vunpack.c.h.b16 %v66
  %v251 = vunpack.c.l.b16 %v67
  %v252 = vunpack.c.h.b16 %v67
  %v253 = vunpack.c.l.b16 %v68
  %v254 = vunpack.c.h.b16 %v68
  %v255 = vunpack.c.l.b16 %v69
  %v256 = vunpack.c.h.b16 %v69
  %v257 = vunpack.c.l.b16 %v70
  %v258 = vunpack.c.h.b16 %v70
  %v259 = vunpack.c.l.b16 %v71
  %v260 = vunpack.c.h.b16 %v71
  %v261 = vunpack.c.l.b16 %v72
  %v262 = vunpack.c.h.b16 %v72
  %v263 = vunpack.c.l.b16 %v73
  %v264 = vunpack.c.h.b16 %v73
  %v265 = vunpack.c.l.b16 %v74
  %v266 = vunpack.c.h.b16 %v74
  %v267 = vunpack.c.l.b16 %v75
  %v268 = vunpack.c.h.b16 %v75
  %v269 = vunpack.c.l.b16 %v76
  %v270 = vunpack.c.h.b16 %v76
  %v271 = vunpack.c.l.b16 %v77
  %v272 = vunpack.c.h.b16 %v77
  %v273 = vunpack.c.l.b16 %v78
  %v274 = vunpack.c.h.b16 %v78
  %v275 = vunpack.c.l.b16 %v79
  %v276 = vunpack.c.h.b16 %v79
  %v277 = vunpack.c.l.b16 %v80
  %v278 = vunpack.c.h.b16 %v80
  %v279 = vunpack.c.l.b16 %v81
  %v280 = vunpack.c.h.b16 %v81
  %v281 = vunpack.c.l.b16 %v82
  %v282 = vunpack.c.h.b16 %v82
  %v283 = vunpack.c.l.b16 %v83
  %v284 = vunpack.c.h.b16 %v83
  %v285 = vunpack.c.l.b16 %v84
  %v286 = vunpack.c.h.b16 %v84
  %v287 = vunpack.c.l.b16 %v85
  %v288 = vunpack.c.h.b16 %v85
  %v289 = vunpack.c.l.b16 %v86
  %v290 = vunpack.c.h.b16 %v86
  %v291 = vunpack.c.l.b16 %v87
  %v292 = vunpack.c.h.b16 %v87
  %v293 = vunpack.c.l.b16 %v88
  %v294 = vunpack.c.h.b16 %v88
  %v295 = vunpack.c.l.b16 %v89
  %v296 = vunpack.c.h.b16 %v89
  %v297 = vunpack.c.l.b16 %v90
  %v298 = vunpack.c.h.b16 %v90
  %v299 = vunpack.c.l.b16 %v91
  %v300 = vunpack.c.h.b16 %v91
  %v301 = vunpack.c.l.b16 %v92
  %v302 = vunpack.c.h.b16 %v92
  %v303 = vunpack.c.l.b16 %v93
  %v304 = vunpack.c.h.b16 %v93
  %v305 = vunpack.c.l.b16 %v94
  %v306 = vunpack.c.h.b16 %v94
  %v307 = vunpack.c.l.b16 %v95
  %v308 = vunpack.c.h.b16 %v95
  %v309 = vunpack.c.l.b16 %v96
  %v310 = vunpack.c.h.b16 %v96
  %v311 = vunpack.c.l.b16 %v97
  %v312 = vunpack.c.h.b16 %v97
  %v313 = vunpack.c.l.b16 %v98
  %v314 = vunpack.c.h.b16 %v98
  %v315 = vunpack.c.l.b16 %v99
  %v316 = vunpack.c.h.b16 %v99
  %v317 = vunpack.c.l.b16 %v100
  %v318 = vunpack.c.h.b16 %v100
  %v319 = vunpack.c.l.b16 %v101
  %v320 = vunpack.c.h.b16 %v101
  %v321 = vunpack.c.l.b16 %v102
  %v322 = vunpack.c.h.b16 %v102
  %v323 = vunpack.c.l.b16 %v103
  %v324 = vunpack.c.h.b16 %v103
  %v325 = vunpack.c.l.b16 %v104
  %v326 = vunpack.c.h.b16 %v104
  %v327 = vpack.c.b16 %v185, %v183
  %v328 = vpack.c.b16 %v186, %v184
  %v329 = vpack.c.b16 %v189, %v187
  %v330 = vpack.c.b16 %v190, %v188
  %v331 = vpack.c.b16 %v193, %v191
  %v332 = vpack.c.b16 %v194, %v192
  %v333 = vpack.c.b16 %v197, %v195
  %v334 = vpack.c.b16 %v198, %v196
  %v335 = vpack.c.b16 %v201, %v199
  %v336 = vpack.c.b16 %v202, %v200
  %v337 = vpack.c.b16 %v205, %v203
  %v338 = vpack.c.b16 %v206, %v204
  %v339 = vpack.c.b16 %v209, %v207
  %v340 = vpack.c.b16 %v210, %v208
  %v341 = vpack.c.b16 %v213, %v211
  %v342 = vpack.c.b16 %v214, %v212
  %v343 = vpack.c.b16 %v217, %v215
  %v344 = vpack.c.b16 %v218, %v216
  %v345 = vpack.c.b16 %v221, %v219
  %v346 = vpack.c.b16 %v222, %v220
  %v347 = vpack.c.b16 %v225, %v223
  %v348 = vpack.c.b16 %v226, %v224
  %v349 = vpack.c.b16 %v229, %v227
  %v350 = vpack.c.b16 %v230, %v228
  %v351 = vpack.c.b16 %v233, %v231
  %v352 = vpack.c.b16 %v234, %v232
  %v353 = vpack.c.b16 %v237, %v235
  %v354 = vpack.c.b16 %v238, %v236
  %v355 = vpack.c.b16 %v241, %v239
  %v356 = vpack.c.b16 %v242, %v240
  %v357 = vpack.c.b16 %v245, %v243
  %v358 = vpack.c.b16 %v246, %v244
  %v359 = vpack.c.b16 %v249, %v247
  %v360 = vpack.c.b16 %v250, %v248
  %v361 = vpack.c.b16 %v253, %v251
  %v362 = vpack.c.b16 %v254, %v252
  %v363 = vpack.c.b16 %v257, %v255
  %v364 = vpack.c.b16 %v258, %v256
  %v365 = vpack.c.b16 %v261, %v259
  %v366 = vpack.c.b16 %v262, %v260
  %v367 = vpack.c.b16 %v265, %v263
  %v368 = vpack.c.b16 %v266, %v264
  %v369 = vpack.c.b16 %v269, %v267
  %v370 = vpack.c.b16 %v270, %v268
  %v371 = vpack.c.b16 %v273, %v271
  %v372 = vpack.c.b16 %v274, %v272
  %v373 = vpack.c.b16 %v277, %v275
  %v374 = vpack.c.b16 %v278, %v276
  %v375 = vpack.c.b16 %v281, %v279
  %v376 = vpack.c.b16 %v282, %v280
  %v377 = vpack.c.b16 %v285, %v283
  %v378 = vpack.c.b16 %v286, %v284
  %v379 = vpack.c.b16 %v289, %v287
  %v380 = vpack.c.b16 %v290, %v288
  %v381 = vpack.c.b16 %v293, %v291
  %v382 = vpack.c.b16 %v294, %v292
  %v383 = vpack.c.b16 %v297, %v295
  %v384 = vpack.c.b16 %v298, %v296
  %v385 = vpack.c.b16 %v301, %v299
  %v386 = vpack.c.b16 %v302, %v300
  %v387 = vpack.c.b16 %v305, %v303
  %v388 = vpack.c.b16 %v306, %v304
  %v389 = vpack.c.b16 %v309, %v307
  %v390 = vpack.c.b16 %v310, %v308
  %v391 = vpack.c.b16 %v313, %v311
  %v392 = vpack.c.b16 %v314, %v312
  %v393 = vpack.c.b16 %v317, %v315
  %v394 = vpack.c.b16 %v318, %v316
  %v395 = vpack.c.b16 %v321, %v319
  %v396 = vpack.c.b16 %v322, %v320
  %v397 = vpack.c.b16 %v325, %v323
  %v398 = vpack.c.b16 %v326, %v324
  %vm471 = vcmask 523264
  %v473 = vsel %vm471, %v32, 0
  %475 = vmatpush.bf16.msra.mxu0 %v341
  %476 = vmatpush.bf16.msra.mxu0 %v339
  %477 = vmatpush.bf16.msra.mxu0 %v337
  %478 = vmatpush.bf16.msra.mxu0 %v335
  %479 = vmatpush.bf16.msra.mxu0 %v333
  %480 = vmatpush.bf16.msra.mxu0 %v331
  %481 = vmatpush.bf16.msra.mxu0 %v329
  %482 = vmatpush.bf16.msra.mxu0 %v327
  %483 = vmatmul.bf16.gmra.mxu0 %v28
  %v484 = vpop.f32.mrf.mxu0
  %v485 = vadd.f32 %v107, %v484
  %v486 = vpop.f32.mrf.mxu0
  %487 = vdwg.mxu0
  %488 = vmatpush.bf16.msra.mxu0 %v357
  %489 = vmatpush.bf16.msra.mxu0 %v355
  %490 = vmatpush.bf16.msra.mxu0 %v353
  %491 = vmatpush.bf16.msra.mxu0 %v351
  %492 = vmatpush.bf16.msra.mxu0 %v349
  %493 = vmatpush.bf16.msra.mxu0 %v347
  %494 = vmatpush.bf16.msra.mxu0 %v345
  %495 = vmatpush.bf16.msra.mxu0 %v343
  %496 = vmatmul.bf16.gmra.mxu0 %v29
  %v497 = vpop.f32.mrf.mxu0
  %v498 = vadd.f32 %v485, %v497
  %v499 = vpop.f32.mrf.mxu0
  %500 = vdwg.mxu0
  %501 = vmatpush.bf16.msra.mxu0 %v373
  %502 = vmatpush.bf16.msra.mxu0 %v371
  %503 = vmatpush.bf16.msra.mxu0 %v369
  %504 = vmatpush.bf16.msra.mxu0 %v367
  %505 = vmatpush.bf16.msra.mxu0 %v365
  %506 = vmatpush.bf16.msra.mxu0 %v363
  %507 = vmatpush.bf16.msra.mxu0 %v361
  %508 = vmatpush.bf16.msra.mxu0 %v359
  %509 = vmatmul.bf16.gmra.mxu0 %v30
  %v510 = vpop.f32.mrf.mxu0
  %v511 = vadd.f32 %v498, %v510
  %v512 = vpop.f32.mrf.mxu0
  %513 = vdwg.mxu0
  %514 = vmatpush.bf16.msra.mxu0 %v389
  %515 = vmatpush.bf16.msra.mxu0 %v387
  %516 = vmatpush.bf16.msra.mxu0 %v385
  %517 = vmatpush.bf16.msra.mxu0 %v383
  %518 = vmatpush.bf16.msra.mxu0 %v381
  %519 = vmatpush.bf16.msra.mxu0 %v379
  %520 = vmatpush.bf16.msra.mxu0 %v377
  %521 = vmatpush.bf16.msra.mxu0 %v375
  %522 = vmatmul.bf16.gmra.mxu0 %v31
  %v523 = vpop.f32.mrf.mxu0
  %v524 = vadd.f32 %v511, %v523
  %v525 = vpop.f32.mrf.mxu0
  %526 = vdwg.mxu0
  %527 = vmatpush.bf16.msra.mxu0 0
  %528 = vmatpush.bf16.msra.mxu0 0
  %529 = vmatpush.bf16.msra.mxu0 0
  %530 = vmatpush.bf16.msra.mxu0 0
  %531 = vmatpush.bf16.msra.mxu0 %v397
  %532 = vmatpush.bf16.msra.mxu0 %v395
  %533 = vmatpush.bf16.msra.mxu0 %v393
  %534 = vmatpush.bf16.msra.mxu0 %v391
  %535 = vmatmul.bf16.gmra.mxu0 %v473
  %v536 = vpop.f32.mrf.mxu0
  %v537 = vadd.f32 %v524, %v536
  %v538 = vpop.f32.mrf.mxu0
  %539 = vdwg.mxu0
  %540 = vmatpush.bf16.msra.mxu0 %v342
  %541 = vmatpush.bf16.msra.mxu0 %v340
  %542 = vmatpush.bf16.msra.mxu0 %v338
  %543 = vmatpush.bf16.msra.mxu0 %v336
  %544 = vmatpush.bf16.msra.mxu0 %v334
  %545 = vmatpush.bf16.msra.mxu0 %v332
  %546 = vmatpush.bf16.msra.mxu0 %v330
  %547 = vmatpush.bf16.msra.mxu0 %v328
  %548 = vmatmul.bf16.gmra.mxu0 %v28
  %v549 = vpop.f32.mrf.mxu0
  %v550 = vadd.f32 %v108, %v549
  %v551 = vpop.f32.mrf.mxu0
  %552 = vdwg.mxu0
  %553 = vmatpush.bf16.msra.mxu0 %v358
  %554 = vmatpush.bf16.msra.mxu0 %v356
  %555 = vmatpush.bf16.msra.mxu0 %v354
  %556 = vmatpush.bf16.msra.mxu0 %v352
  %557 = vmatpush.bf16.msra.mxu0 %v350
  %558 = vmatpush.bf16.msra.mxu0 %v348
  %559 = vmatpush.bf16.msra.mxu0 %v346
  %560 = vmatpush.bf16.msra.mxu0 %v344
  %561 = vmatmul.bf16.gmra.mxu0 %v29
  %v562 = vpop.f32.mrf.mxu0
  %v563 = vadd.f32 %v550, %v562
  %v564 = vpop.f32.mrf.mxu0
  %565 = vdwg.mxu0
  %566 = vmatpush.bf16.msra.mxu0 %v374
  %567 = vmatpush.bf16.msra.mxu0 %v372
  %568 = vmatpush.bf16.msra.mxu0 %v370
  %569 = vmatpush.bf16.msra.mxu0 %v368
  %570 = vmatpush.bf16.msra.mxu0 %v366
  %571 = vmatpush.bf16.msra.mxu0 %v364
  %572 = vmatpush.bf16.msra.mxu0 %v362
  %573 = vmatpush.bf16.msra.mxu0 %v360
  %574 = vmatmul.bf16.gmra.mxu0 %v30
  %v575 = vpop.f32.mrf.mxu0
  %v576 = vadd.f32 %v563, %v575
  %v577 = vpop.f32.mrf.mxu0
  %578 = vdwg.mxu0
  %579 = vmatpush.bf16.msra.mxu0 %v390
  %580 = vmatpush.bf16.msra.mxu0 %v388
  %581 = vmatpush.bf16.msra.mxu0 %v386
  %582 = vmatpush.bf16.msra.mxu0 %v384
  %583 = vmatpush.bf16.msra.mxu0 %v382
  %584 = vmatpush.bf16.msra.mxu0 %v380
  %585 = vmatpush.bf16.msra.mxu0 %v378
  %586 = vmatpush.bf16.msra.mxu0 %v376
  %587 = vmatmul.bf16.gmra.mxu0 %v31
  %v588 = vpop.f32.mrf.mxu0
  %v589 = vadd.f32 %v576, %v588
  %v590 = vpop.f32.mrf.mxu0
  %591 = vdwg.mxu0
  %592 = vmatpush.bf16.msra.mxu0 0
  %593 = vmatpush.bf16.msra.mxu0 0
  %594 = vmatpush.bf16.msra.mxu0 0
  %595 = vmatpush.bf16.msra.mxu0 0
  %596 = vmatpush.bf16.msra.mxu0 %v398
  %597 = vmatpush.bf16.msra.mxu0 %v396
  %598 = vmatpush.bf16.msra.mxu0 %v394
  %599 = vmatpush.bf16.msra.mxu0 %v392
  %600 = vmatmul.bf16.gmra.mxu0 %v473
  %v601 = vpop.f32.mrf.mxu0
  %v602 = vadd.f32 %v589, %v601
  %v603 = vpop.f32.mrf.mxu0
  %604 = vdwg.mxu0
  %605 = vst [vmem:[%s3] sm:$0xff] %v537
  %606 = vst [vmem:[%s3 + $0x8] sm:$0xff] %v602
  // Predicated region
  $region14: #{g_unet_add_all_forward.18} parent=0 // pred_check
    _
  $region15: #{g_unet_add_all_forward.18} parent=0 // pred_check_branch
    %608 = sbr.rel (0) target = $region17
  $region16: #{g_unet_add_all_forward.18} parent=0 // pred_region
    _
  $region17: #{g_unet_add_all_forward.18} parent=0 // pred_fallthru
    _
  // Predicated region
  $region18: #{g_unet_add_all_forward.18} parent=0 // pred_check
    _
  $region19: #{g_unet_add_all_forward.18} parent=0 // pred_check_branch
    %610 = sbr.rel (0) target = $region21
  $region20: #{g_unet_add_all_forward.18} parent=0 // pred_region
    _
  $region21: #{g_unet_add_all_forward.18} parent=0 // pred_fallthru
    _

// kernel: g_unet_add_all_forward.19
$region0: #{g_unet_add_all_forward.19}
  #allocation0 [shape = 'u32[]', space=smem, size = 0x4, offset = 0x4, fixed_abs, tag = 'smem constant byte address 0x4 - core index']
  #allocation1 [shape = 'u32[72,128]{1,0:T(1,128)}', space=vmem, size = 0x9000, scoped, tag = 'internal scratch']
  %s0 = inlined_call_operand.vmem [shape: bf16[8,1152], index: 0, kind: input, shape index: {}]
  %s1 = inlined_call_operand.vmem [shape: bf16[1152,256], index: 1, kind: input, shape index: {}]
  %s2 = inlined_call_operand.vmem [shape: f32[1,256], index: 2, kind: input, shape index: {}]
  %s3 = inlined_call_operand.vmem [shape: f32[8,256], index: 3, kind: output, shape index: {}]
  %s4 = sld [smem:[#allocation0]]
  $region22: #{g_unet_add_all_forward.19} parent=0
    _
  %s6 = ssub.s32 1, %s4
  %s7 = scalar_select 0, %s6, %s4
  // Predicated region
  $region2: #{g_unet_add_all_forward.19} parent=0 // pred_check
    _
  $region3: #{g_unet_add_all_forward.19} parent=0 // pred_check_branch
    %9 = sbr.rel (0) target = $region5
  $region4: #{g_unet_add_all_forward.19} parent=0 // pred_region
    _
  $region5: #{g_unet_add_all_forward.19} parent=0 // pred_fallthru
    _
  // Predicated region
  $region6: #{g_unet_add_all_forward.19} parent=0 // pred_check
    _
  $region7: #{g_unet_add_all_forward.19} parent=0 // pred_check_branch
    %11 = sbr.rel (0) target = $region9
  $region8: #{g_unet_add_all_forward.19} parent=0 // pred_region
    _
  $region9: #{g_unet_add_all_forward.19} parent=0 // pred_fallthru
    _
  // Predicated region
  $region10: #{g_unet_add_all_forward.19} parent=0 // pred_check
    _
  $region11: #{g_unet_add_all_forward.19} parent=0 // pred_check_branch
    %13 = sbr.rel (0) target = $region13
  $region12: #{g_unet_add_all_forward.19} parent=0 // pred_region
    _
  $region13: #{g_unet_add_all_forward.19} parent=0 // pred_fallthru
    _
  %v14 = vld [vmem:[%s0] sm:$0xff]
  %v15 = vld [vmem:[%s0 + $0x8] sm:$0xff]
  %v16 = vld [vmem:[%s0 + $0x10] sm:$0xff]
  %v17 = vld [vmem:[%s0 + $0x18] sm:$0xff]
  %v18 = vld [vmem:[%s0 + $0x20] sm:$0xf]
  %v19 = vunpack.c.l.bf16 %v14
  %v20 = vunpack.c.h.bf16 %v14
  %v21 = vunpack.c.l.bf16 %v15
  %v22 = vunpack.c.h.bf16 %v15
  %v23 = vunpack.c.l.bf16 %v16
  %v24 = vunpack.c.h.bf16 %v16
  %v25 = vunpack.c.l.bf16 %v17
  %v26 = vunpack.c.h.bf16 %v17
  %v27 = vunpack.c.l.bf16 %v18
  %v28 = vmax.f32 %v19, 0.0
  %v29 = vmax.f32 %v20, 0.0
  %v30 = vmax.f32 %v21, 0.0
  %v31 = vmax.f32 %v22, 0.0
  %v32 = vmax.f32 %v23, 0.0
  %v33 = vmax.f32 %v24, 0.0
  %v34 = vmax.f32 %v25, 0.0
  %v35 = vmax.f32 %v26, 0.0
  %v36 = vmax.f32 %v27, 0.0
  %v37 = vpack.c.bf16 %v28, %v28
  %v38 = vpack.c.bf16 %v29, %v29
  %v39 = vpack.c.bf16 %v30, %v30
  %v40 = vpack.c.bf16 %v31, %v31
  %v41 = vpack.c.bf16 %v32, %v32
  %v42 = vpack.c.bf16 %v33, %v33
  %v43 = vpack.c.bf16 %v34, %v34
  %v44 = vpack.c.bf16 %v35, %v35
  %v45 = vpack.c.bf16 %v36, %v36
  %v46 = vld [vmem:[%s1] sm:$0xff]
  %v47 = vld [vmem:[%s1 + $0x8] sm:$0xff]
  %v48 = vld [vmem:[%s1 + $0x10] sm:$0xff]
  %v49 = vld [vmem:[%s1 + $0x18] sm:$0xff]
  %v50 = vld [vmem:[%s1 + $0x20] sm:$0xff]
  %v51 = vld [vmem:[%s1 + $0x28] sm:$0xff]
  %v52 = vld [vmem:[%s1 + $0x30] sm:$0xff]
  %v53 = vld [vmem:[%s1 + $0x38] sm:$0xff]
  %v54 = vld [vmem:[%s1 + $0x40] sm:$0xff]
  %v55 = vld [vmem:[%s1 + $0x48] sm:$0xff]
  %v56 = vld [vmem:[%s1 + $0x50] sm:$0xff]
  %v57 = vld [vmem:[%s1 + $0x58] sm:$0xff]
  %v58 = vld [vmem:[%s1 + $0x60] sm:$0xff]
  %v59 = vld [vmem:[%s1 + $0x68] sm:$0xff]
  %v60 = vld [vmem:[%s1 + $0x70] sm:$0xff]
  %v61 = vld [vmem:[%s1 + $0x78] sm:$0xff]
  %v62 = vld [vmem:[%s1 + $0x80] sm:$0xff]
  %v63 = vld [vmem:[%s1 + $0x88] sm:$0xff]
  %v64 = vld [vmem:[%s1 + $0x90] sm:$0xff]
  %v65 = vld [vmem:[%s1 + $0x98] sm:$0xff]
  %v66 = vld [vmem:[%s1 + $0xa0] sm:$0xff]
  %v67 = vld [vmem:[%s1 + $0xa8] sm:$0xff]
  %v68 = vld [vmem:[%s1 + $0xb0] sm:$0xff]
  %v69 = vld [vmem:[%s1 + $0xb8] sm:$0xff]
  %v70 = vld [vmem:[%s1 + $0xc0] sm:$0xff]
  %v71 = vld [vmem:[%s1 + $0xc8] sm:$0xff]
  %v72 = vld [vmem:[%s1 + $0xd0] sm:$0xff]
  %v73 = vld [vmem:[%s1 + $0xd8] sm:$0xff]
  %v74 = vld [vmem:[%s1 + $0xe0] sm:$0xff]
  %v75 = vld [vmem:[%s1 + $0xe8] sm:$0xff]
  %v76 = vld [vmem:[%s1 + $0xf0] sm:$0xff]
  %v77 = vld [vmem:[%s1 + $0xf8] sm:$0xff]
  %v78 = vld [vmem:[%s1 + $0x100] sm:$0xff]
  %v79 = vld [vmem:[%s1 + $0x108] sm:$0xff]
  %v80 = vld [vmem:[%s1 + $0x110] sm:$0xff]
  %v81 = vld [vmem:[%s1 + $0x118] sm:$0xff]
  %v82 = vld [vmem:[%s1 + $0x120] sm:$0xff]
  %v83 = vld [vmem:[%s1 + $0x128] sm:$0xff]
  %v84 = vld [vmem:[%s1 + $0x130] sm:$0xff]
  %v85 = vld [vmem:[%s1 + $0x138] sm:$0xff]
  %v86 = vld [vmem:[%s1 + $0x140] sm:$0xff]
  %v87 = vld [vmem:[%s1 + $0x148] sm:$0xff]
  %v88 = vld [vmem:[%s1 + $0x150] sm:$0xff]
  %v89 = vld [vmem:[%s1 + $0x158] sm:$0xff]
  %v90 = vld [vmem:[%s1 + $0x160] sm:$0xff]
  %v91 = vld [vmem:[%s1 + $0x168] sm:$0xff]
  %v92 = vld [vmem:[%s1 + $0x170] sm:$0xff]
  %v93 = vld [vmem:[%s1 + $0x178] sm:$0xff]
  %v94 = vld [vmem:[%s1 + $0x180] sm:$0xff]
  %v95 = vld [vmem:[%s1 + $0x188] sm:$0xff]
  %v96 = vld [vmem:[%s1 + $0x190] sm:$0xff]
  %v97 = vld [vmem:[%s1 + $0x198] sm:$0xff]
  %v98 = vld [vmem:[%s1 + $0x1a0] sm:$0xff]
  %v99 = vld [vmem:[%s1 + $0x1a8] sm:$0xff]
  %v100 = vld [vmem:[%s1 + $0x1b0] sm:$0xff]
  %v101 = vld [vmem:[%s1 + $0x1b8] sm:$0xff]
  %v102 = vld [vmem:[%s1 + $0x1c0] sm:$0xff]
  %v103 = vld [vmem:[%s1 + $0x1c8] sm:$0xff]
  %v104 = vld [vmem:[%s1 + $0x1d0] sm:$0xff]
  %v105 = vld [vmem:[%s1 + $0x1d8] sm:$0xff]
  %v106 = vld [vmem:[%s1 + $0x1e0] sm:$0xff]
  %v107 = vld [vmem:[%s1 + $0x1e8] sm:$0xff]
  %v108 = vld [vmem:[%s1 + $0x1f0] sm:$0xff]
  %v109 = vld [vmem:[%s1 + $0x1f8] sm:$0xff]
  %v110 = vld [vmem:[%s1 + $0x200] sm:$0xff]
  %v111 = vld [vmem:[%s1 + $0x208] sm:$0xff]
  %v112 = vld [vmem:[%s1 + $0x210] sm:$0xff]
  %v113 = vld [vmem:[%s1 + $0x218] sm:$0xff]
  %v114 = vld [vmem:[%s1 + $0x220] sm:$0xff]
  %v115 = vld [vmem:[%s1 + $0x228] sm:$0xff]
  %v116 = vld [vmem:[%s1 + $0x230] sm:$0xff]
  %v117 = vld [vmem:[%s1 + $0x238] sm:$0xff]
  %v118 = vld [vmem:[%s1 + $0x240] sm:$0xff]
  %v119 = vld [vmem:[%s1 + $0x248] sm:$0xff]
  %v120 = vld [vmem:[%s1 + $0x250] sm:$0xff]
  %v121 = vld [vmem:[%s1 + $0x258] sm:$0xff]
  %v122 = vld [vmem:[%s1 + $0x260] sm:$0xff]
  %v123 = vld [vmem:[%s1 + $0x268] sm:$0xff]
  %v124 = vld [vmem:[%s1 + $0x270] sm:$0xff]
  %v125 = vld [vmem:[%s1 + $0x278] sm:$0xff]
  %v126 = vld [vmem:[%s1 + $0x280] sm:$0xff]
  %v127 = vld [vmem:[%s1 + $0x288] sm:$0xff]
  %v128 = vld [vmem:[%s1 + $0x290] sm:$0xff]
  %v129 = vld [vmem:[%s1 + $0x298] sm:$0xff]
  %v130 = vld [vmem:[%s1 + $0x2a0] sm:$0xff]
  %v131 = vld [vmem:[%s1 + $0x2a8] sm:$0xff]
  %v132 = vld [vmem:[%s1 + $0x2b0] sm:$0xff]
  %v133 = vld [vmem:[%s1 + $0x2b8] sm:$0xff]
  %v134 = vld [vmem:[%s1 + $0x2c0] sm:$0xff]
  %v135 = vld [vmem:[%s1 + $0x2c8] sm:$0xff]
  %v136 = vld [vmem:[%s1 + $0x2d0] sm:$0xff]
  %v137 = vld [vmem:[%s1 + $0x2d8] sm:$0xff]
  %v138 = vld [vmem:[%s1 + $0x2e0] sm:$0xff]
  %v139 = vld [vmem:[%s1 + $0x2e8] sm:$0xff]
  %v140 = vld [vmem:[%s1 + $0x2f0] sm:$0xff]
  %v141 = vld [vmem:[%s1 + $0x2f8] sm:$0xff]
  %v142 = vld [vmem:[%s1 + $0x300] sm:$0xff]
  %v143 = vld [vmem:[%s1 + $0x308] sm:$0xff]
  %v144 = vld [vmem:[%s1 + $0x310] sm:$0xff]
  %v145 = vld [vmem:[%s1 + $0x318] sm:$0xff]
  %v146 = vld [vmem:[%s1 + $0x320] sm:$0xff]
  %v147 = vld [vmem:[%s1 + $0x328] sm:$0xff]
  %v148 = vld [vmem:[%s1 + $0x330] sm:$0xff]
  %v149 = vld [vmem:[%s1 + $0x338] sm:$0xff]
  %v150 = vld [vmem:[%s1 + $0x340] sm:$0xff]
  %v151 = vld [vmem:[%s1 + $0x348] sm:$0xff]
  %v152 = vld [vmem:[%s1 + $0x350] sm:$0xff]
  %v153 = vld [vmem:[%s1 + $0x358] sm:$0xff]
  %v154 = vld [vmem:[%s1 + $0x360] sm:$0xff]
  %v155 = vld [vmem:[%s1 + $0x368] sm:$0xff]
  %v156 = vld [vmem:[%s1 + $0x370] sm:$0xff]
  %v157 = vld [vmem:[%s1 + $0x378] sm:$0xff]
  %v158 = vld [vmem:[%s1 + $0x380] sm:$0xff]
  %v159 = vld [vmem:[%s1 + $0x388] sm:$0xff]
  %v160 = vld [vmem:[%s1 + $0x390] sm:$0xff]
  %v161 = vld [vmem:[%s1 + $0x398] sm:$0xff]
  %v162 = vld [vmem:[%s1 + $0x3a0] sm:$0xff]
  %v163 = vld [vmem:[%s1 + $0x3a8] sm:$0xff]
  %v164 = vld [vmem:[%s1 + $0x3b0] sm:$0xff]
  %v165 = vld [vmem:[%s1 + $0x3b8] sm:$0xff]
  %v166 = vld [vmem:[%s1 + $0x3c0] sm:$0xff]
  %v167 = vld [vmem:[%s1 + $0x3c8] sm:$0xff]
  %v168 = vld [vmem:[%s1 + $0x3d0] sm:$0xff]
  %v169 = vld [vmem:[%s1 + $0x3d8] sm:$0xff]
  %v170 = vld [vmem:[%s1 + $0x3e0] sm:$0xff]
  %v171 = vld [vmem:[%s1 + $0x3e8] sm:$0xff]
  %v172 = vld [vmem:[%s1 + $0x3f0] sm:$0xff]
  %v173 = vld [vmem:[%s1 + $0x3f8] sm:$0xff]
  %v174 = vld [vmem:[%s1 + $0x400] sm:$0xff]
  %v175 = vld [vmem:[%s1 + $0x408] sm:$0xff]
  %v176 = vld [vmem:[%s1 + $0x410] sm:$0xff]
  %v177 = vld [vmem:[%s1 + $0x418] sm:$0xff]
  %v178 = vld [vmem:[%s1 + $0x420] sm:$0xff]
  %v179 = vld [vmem:[%s1 + $0x428] sm:$0xff]
  %v180 = vld [vmem:[%s1 + $0x430] sm:$0xff]
  %v181 = vld [vmem:[%s1 + $0x438] sm:$0xff]
  %v182 = vld [vmem:[%s1 + $0x440] sm:$0xff]
  %v183 = vld [vmem:[%s1 + $0x448] sm:$0xff]
  %v184 = vld [vmem:[%s1 + $0x450] sm:$0xff]
  %v185 = vld [vmem:[%s1 + $0x458] sm:$0xff]
  %v186 = vld [vmem:[%s1 + $0x460] sm:$0xff]
  %v187 = vld [vmem:[%s1 + $0x468] sm:$0xff]
  %v188 = vld [vmem:[%s1 + $0x470] sm:$0xff]
  %v189 = vld [vmem:[%s1 + $0x478] sm:$0xff]
  %v190 = vld [vmem:[%s2] sm:$0x3]
  %v192 = vperm.slane %v190, 0
  %v193 = vperm.slane %v190, 1
  %v340 = vunpack.c.l.b16 %v46
  %v341 = vunpack.c.h.b16 %v46
  %v342 = vunpack.c.l.b16 %v47
  %v343 = vunpack.c.h.b16 %v47
  %v344 = vunpack.c.l.b16 %v48
  %v345 = vunpack.c.h.b16 %v48
  %v346 = vunpack.c.l.b16 %v49
  %v347 = vunpack.c.h.b16 %v49
  %v348 = vunpack.c.l.b16 %v50
  %v349 = vunpack.c.h.b16 %v50
  %v350 = vunpack.c.l.b16 %v51
  %v351 = vunpack.c.h.b16 %v51
  %v352 = vunpack.c.l.b16 %v52
  %v353 = vunpack.c.h.b16 %v52
  %v354 = vunpack.c.l.b16 %v53
  %v355 = vunpack.c.h.b16 %v53
  %v356 = vunpack.c.l.b16 %v54
  %v357 = vunpack.c.h.b16 %v54
  %v358 = vunpack.c.l.b16 %v55
  %v359 = vunpack.c.h.b16 %v55
  %v360 = vunpack.c.l.b16 %v56
  %v361 = vunpack.c.h.b16 %v56
  %v362 = vunpack.c.l.b16 %v57
  %v363 = vunpack.c.h.b16 %v57
  %v364 = vunpack.c.l.b16 %v58
  %v365 = vunpack.c.h.b16 %v58
  %v366 = vunpack.c.l.b16 %v59
  %v367 = vunpack.c.h.b16 %v59
  %v368 = vunpack.c.l.b16 %v60
  %v369 = vunpack.c.h.b16 %v60
  %v370 = vunpack.c.l.b16 %v61
  %v371 = vunpack.c.h.b16 %v61
  %v372 = vunpack.c.l.b16 %v62
  %v373 = vunpack.c.h.b16 %v62
  %v374 = vunpack.c.l.b16 %v63
  %v375 = vunpack.c.h.b16 %v63
  %v376 = vunpack.c.l.b16 %v64
  %v377 = vunpack.c.h.b16 %v64
  %v378 = vunpack.c.l.b16 %v65
  %v379 = vunpack.c.h.b16 %v65
  %v380 = vunpack.c.l.b16 %v66
  %v381 = vunpack.c.h.b16 %v66
  %v382 = vunpack.c.l.b16 %v67
  %v383 = vunpack.c.h.b16 %v67
  %v384 = vunpack.c.l.b16 %v68
  %v385 = vunpack.c.h.b16 %v68
  %v386 = vunpack.c.l.b16 %v69
  %v387 = vunpack.c.h.b16 %v69
  %v388 = vunpack.c.l.b16 %v70
  %v389 = vunpack.c.h.b16 %v70
  %v390 = vunpack.c.l.b16 %v71
  %v391 = vunpack.c.h.b16 %v71
  %v392 = vunpack.c.l.b16 %v72
  %v393 = vunpack.c.h.b16 %v72
  %v394 = vunpack.c.l.b16 %v73
  %v395 = vunpack.c.h.b16 %v73
  %v396 = vunpack.c.l.b16 %v74
  %v397 = vunpack.c.h.b16 %v74
  %v398 = vunpack.c.l.b16 %v75
  %v399 = vunpack.c.h.b16 %v75
  %v400 = vunpack.c.l.b16 %v76
  %v401 = vunpack.c.h.b16 %v76
  %v402 = vunpack.c.l.b16 %v77
  %v403 = vunpack.c.h.b16 %v77
  %v404 = vunpack.c.l.b16 %v78
  %v405 = vunpack.c.h.b16 %v78
  %v406 = vunpack.c.l.b16 %v79
  %v407 = vunpack.c.h.b16 %v79
  %v408 = vunpack.c.l.b16 %v80
  %v409 = vunpack.c.h.b16 %v80
  %v410 = vunpack.c.l.b16 %v81
  %v411 = vunpack.c.h.b16 %v81
  %v412 = vunpack.c.l.b16 %v82
  %v413 = vunpack.c.h.b16 %v82
  %v414 = vunpack.c.l.b16 %v83
  %v415 = vunpack.c.h.b16 %v83
  %v416 = vunpack.c.l.b16 %v84
  %v417 = vunpack.c.h.b16 %v84
  %v418 = vunpack.c.l.b16 %v85
  %v419 = vunpack.c.h.b16 %v85
  %v420 = vunpack.c.l.b16 %v86
  %v421 = vunpack.c.h.b16 %v86
  %v422 = vunpack.c.l.b16 %v87
  %v423 = vunpack.c.h.b16 %v87
  %v424 = vunpack.c.l.b16 %v88
  %v425 = vunpack.c.h.b16 %v88
  %v426 = vunpack.c.l.b16 %v89
  %v427 = vunpack.c.h.b16 %v89
  %v428 = vunpack.c.l.b16 %v90
  %v429 = vunpack.c.h.b16 %v90
  %v430 = vunpack.c.l.b16 %v91
  %v431 = vunpack.c.h.b16 %v91
  %v432 = vunpack.c.l.b16 %v92
  %v433 = vunpack.c.h.b16 %v92
  %v434 = vunpack.c.l.b16 %v93
  %v435 = vunpack.c.h.b16 %v93
  %v436 = vunpack.c.l.b16 %v94
  %v437 = vunpack.c.h.b16 %v94
  %v438 = vunpack.c.l.b16 %v95
  %v439 = vunpack.c.h.b16 %v95
  %v440 = vunpack.c.l.b16 %v96
  %v441 = vunpack.c.h.b16 %v96
  %v442 = vunpack.c.l.b16 %v97
  %v443 = vunpack.c.h.b16 %v97
  %v444 = vunpack.c.l.b16 %v98
  %v445 = vunpack.c.h.b16 %v98
  %v446 = vunpack.c.l.b16 %v99
  %v447 = vunpack.c.h.b16 %v99
  %v448 = vunpack.c.l.b16 %v100
  %v449 = vunpack.c.h.b16 %v100
  %v450 = vunpack.c.l.b16 %v101
  %v451 = vunpack.c.h.b16 %v101
  %v452 = vunpack.c.l.b16 %v102
  %v453 = vunpack.c.h.b16 %v102
  %v454 = vunpack.c.l.b16 %v103
  %v455 = vunpack.c.h.b16 %v103
  %v456 = vunpack.c.l.b16 %v104
  %v457 = vunpack.c.h.b16 %v104
  %v458 = vunpack.c.l.b16 %v105
  %v459 = vunpack.c.h.b16 %v105
  %v460 = vunpack.c.l.b16 %v106
  %v461 = vunpack.c.h.b16 %v106
  %v462 = vunpack.c.l.b16 %v107
  %v463 = vunpack.c.h.b16 %v107
  %v464 = vunpack.c.l.b16 %v108
  %v465 = vunpack.c.h.b16 %v108
  %v466 = vunpack.c.l.b16 %v109
  %v467 = vunpack.c.h.b16 %v109
  %v468 = vunpack.c.l.b16 %v110
  %v469 = vunpack.c.h.b16 %v110
  %v470 = vunpack.c.l.b16 %v111
  %v471 = vunpack.c.h.b16 %v111
  %v472 = vunpack.c.l.b16 %v112
  %v473 = vunpack.c.h.b16 %v112
  %v474 = vunpack.c.l.b16 %v113
  %v475 = vunpack.c.h.b16 %v113
  %v476 = vunpack.c.l.b16 %v114
  %v477 = vunpack.c.h.b16 %v114
  %v478 = vunpack.c.l.b16 %v115
  %v479 = vunpack.c.h.b16 %v115
  %v480 = vunpack.c.l.b16 %v116
  %v481 = vunpack.c.h.b16 %v116
  %v482 = vunpack.c.l.b16 %v117
  %v483 = vunpack.c.h.b16 %v117
  %v484 = vunpack.c.l.b16 %v118
  %v485 = vunpack.c.h.b16 %v118
  %v486 = vunpack.c.l.b16 %v119
  %v487 = vunpack.c.h.b16 %v119
  %v488 = vunpack.c.l.b16 %v120
  %v489 = vunpack.c.h.b16 %v120
  %v490 = vunpack.c.l.b16 %v121
  %v491 = vunpack.c.h.b16 %v121
  %v492 = vunpack.c.l.b16 %v122
  %v493 = vunpack.c.h.b16 %v122
  %v494 = vunpack.c.l.b16 %v123
  %v495 = vunpack.c.h.b16 %v123
  %v496 = vunpack.c.l.b16 %v124
  %v497 = vunpack.c.h.b16 %v124
  %v498 = vunpack.c.l.b16 %v125
  %v499 = vunpack.c.h.b16 %v125
  %v500 = vunpack.c.l.b16 %v126
  %v501 = vunpack.c.h.b16 %v126
  %v502 = vunpack.c.l.b16 %v127
  %v503 = vunpack.c.h.b16 %v127
  %v504 = vunpack.c.l.b16 %v128
  %v505 = vunpack.c.h.b16 %v128
  %v506 = vunpack.c.l.b16 %v129
  %v507 = vunpack.c.h.b16 %v129
  %v508 = vunpack.c.l.b16 %v130
  %v509 = vunpack.c.h.b16 %v130
  %v510 = vunpack.c.l.b16 %v131
  %v511 = vunpack.c.h.b16 %v131
  %v512 = vunpack.c.l.b16 %v132
  %v513 = vunpack.c.h.b16 %v132
  %v514 = vunpack.c.l.b16 %v133
  %v515 = vunpack.c.h.b16 %v133
  %v516 = vunpack.c.l.b16 %v134
  %v517 = vunpack.c.h.b16 %v134
  %v518 = vunpack.c.l.b16 %v135
  %v519 = vunpack.c.h.b16 %v135
  %v520 = vunpack.c.l.b16 %v136
  %v521 = vunpack.c.h.b16 %v136
  %v522 = vunpack.c.l.b16 %v137
  %v523 = vunpack.c.h.b16 %v137
  %v524 = vunpack.c.l.b16 %v138
  %v525 = vunpack.c.h.b16 %v138
  %v526 = vunpack.c.l.b16 %v139
  %v527 = vunpack.c.h.b16 %v139
  %v528 = vunpack.c.l.b16 %v140
  %v529 = vunpack.c.h.b16 %v140
  %v530 = vunpack.c.l.b16 %v141
  %v531 = vunpack.c.h.b16 %v141
  %v532 = vunpack.c.l.b16 %v142
  %v533 = vunpack.c.h.b16 %v142
  %v534 = vunpack.c.l.b16 %v143
  %v535 = vunpack.c.h.b16 %v143
  %v536 = vunpack.c.l.b16 %v144
  %v537 = vunpack.c.h.b16 %v144
  %v538 = vunpack.c.l.b16 %v145
  %v539 = vunpack.c.h.b16 %v145
  %v540 = vunpack.c.l.b16 %v146
  %v541 = vunpack.c.h.b16 %v146
  %v542 = vunpack.c.l.b16 %v147
  %v543 = vunpack.c.h.b16 %v147
  %v544 = vunpack.c.l.b16 %v148
  %v545 = vunpack.c.h.b16 %v148
  %v546 = vunpack.c.l.b16 %v149
  %v547 = vunpack.c.h.b16 %v149
  %v548 = vunpack.c.l.b16 %v150
  %v549 = vunpack.c.h.b16 %v150
  %v550 = vunpack.c.l.b16 %v151
  %v551 = vunpack.c.h.b16 %v151
  %v552 = vunpack.c.l.b16 %v152
  %v553 = vunpack.c.h.b16 %v152
  %v554 = vunpack.c.l.b16 %v153
  %v555 = vunpack.c.h.b16 %v153
  %v556 = vunpack.c.l.b16 %v154
  %v557 = vunpack.c.h.b16 %v154
  %v558 = vunpack.c.l.b16 %v155
  %v559 = vunpack.c.h.b16 %v155
  %v560 = vunpack.c.l.b16 %v156
  %v561 = vunpack.c.h.b16 %v156
  %v562 = vunpack.c.l.b16 %v157
  %v563 = vunpack.c.h.b16 %v157
  %v564 = vunpack.c.l.b16 %v158
  %v565 = vunpack.c.h.b16 %v158
  %v566 = vunpack.c.l.b16 %v159
  %v567 = vunpack.c.h.b16 %v159
  %v568 = vunpack.c.l.b16 %v160
  %v569 = vunpack.c.h.b16 %v160
  %v570 = vunpack.c.l.b16 %v161
  %v571 = vunpack.c.h.b16 %v161
  %v572 = vunpack.c.l.b16 %v162
  %v573 = vunpack.c.h.b16 %v162
  %v574 = vunpack.c.l.b16 %v163
  %v575 = vunpack.c.h.b16 %v163
  %v576 = vunpack.c.l.b16 %v164
  %v577 = vunpack.c.h.b16 %v164
  %v578 = vunpack.c.l.b16 %v165
  %v579 = vunpack.c.h.b16 %v165
  %v580 = vunpack.c.l.b16 %v166
  %v581 = vunpack.c.h.b16 %v166
  %v582 = vunpack.c.l.b16 %v167
  %v583 = vunpack.c.h.b16 %v167
  %v584 = vunpack.c.l.b16 %v168
  %v585 = vunpack.c.h.b16 %v168
  %v586 = vunpack.c.l.b16 %v169
  %v587 = vunpack.c.h.b16 %v169
  %v588 = vunpack.c.l.b16 %v170
  %v589 = vunpack.c.h.b16 %v170
  %v590 = vunpack.c.l.b16 %v171
  %v591 = vunpack.c.h.b16 %v171
  %v592 = vunpack.c.l.b16 %v172
  %v593 = vunpack.c.h.b16 %v172
  %v594 = vunpack.c.l.b16 %v173
  %v595 = vunpack.c.h.b16 %v173
  %v596 = vunpack.c.l.b16 %v174
  %v597 = vunpack.c.h.b16 %v174
  %v598 = vunpack.c.l.b16 %v175
  %v599 = vunpack.c.h.b16 %v175
  %v600 = vunpack.c.l.b16 %v176
  %v601 = vunpack.c.h.b16 %v176
  %v602 = vunpack.c.l.b16 %v177
  %v603 = vunpack.c.h.b16 %v177
  %v604 = vunpack.c.l.b16 %v178
  %v605 = vunpack.c.h.b16 %v178
  %v606 = vunpack.c.l.b16 %v179
  %v607 = vunpack.c.h.b16 %v179
  %v608 = vunpack.c.l.b16 %v180
  %v609 = vunpack.c.h.b16 %v180
  %v610 = vunpack.c.l.b16 %v181
  %v611 = vunpack.c.h.b16 %v181
  %v612 = vunpack.c.l.b16 %v182
  %v613 = vunpack.c.h.b16 %v182
  %v614 = vunpack.c.l.b16 %v183
  %v615 = vunpack.c.h.b16 %v183
  %v616 = vunpack.c.l.b16 %v184
  %v617 = vunpack.c.h.b16 %v184
  %v618 = vunpack.c.l.b16 %v185
  %v619 = vunpack.c.h.b16 %v185
  %v620 = vunpack.c.l.b16 %v186
  %v621 = vunpack.c.h.b16 %v186
  %v622 = vunpack.c.l.b16 %v187
  %v623 = vunpack.c.h.b16 %v187
  %v624 = vunpack.c.l.b16 %v188
  %v625 = vunpack.c.h.b16 %v188
  %v626 = vunpack.c.l.b16 %v189
  %v627 = vunpack.c.h.b16 %v189
  %v628 = vpack.c.b16 %v342, %v340
  %v629 = vpack.c.b16 %v343, %v341
  %v630 = vpack.c.b16 %v346, %v344
  %v631 = vpack.c.b16 %v347, %v345
  %v632 = vpack.c.b16 %v350, %v348
  %v633 = vpack.c.b16 %v351, %v349
  %v634 = vpack.c.b16 %v354, %v352
  %v635 = vpack.c.b16 %v355, %v353
  %v636 = vpack.c.b16 %v358, %v356
  %v637 = vpack.c.b16 %v359, %v357
  %v638 = vpack.c.b16 %v362, %v360
  %v639 = vpack.c.b16 %v363, %v361
  %v640 = vpack.c.b16 %v366, %v364
  %v641 = vpack.c.b16 %v367, %v365
  %v642 = vpack.c.b16 %v370, %v368
  %v643 = vpack.c.b16 %v371, %v369
  %v644 = vpack.c.b16 %v374, %v372
  %v645 = vpack.c.b16 %v375, %v373
  %v646 = vpack.c.b16 %v378, %v376
  %v647 = vpack.c.b16 %v379, %v377
  %v648 = vpack.c.b16 %v382, %v380
  %v649 = vpack.c.b16 %v383, %v381
  %v650 = vpack.c.b16 %v386, %v384
  %v651 = vpack.c.b16 %v387, %v385
  %v652 = vpack.c.b16 %v390, %v388
  %v653 = vpack.c.b16 %v391, %v389
  %v654 = vpack.c.b16 %v394, %v392
  %v655 = vpack.c.b16 %v395, %v393
  %v656 = vpack.c.b16 %v398, %v396
  %v657 = vpack.c.b16 %v399, %v397
  %v658 = vpack.c.b16 %v402, %v400
  %v659 = vpack.c.b16 %v403, %v401
  %v660 = vpack.c.b16 %v406, %v404
  %v661 = vpack.c.b16 %v407, %v405
  %v662 = vpack.c.b16 %v410, %v408
  %v663 = vpack.c.b16 %v411, %v409
  %v664 = vpack.c.b16 %v414, %v412
  %v665 = vpack.c.b16 %v415, %v413
  %v666 = vpack.c.b16 %v418, %v416
  %v667 = vpack.c.b16 %v419, %v417
  %v668 = vpack.c.b16 %v422, %v420
  %v669 = vpack.c.b16 %v423, %v421
  %v670 = vpack.c.b16 %v426, %v424
  %v671 = vpack.c.b16 %v427, %v425
  %v672 = vpack.c.b16 %v430, %v428
  %v673 = vpack.c.b16 %v431, %v429
  %v674 = vpack.c.b16 %v434, %v432
  %v675 = vpack.c.b16 %v435, %v433
  %v676 = vpack.c.b16 %v438, %v436
  %v677 = vpack.c.b16 %v439, %v437
  %v678 = vpack.c.b16 %v442, %v440
  %v679 = vpack.c.b16 %v443, %v441
  %v680 = vpack.c.b16 %v446, %v444
  %v681 = vpack.c.b16 %v447, %v445
  %v682 = vpack.c.b16 %v450, %v448
  %v683 = vpack.c.b16 %v451, %v449
  %v684 = vpack.c.b16 %v454, %v452
  %v685 = vpack.c.b16 %v455, %v453
  %v686 = vpack.c.b16 %v458, %v456
  %v687 = vpack.c.b16 %v459, %v457
  %v688 = vpack.c.b16 %v462, %v460
  %v689 = vpack.c.b16 %v463, %v461
  %v690 = vpack.c.b16 %v466, %v464
  %v691 = vpack.c.b16 %v467, %v465
  %v692 = vpack.c.b16 %v470, %v468
  %v693 = vpack.c.b16 %v471, %v469
  %v694 = vpack.c.b16 %v474, %v472
  %v695 = vpack.c.b16 %v475, %v473
  %v696 = vpack.c.b16 %v478, %v476
  %v697 = vpack.c.b16 %v479, %v477
  %v698 = vpack.c.b16 %v482, %v480
  %v699 = vpack.c.b16 %v483, %v481
  %v700 = vpack.c.b16 %v486, %v484
  %v701 = vpack.c.b16 %v487, %v485
  %v702 = vpack.c.b16 %v490, %v488
  %v703 = vpack.c.b16 %v491, %v489
  %v704 = vpack.c.b16 %v494, %v492
  %v705 = vpack.c.b16 %v495, %v493
  %v706 = vpack.c.b16 %v498, %v496
  %v707 = vpack.c.b16 %v499, %v497
  %v708 = vpack.c.b16 %v502, %v500
  %v709 = vpack.c.b16 %v503, %v501
  %v710 = vpack.c.b16 %v506, %v504
  %v711 = vpack.c.b16 %v507, %v505
  %v712 = vpack.c.b16 %v510, %v508
  %v713 = vpack.c.b16 %v511, %v509
  %v714 = vpack.c.b16 %v514, %v512
  %v715 = vpack.c.b16 %v515, %v513
  %v716 = vpack.c.b16 %v518, %v516
  %v717 = vpack.c.b16 %v519, %v517
  %v718 = vpack.c.b16 %v522, %v520
  %v719 = vpack.c.b16 %v523, %v521
  %v720 = vpack.c.b16 %v526, %v524
  %v721 = vpack.c.b16 %v527, %v525
  %v722 = vpack.c.b16 %v530, %v528
  %v723 = vpack.c.b16 %v531, %v529
  %v724 = vpack.c.b16 %v534, %v532
  %v725 = vpack.c.b16 %v535, %v533
  %v726 = vpack.c.b16 %v538, %v536
  %v727 = vpack.c.b16 %v539, %v537
  %v728 = vpack.c.b16 %v542, %v540
  %v729 = vpack.c.b16 %v543, %v541
  %v730 = vpack.c.b16 %v546, %v544
  %v731 = vpack.c.b16 %v547, %v545
  %v732 = vpack.c.b16 %v550, %v548
  %v733 = vpack.c.b16 %v551, %v549
  %v734 = vpack.c.b16 %v554, %v552
  %v735 = vpack.c.b16 %v555, %v553
  %v736 = vpack.c.b16 %v558, %v556
  %v737 = vpack.c.b16 %v559, %v557
  %v738 = vpack.c.b16 %v562, %v560
  %v739 = vpack.c.b16 %v563, %v561
  %v740 = vpack.c.b16 %v566, %v564
  %v741 = vpack.c.b16 %v567, %v565
  %v742 = vpack.c.b16 %v570, %v568
  %v743 = vpack.c.b16 %v571, %v569
  %v744 = vpack.c.b16 %v574, %v572
  %v745 = vpack.c.b16 %v575, %v573
  %v746 = vpack.c.b16 %v578, %v576
  %v747 = vpack.c.b16 %v579, %v577
  %v748 = vpack.c.b16 %v582, %v580
  %v749 = vpack.c.b16 %v583, %v581
  %v750 = vpack.c.b16 %v586, %v584
  %v751 = vpack.c.b16 %v587, %v585
  %v752 = vpack.c.b16 %v590, %v588
  %v753 = vpack.c.b16 %v591, %v589
  %v754 = vpack.c.b16 %v594, %v592
  %v755 = vpack.c.b16 %v595, %v593
  %v756 = vpack.c.b16 %v598, %v596
  %v757 = vpack.c.b16 %v599, %v597
  %v758 = vpack.c.b16 %v602, %v600
  %v759 = vpack.c.b16 %v603, %v601
  %v760 = vpack.c.b16 %v606, %v604
  %v761 = vpack.c.b16 %v607, %v605
  %v762 = vpack.c.b16 %v610, %v608
  %v763 = vpack.c.b16 %v611, %v609
  %v764 = vpack.c.b16 %v614, %v612
  %v765 = vpack.c.b16 %v615, %v613
  %v766 = vpack.c.b16 %v618, %v616
  %v767 = vpack.c.b16 %v619, %v617
  %v768 = vpack.c.b16 %v622, %v620
  %v769 = vpack.c.b16 %v623, %v621
  %v770 = vpack.c.b16 %v626, %v624
  %v771 = vpack.c.b16 %v627, %v625
  %916 = vmatpush.bf16.msra.mxu0 %v642
  %917 = vmatpush.bf16.msra.mxu0 %v640
  %918 = vmatpush.bf16.msra.mxu0 %v638
  %919 = vmatpush.bf16.msra.mxu0 %v636
  %920 = vmatpush.bf16.msra.mxu0 %v634
  %921 = vmatpush.bf16.msra.mxu0 %v632
  %922 = vmatpush.bf16.msra.mxu0 %v630
  %923 = vmatpush.bf16.msra.mxu0 %v628
  %924 = vmatmul.bf16.gmra.mxu0 %v37
  %v925 = vpop.f32.mrf.mxu0
  %v926 = vadd.f32 %v192, %v925
  %v927 = vpop.f32.mrf.mxu0
  %928 = vdwg.mxu0
  %929 = vmatpush.bf16.msra.mxu0 %v658
  %930 = vmatpush.bf16.msra.mxu0 %v656
  %931 = vmatpush.bf16.msra.mxu0 %v654
  %932 = vmatpush.bf16.msra.mxu0 %v652
  %933 = vmatpush.bf16.msra.mxu0 %v650
  %934 = vmatpush.bf16.msra.mxu0 %v648
  %935 = vmatpush.bf16.msra.mxu0 %v646
  %936 = vmatpush.bf16.msra.mxu0 %v644
  %937 = vmatmul.bf16.gmra.mxu0 %v38
  %v938 = vpop.f32.mrf.mxu0
  %v939 = vadd.f32 %v926, %v938
  %v940 = vpop.f32.mrf.mxu0
  %941 = vdwg.mxu0
  %942 = vmatpush.bf16.msra.mxu0 %v674
  %943 = vmatpush.bf16.msra.mxu0 %v672
  %944 = vmatpush.bf16.msra.mxu0 %v670
  %945 = vmatpush.bf16.msra.mxu0 %v668
  %946 = vmatpush.bf16.msra.mxu0 %v666
  %947 = vmatpush.bf16.msra.mxu0 %v664
  %948 = vmatpush.bf16.msra.mxu0 %v662
  %949 = vmatpush.bf16.msra.mxu0 %v660
  %950 = vmatmul.bf16.gmra.mxu0 %v39
  %v951 = vpop.f32.mrf.mxu0
  %v952 = vadd.f32 %v939, %v951
  %v953 = vpop.f32.mrf.mxu0
  %954 = vdwg.mxu0
  %955 = vmatpush.bf16.msra.mxu0 %v690
  %956 = vmatpush.bf16.msra.mxu0 %v688
  %957 = vmatpush.bf16.msra.mxu0 %v686
  %958 = vmatpush.bf16.msra.mxu0 %v684
  %959 = vmatpush.bf16.msra.mxu0 %v682
  %960 = vmatpush.bf16.msra.mxu0 %v680
  %961 = vmatpush.bf16.msra.mxu0 %v678
  %962 = vmatpush.bf16.msra.mxu0 %v676
  %963 = vmatmul.bf16.gmra.mxu0 %v40
  %v964 = vpop.f32.mrf.mxu0
  %v965 = vadd.f32 %v952, %v964
  %v966 = vpop.f32.mrf.mxu0
  %967 = vdwg.mxu0
  %968 = vmatpush.bf16.msra.mxu0 %v706
  %969 = vmatpush.bf16.msra.mxu0 %v704
  %970 = vmatpush.bf16.msra.mxu0 %v702
  %971 = vmatpush.bf16.msra.mxu0 %v700
  %972 = vmatpush.bf16.msra.mxu0 %v698
  %973 = vmatpush.bf16.msra.mxu0 %v696
  %974 = vmatpush.bf16.msra.mxu0 %v694
  %975 = vmatpush.bf16.msra.mxu0 %v692
  %976 = vmatmul.bf16.gmra.mxu0 %v41
  %v977 = vpop.f32.mrf.mxu0
  %v978 = vadd.f32 %v965, %v977
  %v979 = vpop.f32.mrf.mxu0
  %980 = vdwg.mxu0
  %981 = vmatpush.bf16.msra.mxu0 %v722
  %982 = vmatpush.bf16.msra.mxu0 %v720
  %983 = vmatpush.bf16.msra.mxu0 %v718
  %984 = vmatpush.bf16.msra.mxu0 %v716
  %985 = vmatpush.bf16.msra.mxu0 %v714
  %986 = vmatpush.bf16.msra.mxu0 %v712
  %987 = vmatpush.bf16.msra.mxu0 %v710
  %988 = vmatpush.bf16.msra.mxu0 %v708
  %989 = vmatmul.bf16.gmra.mxu0 %v42
  %v990 = vpop.f32.mrf.mxu0
  %v991 = vadd.f32 %v978, %v990
  %v992 = vpop.f32.mrf.mxu0
  %993 = vdwg.mxu0
  %994 = vmatpush.bf16.msra.mxu0 %v738
  %995 = vmatpush.bf16.msra.mxu0 %v736
  %996 = vmatpush.bf16.msra.mxu0 %v734
  %997 = vmatpush.bf16.msra.mxu0 %v732
  %998 = vmatpush.bf16.msra.mxu0 %v730
  %999 = vmatpush.bf16.msra.mxu0 %v728
  %1000 = vmatpush.bf16.msra.mxu0 %v726
  %1001 = vmatpush.bf16.msra.mxu0 %v724
  %1002 = vmatmul.bf16.gmra.mxu0 %v43
  %v1003 = vpop.f32.mrf.mxu0
  %v1004 = vadd.f32 %v991, %v1003
  %v1005 = vpop.f32.mrf.mxu0
  %1006 = vdwg.mxu0
  %1007 = vmatpush.bf16.msra.mxu0 %v754
  %1008 = vmatpush.bf16.msra.mxu0 %v752
  %1009 = vmatpush.bf16.msra.mxu0 %v750
  %1010 = vmatpush.bf16.msra.mxu0 %v748
  %1011 = vmatpush.bf16.msra.mxu0 %v746
  %1012 = vmatpush.bf16.msra.mxu0 %v744
  %1013 = vmatpush.bf16.msra.mxu0 %v742
  %1014 = vmatpush.bf16.msra.mxu0 %v740
  %1015 = vmatmul.bf16.gmra.mxu0 %v44
  %v1016 = vpop.f32.mrf.mxu0
  %v1017 = vadd.f32 %v1004, %v1016
  %v1018 = vpop.f32.mrf.mxu0
  %1019 = vdwg.mxu0
  %1020 = vmatpush.bf16.msra.mxu0 %v770
  %1021 = vmatpush.bf16.msra.mxu0 %v768
  %1022 = vmatpush.bf16.msra.mxu0 %v766
  %1023 = vmatpush.bf16.msra.mxu0 %v764
  %1024 = vmatpush.bf16.msra.mxu0 %v762
  %1025 = vmatpush.bf16.msra.mxu0 %v760
  %1026 = vmatpush.bf16.msra.mxu0 %v758
  %1027 = vmatpush.bf16.msra.mxu0 %v756
  %1028 = vmatmul.bf16.gmra.mxu0 %v45
  %v1029 = vpop.f32.mrf.mxu0
  %v1030 = vadd.f32 %v1017, %v1029
  %v1031 = vpop.f32.mrf.mxu0
  %1032 = vdwg.mxu0
  %1033 = vmatpush.bf16.msra.mxu0 %v643
  %1034 = vmatpush.bf16.msra.mxu0 %v641
  %1035 = vmatpush.bf16.msra.mxu0 %v639
  %1036 = vmatpush.bf16.msra.mxu0 %v637
  %1037 = vmatpush.bf16.msra.mxu0 %v635
  %1038 = vmatpush.bf16.msra.mxu0 %v633
  %1039 = vmatpush.bf16.msra.mxu0 %v631
  %1040 = vmatpush.bf16.msra.mxu0 %v629
  %1041 = vmatmul.bf16.gmra.mxu0 %v37
  %v1042 = vpop.f32.mrf.mxu0
  %v1043 = vadd.f32 %v193, %v1042
  %v1044 = vpop.f32.mrf.mxu0
  %1045 = vdwg.mxu0
  %1046 = vmatpush.bf16.msra.mxu0 %v659
  %1047 = vmatpush.bf16.msra.mxu0 %v657
  %1048 = vmatpush.bf16.msra.mxu0 %v655
  %1049 = vmatpush.bf16.msra.mxu0 %v653
  %1050 = vmatpush.bf16.msra.mxu0 %v651
  %1051 = vmatpush.bf16.msra.mxu0 %v649
  %1052 = vmatpush.bf16.msra.mxu0 %v647
  %1053 = vmatpush.bf16.msra.mxu0 %v645
  %1054 = vmatmul.bf16.gmra.mxu0 %v38
  %v1055 = vpop.f32.mrf.mxu0
  %v1056 = vadd.f32 %v1043, %v1055
  %v1057 = vpop.f32.mrf.mxu0
  %1058 = vdwg.mxu0
  %1059 = vmatpush.bf16.msra.mxu0 %v675
  %1060 = vmatpush.bf16.msra.mxu0 %v673
  %1061 = vmatpush.bf16.msra.mxu0 %v671
  %1062 = vmatpush.bf16.msra.mxu0 %v669
  %1063 = vmatpush.bf16.msra.mxu0 %v667
  %1064 = vmatpush.bf16.msra.mxu0 %v665
  %1065 = vmatpush.bf16.msra.mxu0 %v663
  %1066 = vmatpush.bf16.msra.mxu0 %v661
  %1067 = vmatmul.bf16.gmra.mxu0 %v39
  %v1068 = vpop.f32.mrf.mxu0
  %v1069 = vadd.f32 %v1056, %v1068
  %v1070 = vpop.f32.mrf.mxu0
  %1071 = vdwg.mxu0
  %1072 = vmatpush.bf16.msra.mxu0 %v691
  %1073 = vmatpush.bf16.msra.mxu0 %v689
  %1074 = vmatpush.bf16.msra.mxu0 %v687
  %1075 = vmatpush.bf16.msra.mxu0 %v685
  %1076 = vmatpush.bf16.msra.mxu0 %v683
  %1077 = vmatpush.bf16.msra.mxu0 %v681
  %1078 = vmatpush.bf16.msra.mxu0 %v679
  %1079 = vmatpush.bf16.msra.mxu0 %v677
  %1080 = vmatmul.bf16.gmra.mxu0 %v40
  %v1081 = vpop.f32.mrf.mxu0
  %v1082 = vadd.f32 %v1069, %v1081
  %v1083 = vpop.f32.mrf.mxu0
  %1084 = vdwg.mxu0
  %1085 = vmatpush.bf16.msra.mxu0 %v707
  %1086 = vmatpush.bf16.msra.mxu0 %v705
  %1087 = vmatpush.bf16.msra.mxu0 %v703
  %1088 = vmatpush.bf16.msra.mxu0 %v701
  %1089 = vmatpush.bf16.msra.mxu0 %v699
  %1090 = vmatpush.bf16.msra.mxu0 %v697
  %1091 = vmatpush.bf16.msra.mxu0 %v695
  %1092 = vmatpush.bf16.msra.mxu0 %v693
  %1093 = vmatmul.bf16.gmra.mxu0 %v41
  %v1094 = vpop.f32.mrf.mxu0
  %v1095 = vadd.f32 %v1082, %v1094
  %v1096 = vpop.f32.mrf.mxu0
  %1097 = vdwg.mxu0
  %1098 = vmatpush.bf16.msra.mxu0 %v723
  %1099 = vmatpush.bf16.msra.mxu0 %v721
  %1100 = vmatpush.bf16.msra.mxu0 %v719
  %1101 = vmatpush.bf16.msra.mxu0 %v717
  %1102 = vmatpush.bf16.msra.mxu0 %v715
  %1103 = vmatpush.bf16.msra.mxu0 %v713
  %1104 = vmatpush.bf16.msra.mxu0 %v711
  %1105 = vmatpush.bf16.msra.mxu0 %v709
  %1106 = vmatmul.bf16.gmra.mxu0 %v42
  %v1107 = vpop.f32.mrf.mxu0
  %v1108 = vadd.f32 %v1095, %v1107
  %v1109 = vpop.f32.mrf.mxu0
  %1110 = vdwg.mxu0
  %1111 = vmatpush.bf16.msra.mxu0 %v739
  %1112 = vmatpush.bf16.msra.mxu0 %v737
  %1113 = vmatpush.bf16.msra.mxu0 %v735
  %1114 = vmatpush.bf16.msra.mxu0 %v733
  %1115 = vmatpush.bf16.msra.mxu0 %v731
  %1116 = vmatpush.bf16.msra.mxu0 %v729
  %1117 = vmatpush.bf16.msra.mxu0 %v727
  %1118 = vmatpush.bf16.msra.mxu0 %v725
  %1119 = vmatmul.bf16.gmra.mxu0 %v43
  %v1120 = vpop.f32.mrf.mxu0
  %v1121 = vadd.f32 %v1108, %v1120
  %v1122 = vpop.f32.mrf.mxu0
  %1123 = vdwg.mxu0
  %1124 = vmatpush.bf16.msra.mxu0 %v755
  %1125 = vmatpush.bf16.msra.mxu0 %v753
  %1126 = vmatpush.bf16.msra.mxu0 %v751
  %1127 = vmatpush.bf16.msra.mxu0 %v749
  %1128 = vmatpush.bf16.msra.mxu0 %v747
  %1129 = vmatpush.bf16.msra.mxu0 %v745
  %1130 = vmatpush.bf16.msra.mxu0 %v743
  %1131 = vmatpush.bf16.msra.mxu0 %v741
  %1132 = vmatmul.bf16.gmra.mxu0 %v44
  %v1133 = vpop.f32.mrf.mxu0
  %v1134 = vadd.f32 %v1121, %v1133
  %v1135 = vpop.f32.mrf.mxu0
  %1136 = vdwg.mxu0
  %1137 = vmatpush.bf16.msra.mxu0 %v771
  %1138 = vmatpush.bf16.msra.mxu0 %v769
  %1139 = vmatpush.bf16.msra.mxu0 %v767
  %1140 = vmatpush.bf16.msra.mxu0 %v765
  %1141 = vmatpush.bf16.msra.mxu0 %v763
  %1142 = vmatpush.bf16.msra.mxu0 %v761
  %1143 = vmatpush.bf16.msra.mxu0 %v759
  %1144 = vmatpush.bf16.msra.mxu0 %v757
  %1145 = vmatmul.bf16.gmra.mxu0 %v45
  %v1146 = vpop.f32.mrf.mxu0
  %v1147 = vadd.f32 %v1134, %v1146
  %v1148 = vpop.f32.mrf.mxu0
  %1149 = vdwg.mxu0
  %1150 = vst [vmem:[%s3] sm:$0xff] %v1030
  %1151 = vst [vmem:[%s3 + $0x8] sm:$0xff] %v1147
  // Predicated region
  $region14: #{g_unet_add_all_forward.19} parent=0 // pred_check
    _
  $region15: #{g_unet_add_all_forward.19} parent=0 // pred_check_branch
    %1153 = sbr.rel (0) target = $region17
  $region16: #{g_unet_add_all_forward.19} parent=0 // pred_region
    _
  $region17: #{g_unet_add_all_forward.19} parent=0 // pred_fallthru
    _
  // Predicated region
  $region18: #{g_unet_add_all_forward.19} parent=0 // pred_check
    _
  $region19: #{g_unet_add_all_forward.19} parent=0 // pred_check_branch
    %1155 = sbr.rel (0) target = $region21
  $region20: #{g_unet_add_all_forward.19} parent=0 // pred_region
    _
  $region21: #{g_unet_add_all_forward.19} parent=0 // pred_fallthru
    _

// kernel: g_unet_add_all_forward.20
$region0: #{g_unet_add_all_forward.20}
  #allocation0 [shape = 'u32[]', space=smem, size = 0x4, offset = 0x4, fixed_abs, tag = 'smem constant byte address 0x4 - core index']
  #allocation1 [shape = 'u32[72,128]{1,0:T(1,128)}', space=vmem, size = 0x9000, scoped, tag = 'internal scratch']
  %s0 = inlined_call_operand.vmem [shape: bf16[32,1152], index: 0, kind: input, shape index: {}]
  %s1 = inlined_call_operand.vmem [shape: bf16[1152,128], index: 1, kind: input, shape index: {}]
  %s2 = inlined_call_operand.vmem [shape: f32[1,128], index: 2, kind: input, shape index: {}]
  %s3 = inlined_call_operand.vmem [shape: f32[32,128], index: 3, kind: output, shape index: {}]
  %s4 = sld [smem:[#allocation0]]
  $region45: #{g_unet_add_all_forward.20} parent=0
    _
  %s6 = ssub.s32 1, %s4
  %s7 = scalar_select 0, %s6, %s4
  loop: start=0, step=1, limit=4
  $region2: #{g_unet_add_all_forward.20} parent=0 // loop_pre_header
    _
  $region3: #{g_unet_add_all_forward.20} parent=0 // loop_header
    %s9 = sphi 0, %s13
    %p10 = scmp.ge.s32.totalorder %s9, 4
    %s19 = sphi 0, %s21
    %s22 = sphi 0, %s19
    %s23 = sphi 0, %s22
    %s39 = sphi 0, %s23
    %s43 = sphi 0, %s43
    %s45 = sphi 0, %s43
    %s46 = sphi 0, %s45
    %s60 = sphi 0, %s46
    %s64 = sphi 0, %s64
    %s66 = sphi 0, %s64
    %s67 = sphi 0, %s66
    %s81 = sphi 0, %s67
    %s87 = sphi 0, %s89
    %s90 = sphi 0, %s87
    %s91 = sphi 0, %s90
    %s107 = sphi 0, %s91
  $region4: #{g_unet_add_all_forward.20} parent=0 // loop_header_branch
    %12 = sbr.rel (%p10) target = $region8
  $region5: #{g_unet_add_all_forward.20} parent=0 // loop_body
    %s14 = ssub.s32 %s9, 1
    %s15 = ssub.s32 %s9, 2
    %s16 = sadd.s32 %s9, 1
    %s17 = ssub.s32 %s9, %s16
    %p18 = scmp.eq.s32.totalorder %s17, 0
    %s20 = sadd.s32 %s19, 1
    %s21 = scalar_select %p18, %s19, %s20
    %p24 = pneg %p18
    %p25 = scmp.eq.s32.totalorder %s9, 1
    %p26 = por %p24, %p25
    %p27 = scmp.ne.s32.totalorder %s19, %s22
    %p28 = scmp.eq.s32.totalorder %s9, 0
    %p29 = por %p27, %p28
    %p30 = scmp.ne.s32.totalorder %s19, %s22
    %p31 = scmp.eq.s32.totalorder %s14, 1
    %p32 = por %p30, %p31
    %p33 = scmp.ne.s32.totalorder %s22, %s23
    %p34 = scmp.eq.s32.totalorder %s14, 0
    %p35 = por %p33, %p34
    %p36 = scmp.ne.s32.totalorder %s22, %s23
    %p37 = scmp.eq.s32.totalorder %s15, 1
    %p38 = por %p36, %p37
    %p40 = scmp.ne.s32.totalorder %s23, %s39
    %p41 = scmp.eq.s32.totalorder %s15, 0
    %p42 = por %p40, %p41
    %s44 = sadd.s32 %s43, 1
    %p47 = scmp.eq.s32.totalorder %s9, 1
    %p48 = scmp.ne.s32.totalorder %s43, %s45
    %p49 = scmp.eq.s32.totalorder %s9, 0
    %p50 = por %p48, %p49
    %p51 = scmp.ne.s32.totalorder %s43, %s45
    %p52 = scmp.eq.s32.totalorder %s14, 1
    %p53 = por %p51, %p52
    %p54 = scmp.ne.s32.totalorder %s45, %s46
    %p55 = scmp.eq.s32.totalorder %s14, 0
    %p56 = por %p54, %p55
    %p57 = scmp.ne.s32.totalorder %s45, %s46
    %p58 = scmp.eq.s32.totalorder %s15, 1
    %p59 = por %p57, %p58
    %p61 = scmp.ne.s32.totalorder %s46, %s60
    %p62 = scmp.eq.s32.totalorder %s15, 0
    %p63 = por %p61, %p62
    %s65 = sadd.s32 %s64, 1
    %p68 = scmp.eq.s32.totalorder %s9, 1
    %p69 = scmp.ne.s32.totalorder %s64, %s66
    %p70 = scmp.eq.s32.totalorder %s9, 0
    %p71 = por %p69, %p70
    %p72 = scmp.ne.s32.totalorder %s64, %s66
    %p73 = scmp.eq.s32.totalorder %s14, 1
    %p74 = por %p72, %p73
    %p75 = scmp.ne.s32.totalorder %s66, %s67
    %p76 = scmp.eq.s32.totalorder %s14, 0
    %p77 = por %p75, %p76
    %p78 = scmp.ne.s32.totalorder %s66, %s67
    %p79 = scmp.eq.s32.totalorder %s15, 1
    %p80 = por %p78, %p79
    %p82 = scmp.ne.s32.totalorder %s67, %s81
    %p83 = scmp.eq.s32.totalorder %s15, 0
    %p84 = por %p82, %p83
    %s85 = ssub.s32 %s9, %s16
    %p86 = scmp.eq.s32.totalorder %s85, 0
    %s88 = sadd.s32 %s87, 1
    %s89 = scalar_select %p86, %s87, %s88
    %p92 = pneg %p86
    %p93 = scmp.eq.s32.totalorder %s9, 1
    %p94 = por %p92, %p93
    %p95 = scmp.ne.s32.totalorder %s87, %s90
    %p96 = scmp.eq.s32.totalorder %s9, 0
    %p97 = por %p95, %p96
    %p98 = scmp.ne.s32.totalorder %s87, %s90
    %p99 = scmp.eq.s32.totalorder %s14, 1
    %p100 = por %p98, %p99
    %p101 = scmp.ne.s32.totalorder %s90, %s91
    %p102 = scmp.eq.s32.totalorder %s14, 0
    %p103 = por %p101, %p102
    %p104 = scmp.ne.s32.totalorder %s90, %s91
    %p105 = scmp.eq.s32.totalorder %s15, 1
    %p106 = por %p104, %p105
    %p108 = scmp.ne.s32.totalorder %s91, %s107
    %p109 = scmp.eq.s32.totalorder %s15, 0
    %p110 = por %p108, %p109
    %p111 = scmp.le.s32.totalorder 1, %s9
    %p112 = scmp.lt.s32.totalorder %s9, 3
    %p113 = pnand %p111, %p112
    %p114 = pneg %p113
    // Predicated region
    $region9: #{g_unet_add_all_forward.20} parent=5 // pred_check
      _
    $region10: #{g_unet_add_all_forward.20} parent=5 // pred_check_branch
      %116 = sbr.rel (%p113) target = $region12
    $region11: #{g_unet_add_all_forward.20} parent=5 // pred_region
      %s117 = ssub.s32 %s9, 1
      // Predicated region
      $region13: #{g_unet_add_all_forward.20} parent=11 // pred_check
        %p118 = pneg %p56
      $region14: #{g_unet_add_all_forward.20} parent=11 // pred_check_branch
        %120 = sbr.rel (%p118) target = $region16
      $region15: #{g_unet_add_all_forward.20} parent=11 // pred_region
        _
      $region16: #{g_unet_add_all_forward.20} parent=11 // pred_fallthru
        _
      // Predicated region
      $region17: #{g_unet_add_all_forward.20} parent=11 // pred_check
        %p121 = pneg %p77
      $region18: #{g_unet_add_all_forward.20} parent=11 // pred_check_branch
        %123 = sbr.rel (%p121) target = $region20
      $region19: #{g_unet_add_all_forward.20} parent=11 // pred_region
        _
      $region20: #{g_unet_add_all_forward.20} parent=11 // pred_fallthru
        _
    $region12: #{g_unet_add_all_forward.20} parent=5 // pred_fallthru
      _
    %p124 = scmp.lt.s32.totalorder %s9, 2
    // Predicated region
    $region21: #{g_unet_add_all_forward.20} parent=5 // pred_check
      %p125 = pneg %p124
    $region22: #{g_unet_add_all_forward.20} parent=5 // pred_check_branch
      %127 = sbr.rel (%p125) target = $region24
    $region23: #{g_unet_add_all_forward.20} parent=5 // pred_region
      // Predicated region
      $region25: #{g_unet_add_all_forward.20} parent=23 // pred_check
        %p128 = pneg %p29
      $region26: #{g_unet_add_all_forward.20} parent=23 // pred_check_branch
        %130 = sbr.rel (%p128) target = $region28
      $region27: #{g_unet_add_all_forward.20} parent=23 // pred_region
        %s131 = smul.u32 2, %s9
        %p132 = scmp.lt.s32.totalorder %s131, 3
        %s133 = scalar_select %p132, %s131, 3
        %s134 = smul.addr %s133, 9
        %s135 = smul.addr %s134, 4
        %s136 = scalar_lea.vmem %s0, %s135
        %s137 = smul.u32 2, %s9
      $region28: #{g_unet_add_all_forward.20} parent=23 // pred_fallthru
        _
    $region24: #{g_unet_add_all_forward.20} parent=5 // pred_fallthru
      _
    %p138 = scmp.le.s32.totalorder 1, %s9
    %p139 = scmp.lt.s32.totalorder %s9, 3
    %p140 = pnand %p138, %p139
    %p141 = pneg %p140
    // Predicated region
    $region29: #{g_unet_add_all_forward.20} parent=5 // pred_check
      _
    $region30: #{g_unet_add_all_forward.20} parent=5 // pred_check_branch
      %143 = sbr.rel (%p140) target = $region32
    $region31: #{g_unet_add_all_forward.20} parent=5 // pred_region
      %s144 = ssub.s32 %s9, 1
      %s145 = smul.u32 2, %s14
      %p146 = scmp.lt.s32.totalorder %s145, 3
      %s147 = scalar_select %p146, %s145, 3
      %s148 = smul.addr %s147, 9
      %s149 = smul.addr %s148, 4
      %s150 = scalar_lea.vmem %s0, %s149
      %p151 = pneg %p35
      %p152 = pneg %p32
      %p153 = pneg %p56
      %p154 = pneg %p53
      %p155 = pneg %p77
      %p156 = pneg %p74
      %p157 = pneg %p103
      %p158 = pneg %p100
      %s159 = smul.u32 2, %s14
      %p160 = scmp.lt.s32.totalorder %s159, 3
      %s161 = scalar_select %p160, %s159, 3
      %s162 = smul.addr %s161, 8
      %s163 = scalar_lea.vmem %s3, %s162
      %s164 = smul.u32 2, %s14
      %p165 = scmp.lt.s32.totalorder %s164, 3
      %s166 = scalar_select %p165, %s164, 3
      %s167 = smul.addr %s166, 9
      %s168 = smul.addr %s167, 4
      %s169 = scalar_lea.vmem %s0, %s168
      %s170 = smul.u32 2, %s14
      %s171 = smul.u32 2, %s14
      %p172 = scmp.lt.s32.totalorder %s171, 3
      %s173 = scalar_select %p172, %s171, 3
      %s174 = smul.addr %s173, 8
      %s175 = scalar_lea.vmem %s3, %s174
      %s176 = smul.u32 2, %s14
      %v177 = vld [vmem:[%s169] sm:$0xff]
      %v178 = vld [vmem:[%s169 + $0x8] sm:$0xff]
      %v179 = vld [vmem:[%s169 + $0x10] sm:$0xff]
      %v180 = vld [vmem:[%s169 + $0x18] sm:$0xff]
      %v181 = vld [vmem:[%s169 + $0x20] sm:$0xf]
      %v182 = vld [vmem:[%s169 + $0x24] sm:$0xff]
      %v183 = vld [vmem:[%s169 + $0x2c] sm:$0xff]
      %v184 = vld [vmem:[%s169 + $0x34] sm:$0xff]
      %v185 = vld [vmem:[%s169 + $0x3c] sm:$0xff]
      %v186 = vld [vmem:[%s169 + $0x44] sm:$0xf]
      %v187 = vunpack.c.l.bf16 %v177
      %v188 = vunpack.c.h.bf16 %v177
      %v189 = vunpack.c.l.bf16 %v178
      %v190 = vunpack.c.h.bf16 %v178
      %v191 = vunpack.c.l.bf16 %v179
      %v192 = vunpack.c.h.bf16 %v179
      %v193 = vunpack.c.l.bf16 %v180
      %v194 = vunpack.c.h.bf16 %v180
      %v195 = vunpack.c.l.bf16 %v181
      %v196 = vunpack.c.l.bf16 %v182
      %v197 = vunpack.c.h.bf16 %v182
      %v198 = vunpack.c.l.bf16 %v183
      %v199 = vunpack.c.h.bf16 %v183
      %v200 = vunpack.c.l.bf16 %v184
      %v201 = vunpack.c.h.bf16 %v184
      %v202 = vunpack.c.l.bf16 %v185
      %v203 = vunpack.c.h.bf16 %v185
      %v204 = vunpack.c.l.bf16 %v186
      %v205 = vmax.f32 %v187, 0.0
      %v206 = vmax.f32 %v188, 0.0
      %v207 = vmax.f32 %v189, 0.0
      %v208 = vmax.f32 %v190, 0.0
      %v209 = vmax.f32 %v191, 0.0
      %v210 = vmax.f32 %v192, 0.0
      %v211 = vmax.f32 %v193, 0.0
      %v212 = vmax.f32 %v194, 0.0
      %v213 = vmax.f32 %v195, 0.0
      %v214 = vmax.f32 %v196, 0.0
      %v215 = vmax.f32 %v197, 0.0
      %v216 = vmax.f32 %v198, 0.0
      %v217 = vmax.f32 %v199, 0.0
      %v218 = vmax.f32 %v200, 0.0
      %v219 = vmax.f32 %v201, 0.0
      %v220 = vmax.f32 %v202, 0.0
      %v221 = vmax.f32 %v203, 0.0
      %v222 = vmax.f32 %v204, 0.0
      %v223 = vpack.c.bf16 %v214, %v205
      %v224 = vpack.c.bf16 %v215, %v206
      %v225 = vpack.c.bf16 %v216, %v207
      %v226 = vpack.c.bf16 %v217, %v208
      %v227 = vpack.c.bf16 %v218, %v209
      %v228 = vpack.c.bf16 %v219, %v210
      %v229 = vpack.c.bf16 %v220, %v211
      %v230 = vpack.c.bf16 %v221, %v212
      %v231 = vpack.c.bf16 %v222, %v213
      %v232 = vld [vmem:[%s1] sm:$0xf]
      %v233 = vld [vmem:[%s1 + $0x4] sm:$0xf]
      %v234 = vld [vmem:[%s1 + $0x8] sm:$0xf]
      %v235 = vld [vmem:[%s1 + $0xc] sm:$0xf]
      %v236 = vld [vmem:[%s1 + $0x10] sm:$0xf]
      %v237 = vld [vmem:[%s1 + $0x14] sm:$0xf]
      %v238 = vld [vmem:[%s1 + $0x18] sm:$0xf]
      %v239 = vld [vmem:[%s1 + $0x1c] sm:$0xf]
      %v240 = vld [vmem:[%s1 + $0x20] sm:$0xf]
      %v241 = vld [vmem:[%s1 + $0x24] sm:$0xf]
      %v242 = vld [vmem:[%s1 + $0x28] sm:$0xf]
      %v243 = vld [vmem:[%s1 + $0x2c] sm:$0xf]
      %v244 = vld [vmem:[%s1 + $0x30] sm:$0xf]
      %v245 = vld [vmem:[%s1 + $0x34] sm:$0xf]
      %v246 = vld [vmem:[%s1 + $0x38] sm:$0xf]
      %v247 = vld [vmem:[%s1 + $0x3c] sm:$0xf]
      %v248 = vld [vmem:[%s1 + $0x40] sm:$0xf]
      %v249 = vld [vmem:[%s1 + $0x44] sm:$0xf]
      %v250 = vld [vmem:[%s1 + $0x48] sm:$0xf]
      %v251 = vld [vmem:[%s1 + $0x4c] sm:$0xf]
      %v252 = vld [vmem:[%s1 + $0x50] sm:$0xf]
      %v253 = vld [vmem:[%s1 + $0x54] sm:$0xf]
      %v254 = vld [vmem:[%s1 + $0x58] sm:$0xf]
      %v255 = vld [vmem:[%s1 + $0x5c] sm:$0xf]
      %v256 = vld [vmem:[%s1 + $0x60] sm:$0xf]
      %v257 = vld [vmem:[%s1 + $0x64] sm:$0xf]
      %v258 = vld [vmem:[%s1 + $0x68] sm:$0xf]
      %v259 = vld [vmem:[%s1 + $0x6c] sm:$0xf]
      %v260 = vld [vmem:[%s1 + $0x70] sm:$0xf]
      %v261 = vld [vmem:[%s1 + $0x74] sm:$0xf]
      %v262 = vld [vmem:[%s1 + $0x78] sm:$0xf]
      %v263 = vld [vmem:[%s1 + $0x7c] sm:$0xf]
      %v264 = vld [vmem:[%s1 + $0x80] sm:$0xf]
      %v265 = vld [vmem:[%s1 + $0x84] sm:$0xf]
      %v266 = vld [vmem:[%s1 + $0x88] sm:$0xf]
      %v267 = vld [vmem:[%s1 + $0x8c] sm:$0xf]
      %v268 = vld [vmem:[%s1 + $0x90] sm:$0xf]
      %v269 = vld [vmem:[%s1 + $0x94] sm:$0xf]
      %v270 = vld [vmem:[%s1 + $0x98] sm:$0xf]
      %v271 = vld [vmem:[%s1 + $0x9c] sm:$0xf]
      %v272 = vld [vmem:[%s1 + $0xa0] sm:$0xf]
      %v273 = vld [vmem:[%s1 + $0xa4] sm:$0xf]
      %v274 = vld [vmem:[%s1 + $0xa8] sm:$0xf]
      %v275 = vld [vmem:[%s1 + $0xac] sm:$0xf]
      %v276 = vld [vmem:[%s1 + $0xb0] sm:$0xf]
      %v277 = vld [vmem:[%s1 + $0xb4] sm:$0xf]
      %v278 = vld [vmem:[%s1 + $0xb8] sm:$0xf]
      %v279 = vld [vmem:[%s1 + $0xbc] sm:$0xf]
      %v280 = vld [vmem:[%s1 + $0xc0] sm:$0xf]
      %v281 = vld [vmem:[%s1 + $0xc4] sm:$0xf]
      %v282 = vld [vmem:[%s1 + $0xc8] sm:$0xf]
      %v283 = vld [vmem:[%s1 + $0xcc] sm:$0xf]
      %v284 = vld [vmem:[%s1 + $0xd0] sm:$0xf]
      %v285 = vld [vmem:[%s1 + $0xd4] sm:$0xf]
      %v286 = vld [vmem:[%s1 + $0xd8] sm:$0xf]
      %v287 = vld [vmem:[%s1 + $0xdc] sm:$0xf]
      %v288 = vld [vmem:[%s1 + $0xe0] sm:$0xf]
      %v289 = vld [vmem:[%s1 + $0xe4] sm:$0xf]
      %v290 = vld [vmem:[%s1 + $0xe8] sm:$0xf]
      %v291 = vld [vmem:[%s1 + $0xec] sm:$0xf]
      %v292 = vld [vmem:[%s1 + $0xf0] sm:$0xf]
      %v293 = vld [vmem:[%s1 + $0xf4] sm:$0xf]
      %v294 = vld [vmem:[%s1 + $0xf8] sm:$0xf]
      %v295 = vld [vmem:[%s1 + $0xfc] sm:$0xf]
      %v296 = vld [vmem:[%s1 + $0x100] sm:$0xf]
      %v297 = vld [vmem:[%s1 + $0x104] sm:$0xf]
      %v298 = vld [vmem:[%s1 + $0x108] sm:$0xf]
      %v299 = vld [vmem:[%s1 + $0x10c] sm:$0xf]
      %v300 = vld [vmem:[%s1 + $0x110] sm:$0xf]
      %v301 = vld [vmem:[%s1 + $0x114] sm:$0xf]
      %v302 = vld [vmem:[%s1 + $0x118] sm:$0xf]
      %v303 = vld [vmem:[%s1 + $0x11c] sm:$0xf]
      %v304 = vld [vmem:[%s1 + $0x120] sm:$0xf]
      %v305 = vld [vmem:[%s1 + $0x124] sm:$0xf]
      %v306 = vld [vmem:[%s1 + $0x128] sm:$0xf]
      %v307 = vld [vmem:[%s1 + $0x12c] sm:$0xf]
      %v308 = vld [vmem:[%s1 + $0x130] sm:$0xf]
      %v309 = vld [vmem:[%s1 + $0x134] sm:$0xf]
      %v310 = vld [vmem:[%s1 + $0x138] sm:$0xf]
      %v311 = vld [vmem:[%s1 + $0x13c] sm:$0xf]
      %v312 = vld [vmem:[%s1 + $0x140] sm:$0xf]
      %v313 = vld [vmem:[%s1 + $0x144] sm:$0xf]
      %v314 = vld [vmem:[%s1 + $0x148] sm:$0xf]
      %v315 = vld [vmem:[%s1 + $0x14c] sm:$0xf]
      %v316 = vld [vmem:[%s1 + $0x150] sm:$0xf]
      %v317 = vld [vmem:[%s1 + $0x154] sm:$0xf]
      %v318 = vld [vmem:[%s1 + $0x158] sm:$0xf]
      %v319 = vld [vmem:[%s1 + $0x15c] sm:$0xf]
      %v320 = vld [vmem:[%s1 + $0x160] sm:$0xf]
      %v321 = vld [vmem:[%s1 + $0x164] sm:$0xf]
      %v322 = vld [vmem:[%s1 + $0x168] sm:$0xf]
      %v323 = vld [vmem:[%s1 + $0x16c] sm:$0xf]
      %v324 = vld [vmem:[%s1 + $0x170] sm:$0xf]
      %v325 = vld [vmem:[%s1 + $0x174] sm:$0xf]
      %v326 = vld [vmem:[%s1 + $0x178] sm:$0xf]
      %v327 = vld [vmem:[%s1 + $0x17c] sm:$0xf]
      %v328 = vld [vmem:[%s1 + $0x180] sm:$0xf]
      %v329 = vld [vmem:[%s1 + $0x184] sm:$0xf]
      %v330 = vld [vmem:[%s1 + $0x188] sm:$0xf]
      %v331 = vld [vmem:[%s1 + $0x18c] sm:$0xf]
      %v332 = vld [vmem:[%s1 + $0x190] sm:$0xf]
      %v333 = vld [vmem:[%s1 + $0x194] sm:$0xf]
      %v334 = vld [vmem:[%s1 + $0x198] sm:$0xf]
      %v335 = vld [vmem:[%s1 + $0x19c] sm:$0xf]
      %v336 = vld [vmem:[%s1 + $0x1a0] sm:$0xf]
      %v337 = vld [vmem:[%s1 + $0x1a4] sm:$0xf]
      %v338 = vld [vmem:[%s1 + $0x1a8] sm:$0xf]
      %v339 = vld [vmem:[%s1 + $0x1ac] sm:$0xf]
      %v340 = vld [vmem:[%s1 + $0x1b0] sm:$0xf]
      %v341 = vld [vmem:[%s1 + $0x1b4] sm:$0xf]
      %v342 = vld [vmem:[%s1 + $0x1b8] sm:$0xf]
      %v343 = vld [vmem:[%s1 + $0x1bc] sm:$0xf]
      %v344 = vld [vmem:[%s1 + $0x1c0] sm:$0xf]
      %v345 = vld [vmem:[%s1 + $0x1c4] sm:$0xf]
      %v346 = vld [vmem:[%s1 + $0x1c8] sm:$0xf]
      %v347 = vld [vmem:[%s1 + $0x1cc] sm:$0xf]
      %v348 = vld [vmem:[%s1 + $0x1d0] sm:$0xf]
      %v349 = vld [vmem:[%s1 + $0x1d4] sm:$0xf]
      %v350 = vld [vmem:[%s1 + $0x1d8] sm:$0xf]
      %v351 = vld [vmem:[%s1 + $0x1dc] sm:$0xf]
      %v352 = vld [vmem:[%s1 + $0x1e0] sm:$0xf]
      %v353 = vld [vmem:[%s1 + $0x1e4] sm:$0xf]
      %v354 = vld [vmem:[%s1 + $0x1e8] sm:$0xf]
      %v355 = vld [vmem:[%s1 + $0x1ec] sm:$0xf]
      %v356 = vld [vmem:[%s1 + $0x1f0] sm:$0xf]
      %v357 = vld [vmem:[%s1 + $0x1f4] sm:$0xf]
      %v358 = vld [vmem:[%s1 + $0x1f8] sm:$0xf]
      %v359 = vld [vmem:[%s1 + $0x1fc] sm:$0xf]
      %v360 = vld [vmem:[%s1 + $0x200] sm:$0xf]
      %v361 = vld [vmem:[%s1 + $0x204] sm:$0xf]
      %v362 = vld [vmem:[%s1 + $0x208] sm:$0xf]
      %v363 = vld [vmem:[%s1 + $0x20c] sm:$0xf]
      %v364 = vld [vmem:[%s1 + $0x210] sm:$0xf]
      %v365 = vld [vmem:[%s1 + $0x214] sm:$0xf]
      %v366 = vld [vmem:[%s1 + $0x218] sm:$0xf]
      %v367 = vld [vmem:[%s1 + $0x21c] sm:$0xf]
      %v368 = vld [vmem:[%s1 + $0x220] sm:$0xf]
      %v369 = vld [vmem:[%s1 + $0x224] sm:$0xf]
      %v370 = vld [vmem:[%s1 + $0x228] sm:$0xf]
      %v371 = vld [vmem:[%s1 + $0x22c] sm:$0xf]
      %v372 = vld [vmem:[%s1 + $0x230] sm:$0xf]
      %v373 = vld [vmem:[%s1 + $0x234] sm:$0xf]
      %v374 = vld [vmem:[%s1 + $0x238] sm:$0xf]
      %v375 = vld [vmem:[%s1 + $0x23c] sm:$0xf]
      %v376 = vld [vmem:[%s2] sm:$0x1]
      %v378 = vperm.slane %v376, 0
      %v524 = vunpack.c.l.b16 %v232
      %v525 = vunpack.c.l.b16 %v233
      %v526 = vunpack.c.l.b16 %v234
      %v527 = vunpack.c.l.b16 %v235
      %v528 = vunpack.c.l.b16 %v236
      %v529 = vunpack.c.l.b16 %v237
      %v530 = vunpack.c.l.b16 %v238
      %v531 = vunpack.c.l.b16 %v239
      %v532 = vunpack.c.l.b16 %v240
      %v533 = vunpack.c.l.b16 %v241
      %v534 = vunpack.c.l.b16 %v242
      %v535 = vunpack.c.l.b16 %v243
      %v536 = vunpack.c.l.b16 %v244
      %v537 = vunpack.c.l.b16 %v245
      %v538 = vunpack.c.l.b16 %v246
      %v539 = vunpack.c.l.b16 %v247
      %v540 = vunpack.c.l.b16 %v248
      %v541 = vunpack.c.l.b16 %v249
      %v542 = vunpack.c.l.b16 %v250
      %v543 = vunpack.c.l.b16 %v251
      %v544 = vunpack.c.l.b16 %v252
      %v545 = vunpack.c.l.b16 %v253
      %v546 = vunpack.c.l.b16 %v254
      %v547 = vunpack.c.l.b16 %v255
      %v548 = vunpack.c.l.b16 %v256
      %v549 = vunpack.c.l.b16 %v257
      %v550 = vunpack.c.l.b16 %v258
      %v551 = vunpack.c.l.b16 %v259
      %v552 = vunpack.c.l.b16 %v260
      %v553 = vunpack.c.l.b16 %v261
      %v554 = vunpack.c.l.b16 %v262
      %v555 = vunpack.c.l.b16 %v263
      %v556 = vunpack.c.l.b16 %v264
      %v557 = vunpack.c.l.b16 %v265
      %v558 = vunpack.c.l.b16 %v266
      %v559 = vunpack.c.l.b16 %v267
      %v560 = vunpack.c.l.b16 %v268
      %v561 = vunpack.c.l.b16 %v269
      %v562 = vunpack.c.l.b16 %v270
      %v563 = vunpack.c.l.b16 %v271
      %v564 = vunpack.c.l.b16 %v272
      %v565 = vunpack.c.l.b16 %v273
      %v566 = vunpack.c.l.b16 %v274
      %v567 = vunpack.c.l.b16 %v275
      %v568 = vunpack.c.l.b16 %v276
      %v569 = vunpack.c.l.b16 %v277
      %v570 = vunpack.c.l.b16 %v278
      %v571 = vunpack.c.l.b16 %v279
      %v572 = vunpack.c.l.b16 %v280
      %v573 = vunpack.c.l.b16 %v281
      %v574 = vunpack.c.l.b16 %v282
      %v575 = vunpack.c.l.b16 %v283
      %v576 = vunpack.c.l.b16 %v284
      %v577 = vunpack.c.l.b16 %v285
      %v578 = vunpack.c.l.b16 %v286
      %v579 = vunpack.c.l.b16 %v287
      %v580 = vunpack.c.l.b16 %v288
      %v581 = vunpack.c.l.b16 %v289
      %v582 = vunpack.c.l.b16 %v290
      %v583 = vunpack.c.l.b16 %v291
      %v584 = vunpack.c.l.b16 %v292
      %v585 = vunpack.c.l.b16 %v293
      %v586 = vunpack.c.l.b16 %v294
      %v587 = vunpack.c.l.b16 %v295
      %v588 = vunpack.c.l.b16 %v296
      %v589 = vunpack.c.l.b16 %v297
      %v590 = vunpack.c.l.b16 %v298
      %v591 = vunpack.c.l.b16 %v299
      %v592 = vunpack.c.l.b16 %v300
      %v593 = vunpack.c.l.b16 %v301
      %v594 = vunpack.c.l.b16 %v302
      %v595 = vunpack.c.l.b16 %v303
      %v596 = vunpack.c.l.b16 %v304
      %v597 = vunpack.c.l.b16 %v305
      %v598 = vunpack.c.l.b16 %v306
      %v599 = vunpack.c.l.b16 %v307
      %v600 = vunpack.c.l.b16 %v308
      %v601 = vunpack.c.l.b16 %v309
      %v602 = vunpack.c.l.b16 %v310
      %v603 = vunpack.c.l.b16 %v311
      %v604 = vunpack.c.l.b16 %v312
      %v605 = vunpack.c.l.b16 %v313
      %v606 = vunpack.c.l.b16 %v314
      %v607 = vunpack.c.l.b16 %v315
      %v608 = vunpack.c.l.b16 %v316
      %v609 = vunpack.c.l.b16 %v317
      %v610 = vunpack.c.l.b16 %v318
      %v611 = vunpack.c.l.b16 %v319
      %v612 = vunpack.c.l.b16 %v320
      %v613 = vunpack.c.l.b16 %v321
      %v614 = vunpack.c.l.b16 %v322
      %v615 = vunpack.c.l.b16 %v323
      %v616 = vunpack.c.l.b16 %v324
      %v617 = vunpack.c.l.b16 %v325
      %v618 = vunpack.c.l.b16 %v326
      %v619 = vunpack.c.l.b16 %v327
      %v620 = vunpack.c.l.b16 %v328
      %v621 = vunpack.c.l.b16 %v329
      %v622 = vunpack.c.l.b16 %v330
      %v623 = vunpack.c.l.b16 %v331
      %v624 = vunpack.c.l.b16 %v332
      %v625 = vunpack.c.l.b16 %v333
      %v626 = vunpack.c.l.b16 %v334
      %v627 = vunpack.c.l.b16 %v335
      %v628 = vunpack.c.l.b16 %v336
      %v629 = vunpack.c.l.b16 %v337
      %v630 = vunpack.c.l.b16 %v338
      %v631 = vunpack.c.l.b16 %v339
      %v632 = vunpack.c.l.b16 %v340
      %v633 = vunpack.c.l.b16 %v341
      %v634 = vunpack.c.l.b16 %v342
      %v635 = vunpack.c.l.b16 %v343
      %v636 = vunpack.c.l.b16 %v344
      %v637 = vunpack.c.l.b16 %v345
      %v638 = vunpack.c.l.b16 %v346
      %v639 = vunpack.c.l.b16 %v347
      %v640 = vunpack.c.l.b16 %v348
      %v641 = vunpack.c.l.b16 %v349
      %v642 = vunpack.c.l.b16 %v350
      %v643 = vunpack.c.l.b16 %v351
      %v644 = vunpack.c.l.b16 %v352
      %v645 = vunpack.c.l.b16 %v353
      %v646 = vunpack.c.l.b16 %v354
      %v647 = vunpack.c.l.b16 %v355
      %v648 = vunpack.c.l.b16 %v356
      %v649 = vunpack.c.l.b16 %v357
      %v650 = vunpack.c.l.b16 %v358
      %v651 = vunpack.c.l.b16 %v359
      %v652 = vunpack.c.l.b16 %v360
      %v653 = vunpack.c.l.b16 %v361
      %v654 = vunpack.c.l.b16 %v362
      %v655 = vunpack.c.l.b16 %v363
      %v656 = vunpack.c.l.b16 %v364
      %v657 = vunpack.c.l.b16 %v365
      %v658 = vunpack.c.l.b16 %v366
      %v659 = vunpack.c.l.b16 %v367
      %v660 = vunpack.c.l.b16 %v368
      %v661 = vunpack.c.l.b16 %v369
      %v662 = vunpack.c.l.b16 %v370
      %v663 = vunpack.c.l.b16 %v371
      %v664 = vunpack.c.l.b16 %v372
      %v665 = vunpack.c.l.b16 %v373
      %v666 = vunpack.c.l.b16 %v374
      %v667 = vunpack.c.l.b16 %v375
      %v668 = vpack.c.b16 %v525, %v524
      %v669 = vpack.c.b16 %v527, %v526
      %v670 = vpack.c.b16 %v529, %v528
      %v671 = vpack.c.b16 %v531, %v530
      %v672 = vpack.c.b16 %v533, %v532
      %v673 = vpack.c.b16 %v535, %v534
      %v674 = vpack.c.b16 %v537, %v536
      %v675 = vpack.c.b16 %v539, %v538
      %v676 = vpack.c.b16 %v541, %v540
      %v677 = vpack.c.b16 %v543, %v542
      %v678 = vpack.c.b16 %v545, %v544
      %v679 = vpack.c.b16 %v547, %v546
      %v680 = vpack.c.b16 %v549, %v548
      %v681 = vpack.c.b16 %v551, %v550
      %v682 = vpack.c.b16 %v553, %v552
      %v683 = vpack.c.b16 %v555, %v554
      %v684 = vpack.c.b16 %v557, %v556
      %v685 = vpack.c.b16 %v559, %v558
      %v686 = vpack.c.b16 %v561, %v560
      %v687 = vpack.c.b16 %v563, %v562
      %v688 = vpack.c.b16 %v565, %v564
      %v689 = vpack.c.b16 %v567, %v566
      %v690 = vpack.c.b16 %v569, %v568
      %v691 = vpack.c.b16 %v571, %v570
      %v692 = vpack.c.b16 %v573, %v572
      %v693 = vpack.c.b16 %v575, %v574
      %v694 = vpack.c.b16 %v577, %v576
      %v695 = vpack.c.b16 %v579, %v578
      %v696 = vpack.c.b16 %v581, %v580
      %v697 = vpack.c.b16 %v583, %v582
      %v698 = vpack.c.b16 %v585, %v584
      %v699 = vpack.c.b16 %v587, %v586
      %v700 = vpack.c.b16 %v589, %v588
      %v701 = vpack.c.b16 %v591, %v590
      %v702 = vpack.c.b16 %v593, %v592
      %v703 = vpack.c.b16 %v595, %v594
      %v704 = vpack.c.b16 %v597, %v596
      %v705 = vpack.c.b16 %v599, %v598
      %v706 = vpack.c.b16 %v601, %v600
      %v707 = vpack.c.b16 %v603, %v602
      %v708 = vpack.c.b16 %v605, %v604
      %v709 = vpack.c.b16 %v607, %v606
      %v710 = vpack.c.b16 %v609, %v608
      %v711 = vpack.c.b16 %v611, %v610
      %v712 = vpack.c.b16 %v613, %v612
      %v713 = vpack.c.b16 %v615, %v614
      %v714 = vpack.c.b16 %v617, %v616
      %v715 = vpack.c.b16 %v619, %v618
      %v716 = vpack.c.b16 %v621, %v620
      %v717 = vpack.c.b16 %v623, %v622
      %v718 = vpack.c.b16 %v625, %v624
      %v719 = vpack.c.b16 %v627, %v626
      %v720 = vpack.c.b16 %v629, %v628
      %v721 = vpack.c.b16 %v631, %v630
      %v722 = vpack.c.b16 %v633, %v632
      %v723 = vpack.c.b16 %v635, %v634
      %v724 = vpack.c.b16 %v637, %v636
      %v725 = vpack.c.b16 %v639, %v638
      %v726 = vpack.c.b16 %v641, %v640
      %v727 = vpack.c.b16 %v643, %v642
      %v728 = vpack.c.b16 %v645, %v644
      %v729 = vpack.c.b16 %v647, %v646
      %v730 = vpack.c.b16 %v649, %v648
      %v731 = vpack.c.b16 %v651, %v650
      %v732 = vpack.c.b16 %v653, %v652
      %v733 = vpack.c.b16 %v655, %v654
      %v734 = vpack.c.b16 %v657, %v656
      %v735 = vpack.c.b16 %v659, %v658
      %v736 = vpack.c.b16 %v661, %v660
      %v737 = vpack.c.b16 %v663, %v662
      %v738 = vpack.c.b16 %v665, %v664
      %v739 = vpack.c.b16 %v667, %v666
      %812 = vmatpush.bf16.msra.mxu0 %v675
      %813 = vmatpush.bf16.msra.mxu0 %v674
      %814 = vmatpush.bf16.msra.mxu0 %v673
      %815 = vmatpush.bf16.msra.mxu0 %v672
      %816 = vmatpush.bf16.msra.mxu0 %v671
      %817 = vmatpush.bf16.msra.mxu0 %v670
      %818 = vmatpush.bf16.msra.mxu0 %v669
      %819 = vmatpush.bf16.msra.mxu0 %v668
      %820 = vmatmul.bf16.gmra.mxu0 %v223
      %v821 = vpop.f32.mrf.mxu0
      %v822 = vadd.f32 %v378, %v821
      %v823 = vpop.f32.mrf.mxu0
      %v824 = vadd.f32 %v378, %v823
      %825 = vdwg.mxu0
      %826 = vmatpush.bf16.msra.mxu0 %v683
      %827 = vmatpush.bf16.msra.mxu0 %v682
      %828 = vmatpush.bf16.msra.mxu0 %v681
      %829 = vmatpush.bf16.msra.mxu0 %v680
      %830 = vmatpush.bf16.msra.mxu0 %v679
      %831 = vmatpush.bf16.msra.mxu0 %v678
      %832 = vmatpush.bf16.msra.mxu0 %v677
      %833 = vmatpush.bf16.msra.mxu0 %v676
      %834 = vmatmul.bf16.gmra.mxu0 %v224
      %v835 = vpop.f32.mrf.mxu0
      %v836 = vadd.f32 %v822, %v835
      %v837 = vpop.f32.mrf.mxu0
      %v838 = vadd.f32 %v824, %v837
      %839 = vdwg.mxu0
      %840 = vmatpush.bf16.msra.mxu0 %v691
      %841 = vmatpush.bf16.msra.mxu0 %v690
      %842 = vmatpush.bf16.msra.mxu0 %v689
      %843 = vmatpush.bf16.msra.mxu0 %v688
      %844 = vmatpush.bf16.msra.mxu0 %v687
      %845 = vmatpush.bf16.msra.mxu0 %v686
      %846 = vmatpush.bf16.msra.mxu0 %v685
      %847 = vmatpush.bf16.msra.mxu0 %v684
      %848 = vmatmul.bf16.gmra.mxu0 %v225
      %v849 = vpop.f32.mrf.mxu0
      %v850 = vadd.f32 %v836, %v849
      %v851 = vpop.f32.mrf.mxu0
      %v852 = vadd.f32 %v838, %v851
      %853 = vdwg.mxu0
      %854 = vmatpush.bf16.msra.mxu0 %v699
      %855 = vmatpush.bf16.msra.mxu0 %v698
      %856 = vmatpush.bf16.msra.mxu0 %v697
      %857 = vmatpush.bf16.msra.mxu0 %v696
      %858 = vmatpush.bf16.msra.mxu0 %v695
      %859 = vmatpush.bf16.msra.mxu0 %v694
      %860 = vmatpush.bf16.msra.mxu0 %v693
      %861 = vmatpush.bf16.msra.mxu0 %v692
      %862 = vmatmul.bf16.gmra.mxu0 %v226
      %v863 = vpop.f32.mrf.mxu0
      %v864 = vadd.f32 %v850, %v863
      %v865 = vpop.f32.mrf.mxu0
      %v866 = vadd.f32 %v852, %v865
      %867 = vdwg.mxu0
      %868 = vmatpush.bf16.msra.mxu0 %v707
      %869 = vmatpush.bf16.msra.mxu0 %v706
      %870 = vmatpush.bf16.msra.mxu0 %v705
      %871 = vmatpush.bf16.msra.mxu0 %v704
      %872 = vmatpush.bf16.msra.mxu0 %v703
      %873 = vmatpush.bf16.msra.mxu0 %v702
      %874 = vmatpush.bf16.msra.mxu0 %v701
      %875 = vmatpush.bf16.msra.mxu0 %v700
      %876 = vmatmul.bf16.gmra.mxu0 %v227
      %v877 = vpop.f32.mrf.mxu0
      %v878 = vadd.f32 %v864, %v877
      %v879 = vpop.f32.mrf.mxu0
      %v880 = vadd.f32 %v866, %v879
      %881 = vdwg.mxu0
      %882 = vmatpush.bf16.msra.mxu0 %v715
      %883 = vmatpush.bf16.msra.mxu0 %v714
      %884 = vmatpush.bf16.msra.mxu0 %v713
      %885 = vmatpush.bf16.msra.mxu0 %v712
      %886 = vmatpush.bf16.msra.mxu0 %v711
      %887 = vmatpush.bf16.msra.mxu0 %v710
      %888 = vmatpush.bf16.msra.mxu0 %v709
      %889 = vmatpush.bf16.msra.mxu0 %v708
      %890 = vmatmul.bf16.gmra.mxu0 %v228
      %v891 = vpop.f32.mrf.mxu0
      %v892 = vadd.f32 %v878, %v891
      %v893 = vpop.f32.mrf.mxu0
      %v894 = vadd.f32 %v880, %v893
      %895 = vdwg.mxu0
      %896 = vmatpush.bf16.msra.mxu0 %v723
      %897 = vmatpush.bf16.msra.mxu0 %v722
      %898 = vmatpush.bf16.msra.mxu0 %v721
      %899 = vmatpush.bf16.msra.mxu0 %v720
      %900 = vmatpush.bf16.msra.mxu0 %v719
      %901 = vmatpush.bf16.msra.mxu0 %v718
      %902 = vmatpush.bf16.msra.mxu0 %v717
      %903 = vmatpush.bf16.msra.mxu0 %v716
      %904 = vmatmul.bf16.gmra.mxu0 %v229
      %v905 = vpop.f32.mrf.mxu0
      %v906 = vadd.f32 %v892, %v905
      %v907 = vpop.f32.mrf.mxu0
      %v908 = vadd.f32 %v894, %v907
      %909 = vdwg.mxu0
      %910 = vmatpush.bf16.msra.mxu0 %v731
      %911 = vmatpush.bf16.msra.mxu0 %v730
      %912 = vmatpush.bf16.msra.mxu0 %v729
      %913 = vmatpush.bf16.msra.mxu0 %v728
      %914 = vmatpush.bf16.msra.mxu0 %v727
      %915 = vmatpush.bf16.msra.mxu0 %v726
      %916 = vmatpush.bf16.msra.mxu0 %v725
      %917 = vmatpush.bf16.msra.mxu0 %v724
      %918 = vmatmul.bf16.gmra.mxu0 %v230
      %v919 = vpop.f32.mrf.mxu0
      %v920 = vadd.f32 %v906, %v919
      %v921 = vpop.f32.mrf.mxu0
      %v922 = vadd.f32 %v908, %v921
      %923 = vdwg.mxu0
      %924 = vmatpush.bf16.msra.mxu0 %v739
      %925 = vmatpush.bf16.msra.mxu0 %v738
      %926 = vmatpush.bf16.msra.mxu0 %v737
      %927 = vmatpush.bf16.msra.mxu0 %v736
      %928 = vmatpush.bf16.msra.mxu0 %v735
      %929 = vmatpush.bf16.msra.mxu0 %v734
      %930 = vmatpush.bf16.msra.mxu0 %v733
      %931 = vmatpush.bf16.msra.mxu0 %v732
      %932 = vmatmul.bf16.gmra.mxu0 %v231
      %v933 = vpop.f32.mrf.mxu0
      %v934 = vadd.f32 %v920, %v933
      %v935 = vpop.f32.mrf.mxu0
      %v936 = vadd.f32 %v922, %v935
      %937 = vdwg.mxu0
      %938 = vst [vmem:[%s175] sm:$0xff] %v934
      %939 = vst [vmem:[%s175 + $0x8] sm:$0xff] %v936
      %s940 = smul.u32 2, %s14
      %p941 = scmp.lt.s32.totalorder %s940, 3
      %s942 = scalar_select %p941, %s940, 3
      %s943 = smul.addr %s942, 8
      %s944 = scalar_lea.vmem %s3, %s943
      // Predicated region
      $region33: #{g_unet_add_all_forward.20} parent=31 // pred_check
        %p945 = pneg %p100
      $region34: #{g_unet_add_all_forward.20} parent=31 // pred_check_branch
        %947 = sbr.rel (%p945) target = $region36
      $region35: #{g_unet_add_all_forward.20} parent=31 // pred_region
        %s948 = smul.u32 2, %s14
      $region36: #{g_unet_add_all_forward.20} parent=31 // pred_fallthru
        _
    $region32: #{g_unet_add_all_forward.20} parent=5 // pred_fallthru
      _
    %p949 = scmp.le.s32.totalorder 2, %s9
    // Predicated region
    $region37: #{g_unet_add_all_forward.20} parent=5 // pred_check
      %p950 = pneg %p949
    $region38: #{g_unet_add_all_forward.20} parent=5 // pred_check_branch
      %952 = sbr.rel (%p950) target = $region40
    $region39: #{g_unet_add_all_forward.20} parent=5 // pred_region
      %s953 = ssub.s32 %s9, 2
      // Predicated region
      $region41: #{g_unet_add_all_forward.20} parent=39 // pred_check
        %p954 = pneg %p106
      $region42: #{g_unet_add_all_forward.20} parent=39 // pred_check_branch
        %956 = sbr.rel (%p954) target = $region44
      $region43: #{g_unet_add_all_forward.20} parent=39 // pred_region
        %s957 = smul.u32 2, %s15
        %p958 = scmp.lt.s32.totalorder %s957, 3
        %s959 = scalar_select %p958, %s957, 3
        %s960 = smul.addr %s959, 8
        %s961 = scalar_lea.vmem %s3, %s960
      $region44: #{g_unet_add_all_forward.20} parent=39 // pred_fallthru
        _
    $region40: #{g_unet_add_all_forward.20} parent=5 // pred_fallthru
      _
  $region6: #{g_unet_add_all_forward.20} parent=0 // loop_footer
    %s13 = sadd.s32 1, %s9
  $region7: #{g_unet_add_all_forward.20} parent=0 // loop_footer_branch
    %8 = sbr.rel target = $region3
  $region8: #{g_unet_add_all_forward.20} parent=0 // loop_exit
    _

// kernel: g_unet_add_all_forward.21
$region0: #{g_unet_add_all_forward.21}
  #allocation0 [shape = 'u32[]', space=smem, size = 0x4, offset = 0x4, fixed_abs, tag = 'smem constant byte address 0x4 - core index']
  #allocation1 [shape = 'u32[72,128]{1,0:T(1,128)}', space=vmem, size = 0x9000, scoped, tag = 'internal scratch']
  %s0 = inlined_call_operand.vmem [shape: bf16[128,576], index: 0, kind: input, shape index: {}]
  %s1 = inlined_call_operand.vmem [shape: bf16[576,64], index: 1, kind: input, shape index: {}]
  %s2 = inlined_call_operand.vmem [shape: f32[1,64], index: 2, kind: input, shape index: {}]
  %s3 = inlined_call_operand.vmem [shape: f32[128,64], index: 3, kind: output, shape index: {}]
  %s4 = sld [smem:[#allocation0]]
  $region45: #{g_unet_add_all_forward.21} parent=0
    _
  %s6 = ssub.s32 1, %s4
  %s7 = scalar_select 0, %s6, %s4
  loop: start=0, step=1, limit=4
  $region2: #{g_unet_add_all_forward.21} parent=0 // loop_pre_header
    _
  $region3: #{g_unet_add_all_forward.21} parent=0 // loop_header
    %s9 = sphi 0, %s13
    %p10 = scmp.ge.s32.totalorder %s9, 4
    %s19 = sphi 0, %s21
    %s22 = sphi 0, %s19
    %s23 = sphi 0, %s22
    %s39 = sphi 0, %s23
    %s43 = sphi 0, %s43
    %s45 = sphi 0, %s43
    %s46 = sphi 0, %s45
    %s60 = sphi 0, %s46
    %s64 = sphi 0, %s64
    %s66 = sphi 0, %s64
    %s67 = sphi 0, %s66
    %s81 = sphi 0, %s67
    %s87 = sphi 0, %s89
    %s90 = sphi 0, %s87
    %s91 = sphi 0, %s90
    %s107 = sphi 0, %s91
  $region4: #{g_unet_add_all_forward.21} parent=0 // loop_header_branch
    %12 = sbr.rel (%p10) target = $region8
  $region5: #{g_unet_add_all_forward.21} parent=0 // loop_body
    %s14 = ssub.s32 %s9, 1
    %s15 = ssub.s32 %s9, 2
    %s16 = sadd.s32 %s9, 1
    %s17 = ssub.s32 %s9, %s16
    %p18 = scmp.eq.s32.totalorder %s17, 0
    %s20 = sadd.s32 %s19, 1
    %s21 = scalar_select %p18, %s19, %s20
    %p24 = pneg %p18
    %p25 = scmp.eq.s32.totalorder %s9, 1
    %p26 = por %p24, %p25
    %p27 = scmp.ne.s32.totalorder %s19, %s22
    %p28 = scmp.eq.s32.totalorder %s9, 0
    %p29 = por %p27, %p28
    %p30 = scmp.ne.s32.totalorder %s19, %s22
    %p31 = scmp.eq.s32.totalorder %s14, 1
    %p32 = por %p30, %p31
    %p33 = scmp.ne.s32.totalorder %s22, %s23
    %p34 = scmp.eq.s32.totalorder %s14, 0
    %p35 = por %p33, %p34
    %p36 = scmp.ne.s32.totalorder %s22, %s23
    %p37 = scmp.eq.s32.totalorder %s15, 1
    %p38 = por %p36, %p37
    %p40 = scmp.ne.s32.totalorder %s23, %s39
    %p41 = scmp.eq.s32.totalorder %s15, 0
    %p42 = por %p40, %p41
    %s44 = sadd.s32 %s43, 1
    %p47 = scmp.eq.s32.totalorder %s9, 1
    %p48 = scmp.ne.s32.totalorder %s43, %s45
    %p49 = scmp.eq.s32.totalorder %s9, 0
    %p50 = por %p48, %p49
    %p51 = scmp.ne.s32.totalorder %s43, %s45
    %p52 = scmp.eq.s32.totalorder %s14, 1
    %p53 = por %p51, %p52
    %p54 = scmp.ne.s32.totalorder %s45, %s46
    %p55 = scmp.eq.s32.totalorder %s14, 0
    %p56 = por %p54, %p55
    %p57 = scmp.ne.s32.totalorder %s45, %s46
    %p58 = scmp.eq.s32.totalorder %s15, 1
    %p59 = por %p57, %p58
    %p61 = scmp.ne.s32.totalorder %s46, %s60
    %p62 = scmp.eq.s32.totalorder %s15, 0
    %p63 = por %p61, %p62
    %s65 = sadd.s32 %s64, 1
    %p68 = scmp.eq.s32.totalorder %s9, 1
    %p69 = scmp.ne.s32.totalorder %s64, %s66
    %p70 = scmp.eq.s32.totalorder %s9, 0
    %p71 = por %p69, %p70
    %p72 = scmp.ne.s32.totalorder %s64, %s66
    %p73 = scmp.eq.s32.totalorder %s14, 1
    %p74 = por %p72, %p73
    %p75 = scmp.ne.s32.totalorder %s66, %s67
    %p76 = scmp.eq.s32.totalorder %s14, 0
    %p77 = por %p75, %p76
    %p78 = scmp.ne.s32.totalorder %s66, %s67
    %p79 = scmp.eq.s32.totalorder %s15, 1
    %p80 = por %p78, %p79
    %p82 = scmp.ne.s32.totalorder %s67, %s81
    %p83 = scmp.eq.s32.totalorder %s15, 0
    %p84 = por %p82, %p83
    %s85 = ssub.s32 %s9, %s16
    %p86 = scmp.eq.s32.totalorder %s85, 0
    %s88 = sadd.s32 %s87, 1
    %s89 = scalar_select %p86, %s87, %s88
    %p92 = pneg %p86
    %p93 = scmp.eq.s32.totalorder %s9, 1
    %p94 = por %p92, %p93
    %p95 = scmp.ne.s32.totalorder %s87, %s90
    %p96 = scmp.eq.s32.totalorder %s9, 0
    %p97 = por %p95, %p96
    %p98 = scmp.ne.s32.totalorder %s87, %s90
    %p99 = scmp.eq.s32.totalorder %s14, 1
    %p100 = por %p98, %p99
    %p101 = scmp.ne.s32.totalorder %s90, %s91
    %p102 = scmp.eq.s32.totalorder %s14, 0
    %p103 = por %p101, %p102
    %p104 = scmp.ne.s32.totalorder %s90, %s91
    %p105 = scmp.eq.s32.totalorder %s15, 1
    %p106 = por %p104, %p105
    %p108 = scmp.ne.s32.totalorder %s91, %s107
    %p109 = scmp.eq.s32.totalorder %s15, 0
    %p110 = por %p108, %p109
    %p111 = scmp.le.s32.totalorder 1, %s9
    %p112 = scmp.lt.s32.totalorder %s9, 3
    %p113 = pnand %p111, %p112
    %p114 = pneg %p113
    // Predicated region
    $region9: #{g_unet_add_all_forward.21} parent=5 // pred_check
      _
    $region10: #{g_unet_add_all_forward.21} parent=5 // pred_check_branch
      %116 = sbr.rel (%p113) target = $region12
    $region11: #{g_unet_add_all_forward.21} parent=5 // pred_region
      %s117 = ssub.s32 %s9, 1
      // Predicated region
      $region13: #{g_unet_add_all_forward.21} parent=11 // pred_check
        %p118 = pneg %p56
      $region14: #{g_unet_add_all_forward.21} parent=11 // pred_check_branch
        %120 = sbr.rel (%p118) target = $region16
      $region15: #{g_unet_add_all_forward.21} parent=11 // pred_region
        _
      $region16: #{g_unet_add_all_forward.21} parent=11 // pred_fallthru
        _
      // Predicated region
      $region17: #{g_unet_add_all_forward.21} parent=11 // pred_check
        %p121 = pneg %p77
      $region18: #{g_unet_add_all_forward.21} parent=11 // pred_check_branch
        %123 = sbr.rel (%p121) target = $region20
      $region19: #{g_unet_add_all_forward.21} parent=11 // pred_region
        _
      $region20: #{g_unet_add_all_forward.21} parent=11 // pred_fallthru
        _
    $region12: #{g_unet_add_all_forward.21} parent=5 // pred_fallthru
      _
    %p124 = scmp.lt.s32.totalorder %s9, 2
    // Predicated region
    $region21: #{g_unet_add_all_forward.21} parent=5 // pred_check
      %p125 = pneg %p124
    $region22: #{g_unet_add_all_forward.21} parent=5 // pred_check_branch
      %127 = sbr.rel (%p125) target = $region24
    $region23: #{g_unet_add_all_forward.21} parent=5 // pred_region
      // Predicated region
      $region25: #{g_unet_add_all_forward.21} parent=23 // pred_check
        %p128 = pneg %p29
      $region26: #{g_unet_add_all_forward.21} parent=23 // pred_check_branch
        %130 = sbr.rel (%p128) target = $region28
      $region27: #{g_unet_add_all_forward.21} parent=23 // pred_region
        %s131 = smul.u32 8, %s9
        %p132 = scmp.lt.s32.totalorder %s131, 15
        %s133 = scalar_select %p132, %s131, 15
        %s134 = smul.addr %s133, 5
        %s135 = smul.addr %s134, 4
        %s136 = scalar_lea.vmem %s0, %s135
        %s137 = smul.u32 8, %s9
      $region28: #{g_unet_add_all_forward.21} parent=23 // pred_fallthru
        _
    $region24: #{g_unet_add_all_forward.21} parent=5 // pred_fallthru
      _
    %p138 = scmp.le.s32.totalorder 1, %s9
    %p139 = scmp.lt.s32.totalorder %s9, 3
    %p140 = pnand %p138, %p139
    %p141 = pneg %p140
    // Predicated region
    $region29: #{g_unet_add_all_forward.21} parent=5 // pred_check
      _
    $region30: #{g_unet_add_all_forward.21} parent=5 // pred_check_branch
      %143 = sbr.rel (%p140) target = $region32
    $region31: #{g_unet_add_all_forward.21} parent=5 // pred_region
      %s144 = ssub.s32 %s9, 1
      %s145 = smul.u32 8, %s14
      %p146 = scmp.lt.s32.totalorder %s145, 15
      %s147 = scalar_select %p146, %s145, 15
      %s148 = smul.addr %s147, 5
      %s149 = smul.addr %s148, 4
      %s150 = scalar_lea.vmem %s0, %s149
      %p151 = pneg %p35
      %p152 = pneg %p32
      %p153 = pneg %p56
      %p154 = pneg %p53
      %p155 = pneg %p77
      %p156 = pneg %p74
      %p157 = pneg %p103
      %p158 = pneg %p100
      %s159 = smul.u32 8, %s14
      %p160 = scmp.lt.s32.totalorder %s159, 15
      %s161 = scalar_select %p160, %s159, 15
      %s162 = smul.addr %s161, 8
      %s163 = scalar_lea.vmem %s3, %s162
      %s164 = smul.u32 8, %s14
      %p165 = scmp.lt.s32.totalorder %s164, 15
      %s166 = scalar_select %p165, %s164, 15
      %s167 = smul.addr %s166, 5
      %s168 = smul.addr %s167, 4
      %s169 = scalar_lea.vmem %s0, %s168
      %s170 = smul.u32 8, %s14
      %s171 = smul.u32 8, %s14
      %p172 = scmp.lt.s32.totalorder %s171, 15
      %s173 = scalar_select %p172, %s171, 15
      %s174 = smul.addr %s173, 8
      %s175 = scalar_lea.vmem %s3, %s174
      %s176 = smul.u32 8, %s14
      %v178 = vld [vmem:[%s169] sm:$0xff]
      %v179 = vld [vmem:[%s169 + $0x8] sm:$0xff]
      %v180 = vld [vmem:[%s169 + $0x10] sm:$0xf]
      %v181 = vld [vmem:[%s169 + $0x14] sm:$0xff]
      %v182 = vld [vmem:[%s169 + $0x1c] sm:$0xff]
      %v183 = vld [vmem:[%s169 + $0x24] sm:$0xf]
      %v184 = vld [vmem:[%s169 + $0x28] sm:$0xff]
      %v185 = vld [vmem:[%s169 + $0x30] sm:$0xff]
      %v186 = vld [vmem:[%s169 + $0x38] sm:$0xf]
      %v187 = vld [vmem:[%s169 + $0x3c] sm:$0xff]
      %v188 = vld [vmem:[%s169 + $0x44] sm:$0xff]
      %v189 = vld [vmem:[%s169 + $0x4c] sm:$0xf]
      %v190 = vld [vmem:[%s169 + $0x50] sm:$0xff]
      %v191 = vld [vmem:[%s169 + $0x58] sm:$0xff]
      %v192 = vld [vmem:[%s169 + $0x60] sm:$0xf]
      %v193 = vld [vmem:[%s169 + $0x64] sm:$0xff]
      %v194 = vld [vmem:[%s169 + $0x6c] sm:$0xff]
      %v195 = vld [vmem:[%s169 + $0x74] sm:$0xf]
      %v196 = vld [vmem:[%s169 + $0x78] sm:$0xff]
      %v197 = vld [vmem:[%s169 + $0x80] sm:$0xff]
      %v198 = vld [vmem:[%s169 + $0x88] sm:$0xf]
      %v199 = vld [vmem:[%s169 + $0x8c] sm:$0xff]
      %v200 = vld [vmem:[%s169 + $0x94] sm:$0xff]
      %v201 = vld [vmem:[%s169 + $0x9c] sm:$0xf]
      %v202 = vunpack.c.l.bf16 %v178
      %v203 = vunpack.c.h.bf16 %v178
      %v204 = vunpack.c.l.bf16 %v179
      %v205 = vunpack.c.h.bf16 %v179
      %v206 = vunpack.c.l.bf16 %v180
      %v207 = vunpack.c.l.bf16 %v181
      %v208 = vunpack.c.h.bf16 %v181
      %v209 = vunpack.c.l.bf16 %v182
      %v210 = vunpack.c.h.bf16 %v182
      %v211 = vunpack.c.l.bf16 %v183
      %v212 = vunpack.c.l.bf16 %v184
      %v213 = vunpack.c.h.bf16 %v184
      %v214 = vunpack.c.l.bf16 %v185
      %v215 = vunpack.c.h.bf16 %v185
      %v216 = vunpack.c.l.bf16 %v186
      %v217 = vunpack.c.l.bf16 %v187
      %v218 = vunpack.c.h.bf16 %v187
      %v219 = vunpack.c.l.bf16 %v188
      %v220 = vunpack.c.h.bf16 %v188
      %v221 = vunpack.c.l.bf16 %v189
      %v222 = vunpack.c.l.bf16 %v190
      %v223 = vunpack.c.h.bf16 %v190
      %v224 = vunpack.c.l.bf16 %v191
      %v225 = vunpack.c.h.bf16 %v191
      %v226 = vunpack.c.l.bf16 %v192
      %v227 = vunpack.c.l.bf16 %v193
      %v228 = vunpack.c.h.bf16 %v193
      %v229 = vunpack.c.l.bf16 %v194
      %v230 = vunpack.c.h.bf16 %v194
      %v231 = vunpack.c.l.bf16 %v195
      %v232 = vunpack.c.l.bf16 %v196
      %v233 = vunpack.c.h.bf16 %v196
      %v234 = vunpack.c.l.bf16 %v197
      %v235 = vunpack.c.h.bf16 %v197
      %v236 = vunpack.c.l.bf16 %v198
      %v237 = vunpack.c.l.bf16 %v199
      %v238 = vunpack.c.h.bf16 %v199
      %v239 = vunpack.c.l.bf16 %v200
      %v240 = vunpack.c.h.bf16 %v200
      %v241 = vunpack.c.l.bf16 %v201
      %v242 = vmax.f32 %v202, 0.0
      %v243 = vmax.f32 %v203, 0.0
      %v244 = vmax.f32 %v204, 0.0
      %v245 = vmax.f32 %v205, 0.0
      %v246 = vmax.f32 %v206, 0.0
      %v247 = vmax.f32 %v207, 0.0
      %v248 = vmax.f32 %v208, 0.0
      %v249 = vmax.f32 %v209, 0.0
      %v250 = vmax.f32 %v210, 0.0
      %v251 = vmax.f32 %v211, 0.0
      %v252 = vmax.f32 %v212, 0.0
      %v253 = vmax.f32 %v213, 0.0
      %v254 = vmax.f32 %v214, 0.0
      %v255 = vmax.f32 %v215, 0.0
      %v256 = vmax.f32 %v216, 0.0
      %v257 = vmax.f32 %v217, 0.0
      %v258 = vmax.f32 %v218, 0.0
      %v259 = vmax.f32 %v219, 0.0
      %v260 = vmax.f32 %v220, 0.0
      %v261 = vmax.f32 %v221, 0.0
      %v262 = vmax.f32 %v222, 0.0
      %v263 = vmax.f32 %v223, 0.0
      %v264 = vmax.f32 %v224, 0.0
      %v265 = vmax.f32 %v225, 0.0
      %v266 = vmax.f32 %v226, 0.0
      %v267 = vmax.f32 %v227, 0.0
      %v268 = vmax.f32 %v228, 0.0
      %v269 = vmax.f32 %v229, 0.0
      %v270 = vmax.f32 %v230, 0.0
      %v271 = vmax.f32 %v231, 0.0
      %v272 = vmax.f32 %v232, 0.0
      %v273 = vmax.f32 %v233, 0.0
      %v274 = vmax.f32 %v234, 0.0
      %v275 = vmax.f32 %v235, 0.0
      %v276 = vmax.f32 %v236, 0.0
      %v277 = vmax.f32 %v237, 0.0
      %v278 = vmax.f32 %v238, 0.0
      %v279 = vmax.f32 %v239, 0.0
      %v280 = vmax.f32 %v240, 0.0
      %v281 = vmax.f32 %v241, 0.0
      %v282 = vpack.c.bf16 %v247, %v242
      %v283 = vpack.c.bf16 %v248, %v243
      %v284 = vpack.c.bf16 %v249, %v244
      %v285 = vpack.c.bf16 %v250, %v245
      %v286 = vpack.c.bf16 %v251, %v246
      %v287 = vpack.c.bf16 %v257, %v252
      %v288 = vpack.c.bf16 %v258, %v253
      %v289 = vpack.c.bf16 %v259, %v254
      %v290 = vpack.c.bf16 %v260, %v255
      %v291 = vpack.c.bf16 %v261, %v256
      %v292 = vpack.c.bf16 %v267, %v262
      %v293 = vpack.c.bf16 %v268, %v263
      %v294 = vpack.c.bf16 %v269, %v264
      %v295 = vpack.c.bf16 %v270, %v265
      %v296 = vpack.c.bf16 %v271, %v266
      %v297 = vpack.c.bf16 %v277, %v272
      %v298 = vpack.c.bf16 %v278, %v273
      %v299 = vpack.c.bf16 %v279, %v274
      %v300 = vpack.c.bf16 %v280, %v275
      %v301 = vpack.c.bf16 %v281, %v276
      %v302 = vld [vmem:[%s1] sm:$0xf]
      %v303 = vld [vmem:[%s1 + $0x4] sm:$0xf]
      %v304 = vld [vmem:[%s1 + $0x8] sm:$0xf]
      %v305 = vld [vmem:[%s1 + $0xc] sm:$0xf]
      %v306 = vld [vmem:[%s1 + $0x10] sm:$0xf]
      %v307 = vld [vmem:[%s1 + $0x14] sm:$0xf]
      %v308 = vld [vmem:[%s1 + $0x18] sm:$0xf]
      %v309 = vld [vmem:[%s1 + $0x1c] sm:$0xf]
      %v310 = vld [vmem:[%s1 + $0x20] sm:$0xf]
      %v311 = vld [vmem:[%s1 + $0x24] sm:$0xf]
      %v312 = vld [vmem:[%s1 + $0x28] sm:$0xf]
      %v313 = vld [vmem:[%s1 + $0x2c] sm:$0xf]
      %v314 = vld [vmem:[%s1 + $0x30] sm:$0xf]
      %v315 = vld [vmem:[%s1 + $0x34] sm:$0xf]
      %v316 = vld [vmem:[%s1 + $0x38] sm:$0xf]
      %v317 = vld [vmem:[%s1 + $0x3c] sm:$0xf]
      %v318 = vld [vmem:[%s1 + $0x40] sm:$0xf]
      %v319 = vld [vmem:[%s1 + $0x44] sm:$0xf]
      %v320 = vld [vmem:[%s1 + $0x48] sm:$0xf]
      %v321 = vld [vmem:[%s1 + $0x4c] sm:$0xf]
      %v322 = vld [vmem:[%s1 + $0x50] sm:$0xf]
      %v323 = vld [vmem:[%s1 + $0x54] sm:$0xf]
      %v324 = vld [vmem:[%s1 + $0x58] sm:$0xf]
      %v325 = vld [vmem:[%s1 + $0x5c] sm:$0xf]
      %v326 = vld [vmem:[%s1 + $0x60] sm:$0xf]
      %v327 = vld [vmem:[%s1 + $0x64] sm:$0xf]
      %v328 = vld [vmem:[%s1 + $0x68] sm:$0xf]
      %v329 = vld [vmem:[%s1 + $0x6c] sm:$0xf]
      %v330 = vld [vmem:[%s1 + $0x70] sm:$0xf]
      %v331 = vld [vmem:[%s1 + $0x74] sm:$0xf]
      %v332 = vld [vmem:[%s1 + $0x78] sm:$0xf]
      %v333 = vld [vmem:[%s1 + $0x7c] sm:$0xf]
      %v334 = vld [vmem:[%s1 + $0x80] sm:$0xf]
      %v335 = vld [vmem:[%s1 + $0x84] sm:$0xf]
      %v336 = vld [vmem:[%s1 + $0x88] sm:$0xf]
      %v337 = vld [vmem:[%s1 + $0x8c] sm:$0xf]
      %v338 = vld [vmem:[%s1 + $0x90] sm:$0xf]
      %v339 = vld [vmem:[%s1 + $0x94] sm:$0xf]
      %v340 = vld [vmem:[%s1 + $0x98] sm:$0xf]
      %v341 = vld [vmem:[%s1 + $0x9c] sm:$0xf]
      %v342 = vld [vmem:[%s1 + $0xa0] sm:$0xf]
      %v343 = vld [vmem:[%s1 + $0xa4] sm:$0xf]
      %v344 = vld [vmem:[%s1 + $0xa8] sm:$0xf]
      %v345 = vld [vmem:[%s1 + $0xac] sm:$0xf]
      %v346 = vld [vmem:[%s1 + $0xb0] sm:$0xf]
      %v347 = vld [vmem:[%s1 + $0xb4] sm:$0xf]
      %v348 = vld [vmem:[%s1 + $0xb8] sm:$0xf]
      %v349 = vld [vmem:[%s1 + $0xbc] sm:$0xf]
      %v350 = vld [vmem:[%s1 + $0xc0] sm:$0xf]
      %v351 = vld [vmem:[%s1 + $0xc4] sm:$0xf]
      %v352 = vld [vmem:[%s1 + $0xc8] sm:$0xf]
      %v353 = vld [vmem:[%s1 + $0xcc] sm:$0xf]
      %v354 = vld [vmem:[%s1 + $0xd0] sm:$0xf]
      %v355 = vld [vmem:[%s1 + $0xd4] sm:$0xf]
      %v356 = vld [vmem:[%s1 + $0xd8] sm:$0xf]
      %v357 = vld [vmem:[%s1 + $0xdc] sm:$0xf]
      %v358 = vld [vmem:[%s1 + $0xe0] sm:$0xf]
      %v359 = vld [vmem:[%s1 + $0xe4] sm:$0xf]
      %v360 = vld [vmem:[%s1 + $0xe8] sm:$0xf]
      %v361 = vld [vmem:[%s1 + $0xec] sm:$0xf]
      %v362 = vld [vmem:[%s1 + $0xf0] sm:$0xf]
      %v363 = vld [vmem:[%s1 + $0xf4] sm:$0xf]
      %v364 = vld [vmem:[%s1 + $0xf8] sm:$0xf]
      %v365 = vld [vmem:[%s1 + $0xfc] sm:$0xf]
      %v366 = vld [vmem:[%s1 + $0x100] sm:$0xf]
      %v367 = vld [vmem:[%s1 + $0x104] sm:$0xf]
      %v368 = vld [vmem:[%s1 + $0x108] sm:$0xf]
      %v369 = vld [vmem:[%s1 + $0x10c] sm:$0xf]
      %v370 = vld [vmem:[%s1 + $0x110] sm:$0xf]
      %v371 = vld [vmem:[%s1 + $0x114] sm:$0xf]
      %v372 = vld [vmem:[%s1 + $0x118] sm:$0xf]
      %v373 = vld [vmem:[%s1 + $0x11c] sm:$0xf]
      %v374 = vld [vmem:[%s2] sm:$0x1]
      %v376 = vperm.slane %v374, 0
      %v450 = vunpack.c.l.b16 %v302
      %v451 = vunpack.c.l.b16 %v303
      %v452 = vunpack.c.l.b16 %v304
      %v453 = vunpack.c.l.b16 %v305
      %v454 = vunpack.c.l.b16 %v306
      %v455 = vunpack.c.l.b16 %v307
      %v456 = vunpack.c.l.b16 %v308
      %v457 = vunpack.c.l.b16 %v309
      %v458 = vunpack.c.l.b16 %v310
      %v459 = vunpack.c.l.b16 %v311
      %v460 = vunpack.c.l.b16 %v312
      %v461 = vunpack.c.l.b16 %v313
      %v462 = vunpack.c.l.b16 %v314
      %v463 = vunpack.c.l.b16 %v315
      %v464 = vunpack.c.l.b16 %v316
      %v465 = vunpack.c.l.b16 %v317
      %v466 = vunpack.c.l.b16 %v318
      %v467 = vunpack.c.l.b16 %v319
      %v468 = vunpack.c.l.b16 %v320
      %v469 = vunpack.c.l.b16 %v321
      %v470 = vunpack.c.l.b16 %v322
      %v471 = vunpack.c.l.b16 %v323
      %v472 = vunpack.c.l.b16 %v324
      %v473 = vunpack.c.l.b16 %v325
      %v474 = vunpack.c.l.b16 %v326
      %v475 = vunpack.c.l.b16 %v327
      %v476 = vunpack.c.l.b16 %v328
      %v477 = vunpack.c.l.b16 %v329
      %v478 = vunpack.c.l.b16 %v330
      %v479 = vunpack.c.l.b16 %v331
      %v480 = vunpack.c.l.b16 %v332
      %v481 = vunpack.c.l.b16 %v333
      %v482 = vunpack.c.l.b16 %v334
      %v483 = vunpack.c.l.b16 %v335
      %v484 = vunpack.c.l.b16 %v336
      %v485 = vunpack.c.l.b16 %v337
      %v486 = vunpack.c.l.b16 %v338
      %v487 = vunpack.c.l.b16 %v339
      %v488 = vunpack.c.l.b16 %v340
      %v489 = vunpack.c.l.b16 %v341
      %v490 = vunpack.c.l.b16 %v342
      %v491 = vunpack.c.l.b16 %v343
      %v492 = vunpack.c.l.b16 %v344
      %v493 = vunpack.c.l.b16 %v345
      %v494 = vunpack.c.l.b16 %v346
      %v495 = vunpack.c.l.b16 %v347
      %v496 = vunpack.c.l.b16 %v348
      %v497 = vunpack.c.l.b16 %v349
      %v498 = vunpack.c.l.b16 %v350
      %v499 = vunpack.c.l.b16 %v351
      %v500 = vunpack.c.l.b16 %v352
      %v501 = vunpack.c.l.b16 %v353
      %v502 = vunpack.c.l.b16 %v354
      %v503 = vunpack.c.l.b16 %v355
      %v504 = vunpack.c.l.b16 %v356
      %v505 = vunpack.c.l.b16 %v357
      %v506 = vunpack.c.l.b16 %v358
      %v507 = vunpack.c.l.b16 %v359
      %v508 = vunpack.c.l.b16 %v360
      %v509 = vunpack.c.l.b16 %v361
      %v510 = vunpack.c.l.b16 %v362
      %v511 = vunpack.c.l.b16 %v363
      %v512 = vunpack.c.l.b16 %v364
      %v513 = vunpack.c.l.b16 %v365
      %v514 = vunpack.c.l.b16 %v366
      %v515 = vunpack.c.l.b16 %v367
      %v516 = vunpack.c.l.b16 %v368
      %v517 = vunpack.c.l.b16 %v369
      %v518 = vunpack.c.l.b16 %v370
      %v519 = vunpack.c.l.b16 %v371
      %v520 = vunpack.c.l.b16 %v372
      %v521 = vunpack.c.l.b16 %v373
      %v522 = vpack.c.b16 %v451, %v450
      %v523 = vpack.c.b16 %v453, %v452
      %v524 = vpack.c.b16 %v455, %v454
      %v525 = vpack.c.b16 %v457, %v456
      %v526 = vpack.c.b16 %v459, %v458
      %v527 = vpack.c.b16 %v461, %v460
      %v528 = vpack.c.b16 %v463, %v462
      %v529 = vpack.c.b16 %v465, %v464
      %v530 = vpack.c.b16 %v467, %v466
      %v531 = vpack.c.b16 %v469, %v468
      %v532 = vpack.c.b16 %v471, %v470
      %v533 = vpack.c.b16 %v473, %v472
      %v534 = vpack.c.b16 %v475, %v474
      %v535 = vpack.c.b16 %v477, %v476
      %v536 = vpack.c.b16 %v479, %v478
      %v537 = vpack.c.b16 %v481, %v480
      %v538 = vpack.c.b16 %v483, %v482
      %v539 = vpack.c.b16 %v485, %v484
      %v540 = vpack.c.b16 %v487, %v486
      %v541 = vpack.c.b16 %v489, %v488
      %v542 = vpack.c.b16 %v491, %v490
      %v543 = vpack.c.b16 %v493, %v492
      %v544 = vpack.c.b16 %v495, %v494
      %v545 = vpack.c.b16 %v497, %v496
      %v546 = vpack.c.b16 %v499, %v498
      %v547 = vpack.c.b16 %v501, %v500
      %v548 = vpack.c.b16 %v503, %v502
      %v549 = vpack.c.b16 %v505, %v504
      %v550 = vpack.c.b16 %v507, %v506
      %v551 = vpack.c.b16 %v509, %v508
      %v552 = vpack.c.b16 %v511, %v510
      %v553 = vpack.c.b16 %v513, %v512
      %v554 = vpack.c.b16 %v515, %v514
      %v555 = vpack.c.b16 %v517, %v516
      %v556 = vpack.c.b16 %v519, %v518
      %v557 = vpack.c.b16 %v521, %v520
      %vm594 = vcmask 523264
      %v596 = vsel %vm594, %v286, 0
      %v599 = vsel %vm594, %v291, 0
      %v602 = vsel %vm594, %v296, 0
      %v605 = vsel %vm594, %v301, 0
      %607 = vmatpush.bf16.msra.mxu0 %v529
      %608 = vmatpush.bf16.msra.mxu0 %v528
      %609 = vmatpush.bf16.msra.mxu0 %v527
      %610 = vmatpush.bf16.msra.mxu0 %v526
      %611 = vmatpush.bf16.msra.mxu0 %v525
      %612 = vmatpush.bf16.msra.mxu0 %v524
      %613 = vmatpush.bf16.msra.mxu0 %v523
      %614 = vmatpush.bf16.msra.mxu0 %v522
      %615 = vmatmul.bf16.gmra.mxu0 %v282
      %v616 = vpop.f32.mrf.mxu0
      %v617 = vadd.f32 %v376, %v616
      %v618 = vpop.f32.mrf.mxu0
      %v619 = vadd.f32 %v376, %v618
      %620 = vmatmul.bf16.gmra.mxu0 %v287
      %v621 = vpop.f32.mrf.mxu0
      %v622 = vadd.f32 %v376, %v621
      %v623 = vpop.f32.mrf.mxu0
      %v624 = vadd.f32 %v376, %v623
      %625 = vmatmul.bf16.gmra.mxu0 %v292
      %v626 = vpop.f32.mrf.mxu0
      %v627 = vadd.f32 %v376, %v626
      %v628 = vpop.f32.mrf.mxu0
      %v629 = vadd.f32 %v376, %v628
      %630 = vmatmul.bf16.gmra.mxu0 %v297
      %v631 = vpop.f32.mrf.mxu0
      %v632 = vadd.f32 %v376, %v631
      %v633 = vpop.f32.mrf.mxu0
      %v634 = vadd.f32 %v376, %v633
      %635 = vdwg.mxu0
      %636 = vmatpush.bf16.msra.mxu0 %v537
      %637 = vmatpush.bf16.msra.mxu0 %v536
      %638 = vmatpush.bf16.msra.mxu0 %v535
      %639 = vmatpush.bf16.msra.mxu0 %v534
      %640 = vmatpush.bf16.msra.mxu0 %v533
      %641 = vmatpush.bf16.msra.mxu0 %v532
      %642 = vmatpush.bf16.msra.mxu0 %v531
      %643 = vmatpush.bf16.msra.mxu0 %v530
      %644 = vmatmul.bf16.gmra.mxu0 %v283
      %v645 = vpop.f32.mrf.mxu0
      %v646 = vadd.f32 %v617, %v645
      %v647 = vpop.f32.mrf.mxu0
      %v648 = vadd.f32 %v619, %v647
      %649 = vmatmul.bf16.gmra.mxu0 %v288
      %v650 = vpop.f32.mrf.mxu0
      %v651 = vadd.f32 %v622, %v650
      %v652 = vpop.f32.mrf.mxu0
      %v653 = vadd.f32 %v624, %v652
      %654 = vmatmul.bf16.gmra.mxu0 %v293
      %v655 = vpop.f32.mrf.mxu0
      %v656 = vadd.f32 %v627, %v655
      %v657 = vpop.f32.mrf.mxu0
      %v658 = vadd.f32 %v629, %v657
      %659 = vmatmul.bf16.gmra.mxu0 %v298
      %v660 = vpop.f32.mrf.mxu0
      %v661 = vadd.f32 %v632, %v660
      %v662 = vpop.f32.mrf.mxu0
      %v663 = vadd.f32 %v634, %v662
      %664 = vdwg.mxu0
      %665 = vmatpush.bf16.msra.mxu0 %v545
      %666 = vmatpush.bf16.msra.mxu0 %v544
      %667 = vmatpush.bf16.msra.mxu0 %v543
      %668 = vmatpush.bf16.msra.mxu0 %v542
      %669 = vmatpush.bf16.msra.mxu0 %v541
      %670 = vmatpush.bf16.msra.mxu0 %v540
      %671 = vmatpush.bf16.msra.mxu0 %v539
      %672 = vmatpush.bf16.msra.mxu0 %v538
      %673 = vmatmul.bf16.gmra.mxu0 %v284
      %v674 = vpop.f32.mrf.mxu0
      %v675 = vadd.f32 %v646, %v674
      %v676 = vpop.f32.mrf.mxu0
      %v677 = vadd.f32 %v648, %v676
      %678 = vmatmul.bf16.gmra.mxu0 %v289
      %v679 = vpop.f32.mrf.mxu0
      %v680 = vadd.f32 %v651, %v679
      %v681 = vpop.f32.mrf.mxu0
      %v682 = vadd.f32 %v653, %v681
      %683 = vmatmul.bf16.gmra.mxu0 %v294
      %v684 = vpop.f32.mrf.mxu0
      %v685 = vadd.f32 %v656, %v684
      %v686 = vpop.f32.mrf.mxu0
      %v687 = vadd.f32 %v658, %v686
      %688 = vmatmul.bf16.gmra.mxu0 %v299
      %v689 = vpop.f32.mrf.mxu0
      %v690 = vadd.f32 %v661, %v689
      %v691 = vpop.f32.mrf.mxu0
      %v692 = vadd.f32 %v663, %v691
      %693 = vdwg.mxu0
      %694 = vmatpush.bf16.msra.mxu0 %v553
      %695 = vmatpush.bf16.msra.mxu0 %v552
      %696 = vmatpush.bf16.msra.mxu0 %v551
      %697 = vmatpush.bf16.msra.mxu0 %v550
      %698 = vmatpush.bf16.msra.mxu0 %v549
      %699 = vmatpush.bf16.msra.mxu0 %v548
      %700 = vmatpush.bf16.msra.mxu0 %v547
      %701 = vmatpush.bf16.msra.mxu0 %v546
      %702 = vmatmul.bf16.gmra.mxu0 %v285
      %v703 = vpop.f32.mrf.mxu0
      %v704 = vadd.f32 %v675, %v703
      %v705 = vpop.f32.mrf.mxu0
      %v706 = vadd.f32 %v677, %v705
      %707 = vmatmul.bf16.gmra.mxu0 %v290
      %v708 = vpop.f32.mrf.mxu0
      %v709 = vadd.f32 %v680, %v708
      %v710 = vpop.f32.mrf.mxu0
      %v711 = vadd.f32 %v682, %v710
      %712 = vmatmul.bf16.gmra.mxu0 %v295
      %v713 = vpop.f32.mrf.mxu0
      %v714 = vadd.f32 %v685, %v713
      %v715 = vpop.f32.mrf.mxu0
      %v716 = vadd.f32 %v687, %v715
      %717 = vmatmul.bf16.gmra.mxu0 %v300
      %v718 = vpop.f32.mrf.mxu0
      %v719 = vadd.f32 %v690, %v718
      %v720 = vpop.f32.mrf.mxu0
      %v721 = vadd.f32 %v692, %v720
      %722 = vdwg.mxu0
      %723 = vmatpush.bf16.msra.mxu0 0
      %724 = vmatpush.bf16.msra.mxu0 0
      %725 = vmatpush.bf16.msra.mxu0 0
      %726 = vmatpush.bf16.msra.mxu0 0
      %727 = vmatpush.bf16.msra.mxu0 %v557
      %728 = vmatpush.bf16.msra.mxu0 %v556
      %729 = vmatpush.bf16.msra.mxu0 %v555
      %730 = vmatpush.bf16.msra.mxu0 %v554
      %731 = vmatmul.bf16.gmra.mxu0 %v596
      %v732 = vpop.f32.mrf.mxu0
      %v733 = vadd.f32 %v704, %v732
      %v734 = vpop.f32.mrf.mxu0
      %v735 = vadd.f32 %v706, %v734
      %736 = vmatmul.bf16.gmra.mxu0 %v599
      %v737 = vpop.f32.mrf.mxu0
      %v738 = vadd.f32 %v709, %v737
      %v739 = vpop.f32.mrf.mxu0
      %v740 = vadd.f32 %v711, %v739
      %741 = vmatmul.bf16.gmra.mxu0 %v602
      %v742 = vpop.f32.mrf.mxu0
      %v743 = vadd.f32 %v714, %v742
      %v744 = vpop.f32.mrf.mxu0
      %v745 = vadd.f32 %v716, %v744
      %746 = vmatmul.bf16.gmra.mxu0 %v605
      %v747 = vpop.f32.mrf.mxu0
      %v748 = vadd.f32 %v719, %v747
      %v749 = vpop.f32.mrf.mxu0
      %v750 = vadd.f32 %v721, %v749
      %751 = vdwg.mxu0
      %752 = vst.msk [vmem:[%s175] sm:$0xff] %vm594, %v733
      %753 = vst.msk [vmem:[%s175 + $0x8] sm:$0xff] %vm594, %v735
      %754 = vst.msk [vmem:[%s175 + $0x10] sm:$0xff] %vm594, %v738
      %755 = vst.msk [vmem:[%s175 + $0x18] sm:$0xff] %vm594, %v740
      %756 = vst.msk [vmem:[%s175 + $0x20] sm:$0xff] %vm594, %v743
      %757 = vst.msk [vmem:[%s175 + $0x28] sm:$0xff] %vm594, %v745
      %758 = vst.msk [vmem:[%s175 + $0x30] sm:$0xff] %vm594, %v748
      %759 = vst.msk [vmem:[%s175 + $0x38] sm:$0xff] %vm594, %v750
      %s760 = smul.u32 8, %s14
      %p761 = scmp.lt.s32.totalorder %s760, 15
      %s762 = scalar_select %p761, %s760, 15
      %s763 = smul.addr %s762, 8
      %s764 = scalar_lea.vmem %s3, %s763
      // Predicated region
      $region33: #{g_unet_add_all_forward.21} parent=31 // pred_check
        %p765 = pneg %p100
      $region34: #{g_unet_add_all_forward.21} parent=31 // pred_check_branch
        %767 = sbr.rel (%p765) target = $region36
      $region35: #{g_unet_add_all_forward.21} parent=31 // pred_region
        %s768 = smul.u32 8, %s14
      $region36: #{g_unet_add_all_forward.21} parent=31 // pred_fallthru
        _
    $region32: #{g_unet_add_all_forward.21} parent=5 // pred_fallthru
      _
    %p769 = scmp.le.s32.totalorder 2, %s9
    // Predicated region
    $region37: #{g_unet_add_all_forward.21} parent=5 // pred_check
      %p770 = pneg %p769
    $region38: #{g_unet_add_all_forward.21} parent=5 // pred_check_branch
      %772 = sbr.rel (%p770) target = $region40
    $region39: #{g_unet_add_all_forward.21} parent=5 // pred_region
      %s773 = ssub.s32 %s9, 2
      // Predicated region
      $region41: #{g_unet_add_all_forward.21} parent=39 // pred_check
        %p774 = pneg %p106
      $region42: #{g_unet_add_all_forward.21} parent=39 // pred_check_branch
        %776 = sbr.rel (%p774) target = $region44
      $region43: #{g_unet_add_all_forward.21} parent=39 // pred_region
        %s777 = smul.u32 8, %s15
        %p778 = scmp.lt.s32.totalorder %s777, 15
        %s779 = scalar_select %p778, %s777, 15
        %s780 = smul.addr %s779, 8
        %s781 = scalar_lea.vmem %s3, %s780
      $region44: #{g_unet_add_all_forward.21} parent=39 // pred_fallthru
        _
    $region40: #{g_unet_add_all_forward.21} parent=5 // pred_fallthru
      _
  $region6: #{g_unet_add_all_forward.21} parent=0 // loop_footer
    %s13 = sadd.s32 1, %s9
  $region7: #{g_unet_add_all_forward.21} parent=0 // loop_footer_branch
    %8 = sbr.rel target = $region3
  $region8: #{g_unet_add_all_forward.21} parent=0 // loop_exit
    _

// kernel: g_unet_add_all_forward.22
$region0: #{g_unet_add_all_forward.22}
  #allocation0 [shape = 'u32[]', space=smem, size = 0x4, offset = 0x4, fixed_abs, tag = 'smem constant byte address 0x4 - core index']
  #allocation1 [shape = 'u32[72,128]{1,0:T(1,128)}', space=vmem, size = 0x9000, scoped, tag = 'internal scratch']
  %s0 = inlined_call_operand.vmem [shape: bf16[512,288], index: 0, kind: input, shape index: {}]
  %s1 = inlined_call_operand.vmem [shape: bf16[288,32], index: 1, kind: input, shape index: {}]
  %s2 = inlined_call_operand.vmem [shape: f32[1,32], index: 2, kind: input, shape index: {}]
  %s3 = inlined_call_operand.vmem [shape: f32[512,32], index: 3, kind: output, shape index: {}]
  %s4 = sld [smem:[#allocation0]]
  $region45: #{g_unet_add_all_forward.22} parent=0
    _
  %s6 = ssub.s32 1, %s4
  %s7 = scalar_select 0, %s6, %s4
  loop: start=0, step=1, limit=4
  $region2: #{g_unet_add_all_forward.22} parent=0 // loop_pre_header
    _
  $region3: #{g_unet_add_all_forward.22} parent=0 // loop_header
    %s9 = sphi 0, %s13
    %p10 = scmp.ge.s32.totalorder %s9, 4
    %s19 = sphi 0, %s21
    %s22 = sphi 0, %s19
    %s23 = sphi 0, %s22
    %s39 = sphi 0, %s23
    %s43 = sphi 0, %s43
    %s45 = sphi 0, %s43
    %s46 = sphi 0, %s45
    %s60 = sphi 0, %s46
    %s64 = sphi 0, %s64
    %s66 = sphi 0, %s64
    %s67 = sphi 0, %s66
    %s81 = sphi 0, %s67
    %s87 = sphi 0, %s89
    %s90 = sphi 0, %s87
    %s91 = sphi 0, %s90
    %s107 = sphi 0, %s91
  $region4: #{g_unet_add_all_forward.22} parent=0 // loop_header_branch
    %12 = sbr.rel (%p10) target = $region8
  $region5: #{g_unet_add_all_forward.22} parent=0 // loop_body
    %s14 = ssub.s32 %s9, 1
    %s15 = ssub.s32 %s9, 2
    %s16 = sadd.s32 %s9, 1
    %s17 = ssub.s32 %s9, %s16
    %p18 = scmp.eq.s32.totalorder %s17, 0
    %s20 = sadd.s32 %s19, 1
    %s21 = scalar_select %p18, %s19, %s20
    %p24 = pneg %p18
    %p25 = scmp.eq.s32.totalorder %s9, 1
    %p26 = por %p24, %p25
    %p27 = scmp.ne.s32.totalorder %s19, %s22
    %p28 = scmp.eq.s32.totalorder %s9, 0
    %p29 = por %p27, %p28
    %p30 = scmp.ne.s32.totalorder %s19, %s22
    %p31 = scmp.eq.s32.totalorder %s14, 1
    %p32 = por %p30, %p31
    %p33 = scmp.ne.s32.totalorder %s22, %s23
    %p34 = scmp.eq.s32.totalorder %s14, 0
    %p35 = por %p33, %p34
    %p36 = scmp.ne.s32.totalorder %s22, %s23
    %p37 = scmp.eq.s32.totalorder %s15, 1
    %p38 = por %p36, %p37
    %p40 = scmp.ne.s32.totalorder %s23, %s39
    %p41 = scmp.eq.s32.totalorder %s15, 0
    %p42 = por %p40, %p41
    %s44 = sadd.s32 %s43, 1
    %p47 = scmp.eq.s32.totalorder %s9, 1
    %p48 = scmp.ne.s32.totalorder %s43, %s45
    %p49 = scmp.eq.s32.totalorder %s9, 0
    %p50 = por %p48, %p49
    %p51 = scmp.ne.s32.totalorder %s43, %s45
    %p52 = scmp.eq.s32.totalorder %s14, 1
    %p53 = por %p51, %p52
    %p54 = scmp.ne.s32.totalorder %s45, %s46
    %p55 = scmp.eq.s32.totalorder %s14, 0
    %p56 = por %p54, %p55
    %p57 = scmp.ne.s32.totalorder %s45, %s46
    %p58 = scmp.eq.s32.totalorder %s15, 1
    %p59 = por %p57, %p58
    %p61 = scmp.ne.s32.totalorder %s46, %s60
    %p62 = scmp.eq.s32.totalorder %s15, 0
    %p63 = por %p61, %p62
    %s65 = sadd.s32 %s64, 1
    %p68 = scmp.eq.s32.totalorder %s9, 1
    %p69 = scmp.ne.s32.totalorder %s64, %s66
    %p70 = scmp.eq.s32.totalorder %s9, 0
    %p71 = por %p69, %p70
    %p72 = scmp.ne.s32.totalorder %s64, %s66
    %p73 = scmp.eq.s32.totalorder %s14, 1
    %p74 = por %p72, %p73
    %p75 = scmp.ne.s32.totalorder %s66, %s67
    %p76 = scmp.eq.s32.totalorder %s14, 0
    %p77 = por %p75, %p76
    %p78 = scmp.ne.s32.totalorder %s66, %s67
    %p79 = scmp.eq.s32.totalorder %s15, 1
    %p80 = por %p78, %p79
    %p82 = scmp.ne.s32.totalorder %s67, %s81
    %p83 = scmp.eq.s32.totalorder %s15, 0
    %p84 = por %p82, %p83
    %s85 = ssub.s32 %s9, %s16
    %p86 = scmp.eq.s32.totalorder %s85, 0
    %s88 = sadd.s32 %s87, 1
    %s89 = scalar_select %p86, %s87, %s88
    %p92 = pneg %p86
    %p93 = scmp.eq.s32.totalorder %s9, 1
    %p94 = por %p92, %p93
    %p95 = scmp.ne.s32.totalorder %s87, %s90
    %p96 = scmp.eq.s32.totalorder %s9, 0
    %p97 = por %p95, %p96
    %p98 = scmp.ne.s32.totalorder %s87, %s90
    %p99 = scmp.eq.s32.totalorder %s14, 1
    %p100 = por %p98, %p99
    %p101 = scmp.ne.s32.totalorder %s90, %s91
    %p102 = scmp.eq.s32.totalorder %s14, 0
    %p103 = por %p101, %p102
    %p104 = scmp.ne.s32.totalorder %s90, %s91
    %p105 = scmp.eq.s32.totalorder %s15, 1
    %p106 = por %p104, %p105
    %p108 = scmp.ne.s32.totalorder %s91, %s107
    %p109 = scmp.eq.s32.totalorder %s15, 0
    %p110 = por %p108, %p109
    %p111 = scmp.le.s32.totalorder 1, %s9
    %p112 = scmp.lt.s32.totalorder %s9, 3
    %p113 = pnand %p111, %p112
    %p114 = pneg %p113
    // Predicated region
    $region9: #{g_unet_add_all_forward.22} parent=5 // pred_check
      _
    $region10: #{g_unet_add_all_forward.22} parent=5 // pred_check_branch
      %116 = sbr.rel (%p113) target = $region12
    $region11: #{g_unet_add_all_forward.22} parent=5 // pred_region
      %s117 = ssub.s32 %s9, 1
      // Predicated region
      $region13: #{g_unet_add_all_forward.22} parent=11 // pred_check
        %p118 = pneg %p56
      $region14: #{g_unet_add_all_forward.22} parent=11 // pred_check_branch
        %120 = sbr.rel (%p118) target = $region16
      $region15: #{g_unet_add_all_forward.22} parent=11 // pred_region
        _
      $region16: #{g_unet_add_all_forward.22} parent=11 // pred_fallthru
        _
      // Predicated region
      $region17: #{g_unet_add_all_forward.22} parent=11 // pred_check
        %p121 = pneg %p77
      $region18: #{g_unet_add_all_forward.22} parent=11 // pred_check_branch
        %123 = sbr.rel (%p121) target = $region20
      $region19: #{g_unet_add_all_forward.22} parent=11 // pred_region
        _
      $region20: #{g_unet_add_all_forward.22} parent=11 // pred_fallthru
        _
    $region12: #{g_unet_add_all_forward.22} parent=5 // pred_fallthru
      _
    %p124 = scmp.lt.s32.totalorder %s9, 2
    // Predicated region
    $region21: #{g_unet_add_all_forward.22} parent=5 // pred_check
      %p125 = pneg %p124
    $region22: #{g_unet_add_all_forward.22} parent=5 // pred_check_branch
      %127 = sbr.rel (%p125) target = $region24
    $region23: #{g_unet_add_all_forward.22} parent=5 // pred_region
      // Predicated region
      $region25: #{g_unet_add_all_forward.22} parent=23 // pred_check
        %p128 = pneg %p29
      $region26: #{g_unet_add_all_forward.22} parent=23 // pred_check_branch
        %130 = sbr.rel (%p128) target = $region28
      $region27: #{g_unet_add_all_forward.22} parent=23 // pred_region
        %s131 = smul.u32 32, %s9
        %p132 = scmp.lt.s32.totalorder %s131, 63
        %s133 = scalar_select %p132, %s131, 63
        %s134 = smul.addr %s133, 3
        %s135 = smul.addr %s134, 4
        %s136 = scalar_lea.vmem %s0, %s135
        %s137 = smul.u32 32, %s9
      $region28: #{g_unet_add_all_forward.22} parent=23 // pred_fallthru
        _
    $region24: #{g_unet_add_all_forward.22} parent=5 // pred_fallthru
      _
    %p138 = scmp.le.s32.totalorder 1, %s9
    %p139 = scmp.lt.s32.totalorder %s9, 3
    %p140 = pnand %p138, %p139
    %p141 = pneg %p140
    // Predicated region
    $region29: #{g_unet_add_all_forward.22} parent=5 // pred_check
      _
    $region30: #{g_unet_add_all_forward.22} parent=5 // pred_check_branch
      %143 = sbr.rel (%p140) target = $region32
    $region31: #{g_unet_add_all_forward.22} parent=5 // pred_region
      %s144 = ssub.s32 %s9, 1
      %s145 = smul.u32 32, %s14
      %p146 = scmp.lt.s32.totalorder %s145, 63
      %s147 = scalar_select %p146, %s145, 63
      %s148 = smul.addr %s147, 3
      %s149 = smul.addr %s148, 4
      %s150 = scalar_lea.vmem %s0, %s149
      %p151 = pneg %p35
      %p152 = pneg %p32
      %p153 = pneg %p56
      %p154 = pneg %p53
      %p155 = pneg %p77
      %p156 = pneg %p74
      %p157 = pneg %p103
      %p158 = pneg %p100
      %s159 = smul.u32 32, %s14
      %p160 = scmp.lt.s32.totalorder %s159, 63
      %s161 = scalar_select %p160, %s159, 63
      %s162 = smul.addr %s161, 8
      %s163 = scalar_lea.vmem %s3, %s162
      %s164 = smul.u32 32, %s14
      %p165 = scmp.lt.s32.totalorder %s164, 63
      %s166 = scalar_select %p165, %s164, 63
      %s167 = smul.addr %s166, 3
      %s168 = smul.addr %s167, 4
      %s169 = scalar_lea.vmem %s0, %s168
      %s170 = smul.u32 32, %s14
      %s171 = smul.u32 32, %s14
      %p172 = scmp.lt.s32.totalorder %s171, 63
      %s173 = scalar_select %p172, %s171, 63
      %s174 = smul.addr %s173, 8
      %s175 = scalar_lea.vmem %s3, %s174
      %s176 = smul.u32 32, %s14
      %v178 = vld [vmem:[%s169] sm:$0xff]
      %v179 = vld [vmem:[%s169 + $0x8] sm:$0xf]
      %v180 = vld [vmem:[%s169 + $0xc] sm:$0xff]
      %v181 = vld [vmem:[%s169 + $0x14] sm:$0xf]
      %v182 = vld [vmem:[%s169 + $0x18] sm:$0xff]
      %v183 = vld [vmem:[%s169 + $0x20] sm:$0xf]
      %v184 = vld [vmem:[%s169 + $0x24] sm:$0xff]
      %v185 = vld [vmem:[%s169 + $0x2c] sm:$0xf]
      %v186 = vld [vmem:[%s169 + $0x30] sm:$0xff]
      %v187 = vld [vmem:[%s169 + $0x38] sm:$0xf]
      %v188 = vld [vmem:[%s169 + $0x3c] sm:$0xff]
      %v189 = vld [vmem:[%s169 + $0x44] sm:$0xf]
      %v190 = vld [vmem:[%s169 + $0x48] sm:$0xff]
      %v191 = vld [vmem:[%s169 + $0x50] sm:$0xf]
      %v192 = vld [vmem:[%s169 + $0x54] sm:$0xff]
      %v193 = vld [vmem:[%s169 + $0x5c] sm:$0xf]
      %v194 = vld [vmem:[%s169 + $0x60] sm:$0xff]
      %v195 = vld [vmem:[%s169 + $0x68] sm:$0xf]
      %v196 = vld [vmem:[%s169 + $0x6c] sm:$0xff]
      %v197 = vld [vmem:[%s169 + $0x74] sm:$0xf]
      %v198 = vld [vmem:[%s169 + $0x78] sm:$0xff]
      %v199 = vld [vmem:[%s169 + $0x80] sm:$0xf]
      %v200 = vld [vmem:[%s169 + $0x84] sm:$0xff]
      %v201 = vld [vmem:[%s169 + $0x8c] sm:$0xf]
      %v202 = vld [vmem:[%s169 + $0x90] sm:$0xff]
      %v203 = vld [vmem:[%s169 + $0x98] sm:$0xf]
      %v204 = vld [vmem:[%s169 + $0x9c] sm:$0xff]
      %v205 = vld [vmem:[%s169 + $0xa4] sm:$0xf]
      %v206 = vld [vmem:[%s169 + $0xa8] sm:$0xff]
      %v207 = vld [vmem:[%s169 + $0xb0] sm:$0xf]
      %v208 = vld [vmem:[%s169 + $0xb4] sm:$0xff]
      %v209 = vld [vmem:[%s169 + $0xbc] sm:$0xf]
      %v210 = vld [vmem:[%s169 + $0xc0] sm:$0xff]
      %v211 = vld [vmem:[%s169 + $0xc8] sm:$0xf]
      %v212 = vld [vmem:[%s169 + $0xcc] sm:$0xff]
      %v213 = vld [vmem:[%s169 + $0xd4] sm:$0xf]
      %v214 = vld [vmem:[%s169 + $0xd8] sm:$0xff]
      %v215 = vld [vmem:[%s169 + $0xe0] sm:$0xf]
      %v216 = vld [vmem:[%s169 + $0xe4] sm:$0xff]
      %v217 = vld [vmem:[%s169 + $0xec] sm:$0xf]
      %v218 = vld [vmem:[%s169 + $0xf0] sm:$0xff]
      %v219 = vld [vmem:[%s169 + $0xf8] sm:$0xf]
      %v220 = vld [vmem:[%s169 + $0xfc] sm:$0xff]
      %v221 = vld [vmem:[%s169 + $0x104] sm:$0xf]
      %v222 = vld [vmem:[%s169 + $0x108] sm:$0xff]
      %v223 = vld [vmem:[%s169 + $0x110] sm:$0xf]
      %v224 = vld [vmem:[%s169 + $0x114] sm:$0xff]
      %v225 = vld [vmem:[%s169 + $0x11c] sm:$0xf]
      %v226 = vld [vmem:[%s169 + $0x120] sm:$0xff]
      %v227 = vld [vmem:[%s169 + $0x128] sm:$0xf]
      %v228 = vld [vmem:[%s169 + $0x12c] sm:$0xff]
      %v229 = vld [vmem:[%s169 + $0x134] sm:$0xf]
      %v230 = vld [vmem:[%s169 + $0x138] sm:$0xff]
      %v231 = vld [vmem:[%s169 + $0x140] sm:$0xf]
      %v232 = vld [vmem:[%s169 + $0x144] sm:$0xff]
      %v233 = vld [vmem:[%s169 + $0x14c] sm:$0xf]
      %v234 = vld [vmem:[%s169 + $0x150] sm:$0xff]
      %v235 = vld [vmem:[%s169 + $0x158] sm:$0xf]
      %v236 = vld [vmem:[%s169 + $0x15c] sm:$0xff]
      %v237 = vld [vmem:[%s169 + $0x164] sm:$0xf]
      %v238 = vld [vmem:[%s169 + $0x168] sm:$0xff]
      %v239 = vld [vmem:[%s169 + $0x170] sm:$0xf]
      %v240 = vld [vmem:[%s169 + $0x174] sm:$0xff]
      %v241 = vld [vmem:[%s169 + $0x17c] sm:$0xf]
      %v242 = vunpack.c.l.bf16 %v178
      %v243 = vunpack.c.h.bf16 %v178
      %v244 = vunpack.c.l.bf16 %v179
      %v245 = vunpack.c.l.bf16 %v180
      %v246 = vunpack.c.h.bf16 %v180
      %v247 = vunpack.c.l.bf16 %v181
      %v248 = vunpack.c.l.bf16 %v182
      %v249 = vunpack.c.h.bf16 %v182
      %v250 = vunpack.c.l.bf16 %v183
      %v251 = vunpack.c.l.bf16 %v184
      %v252 = vunpack.c.h.bf16 %v184
      %v253 = vunpack.c.l.bf16 %v185
      %v254 = vunpack.c.l.bf16 %v186
      %v255 = vunpack.c.h.bf16 %v186
      %v256 = vunpack.c.l.bf16 %v187
      %v257 = vunpack.c.l.bf16 %v188
      %v258 = vunpack.c.h.bf16 %v188
      %v259 = vunpack.c.l.bf16 %v189
      %v260 = vunpack.c.l.bf16 %v190
      %v261 = vunpack.c.h.bf16 %v190
      %v262 = vunpack.c.l.bf16 %v191
      %v263 = vunpack.c.l.bf16 %v192
      %v264 = vunpack.c.h.bf16 %v192
      %v265 = vunpack.c.l.bf16 %v193
      %v266 = vunpack.c.l.bf16 %v194
      %v267 = vunpack.c.h.bf16 %v194
      %v268 = vunpack.c.l.bf16 %v195
      %v269 = vunpack.c.l.bf16 %v196
      %v270 = vunpack.c.h.bf16 %v196
      %v271 = vunpack.c.l.bf16 %v197
      %v272 = vunpack.c.l.bf16 %v198
      %v273 = vunpack.c.h.bf16 %v198
      %v274 = vunpack.c.l.bf16 %v199
      %v275 = vunpack.c.l.bf16 %v200
      %v276 = vunpack.c.h.bf16 %v200
      %v277 = vunpack.c.l.bf16 %v201
      %v278 = vunpack.c.l.bf16 %v202
      %v279 = vunpack.c.h.bf16 %v202
      %v280 = vunpack.c.l.bf16 %v203
      %v281 = vunpack.c.l.bf16 %v204
      %v282 = vunpack.c.h.bf16 %v204
      %v283 = vunpack.c.l.bf16 %v205
      %v284 = vunpack.c.l.bf16 %v206
      %v285 = vunpack.c.h.bf16 %v206
      %v286 = vunpack.c.l.bf16 %v207
      %v287 = vunpack.c.l.bf16 %v208
      %v288 = vunpack.c.h.bf16 %v208
      %v289 = vunpack.c.l.bf16 %v209
      %v290 = vunpack.c.l.bf16 %v210
      %v291 = vunpack.c.h.bf16 %v210
      %v292 = vunpack.c.l.bf16 %v211
      %v293 = vunpack.c.l.bf16 %v212
      %v294 = vunpack.c.h.bf16 %v212
      %v295 = vunpack.c.l.bf16 %v213
      %v296 = vunpack.c.l.bf16 %v214
      %v297 = vunpack.c.h.bf16 %v214
      %v298 = vunpack.c.l.bf16 %v215
      %v299 = vunpack.c.l.bf16 %v216
      %v300 = vunpack.c.h.bf16 %v216
      %v301 = vunpack.c.l.bf16 %v217
      %v302 = vunpack.c.l.bf16 %v218
      %v303 = vunpack.c.h.bf16 %v218
      %v304 = vunpack.c.l.bf16 %v219
      %v305 = vunpack.c.l.bf16 %v220
      %v306 = vunpack.c.h.bf16 %v220
      %v307 = vunpack.c.l.bf16 %v221
      %v308 = vunpack.c.l.bf16 %v222
      %v309 = vunpack.c.h.bf16 %v222
      %v310 = vunpack.c.l.bf16 %v223
      %v311 = vunpack.c.l.bf16 %v224
      %v312 = vunpack.c.h.bf16 %v224
      %v313 = vunpack.c.l.bf16 %v225
      %v314 = vunpack.c.l.bf16 %v226
      %v315 = vunpack.c.h.bf16 %v226
      %v316 = vunpack.c.l.bf16 %v227
      %v317 = vunpack.c.l.bf16 %v228
      %v318 = vunpack.c.h.bf16 %v228
      %v319 = vunpack.c.l.bf16 %v229
      %v320 = vunpack.c.l.bf16 %v230
      %v321 = vunpack.c.h.bf16 %v230
      %v322 = vunpack.c.l.bf16 %v231
      %v323 = vunpack.c.l.bf16 %v232
      %v324 = vunpack.c.h.bf16 %v232
      %v325 = vunpack.c.l.bf16 %v233
      %v326 = vunpack.c.l.bf16 %v234
      %v327 = vunpack.c.h.bf16 %v234
      %v328 = vunpack.c.l.bf16 %v235
      %v329 = vunpack.c.l.bf16 %v236
      %v330 = vunpack.c.h.bf16 %v236
      %v331 = vunpack.c.l.bf16 %v237
      %v332 = vunpack.c.l.bf16 %v238
      %v333 = vunpack.c.h.bf16 %v238
      %v334 = vunpack.c.l.bf16 %v239
      %v335 = vunpack.c.l.bf16 %v240
      %v336 = vunpack.c.h.bf16 %v240
      %v337 = vunpack.c.l.bf16 %v241
      %v338 = vmax.f32 %v242, 0.0
      %v339 = vmax.f32 %v243, 0.0
      %v340 = vmax.f32 %v244, 0.0
      %v341 = vmax.f32 %v245, 0.0
      %v342 = vmax.f32 %v246, 0.0
      %v343 = vmax.f32 %v247, 0.0
      %v344 = vmax.f32 %v248, 0.0
      %v345 = vmax.f32 %v249, 0.0
      %v346 = vmax.f32 %v250, 0.0
      %v347 = vmax.f32 %v251, 0.0
      %v348 = vmax.f32 %v252, 0.0
      %v349 = vmax.f32 %v253, 0.0
      %v350 = vmax.f32 %v254, 0.0
      %v351 = vmax.f32 %v255, 0.0
      %v352 = vmax.f32 %v256, 0.0
      %v353 = vmax.f32 %v257, 0.0
      %v354 = vmax.f32 %v258, 0.0
      %v355 = vmax.f32 %v259, 0.0
      %v356 = vmax.f32 %v260, 0.0
      %v357 = vmax.f32 %v261, 0.0
      %v358 = vmax.f32 %v262, 0.0
      %v359 = vmax.f32 %v263, 0.0
      %v360 = vmax.f32 %v264, 0.0
      %v361 = vmax.f32 %v265, 0.0
      %v362 = vmax.f32 %v266, 0.0
      %v363 = vmax.f32 %v267, 0.0
      %v364 = vmax.f32 %v268, 0.0
      %v365 = vmax.f32 %v269, 0.0
      %v366 = vmax.f32 %v270, 0.0
      %v367 = vmax.f32 %v271, 0.0
      %v368 = vmax.f32 %v272, 0.0
      %v369 = vmax.f32 %v273, 0.0
      %v370 = vmax.f32 %v274, 0.0
      %v371 = vmax.f32 %v275, 0.0
      %v372 = vmax.f32 %v276, 0.0
      %v373 = vmax.f32 %v277, 0.0
      %v374 = vmax.f32 %v278, 0.0
      %v375 = vmax.f32 %v279, 0.0
      %v376 = vmax.f32 %v280, 0.0
      %v377 = vmax.f32 %v281, 0.0
      %v378 = vmax.f32 %v282, 0.0
      %v379 = vmax.f32 %v283, 0.0
      %v380 = vmax.f32 %v284, 0.0
      %v381 = vmax.f32 %v285, 0.0
      %v382 = vmax.f32 %v286, 0.0
      %v383 = vmax.f32 %v287, 0.0
      %v384 = vmax.f32 %v288, 0.0
      %v385 = vmax.f32 %v289, 0.0
      %v386 = vmax.f32 %v290, 0.0
      %v387 = vmax.f32 %v291, 0.0
      %v388 = vmax.f32 %v292, 0.0
      %v389 = vmax.f32 %v293, 0.0
      %v390 = vmax.f32 %v294, 0.0
      %v391 = vmax.f32 %v295, 0.0
      %v392 = vmax.f32 %v296, 0.0
      %v393 = vmax.f32 %v297, 0.0
      %v394 = vmax.f32 %v298, 0.0
      %v395 = vmax.f32 %v299, 0.0
      %v396 = vmax.f32 %v300, 0.0
      %v397 = vmax.f32 %v301, 0.0
      %v398 = vmax.f32 %v302, 0.0
      %v399 = vmax.f32 %v303, 0.0
      %v400 = vmax.f32 %v304, 0.0
      %v401 = vmax.f32 %v305, 0.0
      %v402 = vmax.f32 %v306, 0.0
      %v403 = vmax.f32 %v307, 0.0
      %v404 = vmax.f32 %v308, 0.0
      %v405 = vmax.f32 %v309, 0.0
      %v406 = vmax.f32 %v310, 0.0
      %v407 = vmax.f32 %v311, 0.0
      %v408 = vmax.f32 %v312, 0.0
      %v409 = vmax.f32 %v313, 0.0
      %v410 = vmax.f32 %v314, 0.0
      %v411 = vmax.f32 %v315, 0.0
      %v412 = vmax.f32 %v316, 0.0
      %v413 = vmax.f32 %v317, 0.0
      %v414 = vmax.f32 %v318, 0.0
      %v415 = vmax.f32 %v319, 0.0
      %v416 = vmax.f32 %v320, 0.0
      %v417 = vmax.f32 %v321, 0.0
      %v418 = vmax.f32 %v322, 0.0
      %v419 = vmax.f32 %v323, 0.0
      %v420 = vmax.f32 %v324, 0.0
      %v421 = vmax.f32 %v325, 0.0
      %v422 = vmax.f32 %v326, 0.0
      %v423 = vmax.f32 %v327, 0.0
      %v424 = vmax.f32 %v328, 0.0
      %v425 = vmax.f32 %v329, 0.0
      %v426 = vmax.f32 %v330, 0.0
      %v427 = vmax.f32 %v331, 0.0
      %v428 = vmax.f32 %v332, 0.0
      %v429 = vmax.f32 %v333, 0.0
      %v430 = vmax.f32 %v334, 0.0
      %v431 = vmax.f32 %v335, 0.0
      %v432 = vmax.f32 %v336, 0.0
      %v433 = vmax.f32 %v337, 0.0
      %v434 = vpack.c.bf16 %v341, %v338
      %v435 = vpack.c.bf16 %v342, %v339
      %v436 = vpack.c.bf16 %v343, %v340
      %v437 = vpack.c.bf16 %v347, %v344
      %v438 = vpack.c.bf16 %v348, %v345
      %v439 = vpack.c.bf16 %v349, %v346
      %v440 = vpack.c.bf16 %v353, %v350
      %v441 = vpack.c.bf16 %v354, %v351
      %v442 = vpack.c.bf16 %v355, %v352
      %v443 = vpack.c.bf16 %v359, %v356
      %v444 = vpack.c.bf16 %v360, %v357
      %v445 = vpack.c.bf16 %v361, %v358
      %v446 = vpack.c.bf16 %v365, %v362
      %v447 = vpack.c.bf16 %v366, %v363
      %v448 = vpack.c.bf16 %v367, %v364
      %v449 = vpack.c.bf16 %v371, %v368
      %v450 = vpack.c.bf16 %v372, %v369
      %v451 = vpack.c.bf16 %v373, %v370
      %v452 = vpack.c.bf16 %v377, %v374
      %v453 = vpack.c.bf16 %v378, %v375
      %v454 = vpack.c.bf16 %v379, %v376
      %v455 = vpack.c.bf16 %v383, %v380
      %v456 = vpack.c.bf16 %v384, %v381
      %v457 = vpack.c.bf16 %v385, %v382
      %v458 = vpack.c.bf16 %v389, %v386
      %v459 = vpack.c.bf16 %v390, %v387
      %v460 = vpack.c.bf16 %v391, %v388
      %v461 = vpack.c.bf16 %v395, %v392
      %v462 = vpack.c.bf16 %v396, %v393
      %v463 = vpack.c.bf16 %v397, %v394
      %v464 = vpack.c.bf16 %v401, %v398
      %v465 = vpack.c.bf16 %v402, %v399
      %v466 = vpack.c.bf16 %v403, %v400
      %v467 = vpack.c.bf16 %v407, %v404
      %v468 = vpack.c.bf16 %v408, %v405
      %v469 = vpack.c.bf16 %v409, %v406
      %v470 = vpack.c.bf16 %v413, %v410
      %v471 = vpack.c.bf16 %v414, %v411
      %v472 = vpack.c.bf16 %v415, %v412
      %v473 = vpack.c.bf16 %v419, %v416
      %v474 = vpack.c.bf16 %v420, %v417
      %v475 = vpack.c.bf16 %v421, %v418
      %v476 = vpack.c.bf16 %v425, %v422
      %v477 = vpack.c.bf16 %v426, %v423
      %v478 = vpack.c.bf16 %v427, %v424
      %v479 = vpack.c.bf16 %v431, %v428
      %v480 = vpack.c.bf16 %v432, %v429
      %v481 = vpack.c.bf16 %v433, %v430
      %v482 = vld [vmem:[%s1] sm:$0xf]
      %v483 = vld [vmem:[%s1 + $0x4] sm:$0xf]
      %v484 = vld [vmem:[%s1 + $0x8] sm:$0xf]
      %v485 = vld [vmem:[%s1 + $0xc] sm:$0xf]
      %v486 = vld [vmem:[%s1 + $0x10] sm:$0xf]
      %v487 = vld [vmem:[%s1 + $0x14] sm:$0xf]
      %v488 = vld [vmem:[%s1 + $0x18] sm:$0xf]
      %v489 = vld [vmem:[%s1 + $0x1c] sm:$0xf]
      %v490 = vld [vmem:[%s1 + $0x20] sm:$0xf]
      %v491 = vld [vmem:[%s1 + $0x24] sm:$0xf]
      %v492 = vld [vmem:[%s1 + $0x28] sm:$0xf]
      %v493 = vld [vmem:[%s1 + $0x2c] sm:$0xf]
      %v494 = vld [vmem:[%s1 + $0x30] sm:$0xf]
      %v495 = vld [vmem:[%s1 + $0x34] sm:$0xf]
      %v496 = vld [vmem:[%s1 + $0x38] sm:$0xf]
      %v497 = vld [vmem:[%s1 + $0x3c] sm:$0xf]
      %v498 = vld [vmem:[%s1 + $0x40] sm:$0xf]
      %v499 = vld [vmem:[%s1 + $0x44] sm:$0xf]
      %v500 = vld [vmem:[%s1 + $0x48] sm:$0xf]
      %v501 = vld [vmem:[%s1 + $0x4c] sm:$0xf]
      %v502 = vld [vmem:[%s1 + $0x50] sm:$0xf]
      %v503 = vld [vmem:[%s1 + $0x54] sm:$0xf]
      %v504 = vld [vmem:[%s1 + $0x58] sm:$0xf]
      %v505 = vld [vmem:[%s1 + $0x5c] sm:$0xf]
      %v506 = vld [vmem:[%s1 + $0x60] sm:$0xf]
      %v507 = vld [vmem:[%s1 + $0x64] sm:$0xf]
      %v508 = vld [vmem:[%s1 + $0x68] sm:$0xf]
      %v509 = vld [vmem:[%s1 + $0x6c] sm:$0xf]
      %v510 = vld [vmem:[%s1 + $0x70] sm:$0xf]
      %v511 = vld [vmem:[%s1 + $0x74] sm:$0xf]
      %v512 = vld [vmem:[%s1 + $0x78] sm:$0xf]
      %v513 = vld [vmem:[%s1 + $0x7c] sm:$0xf]
      %v514 = vld [vmem:[%s1 + $0x80] sm:$0xf]
      %v515 = vld [vmem:[%s1 + $0x84] sm:$0xf]
      %v516 = vld [vmem:[%s1 + $0x88] sm:$0xf]
      %v517 = vld [vmem:[%s1 + $0x8c] sm:$0xf]
      %v518 = vld [vmem:[%s2] sm:$0x1]
      %v520 = vperm.slane %v518, 0
      %v558 = vunpack.c.l.b16 %v482
      %v559 = vunpack.c.l.b16 %v483
      %v560 = vunpack.c.l.b16 %v484
      %v561 = vunpack.c.l.b16 %v485
      %v562 = vunpack.c.l.b16 %v486
      %v563 = vunpack.c.l.b16 %v487
      %v564 = vunpack.c.l.b16 %v488
      %v565 = vunpack.c.l.b16 %v489
      %v566 = vunpack.c.l.b16 %v490
      %v567 = vunpack.c.l.b16 %v491
      %v568 = vunpack.c.l.b16 %v492
      %v569 = vunpack.c.l.b16 %v493
      %v570 = vunpack.c.l.b16 %v494
      %v571 = vunpack.c.l.b16 %v495
      %v572 = vunpack.c.l.b16 %v496
      %v573 = vunpack.c.l.b16 %v497
      %v574 = vunpack.c.l.b16 %v498
      %v575 = vunpack.c.l.b16 %v499
      %v576 = vunpack.c.l.b16 %v500
      %v577 = vunpack.c.l.b16 %v501
      %v578 = vunpack.c.l.b16 %v502
      %v579 = vunpack.c.l.b16 %v503
      %v580 = vunpack.c.l.b16 %v504
      %v581 = vunpack.c.l.b16 %v505
      %v582 = vunpack.c.l.b16 %v506
      %v583 = vunpack.c.l.b16 %v507
      %v584 = vunpack.c.l.b16 %v508
      %v585 = vunpack.c.l.b16 %v509
      %v586 = vunpack.c.l.b16 %v510
      %v587 = vunpack.c.l.b16 %v511
      %v588 = vunpack.c.l.b16 %v512
      %v589 = vunpack.c.l.b16 %v513
      %v590 = vunpack.c.l.b16 %v514
      %v591 = vunpack.c.l.b16 %v515
      %v592 = vunpack.c.l.b16 %v516
      %v593 = vunpack.c.l.b16 %v517
      %v594 = vpack.c.b16 %v559, %v558
      %v595 = vpack.c.b16 %v561, %v560
      %v596 = vpack.c.b16 %v563, %v562
      %v597 = vpack.c.b16 %v565, %v564
      %v598 = vpack.c.b16 %v567, %v566
      %v599 = vpack.c.b16 %v569, %v568
      %v600 = vpack.c.b16 %v571, %v570
      %v601 = vpack.c.b16 %v573, %v572
      %v602 = vpack.c.b16 %v575, %v574
      %v603 = vpack.c.b16 %v577, %v576
      %v604 = vpack.c.b16 %v579, %v578
      %v605 = vpack.c.b16 %v581, %v580
      %v606 = vpack.c.b16 %v583, %v582
      %v607 = vpack.c.b16 %v585, %v584
      %v608 = vpack.c.b16 %v587, %v586
      %v609 = vpack.c.b16 %v589, %v588
      %v610 = vpack.c.b16 %v591, %v590
      %v611 = vpack.c.b16 %v593, %v592
      %vm630 = vcmask 261120
      %v632 = vsel %vm630, %v436, 0
      %v635 = vsel %vm630, %v439, 0
      %v638 = vsel %vm630, %v442, 0
      %v641 = vsel %vm630, %v445, 0
      %v644 = vsel %vm630, %v448, 0
      %v647 = vsel %vm630, %v451, 0
      %v650 = vsel %vm630, %v454, 0
      %v653 = vsel %vm630, %v457, 0
      %v656 = vsel %vm630, %v460, 0
      %v659 = vsel %vm630, %v463, 0
      %v662 = vsel %vm630, %v466, 0
      %v665 = vsel %vm630, %v469, 0
      %v668 = vsel %vm630, %v472, 0
      %v671 = vsel %vm630, %v475, 0
      %v674 = vsel %vm630, %v478, 0
      %v677 = vsel %vm630, %v481, 0
      %679 = vmatpush.bf16.msra.mxu0 %v601
      %680 = vmatpush.bf16.msra.mxu0 %v600
      %681 = vmatpush.bf16.msra.mxu0 %v599
      %682 = vmatpush.bf16.msra.mxu0 %v598
      %683 = vmatpush.bf16.msra.mxu0 %v597
      %684 = vmatpush.bf16.msra.mxu0 %v596
      %685 = vmatpush.bf16.msra.mxu0 %v595
      %686 = vmatpush.bf16.msra.mxu0 %v594
      %687 = vmatmul.bf16.gmra.mxu0 %v434
      %v688 = vpop.f32.mrf.mxu0
      %v689 = vadd.f32 %v520, %v688
      %v690 = vpop.f32.mrf.mxu0
      %v691 = vadd.f32 %v520, %v690
      %692 = vmatmul.bf16.gmra.mxu0 %v437
      %v693 = vpop.f32.mrf.mxu0
      %v694 = vadd.f32 %v520, %v693
      %v695 = vpop.f32.mrf.mxu0
      %v696 = vadd.f32 %v520, %v695
      %697 = vmatmul.bf16.gmra.mxu0 %v440
      %v698 = vpop.f32.mrf.mxu0
      %v699 = vadd.f32 %v520, %v698
      %v700 = vpop.f32.mrf.mxu0
      %v701 = vadd.f32 %v520, %v700
      %702 = vmatmul.bf16.gmra.mxu0 %v443
      %v703 = vpop.f32.mrf.mxu0
      %v704 = vadd.f32 %v520, %v703
      %v705 = vpop.f32.mrf.mxu0
      %v706 = vadd.f32 %v520, %v705
      %707 = vmatmul.bf16.gmra.mxu0 %v446
      %v708 = vpop.f32.mrf.mxu0
      %v709 = vadd.f32 %v520, %v708
      %v710 = vpop.f32.mrf.mxu0
      %v711 = vadd.f32 %v520, %v710
      %712 = vmatmul.bf16.gmra.mxu0 %v449
      %v713 = vpop.f32.mrf.mxu0
      %v714 = vadd.f32 %v520, %v713
      %v715 = vpop.f32.mrf.mxu0
      %v716 = vadd.f32 %v520, %v715
      %717 = vmatmul.bf16.gmra.mxu0 %v452
      %v718 = vpop.f32.mrf.mxu0
      %v719 = vadd.f32 %v520, %v718
      %v720 = vpop.f32.mrf.mxu0
      %v721 = vadd.f32 %v520, %v720
      %722 = vmatmul.bf16.gmra.mxu0 %v455
      %v723 = vpop.f32.mrf.mxu0
      %v724 = vadd.f32 %v520, %v723
      %v725 = vpop.f32.mrf.mxu0
      %v726 = vadd.f32 %v520, %v725
      %727 = vmatmul.bf16.gmra.mxu0 %v458
      %v728 = vpop.f32.mrf.mxu0
      %v729 = vadd.f32 %v520, %v728
      %v730 = vpop.f32.mrf.mxu0
      %v731 = vadd.f32 %v520, %v730
      %732 = vmatmul.bf16.gmra.mxu0 %v461
      %v733 = vpop.f32.mrf.mxu0
      %v734 = vadd.f32 %v520, %v733
      %v735 = vpop.f32.mrf.mxu0
      %v736 = vadd.f32 %v520, %v735
      %737 = vmatmul.bf16.gmra.mxu0 %v464
      %v738 = vpop.f32.mrf.mxu0
      %v739 = vadd.f32 %v520, %v738
      %v740 = vpop.f32.mrf.mxu0
      %v741 = vadd.f32 %v520, %v740
      %742 = vmatmul.bf16.gmra.mxu0 %v467
      %v743 = vpop.f32.mrf.mxu0
      %v744 = vadd.f32 %v520, %v743
      %v745 = vpop.f32.mrf.mxu0
      %v746 = vadd.f32 %v520, %v745
      %747 = vmatmul.bf16.gmra.mxu0 %v470
      %v748 = vpop.f32.mrf.mxu0
      %v749 = vadd.f32 %v520, %v748
      %v750 = vpop.f32.mrf.mxu0
      %v751 = vadd.f32 %v520, %v750
      %752 = vmatmul.bf16.gmra.mxu0 %v473
      %v753 = vpop.f32.mrf.mxu0
      %v754 = vadd.f32 %v520, %v753
      %v755 = vpop.f32.mrf.mxu0
      %v756 = vadd.f32 %v520, %v755
      %757 = vmatmul.bf16.gmra.mxu0 %v476
      %v758 = vpop.f32.mrf.mxu0
      %v759 = vadd.f32 %v520, %v758
      %v760 = vpop.f32.mrf.mxu0
      %v761 = vadd.f32 %v520, %v760
      %762 = vmatmul.bf16.gmra.mxu0 %v479
      %v763 = vpop.f32.mrf.mxu0
      %v764 = vadd.f32 %v520, %v763
      %v765 = vpop.f32.mrf.mxu0
      %v766 = vadd.f32 %v520, %v765
      %767 = vdwg.mxu0
      %768 = vmatpush.bf16.msra.mxu0 %v609
      %769 = vmatpush.bf16.msra.mxu0 %v608
      %770 = vmatpush.bf16.msra.mxu0 %v607
      %771 = vmatpush.bf16.msra.mxu0 %v606
      %772 = vmatpush.bf16.msra.mxu0 %v605
      %773 = vmatpush.bf16.msra.mxu0 %v604
      %774 = vmatpush.bf16.msra.mxu0 %v603
      %775 = vmatpush.bf16.msra.mxu0 %v602
      %776 = vmatmul.bf16.gmra.mxu0 %v435
      %v777 = vpop.f32.mrf.mxu0
      %v778 = vadd.f32 %v689, %v777
      %v779 = vpop.f32.mrf.mxu0
      %v780 = vadd.f32 %v691, %v779
      %781 = vmatmul.bf16.gmra.mxu0 %v438
      %v782 = vpop.f32.mrf.mxu0
      %v783 = vadd.f32 %v694, %v782
      %v784 = vpop.f32.mrf.mxu0
      %v785 = vadd.f32 %v696, %v784
      %786 = vmatmul.bf16.gmra.mxu0 %v441
      %v787 = vpop.f32.mrf.mxu0
      %v788 = vadd.f32 %v699, %v787
      %v789 = vpop.f32.mrf.mxu0
      %v790 = vadd.f32 %v701, %v789
      %791 = vmatmul.bf16.gmra.mxu0 %v444
      %v792 = vpop.f32.mrf.mxu0
      %v793 = vadd.f32 %v704, %v792
      %v794 = vpop.f32.mrf.mxu0
      %v795 = vadd.f32 %v706, %v794
      %796 = vmatmul.bf16.gmra.mxu0 %v447
      %v797 = vpop.f32.mrf.mxu0
      %v798 = vadd.f32 %v709, %v797
      %v799 = vpop.f32.mrf.mxu0
      %v800 = vadd.f32 %v711, %v799
      %801 = vmatmul.bf16.gmra.mxu0 %v450
      %v802 = vpop.f32.mrf.mxu0
      %v803 = vadd.f32 %v714, %v802
      %v804 = vpop.f32.mrf.mxu0
      %v805 = vadd.f32 %v716, %v804
      %806 = vmatmul.bf16.gmra.mxu0 %v453
      %v807 = vpop.f32.mrf.mxu0
      %v808 = vadd.f32 %v719, %v807
      %v809 = vpop.f32.mrf.mxu0
      %v810 = vadd.f32 %v721, %v809
      %811 = vmatmul.bf16.gmra.mxu0 %v456
      %v812 = vpop.f32.mrf.mxu0
      %v813 = vadd.f32 %v724, %v812
      %v814 = vpop.f32.mrf.mxu0
      %v815 = vadd.f32 %v726, %v814
      %816 = vmatmul.bf16.gmra.mxu0 %v459
      %v817 = vpop.f32.mrf.mxu0
      %v818 = vadd.f32 %v729, %v817
      %v819 = vpop.f32.mrf.mxu0
      %v820 = vadd.f32 %v731, %v819
      %821 = vmatmul.bf16.gmra.mxu0 %v462
      %v822 = vpop.f32.mrf.mxu0
      %v823 = vadd.f32 %v734, %v822
      %v824 = vpop.f32.mrf.mxu0
      %v825 = vadd.f32 %v736, %v824
      %826 = vmatmul.bf16.gmra.mxu0 %v465
      %v827 = vpop.f32.mrf.mxu0
      %v828 = vadd.f32 %v739, %v827
      %v829 = vpop.f32.mrf.mxu0
      %v830 = vadd.f32 %v741, %v829
      %831 = vmatmul.bf16.gmra.mxu0 %v468
      %v832 = vpop.f32.mrf.mxu0
      %v833 = vadd.f32 %v744, %v832
      %v834 = vpop.f32.mrf.mxu0
      %v835 = vadd.f32 %v746, %v834
      %836 = vmatmul.bf16.gmra.mxu0 %v471
      %v837 = vpop.f32.mrf.mxu0
      %v838 = vadd.f32 %v749, %v837
      %v839 = vpop.f32.mrf.mxu0
      %v840 = vadd.f32 %v751, %v839
      %841 = vmatmul.bf16.gmra.mxu0 %v474
      %v842 = vpop.f32.mrf.mxu0
      %v843 = vadd.f32 %v754, %v842
      %v844 = vpop.f32.mrf.mxu0
      %v845 = vadd.f32 %v756, %v844
      %846 = vmatmul.bf16.gmra.mxu0 %v477
      %v847 = vpop.f32.mrf.mxu0
      %v848 = vadd.f32 %v759, %v847
      %v849 = vpop.f32.mrf.mxu0
      %v850 = vadd.f32 %v761, %v849
      %851 = vmatmul.bf16.gmra.mxu0 %v480
      %v852 = vpop.f32.mrf.mxu0
      %v853 = vadd.f32 %v764, %v852
      %v854 = vpop.f32.mrf.mxu0
      %v855 = vadd.f32 %v766, %v854
      %856 = vdwg.mxu0
      %857 = vmatpush.bf16.msra.mxu0 0
      %858 = vmatpush.bf16.msra.mxu0 0
      %859 = vmatpush.bf16.msra.mxu0 0
      %860 = vmatpush.bf16.msra.mxu0 0
      %861 = vmatpush.bf16.msra.mxu0 0
      %862 = vmatpush.bf16.msra.mxu0 0
      %863 = vmatpush.bf16.msra.mxu0 %v611
      %864 = vmatpush.bf16.msra.mxu0 %v610
      %865 = vmatmul.bf16.gmra.mxu0 %v632
      %v866 = vpop.f32.mrf.mxu0
      %v867 = vadd.f32 %v778, %v866
      %v868 = vpop.f32.mrf.mxu0
      %v869 = vadd.f32 %v780, %v868
      %870 = vmatmul.bf16.gmra.mxu0 %v635
      %v871 = vpop.f32.mrf.mxu0
      %v872 = vadd.f32 %v783, %v871
      %v873 = vpop.f32.mrf.mxu0
      %v874 = vadd.f32 %v785, %v873
      %875 = vmatmul.bf16.gmra.mxu0 %v638
      %v876 = vpop.f32.mrf.mxu0
      %v877 = vadd.f32 %v788, %v876
      %v878 = vpop.f32.mrf.mxu0
      %v879 = vadd.f32 %v790, %v878
      %880 = vmatmul.bf16.gmra.mxu0 %v641
      %v881 = vpop.f32.mrf.mxu0
      %v882 = vadd.f32 %v793, %v881
      %v883 = vpop.f32.mrf.mxu0
      %v884 = vadd.f32 %v795, %v883
      %885 = vmatmul.bf16.gmra.mxu0 %v644
      %v886 = vpop.f32.mrf.mxu0
      %v887 = vadd.f32 %v798, %v886
      %v888 = vpop.f32.mrf.mxu0
      %v889 = vadd.f32 %v800, %v888
      %890 = vmatmul.bf16.gmra.mxu0 %v647
      %v891 = vpop.f32.mrf.mxu0
      %v892 = vadd.f32 %v803, %v891
      %v893 = vpop.f32.mrf.mxu0
      %v894 = vadd.f32 %v805, %v893
      %895 = vmatmul.bf16.gmra.mxu0 %v650
      %v896 = vpop.f32.mrf.mxu0
      %v897 = vadd.f32 %v808, %v896
      %v898 = vpop.f32.mrf.mxu0
      %v899 = vadd.f32 %v810, %v898
      %900 = vmatmul.bf16.gmra.mxu0 %v653
      %v901 = vpop.f32.mrf.mxu0
      %v902 = vadd.f32 %v813, %v901
      %v903 = vpop.f32.mrf.mxu0
      %v904 = vadd.f32 %v815, %v903
      %905 = vmatmul.bf16.gmra.mxu0 %v656
      %v906 = vpop.f32.mrf.mxu0
      %v907 = vadd.f32 %v818, %v906
      %v908 = vpop.f32.mrf.mxu0
      %v909 = vadd.f32 %v820, %v908
      %910 = vmatmul.bf16.gmra.mxu0 %v659
      %v911 = vpop.f32.mrf.mxu0
      %v912 = vadd.f32 %v823, %v911
      %v913 = vpop.f32.mrf.mxu0
      %v914 = vadd.f32 %v825, %v913
      %915 = vmatmul.bf16.gmra.mxu0 %v662
      %v916 = vpop.f32.mrf.mxu0
      %v917 = vadd.f32 %v828, %v916
      %v918 = vpop.f32.mrf.mxu0
      %v919 = vadd.f32 %v830, %v918
      %920 = vmatmul.bf16.gmra.mxu0 %v665
      %v921 = vpop.f32.mrf.mxu0
      %v922 = vadd.f32 %v833, %v921
      %v923 = vpop.f32.mrf.mxu0
      %v924 = vadd.f32 %v835, %v923
      %925 = vmatmul.bf16.gmra.mxu0 %v668
      %v926 = vpop.f32.mrf.mxu0
      %v927 = vadd.f32 %v838, %v926
      %v928 = vpop.f32.mrf.mxu0
      %v929 = vadd.f32 %v840, %v928
      %930 = vmatmul.bf16.gmra.mxu0 %v671
      %v931 = vpop.f32.mrf.mxu0
      %v932 = vadd.f32 %v843, %v931
      %v933 = vpop.f32.mrf.mxu0
      %v934 = vadd.f32 %v845, %v933
      %935 = vmatmul.bf16.gmra.mxu0 %v674
      %v936 = vpop.f32.mrf.mxu0
      %v937 = vadd.f32 %v848, %v936
      %v938 = vpop.f32.mrf.mxu0
      %v939 = vadd.f32 %v850, %v938
      %940 = vmatmul.bf16.gmra.mxu0 %v677
      %v941 = vpop.f32.mrf.mxu0
      %v942 = vadd.f32 %v853, %v941
      %v943 = vpop.f32.mrf.mxu0
      %v944 = vadd.f32 %v855, %v943
      %945 = vdwg.mxu0
      %946 = vst.msk [vmem:[%s175] sm:$0xff] %vm630, %v867
      %947 = vst.msk [vmem:[%s175 + $0x8] sm:$0xff] %vm630, %v869
      %948 = vst.msk [vmem:[%s175 + $0x10] sm:$0xff] %vm630, %v872
      %949 = vst.msk [vmem:[%s175 + $0x18] sm:$0xff] %vm630, %v874
      %950 = vst.msk [vmem:[%s175 + $0x20] sm:$0xff] %vm630, %v877
      %951 = vst.msk [vmem:[%s175 + $0x28] sm:$0xff] %vm630, %v879
      %952 = vst.msk [vmem:[%s175 + $0x30] sm:$0xff] %vm630, %v882
      %953 = vst.msk [vmem:[%s175 + $0x38] sm:$0xff] %vm630, %v884
      %954 = vst.msk [vmem:[%s175 + $0x40] sm:$0xff] %vm630, %v887
      %955 = vst.msk [vmem:[%s175 + $0x48] sm:$0xff] %vm630, %v889
      %956 = vst.msk [vmem:[%s175 + $0x50] sm:$0xff] %vm630, %v892
      %957 = vst.msk [vmem:[%s175 + $0x58] sm:$0xff] %vm630, %v894
      %958 = vst.msk [vmem:[%s175 + $0x60] sm:$0xff] %vm630, %v897
      %959 = vst.msk [vmem:[%s175 + $0x68] sm:$0xff] %vm630, %v899
      %960 = vst.msk [vmem:[%s175 + $0x70] sm:$0xff] %vm630, %v902
      %961 = vst.msk [vmem:[%s175 + $0x78] sm:$0xff] %vm630, %v904
      %962 = vst.msk [vmem:[%s175 + $0x80] sm:$0xff] %vm630, %v907
      %963 = vst.msk [vmem:[%s175 + $0x88] sm:$0xff] %vm630, %v909
      %964 = vst.msk [vmem:[%s175 + $0x90] sm:$0xff] %vm630, %v912
      %965 = vst.msk [vmem:[%s175 + $0x98] sm:$0xff] %vm630, %v914
      %966 = vst.msk [vmem:[%s175 + $0xa0] sm:$0xff] %vm630, %v917
      %967 = vst.msk [vmem:[%s175 + $0xa8] sm:$0xff] %vm630, %v919
      %968 = vst.msk [vmem:[%s175 + $0xb0] sm:$0xff] %vm630, %v922
      %969 = vst.msk [vmem:[%s175 + $0xb8] sm:$0xff] %vm630, %v924
      %970 = vst.msk [vmem:[%s175 + $0xc0] sm:$0xff] %vm630, %v927
      %971 = vst.msk [vmem:[%s175 + $0xc8] sm:$0xff] %vm630, %v929
      %972 = vst.msk [vmem:[%s175 + $0xd0] sm:$0xff] %vm630, %v932
      %973 = vst.msk [vmem:[%s175 + $0xd8] sm:$0xff] %vm630, %v934
      %974 = vst.msk [vmem:[%s175 + $0xe0] sm:$0xff] %vm630, %v937
      %975 = vst.msk [vmem:[%s175 + $0xe8] sm:$0xff] %vm630, %v939
      %976 = vst.msk [vmem:[%s175 + $0xf0] sm:$0xff] %vm630, %v942
      %977 = vst.msk [vmem:[%s175 + $0xf8] sm:$0xff] %vm630, %v944
      %s978 = smul.u32 32, %s14
      %p979 = scmp.lt.s32.totalorder %s978, 63
      %s980 = scalar_select %p979, %s978, 63
      %s981 = smul.addr %s980, 8
      %s982 = scalar_lea.vmem %s3, %s981
      // Predicated region
      $region33: #{g_unet_add_all_forward.22} parent=31 // pred_check
        %p983 = pneg %p100
      $region34: #{g_unet_add_all_forward.22} parent=31 // pred_check_branch
        %985 = sbr.rel (%p983) target = $region36
      $region35: #{g_unet_add_all_forward.22} parent=31 // pred_region
        %s986 = smul.u32 32, %s14
      $region36: #{g_unet_add_all_forward.22} parent=31 // pred_fallthru
        _
    $region32: #{g_unet_add_all_forward.22} parent=5 // pred_fallthru
      _
    %p987 = scmp.le.s32.totalorder 2, %s9
    // Predicated region
    $region37: #{g_unet_add_all_forward.22} parent=5 // pred_check
      %p988 = pneg %p987
    $region38: #{g_unet_add_all_forward.22} parent=5 // pred_check_branch
      %990 = sbr.rel (%p988) target = $region40
    $region39: #{g_unet_add_all_forward.22} parent=5 // pred_region
      %s991 = ssub.s32 %s9, 2
      // Predicated region
      $region41: #{g_unet_add_all_forward.22} parent=39 // pred_check
        %p992 = pneg %p106
      $region42: #{g_unet_add_all_forward.22} parent=39 // pred_check_branch
        %994 = sbr.rel (%p992) target = $region44
      $region43: #{g_unet_add_all_forward.22} parent=39 // pred_region
        %s995 = smul.u32 32, %s15
        %p996 = scmp.lt.s32.totalorder %s995, 63
        %s997 = scalar_select %p996, %s995, 63
        %s998 = smul.addr %s997, 8
        %s999 = scalar_lea.vmem %s3, %s998
      $region44: #{g_unet_add_all_forward.22} parent=39 // pred_fallthru
        _
    $region40: #{g_unet_add_all_forward.22} parent=5 // pred_fallthru
      _
  $region6: #{g_unet_add_all_forward.22} parent=0 // loop_footer
    %s13 = sadd.s32 1, %s9
  $region7: #{g_unet_add_all_forward.22} parent=0 // loop_footer_branch
    %8 = sbr.rel target = $region3
  $region8: #{g_unet_add_all_forward.22} parent=0 // loop_exit
    _

// kernel: g_unet_add_all_forward.23
$region0: #{g_unet_add_all_forward.23}
  #allocation0 [shape = 'u32[]', space=smem, size = 0x4, offset = 0x4, fixed_abs, tag = 'smem constant byte address 0x4 - core index']
  #allocation1 [shape = 'u32[72,128]{1,0:T(1,128)}', space=vmem, size = 0x9000, scoped, tag = 'internal scratch']
  %s0 = inlined_call_operand.vmem [shape: bf16[2048,144], index: 0, kind: input, shape index: {}]
  %s1 = inlined_call_operand.vmem [shape: bf16[144,12], index: 1, kind: input, shape index: {}]
  %s2 = inlined_call_operand.vmem [shape: f32[1,12], index: 2, kind: input, shape index: {}]
  %s3 = inlined_call_operand.vmem [shape: f32[2048,12], index: 3, kind: output, shape index: {}]
  %s4 = sld [smem:[#allocation0]]
  $region45: #{g_unet_add_all_forward.23} parent=0
    _
  %s6 = ssub.s32 1, %s4
  %s7 = scalar_select 0, %s6, %s4
  loop: start=0, step=1, limit=4
  $region2: #{g_unet_add_all_forward.23} parent=0 // loop_pre_header
    _
  $region3: #{g_unet_add_all_forward.23} parent=0 // loop_header
    %s9 = sphi 0, %s13
    %p10 = scmp.ge.s32.totalorder %s9, 4
    %s19 = sphi 0, %s21
    %s22 = sphi 0, %s19
    %s23 = sphi 0, %s22
    %s39 = sphi 0, %s23
    %s43 = sphi 0, %s43
    %s45 = sphi 0, %s43
    %s46 = sphi 0, %s45
    %s60 = sphi 0, %s46
    %s64 = sphi 0, %s64
    %s66 = sphi 0, %s64
    %s67 = sphi 0, %s66
    %s81 = sphi 0, %s67
    %s87 = sphi 0, %s89
    %s90 = sphi 0, %s87
    %s91 = sphi 0, %s90
    %s107 = sphi 0, %s91
  $region4: #{g_unet_add_all_forward.23} parent=0 // loop_header_branch
    %12 = sbr.rel (%p10) target = $region8
  $region5: #{g_unet_add_all_forward.23} parent=0 // loop_body
    %s14 = ssub.s32 %s9, 1
    %s15 = ssub.s32 %s9, 2
    %s16 = sadd.s32 %s9, 1
    %s17 = ssub.s32 %s9, %s16
    %p18 = scmp.eq.s32.totalorder %s17, 0
    %s20 = sadd.s32 %s19, 1
    %s21 = scalar_select %p18, %s19, %s20
    %p24 = pneg %p18
    %p25 = scmp.eq.s32.totalorder %s9, 1
    %p26 = por %p24, %p25
    %p27 = scmp.ne.s32.totalorder %s19, %s22
    %p28 = scmp.eq.s32.totalorder %s9, 0
    %p29 = por %p27, %p28
    %p30 = scmp.ne.s32.totalorder %s19, %s22
    %p31 = scmp.eq.s32.totalorder %s14, 1
    %p32 = por %p30, %p31
    %p33 = scmp.ne.s32.totalorder %s22, %s23
    %p34 = scmp.eq.s32.totalorder %s14, 0
    %p35 = por %p33, %p34
    %p36 = scmp.ne.s32.totalorder %s22, %s23
    %p37 = scmp.eq.s32.totalorder %s15, 1
    %p38 = por %p36, %p37
    %p40 = scmp.ne.s32.totalorder %s23, %s39
    %p41 = scmp.eq.s32.totalorder %s15, 0
    %p42 = por %p40, %p41
    %s44 = sadd.s32 %s43, 1
    %p47 = scmp.eq.s32.totalorder %s9, 1
    %p48 = scmp.ne.s32.totalorder %s43, %s45
    %p49 = scmp.eq.s32.totalorder %s9, 0
    %p50 = por %p48, %p49
    %p51 = scmp.ne.s32.totalorder %s43, %s45
    %p52 = scmp.eq.s32.totalorder %s14, 1
    %p53 = por %p51, %p52
    %p54 = scmp.ne.s32.totalorder %s45, %s46
    %p55 = scmp.eq.s32.totalorder %s14, 0
    %p56 = por %p54, %p55
    %p57 = scmp.ne.s32.totalorder %s45, %s46
    %p58 = scmp.eq.s32.totalorder %s15, 1
    %p59 = por %p57, %p58
    %p61 = scmp.ne.s32.totalorder %s46, %s60
    %p62 = scmp.eq.s32.totalorder %s15, 0
    %p63 = por %p61, %p62
    %s65 = sadd.s32 %s64, 1
    %p68 = scmp.eq.s32.totalorder %s9, 1
    %p69 = scmp.ne.s32.totalorder %s64, %s66
    %p70 = scmp.eq.s32.totalorder %s9, 0
    %p71 = por %p69, %p70
    %p72 = scmp.ne.s32.totalorder %s64, %s66
    %p73 = scmp.eq.s32.totalorder %s14, 1
    %p74 = por %p72, %p73
    %p75 = scmp.ne.s32.totalorder %s66, %s67
    %p76 = scmp.eq.s32.totalorder %s14, 0
    %p77 = por %p75, %p76
    %p78 = scmp.ne.s32.totalorder %s66, %s67
    %p79 = scmp.eq.s32.totalorder %s15, 1
    %p80 = por %p78, %p79
    %p82 = scmp.ne.s32.totalorder %s67, %s81
    %p83 = scmp.eq.s32.totalorder %s15, 0
    %p84 = por %p82, %p83
    %s85 = ssub.s32 %s9, %s16
    %p86 = scmp.eq.s32.totalorder %s85, 0
    %s88 = sadd.s32 %s87, 1
    %s89 = scalar_select %p86, %s87, %s88
    %p92 = pneg %p86
    %p93 = scmp.eq.s32.totalorder %s9, 1
    %p94 = por %p92, %p93
    %p95 = scmp.ne.s32.totalorder %s87, %s90
    %p96 = scmp.eq.s32.totalorder %s9, 0
    %p97 = por %p95, %p96
    %p98 = scmp.ne.s32.totalorder %s87, %s90
    %p99 = scmp.eq.s32.totalorder %s14, 1
    %p100 = por %p98, %p99
    %p101 = scmp.ne.s32.totalorder %s90, %s91
    %p102 = scmp.eq.s32.totalorder %s14, 0
    %p103 = por %p101, %p102
    %p104 = scmp.ne.s32.totalorder %s90, %s91
    %p105 = scmp.eq.s32.totalorder %s15, 1
    %p106 = por %p104, %p105
    %p108 = scmp.ne.s32.totalorder %s91, %s107
    %p109 = scmp.eq.s32.totalorder %s15, 0
    %p110 = por %p108, %p109
    %p111 = scmp.le.s32.totalorder 1, %s9
    %p112 = scmp.lt.s32.totalorder %s9, 3
    %p113 = pnand %p111, %p112
    %p114 = pneg %p113
    // Predicated region
    $region9: #{g_unet_add_all_forward.23} parent=5 // pred_check
      _
    $region10: #{g_unet_add_all_forward.23} parent=5 // pred_check_branch
      %116 = sbr.rel (%p113) target = $region12
    $region11: #{g_unet_add_all_forward.23} parent=5 // pred_region
      %s117 = ssub.s32 %s9, 1
      // Predicated region
      $region13: #{g_unet_add_all_forward.23} parent=11 // pred_check
        %p118 = pneg %p56
      $region14: #{g_unet_add_all_forward.23} parent=11 // pred_check_branch
        %120 = sbr.rel (%p118) target = $region16
      $region15: #{g_unet_add_all_forward.23} parent=11 // pred_region
        _
      $region16: #{g_unet_add_all_forward.23} parent=11 // pred_fallthru
        _
      // Predicated region
      $region17: #{g_unet_add_all_forward.23} parent=11 // pred_check
        %p121 = pneg %p77
      $region18: #{g_unet_add_all_forward.23} parent=11 // pred_check_branch
        %123 = sbr.rel (%p121) target = $region20
      $region19: #{g_unet_add_all_forward.23} parent=11 // pred_region
        _
      $region20: #{g_unet_add_all_forward.23} parent=11 // pred_fallthru
        _
    $region12: #{g_unet_add_all_forward.23} parent=5 // pred_fallthru
      _
    %p124 = scmp.lt.s32.totalorder %s9, 2
    // Predicated region
    $region21: #{g_unet_add_all_forward.23} parent=5 // pred_check
      %p125 = pneg %p124
    $region22: #{g_unet_add_all_forward.23} parent=5 // pred_check_branch
      %127 = sbr.rel (%p125) target = $region24
    $region23: #{g_unet_add_all_forward.23} parent=5 // pred_region
      // Predicated region
      $region25: #{g_unet_add_all_forward.23} parent=23 // pred_check
        %p128 = pneg %p29
      $region26: #{g_unet_add_all_forward.23} parent=23 // pred_check_branch
        %130 = sbr.rel (%p128) target = $region28
      $region27: #{g_unet_add_all_forward.23} parent=23 // pred_region
        %s131 = smul.u32 128, %s9
        %p132 = scmp.lt.s32.totalorder %s131, 255
        %s133 = scalar_select %p132, %s131, 255
        %s134 = smul.addr %s133, 2
        %s135 = smul.addr %s134, 4
        %s136 = scalar_lea.vmem %s0, %s135
        %s137 = smul.u32 128, %s9
      $region28: #{g_unet_add_all_forward.23} parent=23 // pred_fallthru
        _
    $region24: #{g_unet_add_all_forward.23} parent=5 // pred_fallthru
      _
    %p138 = scmp.le.s32.totalorder 1, %s9
    %p139 = scmp.lt.s32.totalorder %s9, 3
    %p140 = pnand %p138, %p139
    %p141 = pneg %p140
    // Predicated region
    $region29: #{g_unet_add_all_forward.23} parent=5 // pred_check
      _
    $region30: #{g_unet_add_all_forward.23} parent=5 // pred_check_branch
      %143 = sbr.rel (%p140) target = $region32
    $region31: #{g_unet_add_all_forward.23} parent=5 // pred_region
      %s144 = ssub.s32 %s9, 1
      %s145 = smul.u32 128, %s14
      %p146 = scmp.lt.s32.totalorder %s145, 255
      %s147 = scalar_select %p146, %s145, 255
      %s148 = smul.addr %s147, 2
      %s149 = smul.addr %s148, 4
      %s150 = scalar_lea.vmem %s0, %s149
      %p151 = pneg %p35
      %p152 = pneg %p32
      %p153 = pneg %p56
      %p154 = pneg %p53
      %p155 = pneg %p77
      %p156 = pneg %p74
      %p157 = pneg %p103
      %p158 = pneg %p100
      %s159 = smul.u32 128, %s14
      %p160 = scmp.lt.s32.totalorder %s159, 255
      %s161 = scalar_select %p160, %s159, 255
      %s162 = smul.addr %s161, 8
      %s163 = scalar_lea.vmem %s3, %s162
      %s164 = smul.u32 128, %s14
      %p165 = scmp.lt.s32.totalorder %s164, 255
      %s166 = scalar_select %p165, %s164, 255
      %s167 = smul.addr %s166, 2
      %s168 = smul.addr %s167, 4
      %s169 = scalar_lea.vmem %s0, %s168
      %s170 = smul.u32 128, %s14
      %s171 = smul.u32 128, %s14
      %p172 = scmp.lt.s32.totalorder %s171, 255
      %s173 = scalar_select %p172, %s171, 255
      %s174 = smul.addr %s173, 8
      %s175 = scalar_lea.vmem %s3, %s174
      %s176 = smul.u32 128, %s14
      %v178 = vld [vmem:[%s169] sm:$0xff]
      %v179 = vld [vmem:[%s169 + $0x8] sm:$0xff]
      %v180 = vld [vmem:[%s169 + $0x10] sm:$0xff]
      %v181 = vld [vmem:[%s169 + $0x18] sm:$0xff]
      %v182 = vld [vmem:[%s169 + $0x20] sm:$0xff]
      %v183 = vld [vmem:[%s169 + $0x28] sm:$0xff]
      %v184 = vld [vmem:[%s169 + $0x30] sm:$0xff]
      %v185 = vld [vmem:[%s169 + $0x38] sm:$0xff]
      %v186 = vld [vmem:[%s169 + $0x40] sm:$0xff]
      %v187 = vld [vmem:[%s169 + $0x48] sm:$0xff]
      %v188 = vld [vmem:[%s169 + $0x50] sm:$0xff]
      %v189 = vld [vmem:[%s169 + $0x58] sm:$0xff]
      %v190 = vld [vmem:[%s169 + $0x60] sm:$0xff]
      %v191 = vld [vmem:[%s169 + $0x68] sm:$0xff]
      %v192 = vld [vmem:[%s169 + $0x70] sm:$0xff]
      %v193 = vld [vmem:[%s169 + $0x78] sm:$0xff]
      %v194 = vld [vmem:[%s169 + $0x80] sm:$0xff]
      %v195 = vld [vmem:[%s169 + $0x88] sm:$0xff]
      %v196 = vld [vmem:[%s169 + $0x90] sm:$0xff]
      %v197 = vld [vmem:[%s169 + $0x98] sm:$0xff]
      %v198 = vld [vmem:[%s169 + $0xa0] sm:$0xff]
      %v199 = vld [vmem:[%s169 + $0xa8] sm:$0xff]
      %v200 = vld [vmem:[%s169 + $0xb0] sm:$0xff]
      %v201 = vld [vmem:[%s169 + $0xb8] sm:$0xff]
      %v202 = vld [vmem:[%s169 + $0xc0] sm:$0xff]
      %v203 = vld [vmem:[%s169 + $0xc8] sm:$0xff]
      %v204 = vld [vmem:[%s169 + $0xd0] sm:$0xff]
      %v205 = vld [vmem:[%s169 + $0xd8] sm:$0xff]
      %v206 = vld [vmem:[%s169 + $0xe0] sm:$0xff]
      %v207 = vld [vmem:[%s169 + $0xe8] sm:$0xff]
      %v208 = vld [vmem:[%s169 + $0xf0] sm:$0xff]
      %v209 = vld [vmem:[%s169 + $0xf8] sm:$0xff]
      %v210 = vld [vmem:[%s169 + $0x100] sm:$0xff]
      %v211 = vld [vmem:[%s169 + $0x108] sm:$0xff]
      %v212 = vld [vmem:[%s169 + $0x110] sm:$0xff]
      %v213 = vld [vmem:[%s169 + $0x118] sm:$0xff]
      %v214 = vld [vmem:[%s169 + $0x120] sm:$0xff]
      %v215 = vld [vmem:[%s169 + $0x128] sm:$0xff]
      %v216 = vld [vmem:[%s169 + $0x130] sm:$0xff]
      %v217 = vld [vmem:[%s169 + $0x138] sm:$0xff]
      %v218 = vld [vmem:[%s169 + $0x140] sm:$0xff]
      %v219 = vld [vmem:[%s169 + $0x148] sm:$0xff]
      %v220 = vld [vmem:[%s169 + $0x150] sm:$0xff]
      %v221 = vld [vmem:[%s169 + $0x158] sm:$0xff]
      %v222 = vld [vmem:[%s169 + $0x160] sm:$0xff]
      %v223 = vld [vmem:[%s169 + $0x168] sm:$0xff]
      %v224 = vld [vmem:[%s169 + $0x170] sm:$0xff]
      %v225 = vld [vmem:[%s169 + $0x178] sm:$0xff]
      %v226 = vld [vmem:[%s169 + $0x180] sm:$0xff]
      %v227 = vld [vmem:[%s169 + $0x188] sm:$0xff]
      %v228 = vld [vmem:[%s169 + $0x190] sm:$0xff]
      %v229 = vld [vmem:[%s169 + $0x198] sm:$0xff]
      %v230 = vld [vmem:[%s169 + $0x1a0] sm:$0xff]
      %v231 = vld [vmem:[%s169 + $0x1a8] sm:$0xff]
      %v232 = vld [vmem:[%s169 + $0x1b0] sm:$0xff]
      %v233 = vld [vmem:[%s169 + $0x1b8] sm:$0xff]
      %v234 = vld [vmem:[%s169 + $0x1c0] sm:$0xff]
      %v235 = vld [vmem:[%s169 + $0x1c8] sm:$0xff]
      %v236 = vld [vmem:[%s169 + $0x1d0] sm:$0xff]
      %v237 = vld [vmem:[%s169 + $0x1d8] sm:$0xff]
      %v238 = vld [vmem:[%s169 + $0x1e0] sm:$0xff]
      %v239 = vld [vmem:[%s169 + $0x1e8] sm:$0xff]
      %v240 = vld [vmem:[%s169 + $0x1f0] sm:$0xff]
      %v241 = vld [vmem:[%s169 + $0x1f8] sm:$0xff]
      %v242 = vld [vmem:[%s169 + $0x200] sm:$0xff]
      %v243 = vld [vmem:[%s169 + $0x208] sm:$0xff]
      %v244 = vld [vmem:[%s169 + $0x210] sm:$0xff]
      %v245 = vld [vmem:[%s169 + $0x218] sm:$0xff]
      %v246 = vld [vmem:[%s169 + $0x220] sm:$0xff]
      %v247 = vld [vmem:[%s169 + $0x228] sm:$0xff]
      %v248 = vld [vmem:[%s169 + $0x230] sm:$0xff]
      %v249 = vld [vmem:[%s169 + $0x238] sm:$0xff]
      %v250 = vld [vmem:[%s169 + $0x240] sm:$0xff]
      %v251 = vld [vmem:[%s169 + $0x248] sm:$0xff]
      %v252 = vld [vmem:[%s169 + $0x250] sm:$0xff]
      %v253 = vld [vmem:[%s169 + $0x258] sm:$0xff]
      %v254 = vld [vmem:[%s169 + $0x260] sm:$0xff]
      %v255 = vld [vmem:[%s169 + $0x268] sm:$0xff]
      %v256 = vld [vmem:[%s169 + $0x270] sm:$0xff]
      %v257 = vld [vmem:[%s169 + $0x278] sm:$0xff]
      %v258 = vld [vmem:[%s169 + $0x280] sm:$0xff]
      %v259 = vld [vmem:[%s169 + $0x288] sm:$0xff]
      %v260 = vld [vmem:[%s169 + $0x290] sm:$0xff]
      %v261 = vld [vmem:[%s169 + $0x298] sm:$0xff]
      %v262 = vld [vmem:[%s169 + $0x2a0] sm:$0xff]
      %v263 = vld [vmem:[%s169 + $0x2a8] sm:$0xff]
      %v264 = vld [vmem:[%s169 + $0x2b0] sm:$0xff]
      %v265 = vld [vmem:[%s169 + $0x2b8] sm:$0xff]
      %v266 = vld [vmem:[%s169 + $0x2c0] sm:$0xff]
      %v267 = vld [vmem:[%s169 + $0x2c8] sm:$0xff]
      %v268 = vld [vmem:[%s169 + $0x2d0] sm:$0xff]
      %v269 = vld [vmem:[%s169 + $0x2d8] sm:$0xff]
      %v270 = vld [vmem:[%s169 + $0x2e0] sm:$0xff]
      %v271 = vld [vmem:[%s169 + $0x2e8] sm:$0xff]
      %v272 = vld [vmem:[%s169 + $0x2f0] sm:$0xff]
      %v273 = vld [vmem:[%s169 + $0x2f8] sm:$0xff]
      %v274 = vld [vmem:[%s169 + $0x300] sm:$0xff]
      %v275 = vld [vmem:[%s169 + $0x308] sm:$0xff]
      %v276 = vld [vmem:[%s169 + $0x310] sm:$0xff]
      %v277 = vld [vmem:[%s169 + $0x318] sm:$0xff]
      %v278 = vld [vmem:[%s169 + $0x320] sm:$0xff]
      %v279 = vld [vmem:[%s169 + $0x328] sm:$0xff]
      %v280 = vld [vmem:[%s169 + $0x330] sm:$0xff]
      %v281 = vld [vmem:[%s169 + $0x338] sm:$0xff]
      %v282 = vld [vmem:[%s169 + $0x340] sm:$0xff]
      %v283 = vld [vmem:[%s169 + $0x348] sm:$0xff]
      %v284 = vld [vmem:[%s169 + $0x350] sm:$0xff]
      %v285 = vld [vmem:[%s169 + $0x358] sm:$0xff]
      %v286 = vld [vmem:[%s169 + $0x360] sm:$0xff]
      %v287 = vld [vmem:[%s169 + $0x368] sm:$0xff]
      %v288 = vld [vmem:[%s169 + $0x370] sm:$0xff]
      %v289 = vld [vmem:[%s169 + $0x378] sm:$0xff]
      %v290 = vld [vmem:[%s169 + $0x380] sm:$0xff]
      %v291 = vld [vmem:[%s169 + $0x388] sm:$0xff]
      %v292 = vld [vmem:[%s169 + $0x390] sm:$0xff]
      %v293 = vld [vmem:[%s169 + $0x398] sm:$0xff]
      %v294 = vld [vmem:[%s169 + $0x3a0] sm:$0xff]
      %v295 = vld [vmem:[%s169 + $0x3a8] sm:$0xff]
      %v296 = vld [vmem:[%s169 + $0x3b0] sm:$0xff]
      %v297 = vld [vmem:[%s169 + $0x3b8] sm:$0xff]
      %v298 = vld [vmem:[%s169 + $0x3c0] sm:$0xff]
      %v299 = vld [vmem:[%s169 + $0x3c8] sm:$0xff]
      %v300 = vld [vmem:[%s169 + $0x3d0] sm:$0xff]
      %v301 = vld [vmem:[%s169 + $0x3d8] sm:$0xff]
      %v302 = vld [vmem:[%s169 + $0x3e0] sm:$0xff]
      %v303 = vld [vmem:[%s169 + $0x3e8] sm:$0xff]
      %v304 = vld [vmem:[%s169 + $0x3f0] sm:$0xff]
      %v305 = vld [vmem:[%s169 + $0x3f8] sm:$0xff]
      %v306 = vunpack.c.l.bf16 %v178
      %v307 = vunpack.c.h.bf16 %v178
      %v308 = vunpack.c.l.bf16 %v179
      %v309 = vunpack.c.h.bf16 %v179
      %v310 = vunpack.c.l.bf16 %v180
      %v311 = vunpack.c.h.bf16 %v180
      %v312 = vunpack.c.l.bf16 %v181
      %v313 = vunpack.c.h.bf16 %v181
      %v314 = vunpack.c.l.bf16 %v182
      %v315 = vunpack.c.h.bf16 %v182
      %v316 = vunpack.c.l.bf16 %v183
      %v317 = vunpack.c.h.bf16 %v183
      %v318 = vunpack.c.l.bf16 %v184
      %v319 = vunpack.c.h.bf16 %v184
      %v320 = vunpack.c.l.bf16 %v185
      %v321 = vunpack.c.h.bf16 %v185
      %v322 = vunpack.c.l.bf16 %v186
      %v323 = vunpack.c.h.bf16 %v186
      %v324 = vunpack.c.l.bf16 %v187
      %v325 = vunpack.c.h.bf16 %v187
      %v326 = vunpack.c.l.bf16 %v188
      %v327 = vunpack.c.h.bf16 %v188
      %v328 = vunpack.c.l.bf16 %v189
      %v329 = vunpack.c.h.bf16 %v189
      %v330 = vunpack.c.l.bf16 %v190
      %v331 = vunpack.c.h.bf16 %v190
      %v332 = vunpack.c.l.bf16 %v191
      %v333 = vunpack.c.h.bf16 %v191
      %v334 = vunpack.c.l.bf16 %v192
      %v335 = vunpack.c.h.bf16 %v192
      %v336 = vunpack.c.l.bf16 %v193
      %v337 = vunpack.c.h.bf16 %v193
      %v338 = vunpack.c.l.bf16 %v194
      %v339 = vunpack.c.h.bf16 %v194
      %v340 = vunpack.c.l.bf16 %v195
      %v341 = vunpack.c.h.bf16 %v195
      %v342 = vunpack.c.l.bf16 %v196
      %v343 = vunpack.c.h.bf16 %v196
      %v344 = vunpack.c.l.bf16 %v197
      %v345 = vunpack.c.h.bf16 %v197
      %v346 = vunpack.c.l.bf16 %v198
      %v347 = vunpack.c.h.bf16 %v198
      %v348 = vunpack.c.l.bf16 %v199
      %v349 = vunpack.c.h.bf16 %v199
      %v350 = vunpack.c.l.bf16 %v200
      %v351 = vunpack.c.h.bf16 %v200
      %v352 = vunpack.c.l.bf16 %v201
      %v353 = vunpack.c.h.bf16 %v201
      %v354 = vunpack.c.l.bf16 %v202
      %v355 = vunpack.c.h.bf16 %v202
      %v356 = vunpack.c.l.bf16 %v203
      %v357 = vunpack.c.h.bf16 %v203
      %v358 = vunpack.c.l.bf16 %v204
      %v359 = vunpack.c.h.bf16 %v204
      %v360 = vunpack.c.l.bf16 %v205
      %v361 = vunpack.c.h.bf16 %v205
      %v362 = vunpack.c.l.bf16 %v206
      %v363 = vunpack.c.h.bf16 %v206
      %v364 = vunpack.c.l.bf16 %v207
      %v365 = vunpack.c.h.bf16 %v207
      %v366 = vunpack.c.l.bf16 %v208
      %v367 = vunpack.c.h.bf16 %v208
      %v368 = vunpack.c.l.bf16 %v209
      %v369 = vunpack.c.h.bf16 %v209
      %v370 = vunpack.c.l.bf16 %v210
      %v371 = vunpack.c.h.bf16 %v210
      %v372 = vunpack.c.l.bf16 %v211
      %v373 = vunpack.c.h.bf16 %v211
      %v374 = vunpack.c.l.bf16 %v212
      %v375 = vunpack.c.h.bf16 %v212
      %v376 = vunpack.c.l.bf16 %v213
      %v377 = vunpack.c.h.bf16 %v213
      %v378 = vunpack.c.l.bf16 %v214
      %v379 = vunpack.c.h.bf16 %v214
      %v380 = vunpack.c.l.bf16 %v215
      %v381 = vunpack.c.h.bf16 %v215
      %v382 = vunpack.c.l.bf16 %v216
      %v383 = vunpack.c.h.bf16 %v216
      %v384 = vunpack.c.l.bf16 %v217
      %v385 = vunpack.c.h.bf16 %v217
      %v386 = vunpack.c.l.bf16 %v218
      %v387 = vunpack.c.h.bf16 %v218
      %v388 = vunpack.c.l.bf16 %v219
      %v389 = vunpack.c.h.bf16 %v219
      %v390 = vunpack.c.l.bf16 %v220
      %v391 = vunpack.c.h.bf16 %v220
      %v392 = vunpack.c.l.bf16 %v221
      %v393 = vunpack.c.h.bf16 %v221
      %v394 = vunpack.c.l.bf16 %v222
      %v395 = vunpack.c.h.bf16 %v222
      %v396 = vunpack.c.l.bf16 %v223
      %v397 = vunpack.c.h.bf16 %v223
      %v398 = vunpack.c.l.bf16 %v224
      %v399 = vunpack.c.h.bf16 %v224
      %v400 = vunpack.c.l.bf16 %v225
      %v401 = vunpack.c.h.bf16 %v225
      %v402 = vunpack.c.l.bf16 %v226
      %v403 = vunpack.c.h.bf16 %v226
      %v404 = vunpack.c.l.bf16 %v227
      %v405 = vunpack.c.h.bf16 %v227
      %v406 = vunpack.c.l.bf16 %v228
      %v407 = vunpack.c.h.bf16 %v228
      %v408 = vunpack.c.l.bf16 %v229
      %v409 = vunpack.c.h.bf16 %v229
      %v410 = vunpack.c.l.bf16 %v230
      %v411 = vunpack.c.h.bf16 %v230
      %v412 = vunpack.c.l.bf16 %v231
      %v413 = vunpack.c.h.bf16 %v231
      %v414 = vunpack.c.l.bf16 %v232
      %v415 = vunpack.c.h.bf16 %v232
      %v416 = vunpack.c.l.bf16 %v233
      %v417 = vunpack.c.h.bf16 %v233
      %v418 = vunpack.c.l.bf16 %v234
      %v419 = vunpack.c.h.bf16 %v234
      %v420 = vunpack.c.l.bf16 %v235
      %v421 = vunpack.c.h.bf16 %v235
      %v422 = vunpack.c.l.bf16 %v236
      %v423 = vunpack.c.h.bf16 %v236
      %v424 = vunpack.c.l.bf16 %v237
      %v425 = vunpack.c.h.bf16 %v237
      %v426 = vunpack.c.l.bf16 %v238
      %v427 = vunpack.c.h.bf16 %v238
      %v428 = vunpack.c.l.bf16 %v239
      %v429 = vunpack.c.h.bf16 %v239
      %v430 = vunpack.c.l.bf16 %v240
      %v431 = vunpack.c.h.bf16 %v240
      %v432 = vunpack.c.l.bf16 %v241
      %v433 = vunpack.c.h.bf16 %v241
      %v434 = vunpack.c.l.bf16 %v242
      %v435 = vunpack.c.h.bf16 %v242
      %v436 = vunpack.c.l.bf16 %v243
      %v437 = vunpack.c.h.bf16 %v243
      %v438 = vunpack.c.l.bf16 %v244
      %v439 = vunpack.c.h.bf16 %v244
      %v440 = vunpack.c.l.bf16 %v245
      %v441 = vunpack.c.h.bf16 %v245
      %v442 = vunpack.c.l.bf16 %v246
      %v443 = vunpack.c.h.bf16 %v246
      %v444 = vunpack.c.l.bf16 %v247
      %v445 = vunpack.c.h.bf16 %v247
      %v446 = vunpack.c.l.bf16 %v248
      %v447 = vunpack.c.h.bf16 %v248
      %v448 = vunpack.c.l.bf16 %v249
      %v449 = vunpack.c.h.bf16 %v249
      %v450 = vunpack.c.l.bf16 %v250
      %v451 = vunpack.c.h.bf16 %v250
      %v452 = vunpack.c.l.bf16 %v251
      %v453 = vunpack.c.h.bf16 %v251
      %v454 = vunpack.c.l.bf16 %v252
      %v455 = vunpack.c.h.bf16 %v252
      %v456 = vunpack.c.l.bf16 %v253
      %v457 = vunpack.c.h.bf16 %v253
      %v458 = vunpack.c.l.bf16 %v254
      %v459 = vunpack.c.h.bf16 %v254
      %v460 = vunpack.c.l.bf16 %v255
      %v461 = vunpack.c.h.bf16 %v255
      %v462 = vunpack.c.l.bf16 %v256
      %v463 = vunpack.c.h.bf16 %v256
      %v464 = vunpack.c.l.bf16 %v257
      %v465 = vunpack.c.h.bf16 %v257
      %v466 = vunpack.c.l.bf16 %v258
      %v467 = vunpack.c.h.bf16 %v258
      %v468 = vunpack.c.l.bf16 %v259
      %v469 = vunpack.c.h.bf16 %v259
      %v470 = vunpack.c.l.bf16 %v260
      %v471 = vunpack.c.h.bf16 %v260
      %v472 = vunpack.c.l.bf16 %v261
      %v473 = vunpack.c.h.bf16 %v261
      %v474 = vunpack.c.l.bf16 %v262
      %v475 = vunpack.c.h.bf16 %v262
      %v476 = vunpack.c.l.bf16 %v263
      %v477 = vunpack.c.h.bf16 %v263
      %v478 = vunpack.c.l.bf16 %v264
      %v479 = vunpack.c.h.bf16 %v264
      %v480 = vunpack.c.l.bf16 %v265
      %v481 = vunpack.c.h.bf16 %v265
      %v482 = vunpack.c.l.bf16 %v266
      %v483 = vunpack.c.h.bf16 %v266
      %v484 = vunpack.c.l.bf16 %v267
      %v485 = vunpack.c.h.bf16 %v267
      %v486 = vunpack.c.l.bf16 %v268
      %v487 = vunpack.c.h.bf16 %v268
      %v488 = vunpack.c.l.bf16 %v269
      %v489 = vunpack.c.h.bf16 %v269
      %v490 = vunpack.c.l.bf16 %v270
      %v491 = vunpack.c.h.bf16 %v270
      %v492 = vunpack.c.l.bf16 %v271
      %v493 = vunpack.c.h.bf16 %v271
      %v494 = vunpack.c.l.bf16 %v272
      %v495 = vunpack.c.h.bf16 %v272
      %v496 = vunpack.c.l.bf16 %v273
      %v497 = vunpack.c.h.bf16 %v273
      %v498 = vunpack.c.l.bf16 %v274
      %v499 = vunpack.c.h.bf16 %v274
      %v500 = vunpack.c.l.bf16 %v275
      %v501 = vunpack.c.h.bf16 %v275
      %v502 = vunpack.c.l.bf16 %v276
      %v503 = vunpack.c.h.bf16 %v276
      %v504 = vunpack.c.l.bf16 %v277
      %v505 = vunpack.c.h.bf16 %v277
      %v506 = vunpack.c.l.bf16 %v278
      %v507 = vunpack.c.h.bf16 %v278
      %v508 = vunpack.c.l.bf16 %v279
      %v509 = vunpack.c.h.bf16 %v279
      %v510 = vunpack.c.l.bf16 %v280
      %v511 = vunpack.c.h.bf16 %v280
      %v512 = vunpack.c.l.bf16 %v281
      %v513 = vunpack.c.h.bf16 %v281
      %v514 = vunpack.c.l.bf16 %v282
      %v515 = vunpack.c.h.bf16 %v282
      %v516 = vunpack.c.l.bf16 %v283
      %v517 = vunpack.c.h.bf16 %v283
      %v518 = vunpack.c.l.bf16 %v284
      %v519 = vunpack.c.h.bf16 %v284
      %v520 = vunpack.c.l.bf16 %v285
      %v521 = vunpack.c.h.bf16 %v285
      %v522 = vunpack.c.l.bf16 %v286
      %v523 = vunpack.c.h.bf16 %v286
      %v524 = vunpack.c.l.bf16 %v287
      %v525 = vunpack.c.h.bf16 %v287
      %v526 = vunpack.c.l.bf16 %v288
      %v527 = vunpack.c.h.bf16 %v288
      %v528 = vunpack.c.l.bf16 %v289
      %v529 = vunpack.c.h.bf16 %v289
      %v530 = vunpack.c.l.bf16 %v290
      %v531 = vunpack.c.h.bf16 %v290
      %v532 = vunpack.c.l.bf16 %v291
      %v533 = vunpack.c.h.bf16 %v291
      %v534 = vunpack.c.l.bf16 %v292
      %v535 = vunpack.c.h.bf16 %v292
      %v536 = vunpack.c.l.bf16 %v293
      %v537 = vunpack.c.h.bf16 %v293
      %v538 = vunpack.c.l.bf16 %v294
      %v539 = vunpack.c.h.bf16 %v294
      %v540 = vunpack.c.l.bf16 %v295
      %v541 = vunpack.c.h.bf16 %v295
      %v542 = vunpack.c.l.bf16 %v296
      %v543 = vunpack.c.h.bf16 %v296
      %v544 = vunpack.c.l.bf16 %v297
      %v545 = vunpack.c.h.bf16 %v297
      %v546 = vunpack.c.l.bf16 %v298
      %v547 = vunpack.c.h.bf16 %v298
      %v548 = vunpack.c.l.bf16 %v299
      %v549 = vunpack.c.h.bf16 %v299
      %v550 = vunpack.c.l.bf16 %v300
      %v551 = vunpack.c.h.bf16 %v300
      %v552 = vunpack.c.l.bf16 %v301
      %v553 = vunpack.c.h.bf16 %v301
      %v554 = vunpack.c.l.bf16 %v302
      %v555 = vunpack.c.h.bf16 %v302
      %v556 = vunpack.c.l.bf16 %v303
      %v557 = vunpack.c.h.bf16 %v303
      %v558 = vunpack.c.l.bf16 %v304
      %v559 = vunpack.c.h.bf16 %v304
      %v560 = vunpack.c.l.bf16 %v305
      %v561 = vunpack.c.h.bf16 %v305
      %v562 = vmax.f32 %v306, 0.0
      %v563 = vmax.f32 %v307, 0.0
      %v564 = vmax.f32 %v308, 0.0
      %v565 = vmax.f32 %v309, 0.0
      %v566 = vmax.f32 %v310, 0.0
      %v567 = vmax.f32 %v311, 0.0
      %v568 = vmax.f32 %v312, 0.0
      %v569 = vmax.f32 %v313, 0.0
      %v570 = vmax.f32 %v314, 0.0
      %v571 = vmax.f32 %v315, 0.0
      %v572 = vmax.f32 %v316, 0.0
      %v573 = vmax.f32 %v317, 0.0
      %v574 = vmax.f32 %v318, 0.0
      %v575 = vmax.f32 %v319, 0.0
      %v576 = vmax.f32 %v320, 0.0
      %v577 = vmax.f32 %v321, 0.0
      %v578 = vmax.f32 %v322, 0.0
      %v579 = vmax.f32 %v323, 0.0
      %v580 = vmax.f32 %v324, 0.0
      %v581 = vmax.f32 %v325, 0.0
      %v582 = vmax.f32 %v326, 0.0
      %v583 = vmax.f32 %v327, 0.0
      %v584 = vmax.f32 %v328, 0.0
      %v585 = vmax.f32 %v329, 0.0
      %v586 = vmax.f32 %v330, 0.0
      %v587 = vmax.f32 %v331, 0.0
      %v588 = vmax.f32 %v332, 0.0
      %v589 = vmax.f32 %v333, 0.0
      %v590 = vmax.f32 %v334, 0.0
      %v591 = vmax.f32 %v335, 0.0
      %v592 = vmax.f32 %v336, 0.0
      %v593 = vmax.f32 %v337, 0.0
      %v594 = vmax.f32 %v338, 0.0
      %v595 = vmax.f32 %v339, 0.0
      %v596 = vmax.f32 %v340, 0.0
      %v597 = vmax.f32 %v341, 0.0
      %v598 = vmax.f32 %v342, 0.0
      %v599 = vmax.f32 %v343, 0.0
      %v600 = vmax.f32 %v344, 0.0
      %v601 = vmax.f32 %v345, 0.0
      %v602 = vmax.f32 %v346, 0.0
      %v603 = vmax.f32 %v347, 0.0
      %v604 = vmax.f32 %v348, 0.0
      %v605 = vmax.f32 %v349, 0.0
      %v606 = vmax.f32 %v350, 0.0
      %v607 = vmax.f32 %v351, 0.0
      %v608 = vmax.f32 %v352, 0.0
      %v609 = vmax.f32 %v353, 0.0
      %v610 = vmax.f32 %v354, 0.0
      %v611 = vmax.f32 %v355, 0.0
      %v612 = vmax.f32 %v356, 0.0
      %v613 = vmax.f32 %v357, 0.0
      %v614 = vmax.f32 %v358, 0.0
      %v615 = vmax.f32 %v359, 0.0
      %v616 = vmax.f32 %v360, 0.0
      %v617 = vmax.f32 %v361, 0.0
      %v618 = vmax.f32 %v362, 0.0
      %v619 = vmax.f32 %v363, 0.0
      %v620 = vmax.f32 %v364, 0.0
      %v621 = vmax.f32 %v365, 0.0
      %v622 = vmax.f32 %v366, 0.0
      %v623 = vmax.f32 %v367, 0.0
      %v624 = vmax.f32 %v368, 0.0
      %v625 = vmax.f32 %v369, 0.0
      %v626 = vmax.f32 %v370, 0.0
      %v627 = vmax.f32 %v371, 0.0
      %v628 = vmax.f32 %v372, 0.0
      %v629 = vmax.f32 %v373, 0.0
      %v630 = vmax.f32 %v374, 0.0
      %v631 = vmax.f32 %v375, 0.0
      %v632 = vmax.f32 %v376, 0.0
      %v633 = vmax.f32 %v377, 0.0
      %v634 = vmax.f32 %v378, 0.0
      %v635 = vmax.f32 %v379, 0.0
      %v636 = vmax.f32 %v380, 0.0
      %v637 = vmax.f32 %v381, 0.0
      %v638 = vmax.f32 %v382, 0.0
      %v639 = vmax.f32 %v383, 0.0
      %v640 = vmax.f32 %v384, 0.0
      %v641 = vmax.f32 %v385, 0.0
      %v642 = vmax.f32 %v386, 0.0
      %v643 = vmax.f32 %v387, 0.0
      %v644 = vmax.f32 %v388, 0.0
      %v645 = vmax.f32 %v389, 0.0
      %v646 = vmax.f32 %v390, 0.0
      %v647 = vmax.f32 %v391, 0.0
      %v648 = vmax.f32 %v392, 0.0
      %v649 = vmax.f32 %v393, 0.0
      %v650 = vmax.f32 %v394, 0.0
      %v651 = vmax.f32 %v395, 0.0
      %v652 = vmax.f32 %v396, 0.0
      %v653 = vmax.f32 %v397, 0.0
      %v654 = vmax.f32 %v398, 0.0
      %v655 = vmax.f32 %v399, 0.0
      %v656 = vmax.f32 %v400, 0.0
      %v657 = vmax.f32 %v401, 0.0
      %v658 = vmax.f32 %v402, 0.0
      %v659 = vmax.f32 %v403, 0.0
      %v660 = vmax.f32 %v404, 0.0
      %v661 = vmax.f32 %v405, 0.0
      %v662 = vmax.f32 %v406, 0.0
      %v663 = vmax.f32 %v407, 0.0
      %v664 = vmax.f32 %v408, 0.0
      %v665 = vmax.f32 %v409, 0.0
      %v666 = vmax.f32 %v410, 0.0
      %v667 = vmax.f32 %v411, 0.0
      %v668 = vmax.f32 %v412, 0.0
      %v669 = vmax.f32 %v413, 0.0
      %v670 = vmax.f32 %v414, 0.0
      %v671 = vmax.f32 %v415, 0.0
      %v672 = vmax.f32 %v416, 0.0
      %v673 = vmax.f32 %v417, 0.0
      %v674 = vmax.f32 %v418, 0.0
      %v675 = vmax.f32 %v419, 0.0
      %v676 = vmax.f32 %v420, 0.0
      %v677 = vmax.f32 %v421, 0.0
      %v678 = vmax.f32 %v422, 0.0
      %v679 = vmax.f32 %v423, 0.0
      %v680 = vmax.f32 %v424, 0.0
      %v681 = vmax.f32 %v425, 0.0
      %v682 = vmax.f32 %v426, 0.0
      %v683 = vmax.f32 %v427, 0.0
      %v684 = vmax.f32 %v428, 0.0
      %v685 = vmax.f32 %v429, 0.0
      %v686 = vmax.f32 %v430, 0.0
      %v687 = vmax.f32 %v431, 0.0
      %v688 = vmax.f32 %v432, 0.0
      %v689 = vmax.f32 %v433, 0.0
      %v690 = vmax.f32 %v434, 0.0
      %v691 = vmax.f32 %v435, 0.0
      %v692 = vmax.f32 %v436, 0.0
      %v693 = vmax.f32 %v437, 0.0
      %v694 = vmax.f32 %v438, 0.0
      %v695 = vmax.f32 %v439, 0.0
      %v696 = vmax.f32 %v440, 0.0
      %v697 = vmax.f32 %v441, 0.0
      %v698 = vmax.f32 %v442, 0.0
      %v699 = vmax.f32 %v443, 0.0
      %v700 = vmax.f32 %v444, 0.0
      %v701 = vmax.f32 %v445, 0.0
      %v702 = vmax.f32 %v446, 0.0
      %v703 = vmax.f32 %v447, 0.0
      %v704 = vmax.f32 %v448, 0.0
      %v705 = vmax.f32 %v449, 0.0
      %v706 = vmax.f32 %v450, 0.0
      %v707 = vmax.f32 %v451, 0.0
      %v708 = vmax.f32 %v452, 0.0
      %v709 = vmax.f32 %v453, 0.0
      %v710 = vmax.f32 %v454, 0.0
      %v711 = vmax.f32 %v455, 0.0
      %v712 = vmax.f32 %v456, 0.0
      %v713 = vmax.f32 %v457, 0.0
      %v714 = vmax.f32 %v458, 0.0
      %v715 = vmax.f32 %v459, 0.0
      %v716 = vmax.f32 %v460, 0.0
      %v717 = vmax.f32 %v461, 0.0
      %v718 = vmax.f32 %v462, 0.0
      %v719 = vmax.f32 %v463, 0.0
      %v720 = vmax.f32 %v464, 0.0
      %v721 = vmax.f32 %v465, 0.0
      %v722 = vmax.f32 %v466, 0.0
      %v723 = vmax.f32 %v467, 0.0
      %v724 = vmax.f32 %v468, 0.0
      %v725 = vmax.f32 %v469, 0.0
      %v726 = vmax.f32 %v470, 0.0
      %v727 = vmax.f32 %v471, 0.0
      %v728 = vmax.f32 %v472, 0.0
      %v729 = vmax.f32 %v473, 0.0
      %v730 = vmax.f32 %v474, 0.0
      %v731 = vmax.f32 %v475, 0.0
      %v732 = vmax.f32 %v476, 0.0
      %v733 = vmax.f32 %v477, 0.0
      %v734 = vmax.f32 %v478, 0.0
      %v735 = vmax.f32 %v479, 0.0
      %v736 = vmax.f32 %v480, 0.0
      %v737 = vmax.f32 %v481, 0.0
      %v738 = vmax.f32 %v482, 0.0
      %v739 = vmax.f32 %v483, 0.0
      %v740 = vmax.f32 %v484, 0.0
      %v741 = vmax.f32 %v485, 0.0
      %v742 = vmax.f32 %v486, 0.0
      %v743 = vmax.f32 %v487, 0.0
      %v744 = vmax.f32 %v488, 0.0
      %v745 = vmax.f32 %v489, 0.0
      %v746 = vmax.f32 %v490, 0.0
      %v747 = vmax.f32 %v491, 0.0
      %v748 = vmax.f32 %v492, 0.0
      %v749 = vmax.f32 %v493, 0.0
      %v750 = vmax.f32 %v494, 0.0
      %v751 = vmax.f32 %v495, 0.0
      %v752 = vmax.f32 %v496, 0.0
      %v753 = vmax.f32 %v497, 0.0
      %v754 = vmax.f32 %v498, 0.0
      %v755 = vmax.f32 %v499, 0.0
      %v756 = vmax.f32 %v500, 0.0
      %v757 = vmax.f32 %v501, 0.0
      %v758 = vmax.f32 %v502, 0.0
      %v759 = vmax.f32 %v503, 0.0
      %v760 = vmax.f32 %v504, 0.0
      %v761 = vmax.f32 %v505, 0.0
      %v762 = vmax.f32 %v506, 0.0
      %v763 = vmax.f32 %v507, 0.0
      %v764 = vmax.f32 %v508, 0.0
      %v765 = vmax.f32 %v509, 0.0
      %v766 = vmax.f32 %v510, 0.0
      %v767 = vmax.f32 %v511, 0.0
      %v768 = vmax.f32 %v512, 0.0
      %v769 = vmax.f32 %v513, 0.0
      %v770 = vmax.f32 %v514, 0.0
      %v771 = vmax.f32 %v515, 0.0
      %v772 = vmax.f32 %v516, 0.0
      %v773 = vmax.f32 %v517, 0.0
      %v774 = vmax.f32 %v518, 0.0
      %v775 = vmax.f32 %v519, 0.0
      %v776 = vmax.f32 %v520, 0.0
      %v777 = vmax.f32 %v521, 0.0
      %v778 = vmax.f32 %v522, 0.0
      %v779 = vmax.f32 %v523, 0.0
      %v780 = vmax.f32 %v524, 0.0
      %v781 = vmax.f32 %v525, 0.0
      %v782 = vmax.f32 %v526, 0.0
      %v783 = vmax.f32 %v527, 0.0
      %v784 = vmax.f32 %v528, 0.0
      %v785 = vmax.f32 %v529, 0.0
      %v786 = vmax.f32 %v530, 0.0
      %v787 = vmax.f32 %v531, 0.0
      %v788 = vmax.f32 %v532, 0.0
      %v789 = vmax.f32 %v533, 0.0
      %v790 = vmax.f32 %v534, 0.0
      %v791 = vmax.f32 %v535, 0.0
      %v792 = vmax.f32 %v536, 0.0
      %v793 = vmax.f32 %v537, 0.0
      %v794 = vmax.f32 %v538, 0.0
      %v795 = vmax.f32 %v539, 0.0
      %v796 = vmax.f32 %v540, 0.0
      %v797 = vmax.f32 %v541, 0.0
      %v798 = vmax.f32 %v542, 0.0
      %v799 = vmax.f32 %v543, 0.0
      %v800 = vmax.f32 %v544, 0.0
      %v801 = vmax.f32 %v545, 0.0
      %v802 = vmax.f32 %v546, 0.0
      %v803 = vmax.f32 %v547, 0.0
      %v804 = vmax.f32 %v548, 0.0
      %v805 = vmax.f32 %v549, 0.0
      %v806 = vmax.f32 %v550, 0.0
      %v807 = vmax.f32 %v551, 0.0
      %v808 = vmax.f32 %v552, 0.0
      %v809 = vmax.f32 %v553, 0.0
      %v810 = vmax.f32 %v554, 0.0
      %v811 = vmax.f32 %v555, 0.0
      %v812 = vmax.f32 %v556, 0.0
      %v813 = vmax.f32 %v557, 0.0
      %v814 = vmax.f32 %v558, 0.0
      %v815 = vmax.f32 %v559, 0.0
      %v816 = vmax.f32 %v560, 0.0
      %v817 = vmax.f32 %v561, 0.0
      %v818 = vpack.c.bf16 %v564, %v562
      %v819 = vpack.c.bf16 %v565, %v563
      %v820 = vpack.c.bf16 %v568, %v566
      %v821 = vpack.c.bf16 %v569, %v567
      %v822 = vpack.c.bf16 %v572, %v570
      %v823 = vpack.c.bf16 %v573, %v571
      %v824 = vpack.c.bf16 %v576, %v574
      %v825 = vpack.c.bf16 %v577, %v575
      %v826 = vpack.c.bf16 %v580, %v578
      %v827 = vpack.c.bf16 %v581, %v579
      %v828 = vpack.c.bf16 %v584, %v582
      %v829 = vpack.c.bf16 %v585, %v583
      %v830 = vpack.c.bf16 %v588, %v586
      %v831 = vpack.c.bf16 %v589, %v587
      %v832 = vpack.c.bf16 %v592, %v590
      %v833 = vpack.c.bf16 %v593, %v591
      %v834 = vpack.c.bf16 %v596, %v594
      %v835 = vpack.c.bf16 %v597, %v595
      %v836 = vpack.c.bf16 %v600, %v598
      %v837 = vpack.c.bf16 %v601, %v599
      %v838 = vpack.c.bf16 %v604, %v602
      %v839 = vpack.c.bf16 %v605, %v603
      %v840 = vpack.c.bf16 %v608, %v606
      %v841 = vpack.c.bf16 %v609, %v607
      %v842 = vpack.c.bf16 %v612, %v610
      %v843 = vpack.c.bf16 %v613, %v611
      %v844 = vpack.c.bf16 %v616, %v614
      %v845 = vpack.c.bf16 %v617, %v615
      %v846 = vpack.c.bf16 %v620, %v618
      %v847 = vpack.c.bf16 %v621, %v619
      %v848 = vpack.c.bf16 %v624, %v622
      %v849 = vpack.c.bf16 %v625, %v623
      %v850 = vpack.c.bf16 %v628, %v626
      %v851 = vpack.c.bf16 %v629, %v627
      %v852 = vpack.c.bf16 %v632, %v630
      %v853 = vpack.c.bf16 %v633, %v631
      %v854 = vpack.c.bf16 %v636, %v634
      %v855 = vpack.c.bf16 %v637, %v635
      %v856 = vpack.c.bf16 %v640, %v638
      %v857 = vpack.c.bf16 %v641, %v639
      %v858 = vpack.c.bf16 %v644, %v642
      %v859 = vpack.c.bf16 %v645, %v643
      %v860 = vpack.c.bf16 %v648, %v646
      %v861 = vpack.c.bf16 %v649, %v647
      %v862 = vpack.c.bf16 %v652, %v650
      %v863 = vpack.c.bf16 %v653, %v651
      %v864 = vpack.c.bf16 %v656, %v654
      %v865 = vpack.c.bf16 %v657, %v655
      %v866 = vpack.c.bf16 %v660, %v658
      %v867 = vpack.c.bf16 %v661, %v659
      %v868 = vpack.c.bf16 %v664, %v662
      %v869 = vpack.c.bf16 %v665, %v663
      %v870 = vpack.c.bf16 %v668, %v666
      %v871 = vpack.c.bf16 %v669, %v667
      %v872 = vpack.c.bf16 %v672, %v670
      %v873 = vpack.c.bf16 %v673, %v671
      %v874 = vpack.c.bf16 %v676, %v674
      %v875 = vpack.c.bf16 %v677, %v675
      %v876 = vpack.c.bf16 %v680, %v678
      %v877 = vpack.c.bf16 %v681, %v679
      %v878 = vpack.c.bf16 %v684, %v682
      %v879 = vpack.c.bf16 %v685, %v683
      %v880 = vpack.c.bf16 %v688, %v686
      %v881 = vpack.c.bf16 %v689, %v687
      %v882 = vpack.c.bf16 %v692, %v690
      %v883 = vpack.c.bf16 %v693, %v691
      %v884 = vpack.c.bf16 %v696, %v694
      %v885 = vpack.c.bf16 %v697, %v695
      %v886 = vpack.c.bf16 %v700, %v698
      %v887 = vpack.c.bf16 %v701, %v699
      %v888 = vpack.c.bf16 %v704, %v702
      %v889 = vpack.c.bf16 %v705, %v703
      %v890 = vpack.c.bf16 %v708, %v706
      %v891 = vpack.c.bf16 %v709, %v707
      %v892 = vpack.c.bf16 %v712, %v710
      %v893 = vpack.c.bf16 %v713, %v711
      %v894 = vpack.c.bf16 %v716, %v714
      %v895 = vpack.c.bf16 %v717, %v715
      %v896 = vpack.c.bf16 %v720, %v718
      %v897 = vpack.c.bf16 %v721, %v719
      %v898 = vpack.c.bf16 %v724, %v722
      %v899 = vpack.c.bf16 %v725, %v723
      %v900 = vpack.c.bf16 %v728, %v726
      %v901 = vpack.c.bf16 %v729, %v727
      %v902 = vpack.c.bf16 %v732, %v730
      %v903 = vpack.c.bf16 %v733, %v731
      %v904 = vpack.c.bf16 %v736, %v734
      %v905 = vpack.c.bf16 %v737, %v735
      %v906 = vpack.c.bf16 %v740, %v738
      %v907 = vpack.c.bf16 %v741, %v739
      %v908 = vpack.c.bf16 %v744, %v742
      %v909 = vpack.c.bf16 %v745, %v743
      %v910 = vpack.c.bf16 %v748, %v746
      %v911 = vpack.c.bf16 %v749, %v747
      %v912 = vpack.c.bf16 %v752, %v750
      %v913 = vpack.c.bf16 %v753, %v751
      %v914 = vpack.c.bf16 %v756, %v754
      %v915 = vpack.c.bf16 %v757, %v755
      %v916 = vpack.c.bf16 %v760, %v758
      %v917 = vpack.c.bf16 %v761, %v759
      %v918 = vpack.c.bf16 %v764, %v762
      %v919 = vpack.c.bf16 %v765, %v763
      %v920 = vpack.c.bf16 %v768, %v766
      %v921 = vpack.c.bf16 %v769, %v767
      %v922 = vpack.c.bf16 %v772, %v770
      %v923 = vpack.c.bf16 %v773, %v771
      %v924 = vpack.c.bf16 %v776, %v774
      %v925 = vpack.c.bf16 %v777, %v775
      %v926 = vpack.c.bf16 %v780, %v778
      %v927 = vpack.c.bf16 %v781, %v779
      %v928 = vpack.c.bf16 %v784, %v782
      %v929 = vpack.c.bf16 %v785, %v783
      %v930 = vpack.c.bf16 %v788, %v786
      %v931 = vpack.c.bf16 %v789, %v787
      %v932 = vpack.c.bf16 %v792, %v790
      %v933 = vpack.c.bf16 %v793, %v791
      %v934 = vpack.c.bf16 %v796, %v794
      %v935 = vpack.c.bf16 %v797, %v795
      %v936 = vpack.c.bf16 %v800, %v798
      %v937 = vpack.c.bf16 %v801, %v799
      %v938 = vpack.c.bf16 %v804, %v802
      %v939 = vpack.c.bf16 %v805, %v803
      %v940 = vpack.c.bf16 %v808, %v806
      %v941 = vpack.c.bf16 %v809, %v807
      %v942 = vpack.c.bf16 %v812, %v810
      %v943 = vpack.c.bf16 %v813, %v811
      %v944 = vpack.c.bf16 %v816, %v814
      %v945 = vpack.c.bf16 %v817, %v815
      %v946 = vld [vmem:[%s1] sm:$0xf]
      %v947 = vld [vmem:[%s1 + $0x4] sm:$0xf]
      %v948 = vld [vmem:[%s1 + $0x8] sm:$0xf]
      %v949 = vld [vmem:[%s1 + $0xc] sm:$0xf]
      %v950 = vld [vmem:[%s1 + $0x10] sm:$0xf]
      %v951 = vld [vmem:[%s1 + $0x14] sm:$0xf]
      %v952 = vld [vmem:[%s1 + $0x18] sm:$0xf]
      %v953 = vld [vmem:[%s1 + $0x1c] sm:$0xf]
      %v954 = vld [vmem:[%s1 + $0x20] sm:$0xf]
      %v955 = vld [vmem:[%s1 + $0x24] sm:$0xf]
      %v956 = vld [vmem:[%s1 + $0x28] sm:$0xf]
      %v957 = vld [vmem:[%s1 + $0x2c] sm:$0xf]
      %v958 = vld [vmem:[%s1 + $0x30] sm:$0xf]
      %v959 = vld [vmem:[%s1 + $0x34] sm:$0xf]
      %v960 = vld [vmem:[%s1 + $0x38] sm:$0xf]
      %v961 = vld [vmem:[%s1 + $0x3c] sm:$0xf]
      %v962 = vld [vmem:[%s1 + $0x40] sm:$0xf]
      %v963 = vld [vmem:[%s1 + $0x44] sm:$0xf]
      %v964 = vld [vmem:[%s2] sm:$0x1]
      %v966 = vperm.slane %v964, 0
      %v986 = vunpack.c.l.b16 %v946
      %v987 = vunpack.c.l.b16 %v947
      %v988 = vunpack.c.l.b16 %v948
      %v989 = vunpack.c.l.b16 %v949
      %v990 = vunpack.c.l.b16 %v950
      %v991 = vunpack.c.l.b16 %v951
      %v992 = vunpack.c.l.b16 %v952
      %v993 = vunpack.c.l.b16 %v953
      %v994 = vunpack.c.l.b16 %v954
      %v995 = vunpack.c.l.b16 %v955
      %v996 = vunpack.c.l.b16 %v956
      %v997 = vunpack.c.l.b16 %v957
      %v998 = vunpack.c.l.b16 %v958
      %v999 = vunpack.c.l.b16 %v959
      %v1000 = vunpack.c.l.b16 %v960
      %v1001 = vunpack.c.l.b16 %v961
      %v1002 = vunpack.c.l.b16 %v962
      %v1003 = vunpack.c.l.b16 %v963
      %v1004 = vpack.c.b16 %v987, %v986
      %v1005 = vpack.c.b16 %v989, %v988
      %v1006 = vpack.c.b16 %v991, %v990
      %v1007 = vpack.c.b16 %v993, %v992
      %v1008 = vpack.c.b16 %v995, %v994
      %v1009 = vpack.c.b16 %v997, %v996
      %v1010 = vpack.c.b16 %v999, %v998
      %v1011 = vpack.c.b16 %v1001, %v1000
      %v1012 = vpack.c.b16 %v1003, %v1002
      %vm1022 = vcmask 130048
      %v1024 = vsel %vm1022, %v819, 0
      %v1027 = vsel %vm1022, %v821, 0
      %v1030 = vsel %vm1022, %v823, 0
      %v1033 = vsel %vm1022, %v825, 0
      %v1036 = vsel %vm1022, %v827, 0
      %v1039 = vsel %vm1022, %v829, 0
      %v1042 = vsel %vm1022, %v831, 0
      %v1045 = vsel %vm1022, %v833, 0
      %v1048 = vsel %vm1022, %v835, 0
      %v1051 = vsel %vm1022, %v837, 0
      %v1054 = vsel %vm1022, %v839, 0
      %v1057 = vsel %vm1022, %v841, 0
      %v1060 = vsel %vm1022, %v843, 0
      %v1063 = vsel %vm1022, %v845, 0
      %v1066 = vsel %vm1022, %v847, 0
      %v1069 = vsel %vm1022, %v849, 0
      %v1072 = vsel %vm1022, %v851, 0
      %v1075 = vsel %vm1022, %v853, 0
      %v1078 = vsel %vm1022, %v855, 0
      %v1081 = vsel %vm1022, %v857, 0
      %v1084 = vsel %vm1022, %v859, 0
      %v1087 = vsel %vm1022, %v861, 0
      %v1090 = vsel %vm1022, %v863, 0
      %v1093 = vsel %vm1022, %v865, 0
      %v1096 = vsel %vm1022, %v867, 0
      %v1099 = vsel %vm1022, %v869, 0
      %v1102 = vsel %vm1022, %v871, 0
      %v1105 = vsel %vm1022, %v873, 0
      %v1108 = vsel %vm1022, %v875, 0
      %v1111 = vsel %vm1022, %v877, 0
      %v1114 = vsel %vm1022, %v879, 0
      %v1117 = vsel %vm1022, %v881, 0
      %v1120 = vsel %vm1022, %v883, 0
      %v1123 = vsel %vm1022, %v885, 0
      %v1126 = vsel %vm1022, %v887, 0
      %v1129 = vsel %vm1022, %v889, 0
      %v1132 = vsel %vm1022, %v891, 0
      %v1135 = vsel %vm1022, %v893, 0
      %v1138 = vsel %vm1022, %v895, 0
      %v1141 = vsel %vm1022, %v897, 0
      %v1144 = vsel %vm1022, %v899, 0
      %v1147 = vsel %vm1022, %v901, 0
      %v1150 = vsel %vm1022, %v903, 0
      %v1153 = vsel %vm1022, %v905, 0
      %v1156 = vsel %vm1022, %v907, 0
      %v1159 = vsel %vm1022, %v909, 0
      %v1162 = vsel %vm1022, %v911, 0
      %v1165 = vsel %vm1022, %v913, 0
      %v1168 = vsel %vm1022, %v915, 0
      %v1171 = vsel %vm1022, %v917, 0
      %v1174 = vsel %vm1022, %v919, 0
      %v1177 = vsel %vm1022, %v921, 0
      %v1180 = vsel %vm1022, %v923, 0
      %v1183 = vsel %vm1022, %v925, 0
      %v1186 = vsel %vm1022, %v927, 0
      %v1189 = vsel %vm1022, %v929, 0
      %v1192 = vsel %vm1022, %v931, 0
      %v1195 = vsel %vm1022, %v933, 0
      %v1198 = vsel %vm1022, %v935, 0
      %v1201 = vsel %vm1022, %v937, 0
      %v1204 = vsel %vm1022, %v939, 0
      %v1207 = vsel %vm1022, %v941, 0
      %v1210 = vsel %vm1022, %v943, 0
      %v1213 = vsel %vm1022, %v945, 0
      %1215 = vmatpush.bf16.msra.mxu0 %v1011
      %1216 = vmatpush.bf16.msra.mxu0 %v1010
      %1217 = vmatpush.bf16.msra.mxu0 %v1009
      %1218 = vmatpush.bf16.msra.mxu0 %v1008
      %1219 = vmatpush.bf16.msra.mxu0 %v1007
      %1220 = vmatpush.bf16.msra.mxu0 %v1006
      %1221 = vmatpush.bf16.msra.mxu0 %v1005
      %1222 = vmatpush.bf16.msra.mxu0 %v1004
      %1223 = vmatmul.bf16.gmra.mxu0 %v818
      %v1224 = vpop.f32.mrf.mxu0
      %v1225 = vadd.f32 %v966, %v1224
      %v1226 = vpop.f32.mrf.mxu0
      %v1227 = vadd.f32 %v966, %v1226
      %1228 = vmatmul.bf16.gmra.mxu0 %v820
      %v1229 = vpop.f32.mrf.mxu0
      %v1230 = vadd.f32 %v966, %v1229
      %v1231 = vpop.f32.mrf.mxu0
      %v1232 = vadd.f32 %v966, %v1231
      %1233 = vmatmul.bf16.gmra.mxu0 %v822
      %v1234 = vpop.f32.mrf.mxu0
      %v1235 = vadd.f32 %v966, %v1234
      %v1236 = vpop.f32.mrf.mxu0
      %v1237 = vadd.f32 %v966, %v1236
      %1238 = vmatmul.bf16.gmra.mxu0 %v824
      %v1239 = vpop.f32.mrf.mxu0
      %v1240 = vadd.f32 %v966, %v1239
      %v1241 = vpop.f32.mrf.mxu0
      %v1242 = vadd.f32 %v966, %v1241
      %1243 = vmatmul.bf16.gmra.mxu0 %v826
      %v1244 = vpop.f32.mrf.mxu0
      %v1245 = vadd.f32 %v966, %v1244
      %v1246 = vpop.f32.mrf.mxu0
      %v1247 = vadd.f32 %v966, %v1246
      %1248 = vmatmul.bf16.gmra.mxu0 %v828
      %v1249 = vpop.f32.mrf.mxu0
      %v1250 = vadd.f32 %v966, %v1249
      %v1251 = vpop.f32.mrf.mxu0
      %v1252 = vadd.f32 %v966, %v1251
      %1253 = vmatmul.bf16.gmra.mxu0 %v830
      %v1254 = vpop.f32.mrf.mxu0
      %v1255 = vadd.f32 %v966, %v1254
      %v1256 = vpop.f32.mrf.mxu0
      %v1257 = vadd.f32 %v966, %v1256
      %1258 = vmatmul.bf16.gmra.mxu0 %v832
      %v1259 = vpop.f32.mrf.mxu0
      %v1260 = vadd.f32 %v966, %v1259
      %v1261 = vpop.f32.mrf.mxu0
      %v1262 = vadd.f32 %v966, %v1261
      %1263 = vmatmul.bf16.gmra.mxu0 %v834
      %v1264 = vpop.f32.mrf.mxu0
      %v1265 = vadd.f32 %v966, %v1264
      %v1266 = vpop.f32.mrf.mxu0
      %v1267 = vadd.f32 %v966, %v1266
      %1268 = vmatmul.bf16.gmra.mxu0 %v836
      %v1269 = vpop.f32.mrf.mxu0
      %v1270 = vadd.f32 %v966, %v1269
      %v1271 = vpop.f32.mrf.mxu0
      %v1272 = vadd.f32 %v966, %v1271
      %1273 = vmatmul.bf16.gmra.mxu0 %v838
      %v1274 = vpop.f32.mrf.mxu0
      %v1275 = vadd.f32 %v966, %v1274
      %v1276 = vpop.f32.mrf.mxu0
      %v1277 = vadd.f32 %v966, %v1276
      %1278 = vmatmul.bf16.gmra.mxu0 %v840
      %v1279 = vpop.f32.mrf.mxu0
      %v1280 = vadd.f32 %v966, %v1279
      %v1281 = vpop.f32.mrf.mxu0
      %v1282 = vadd.f32 %v966, %v1281
      %1283 = vmatmul.bf16.gmra.mxu0 %v842
      %v1284 = vpop.f32.mrf.mxu0
      %v1285 = vadd.f32 %v966, %v1284
      %v1286 = vpop.f32.mrf.mxu0
      %v1287 = vadd.f32 %v966, %v1286
      %1288 = vmatmul.bf16.gmra.mxu0 %v844
      %v1289 = vpop.f32.mrf.mxu0
      %v1290 = vadd.f32 %v966, %v1289
      %v1291 = vpop.f32.mrf.mxu0
      %v1292 = vadd.f32 %v966, %v1291
      %1293 = vmatmul.bf16.gmra.mxu0 %v846
      %v1294 = vpop.f32.mrf.mxu0
      %v1295 = vadd.f32 %v966, %v1294
      %v1296 = vpop.f32.mrf.mxu0
      %v1297 = vadd.f32 %v966, %v1296
      %1298 = vmatmul.bf16.gmra.mxu0 %v848
      %v1299 = vpop.f32.mrf.mxu0
      %v1300 = vadd.f32 %v966, %v1299
      %v1301 = vpop.f32.mrf.mxu0
      %v1302 = vadd.f32 %v966, %v1301
      %1303 = vmatmul.bf16.gmra.mxu0 %v850
      %v1304 = vpop.f32.mrf.mxu0
      %v1305 = vadd.f32 %v966, %v1304
      %v1306 = vpop.f32.mrf.mxu0
      %v1307 = vadd.f32 %v966, %v1306
      %1308 = vmatmul.bf16.gmra.mxu0 %v852
      %v1309 = vpop.f32.mrf.mxu0
      %v1310 = vadd.f32 %v966, %v1309
      %v1311 = vpop.f32.mrf.mxu0
      %v1312 = vadd.f32 %v966, %v1311
      %1313 = vmatmul.bf16.gmra.mxu0 %v854
      %v1314 = vpop.f32.mrf.mxu0
      %v1315 = vadd.f32 %v966, %v1314
      %v1316 = vpop.f32.mrf.mxu0
      %v1317 = vadd.f32 %v966, %v1316
      %1318 = vmatmul.bf16.gmra.mxu0 %v856
      %v1319 = vpop.f32.mrf.mxu0
      %v1320 = vadd.f32 %v966, %v1319
      %v1321 = vpop.f32.mrf.mxu0
      %v1322 = vadd.f32 %v966, %v1321
      %1323 = vmatmul.bf16.gmra.mxu0 %v858
      %v1324 = vpop.f32.mrf.mxu0
      %v1325 = vadd.f32 %v966, %v1324
      %v1326 = vpop.f32.mrf.mxu0
      %v1327 = vadd.f32 %v966, %v1326
      %1328 = vmatmul.bf16.gmra.mxu0 %v860
      %v1329 = vpop.f32.mrf.mxu0
      %v1330 = vadd.f32 %v966, %v1329
      %v1331 = vpop.f32.mrf.mxu0
      %v1332 = vadd.f32 %v966, %v1331
      %1333 = vmatmul.bf16.gmra.mxu0 %v862
      %v1334 = vpop.f32.mrf.mxu0
      %v1335 = vadd.f32 %v966, %v1334
      %v1336 = vpop.f32.mrf.mxu0
      %v1337 = vadd.f32 %v966, %v1336
      %1338 = vmatmul.bf16.gmra.mxu0 %v864
      %v1339 = vpop.f32.mrf.mxu0
      %v1340 = vadd.f32 %v966, %v1339
      %v1341 = vpop.f32.mrf.mxu0
      %v1342 = vadd.f32 %v966, %v1341
      %1343 = vmatmul.bf16.gmra.mxu0 %v866
      %v1344 = vpop.f32.mrf.mxu0
      %v1345 = vadd.f32 %v966, %v1344
      %v1346 = vpop.f32.mrf.mxu0
      %v1347 = vadd.f32 %v966, %v1346
      %1348 = vmatmul.bf16.gmra.mxu0 %v868
      %v1349 = vpop.f32.mrf.mxu0
      %v1350 = vadd.f32 %v966, %v1349
      %v1351 = vpop.f32.mrf.mxu0
      %v1352 = vadd.f32 %v966, %v1351
      %1353 = vmatmul.bf16.gmra.mxu0 %v870
      %v1354 = vpop.f32.mrf.mxu0
      %v1355 = vadd.f32 %v966, %v1354
      %v1356 = vpop.f32.mrf.mxu0
      %v1357 = vadd.f32 %v966, %v1356
      %1358 = vmatmul.bf16.gmra.mxu0 %v872
      %v1359 = vpop.f32.mrf.mxu0
      %v1360 = vadd.f32 %v966, %v1359
      %v1361 = vpop.f32.mrf.mxu0
      %v1362 = vadd.f32 %v966, %v1361
      %1363 = vmatmul.bf16.gmra.mxu0 %v874
      %v1364 = vpop.f32.mrf.mxu0
      %v1365 = vadd.f32 %v966, %v1364
      %v1366 = vpop.f32.mrf.mxu0
      %v1367 = vadd.f32 %v966, %v1366
      %1368 = vmatmul.bf16.gmra.mxu0 %v876
      %v1369 = vpop.f32.mrf.mxu0
      %v1370 = vadd.f32 %v966, %v1369
      %v1371 = vpop.f32.mrf.mxu0
      %v1372 = vadd.f32 %v966, %v1371
      %1373 = vmatmul.bf16.gmra.mxu0 %v878
      %v1374 = vpop.f32.mrf.mxu0
      %v1375 = vadd.f32 %v966, %v1374
      %v1376 = vpop.f32.mrf.mxu0
      %v1377 = vadd.f32 %v966, %v1376
      %1378 = vmatmul.bf16.gmra.mxu0 %v880
      %v1379 = vpop.f32.mrf.mxu0
      %v1380 = vadd.f32 %v966, %v1379
      %v1381 = vpop.f32.mrf.mxu0
      %v1382 = vadd.f32 %v966, %v1381
      %1383 = vmatmul.bf16.gmra.mxu0 %v882
      %v1384 = vpop.f32.mrf.mxu0
      %v1385 = vadd.f32 %v966, %v1384
      %v1386 = vpop.f32.mrf.mxu0
      %v1387 = vadd.f32 %v966, %v1386
      %1388 = vmatmul.bf16.gmra.mxu0 %v884
      %v1389 = vpop.f32.mrf.mxu0
      %v1390 = vadd.f32 %v966, %v1389
      %v1391 = vpop.f32.mrf.mxu0
      %v1392 = vadd.f32 %v966, %v1391
      %1393 = vmatmul.bf16.gmra.mxu0 %v886
      %v1394 = vpop.f32.mrf.mxu0
      %v1395 = vadd.f32 %v966, %v1394
      %v1396 = vpop.f32.mrf.mxu0
      %v1397 = vadd.f32 %v966, %v1396
      %1398 = vmatmul.bf16.gmra.mxu0 %v888
      %v1399 = vpop.f32.mrf.mxu0
      %v1400 = vadd.f32 %v966, %v1399
      %v1401 = vpop.f32.mrf.mxu0
      %v1402 = vadd.f32 %v966, %v1401
      %1403 = vmatmul.bf16.gmra.mxu0 %v890
      %v1404 = vpop.f32.mrf.mxu0
      %v1405 = vadd.f32 %v966, %v1404
      %v1406 = vpop.f32.mrf.mxu0
      %v1407 = vadd.f32 %v966, %v1406
      %1408 = vmatmul.bf16.gmra.mxu0 %v892
      %v1409 = vpop.f32.mrf.mxu0
      %v1410 = vadd.f32 %v966, %v1409
      %v1411 = vpop.f32.mrf.mxu0
      %v1412 = vadd.f32 %v966, %v1411
      %1413 = vmatmul.bf16.gmra.mxu0 %v894
      %v1414 = vpop.f32.mrf.mxu0
      %v1415 = vadd.f32 %v966, %v1414
      %v1416 = vpop.f32.mrf.mxu0
      %v1417 = vadd.f32 %v966, %v1416
      %1418 = vmatmul.bf16.gmra.mxu0 %v896
      %v1419 = vpop.f32.mrf.mxu0
      %v1420 = vadd.f32 %v966, %v1419
      %v1421 = vpop.f32.mrf.mxu0
      %v1422 = vadd.f32 %v966, %v1421
      %1423 = vmatmul.bf16.gmra.mxu0 %v898
      %v1424 = vpop.f32.mrf.mxu0
      %v1425 = vadd.f32 %v966, %v1424
      %v1426 = vpop.f32.mrf.mxu0
      %v1427 = vadd.f32 %v966, %v1426
      %1428 = vmatmul.bf16.gmra.mxu0 %v900
      %v1429 = vpop.f32.mrf.mxu0
      %v1430 = vadd.f32 %v966, %v1429
      %v1431 = vpop.f32.mrf.mxu0
      %v1432 = vadd.f32 %v966, %v1431
      %1433 = vmatmul.bf16.gmra.mxu0 %v902
      %v1434 = vpop.f32.mrf.mxu0
      %v1435 = vadd.f32 %v966, %v1434
      %v1436 = vpop.f32.mrf.mxu0
      %v1437 = vadd.f32 %v966, %v1436
      %1438 = vmatmul.bf16.gmra.mxu0 %v904
      %v1439 = vpop.f32.mrf.mxu0
      %v1440 = vadd.f32 %v966, %v1439
      %v1441 = vpop.f32.mrf.mxu0
      %v1442 = vadd.f32 %v966, %v1441
      %1443 = vmatmul.bf16.gmra.mxu0 %v906
      %v1444 = vpop.f32.mrf.mxu0
      %v1445 = vadd.f32 %v966, %v1444
      %v1446 = vpop.f32.mrf.mxu0
      %v1447 = vadd.f32 %v966, %v1446
      %1448 = vmatmul.bf16.gmra.mxu0 %v908
      %v1449 = vpop.f32.mrf.mxu0
      %v1450 = vadd.f32 %v966, %v1449
      %v1451 = vpop.f32.mrf.mxu0
      %v1452 = vadd.f32 %v966, %v1451
      %1453 = vmatmul.bf16.gmra.mxu0 %v910
      %v1454 = vpop.f32.mrf.mxu0
      %v1455 = vadd.f32 %v966, %v1454
      %v1456 = vpop.f32.mrf.mxu0
      %v1457 = vadd.f32 %v966, %v1456
      %1458 = vmatmul.bf16.gmra.mxu0 %v912
      %v1459 = vpop.f32.mrf.mxu0
      %v1460 = vadd.f32 %v966, %v1459
      %v1461 = vpop.f32.mrf.mxu0
      %v1462 = vadd.f32 %v966, %v1461
      %1463 = vmatmul.bf16.gmra.mxu0 %v914
      %v1464 = vpop.f32.mrf.mxu0
      %v1465 = vadd.f32 %v966, %v1464
      %v1466 = vpop.f32.mrf.mxu0
      %v1467 = vadd.f32 %v966, %v1466
      %1468 = vmatmul.bf16.gmra.mxu0 %v916
      %v1469 = vpop.f32.mrf.mxu0
      %v1470 = vadd.f32 %v966, %v1469
      %v1471 = vpop.f32.mrf.mxu0
      %v1472 = vadd.f32 %v966, %v1471
      %1473 = vmatmul.bf16.gmra.mxu0 %v918
      %v1474 = vpop.f32.mrf.mxu0
      %v1475 = vadd.f32 %v966, %v1474
      %v1476 = vpop.f32.mrf.mxu0
      %v1477 = vadd.f32 %v966, %v1476
      %1478 = vmatmul.bf16.gmra.mxu0 %v920
      %v1479 = vpop.f32.mrf.mxu0
      %v1480 = vadd.f32 %v966, %v1479
      %v1481 = vpop.f32.mrf.mxu0
      %v1482 = vadd.f32 %v966, %v1481
      %1483 = vmatmul.bf16.gmra.mxu0 %v922
      %v1484 = vpop.f32.mrf.mxu0
      %v1485 = vadd.f32 %v966, %v1484
      %v1486 = vpop.f32.mrf.mxu0
      %v1487 = vadd.f32 %v966, %v1486
      %1488 = vmatmul.bf16.gmra.mxu0 %v924
      %v1489 = vpop.f32.mrf.mxu0
      %v1490 = vadd.f32 %v966, %v1489
      %v1491 = vpop.f32.mrf.mxu0
      %v1492 = vadd.f32 %v966, %v1491
      %1493 = vmatmul.bf16.gmra.mxu0 %v926
      %v1494 = vpop.f32.mrf.mxu0
      %v1495 = vadd.f32 %v966, %v1494
      %v1496 = vpop.f32.mrf.mxu0
      %v1497 = vadd.f32 %v966, %v1496
      %1498 = vmatmul.bf16.gmra.mxu0 %v928
      %v1499 = vpop.f32.mrf.mxu0
      %v1500 = vadd.f32 %v966, %v1499
      %v1501 = vpop.f32.mrf.mxu0
      %v1502 = vadd.f32 %v966, %v1501
      %1503 = vmatmul.bf16.gmra.mxu0 %v930
      %v1504 = vpop.f32.mrf.mxu0
      %v1505 = vadd.f32 %v966, %v1504
      %v1506 = vpop.f32.mrf.mxu0
      %v1507 = vadd.f32 %v966, %v1506
      %1508 = vmatmul.bf16.gmra.mxu0 %v932
      %v1509 = vpop.f32.mrf.mxu0
      %v1510 = vadd.f32 %v966, %v1509
      %v1511 = vpop.f32.mrf.mxu0
      %v1512 = vadd.f32 %v966, %v1511
      %1513 = vmatmul.bf16.gmra.mxu0 %v934
      %v1514 = vpop.f32.mrf.mxu0
      %v1515 = vadd.f32 %v966, %v1514
      %v1516 = vpop.f32.mrf.mxu0
      %v1517 = vadd.f32 %v966, %v1516
      %1518 = vmatmul.bf16.gmra.mxu0 %v936
      %v1519 = vpop.f32.mrf.mxu0
      %v1520 = vadd.f32 %v966, %v1519
      %v1521 = vpop.f32.mrf.mxu0
      %v1522 = vadd.f32 %v966, %v1521
      %1523 = vmatmul.bf16.gmra.mxu0 %v938
      %v1524 = vpop.f32.mrf.mxu0
      %v1525 = vadd.f32 %v966, %v1524
      %v1526 = vpop.f32.mrf.mxu0
      %v1527 = vadd.f32 %v966, %v1526
      %1528 = vmatmul.bf16.gmra.mxu0 %v940
      %v1529 = vpop.f32.mrf.mxu0
      %v1530 = vadd.f32 %v966, %v1529
      %v1531 = vpop.f32.mrf.mxu0
      %v1532 = vadd.f32 %v966, %v1531
      %1533 = vmatmul.bf16.gmra.mxu0 %v942
      %v1534 = vpop.f32.mrf.mxu0
      %v1535 = vadd.f32 %v966, %v1534
      %v1536 = vpop.f32.mrf.mxu0
      %v1537 = vadd.f32 %v966, %v1536
      %1538 = vmatmul.bf16.gmra.mxu0 %v944
      %v1539 = vpop.f32.mrf.mxu0
      %v1540 = vadd.f32 %v966, %v1539
      %v1541 = vpop.f32.mrf.mxu0
      %v1542 = vadd.f32 %v966, %v1541
      %1543 = vdwg.mxu0
      %1544 = vmatpush.bf16.msra.mxu0 0
      %1545 = vmatpush.bf16.msra.mxu0 0
      %1546 = vmatpush.bf16.msra.mxu0 0
      %1547 = vmatpush.bf16.msra.mxu0 0
      %1548 = vmatpush.bf16.msra.mxu0 0
      %1549 = vmatpush.bf16.msra.mxu0 0
      %1550 = vmatpush.bf16.msra.mxu0 0
      %1551 = vmatpush.bf16.msra.mxu0 %v1012
      %1552 = vmatmul.bf16.gmra.mxu0 %v1024
      %v1553 = vpop.f32.mrf.mxu0
      %v1554 = vadd.f32 %v1225, %v1553
      %v1555 = vpop.f32.mrf.mxu0
      %v1556 = vadd.f32 %v1227, %v1555
      %1557 = vmatmul.bf16.gmra.mxu0 %v1027
      %v1558 = vpop.f32.mrf.mxu0
      %v1559 = vadd.f32 %v1230, %v1558
      %v1560 = vpop.f32.mrf.mxu0
      %v1561 = vadd.f32 %v1232, %v1560
      %1562 = vmatmul.bf16.gmra.mxu0 %v1030
      %v1563 = vpop.f32.mrf.mxu0
      %v1564 = vadd.f32 %v1235, %v1563
      %v1565 = vpop.f32.mrf.mxu0
      %v1566 = vadd.f32 %v1237, %v1565
      %1567 = vmatmul.bf16.gmra.mxu0 %v1033
      %v1568 = vpop.f32.mrf.mxu0
      %v1569 = vadd.f32 %v1240, %v1568
      %v1570 = vpop.f32.mrf.mxu0
      %v1571 = vadd.f32 %v1242, %v1570
      %1572 = vmatmul.bf16.gmra.mxu0 %v1036
      %v1573 = vpop.f32.mrf.mxu0
      %v1574 = vadd.f32 %v1245, %v1573
      %v1575 = vpop.f32.mrf.mxu0
      %v1576 = vadd.f32 %v1247, %v1575
      %1577 = vmatmul.bf16.gmra.mxu0 %v1039
      %v1578 = vpop.f32.mrf.mxu0
      %v1579 = vadd.f32 %v1250, %v1578
      %v1580 = vpop.f32.mrf.mxu0
      %v1581 = vadd.f32 %v1252, %v1580
      %1582 = vmatmul.bf16.gmra.mxu0 %v1042
      %v1583 = vpop.f32.mrf.mxu0
      %v1584 = vadd.f32 %v1255, %v1583
      %v1585 = vpop.f32.mrf.mxu0
      %v1586 = vadd.f32 %v1257, %v1585
      %1587 = vmatmul.bf16.gmra.mxu0 %v1045
      %v1588 = vpop.f32.mrf.mxu0
      %v1589 = vadd.f32 %v1260, %v1588
      %v1590 = vpop.f32.mrf.mxu0
      %v1591 = vadd.f32 %v1262, %v1590
      %1592 = vmatmul.bf16.gmra.mxu0 %v1048
      %v1593 = vpop.f32.mrf.mxu0
      %v1594 = vadd.f32 %v1265, %v1593
      %v1595 = vpop.f32.mrf.mxu0
      %v1596 = vadd.f32 %v1267, %v1595
      %1597 = vmatmul.bf16.gmra.mxu0 %v1051
      %v1598 = vpop.f32.mrf.mxu0
      %v1599 = vadd.f32 %v1270, %v1598
      %v1600 = vpop.f32.mrf.mxu0
      %v1601 = vadd.f32 %v1272, %v1600
      %1602 = vmatmul.bf16.gmra.mxu0 %v1054
      %v1603 = vpop.f32.mrf.mxu0
      %v1604 = vadd.f32 %v1275, %v1603
      %v1605 = vpop.f32.mrf.mxu0
      %v1606 = vadd.f32 %v1277, %v1605
      %1607 = vmatmul.bf16.gmra.mxu0 %v1057
      %v1608 = vpop.f32.mrf.mxu0
      %v1609 = vadd.f32 %v1280, %v1608
      %v1610 = vpop.f32.mrf.mxu0
      %v1611 = vadd.f32 %v1282, %v1610
      %1612 = vmatmul.bf16.gmra.mxu0 %v1060
      %v1613 = vpop.f32.mrf.mxu0
      %v1614 = vadd.f32 %v1285, %v1613
      %v1615 = vpop.f32.mrf.mxu0
      %v1616 = vadd.f32 %v1287, %v1615
      %1617 = vmatmul.bf16.gmra.mxu0 %v1063
      %v1618 = vpop.f32.mrf.mxu0
      %v1619 = vadd.f32 %v1290, %v1618
      %v1620 = vpop.f32.mrf.mxu0
      %v1621 = vadd.f32 %v1292, %v1620
      %1622 = vmatmul.bf16.gmra.mxu0 %v1066
      %v1623 = vpop.f32.mrf.mxu0
      %v1624 = vadd.f32 %v1295, %v1623
      %v1625 = vpop.f32.mrf.mxu0
      %v1626 = vadd.f32 %v1297, %v1625
      %1627 = vmatmul.bf16.gmra.mxu0 %v1069
      %v1628 = vpop.f32.mrf.mxu0
      %v1629 = vadd.f32 %v1300, %v1628
      %v1630 = vpop.f32.mrf.mxu0
      %v1631 = vadd.f32 %v1302, %v1630
      %1632 = vmatmul.bf16.gmra.mxu0 %v1072
      %v1633 = vpop.f32.mrf.mxu0
      %v1634 = vadd.f32 %v1305, %v1633
      %v1635 = vpop.f32.mrf.mxu0
      %v1636 = vadd.f32 %v1307, %v1635
      %1637 = vmatmul.bf16.gmra.mxu0 %v1075
      %v1638 = vpop.f32.mrf.mxu0
      %v1639 = vadd.f32 %v1310, %v1638
      %v1640 = vpop.f32.mrf.mxu0
      %v1641 = vadd.f32 %v1312, %v1640
      %1642 = vmatmul.bf16.gmra.mxu0 %v1078
      %v1643 = vpop.f32.mrf.mxu0
      %v1644 = vadd.f32 %v1315, %v1643
      %v1645 = vpop.f32.mrf.mxu0
      %v1646 = vadd.f32 %v1317, %v1645
      %1647 = vmatmul.bf16.gmra.mxu0 %v1081
      %v1648 = vpop.f32.mrf.mxu0
      %v1649 = vadd.f32 %v1320, %v1648
      %v1650 = vpop.f32.mrf.mxu0
      %v1651 = vadd.f32 %v1322, %v1650
      %1652 = vmatmul.bf16.gmra.mxu0 %v1084
      %v1653 = vpop.f32.mrf.mxu0
      %v1654 = vadd.f32 %v1325, %v1653
      %v1655 = vpop.f32.mrf.mxu0
      %v1656 = vadd.f32 %v1327, %v1655
      %1657 = vmatmul.bf16.gmra.mxu0 %v1087
      %v1658 = vpop.f32.mrf.mxu0
      %v1659 = vadd.f32 %v1330, %v1658
      %v1660 = vpop.f32.mrf.mxu0
      %v1661 = vadd.f32 %v1332, %v1660
      %1662 = vmatmul.bf16.gmra.mxu0 %v1090
      %v1663 = vpop.f32.mrf.mxu0
      %v1664 = vadd.f32 %v1335, %v1663
      %v1665 = vpop.f32.mrf.mxu0
      %v1666 = vadd.f32 %v1337, %v1665
      %1667 = vmatmul.bf16.gmra.mxu0 %v1093
      %v1668 = vpop.f32.mrf.mxu0
      %v1669 = vadd.f32 %v1340, %v1668
      %v1670 = vpop.f32.mrf.mxu0
      %v1671 = vadd.f32 %v1342, %v1670
      %1672 = vmatmul.bf16.gmra.mxu0 %v1096
      %v1673 = vpop.f32.mrf.mxu0
      %v1674 = vadd.f32 %v1345, %v1673
      %v1675 = vpop.f32.mrf.mxu0
      %v1676 = vadd.f32 %v1347, %v1675
      %1677 = vmatmul.bf16.gmra.mxu0 %v1099
      %v1678 = vpop.f32.mrf.mxu0
      %v1679 = vadd.f32 %v1350, %v1678
      %v1680 = vpop.f32.mrf.mxu0
      %v1681 = vadd.f32 %v1352, %v1680
      %1682 = vmatmul.bf16.gmra.mxu0 %v1102
      %v1683 = vpop.f32.mrf.mxu0
      %v1684 = vadd.f32 %v1355, %v1683
      %v1685 = vpop.f32.mrf.mxu0
      %v1686 = vadd.f32 %v1357, %v1685
      %1687 = vmatmul.bf16.gmra.mxu0 %v1105
      %v1688 = vpop.f32.mrf.mxu0
      %v1689 = vadd.f32 %v1360, %v1688
      %v1690 = vpop.f32.mrf.mxu0
      %v1691 = vadd.f32 %v1362, %v1690
      %1692 = vmatmul.bf16.gmra.mxu0 %v1108
      %v1693 = vpop.f32.mrf.mxu0
      %v1694 = vadd.f32 %v1365, %v1693
      %v1695 = vpop.f32.mrf.mxu0
      %v1696 = vadd.f32 %v1367, %v1695
      %1697 = vmatmul.bf16.gmra.mxu0 %v1111
      %v1698 = vpop.f32.mrf.mxu0
      %v1699 = vadd.f32 %v1370, %v1698
      %v1700 = vpop.f32.mrf.mxu0
      %v1701 = vadd.f32 %v1372, %v1700
      %1702 = vmatmul.bf16.gmra.mxu0 %v1114
      %v1703 = vpop.f32.mrf.mxu0
      %v1704 = vadd.f32 %v1375, %v1703
      %v1705 = vpop.f32.mrf.mxu0
      %v1706 = vadd.f32 %v1377, %v1705
      %1707 = vmatmul.bf16.gmra.mxu0 %v1117
      %v1708 = vpop.f32.mrf.mxu0
      %v1709 = vadd.f32 %v1380, %v1708
      %v1710 = vpop.f32.mrf.mxu0
      %v1711 = vadd.f32 %v1382, %v1710
      %1712 = vmatmul.bf16.gmra.mxu0 %v1120
      %v1713 = vpop.f32.mrf.mxu0
      %v1714 = vadd.f32 %v1385, %v1713
      %v1715 = vpop.f32.mrf.mxu0
      %v1716 = vadd.f32 %v1387, %v1715
      %1717 = vmatmul.bf16.gmra.mxu0 %v1123
      %v1718 = vpop.f32.mrf.mxu0
      %v1719 = vadd.f32 %v1390, %v1718
      %v1720 = vpop.f32.mrf.mxu0
      %v1721 = vadd.f32 %v1392, %v1720
      %1722 = vmatmul.bf16.gmra.mxu0 %v1126
      %v1723 = vpop.f32.mrf.mxu0
      %v1724 = vadd.f32 %v1395, %v1723
      %v1725 = vpop.f32.mrf.mxu0
      %v1726 = vadd.f32 %v1397, %v1725
      %1727 = vmatmul.bf16.gmra.mxu0 %v1129
      %v1728 = vpop.f32.mrf.mxu0
      %v1729 = vadd.f32 %v1400, %v1728
      %v1730 = vpop.f32.mrf.mxu0
      %v1731 = vadd.f32 %v1402, %v1730
      %1732 = vmatmul.bf16.gmra.mxu0 %v1132
      %v1733 = vpop.f32.mrf.mxu0
      %v1734 = vadd.f32 %v1405, %v1733
      %v1735 = vpop.f32.mrf.mxu0
      %v1736 = vadd.f32 %v1407, %v1735
      %1737 = vmatmul.bf16.gmra.mxu0 %v1135
      %v1738 = vpop.f32.mrf.mxu0
      %v1739 = vadd.f32 %v1410, %v1738
      %v1740 = vpop.f32.mrf.mxu0
      %v1741 = vadd.f32 %v1412, %v1740
      %1742 = vmatmul.bf16.gmra.mxu0 %v1138
      %v1743 = vpop.f32.mrf.mxu0
      %v1744 = vadd.f32 %v1415, %v1743
      %v1745 = vpop.f32.mrf.mxu0
      %v1746 = vadd.f32 %v1417, %v1745
      %1747 = vmatmul.bf16.gmra.mxu0 %v1141
      %v1748 = vpop.f32.mrf.mxu0
      %v1749 = vadd.f32 %v1420, %v1748
      %v1750 = vpop.f32.mrf.mxu0
      %v1751 = vadd.f32 %v1422, %v1750
      %1752 = vmatmul.bf16.gmra.mxu0 %v1144
      %v1753 = vpop.f32.mrf.mxu0
      %v1754 = vadd.f32 %v1425, %v1753
      %v1755 = vpop.f32.mrf.mxu0
      %v1756 = vadd.f32 %v1427, %v1755
      %1757 = vmatmul.bf16.gmra.mxu0 %v1147
      %v1758 = vpop.f32.mrf.mxu0
      %v1759 = vadd.f32 %v1430, %v1758
      %v1760 = vpop.f32.mrf.mxu0
      %v1761 = vadd.f32 %v1432, %v1760
      %1762 = vmatmul.bf16.gmra.mxu0 %v1150
      %v1763 = vpop.f32.mrf.mxu0
      %v1764 = vadd.f32 %v1435, %v1763
      %v1765 = vpop.f32.mrf.mxu0
      %v1766 = vadd.f32 %v1437, %v1765
      %1767 = vmatmul.bf16.gmra.mxu0 %v1153
      %v1768 = vpop.f32.mrf.mxu0
      %v1769 = vadd.f32 %v1440, %v1768
      %v1770 = vpop.f32.mrf.mxu0
      %v1771 = vadd.f32 %v1442, %v1770
      %1772 = vmatmul.bf16.gmra.mxu0 %v1156
      %v1773 = vpop.f32.mrf.mxu0
      %v1774 = vadd.f32 %v1445, %v1773
      %v1775 = vpop.f32.mrf.mxu0
      %v1776 = vadd.f32 %v1447, %v1775
      %1777 = vmatmul.bf16.gmra.mxu0 %v1159
      %v1778 = vpop.f32.mrf.mxu0
      %v1779 = vadd.f32 %v1450, %v1778
      %v1780 = vpop.f32.mrf.mxu0
      %v1781 = vadd.f32 %v1452, %v1780
      %1782 = vmatmul.bf16.gmra.mxu0 %v1162
      %v1783 = vpop.f32.mrf.mxu0
      %v1784 = vadd.f32 %v1455, %v1783
      %v1785 = vpop.f32.mrf.mxu0
      %v1786 = vadd.f32 %v1457, %v1785
      %1787 = vmatmul.bf16.gmra.mxu0 %v1165
      %v1788 = vpop.f32.mrf.mxu0
      %v1789 = vadd.f32 %v1460, %v1788
      %v1790 = vpop.f32.mrf.mxu0
      %v1791 = vadd.f32 %v1462, %v1790
      %1792 = vmatmul.bf16.gmra.mxu0 %v1168
      %v1793 = vpop.f32.mrf.mxu0
      %v1794 = vadd.f32 %v1465, %v1793
      %v1795 = vpop.f32.mrf.mxu0
      %v1796 = vadd.f32 %v1467, %v1795
      %1797 = vmatmul.bf16.gmra.mxu0 %v1171
      %v1798 = vpop.f32.mrf.mxu0
      %v1799 = vadd.f32 %v1470, %v1798
      %v1800 = vpop.f32.mrf.mxu0
      %v1801 = vadd.f32 %v1472, %v1800
      %1802 = vmatmul.bf16.gmra.mxu0 %v1174
      %v1803 = vpop.f32.mrf.mxu0
      %v1804 = vadd.f32 %v1475, %v1803
      %v1805 = vpop.f32.mrf.mxu0
      %v1806 = vadd.f32 %v1477, %v1805
      %1807 = vmatmul.bf16.gmra.mxu0 %v1177
      %v1808 = vpop.f32.mrf.mxu0
      %v1809 = vadd.f32 %v1480, %v1808
      %v1810 = vpop.f32.mrf.mxu0
      %v1811 = vadd.f32 %v1482, %v1810
      %1812 = vmatmul.bf16.gmra.mxu0 %v1180
      %v1813 = vpop.f32.mrf.mxu0
      %v1814 = vadd.f32 %v1485, %v1813
      %v1815 = vpop.f32.mrf.mxu0
      %v1816 = vadd.f32 %v1487, %v1815
      %1817 = vmatmul.bf16.gmra.mxu0 %v1183
      %v1818 = vpop.f32.mrf.mxu0
      %v1819 = vadd.f32 %v1490, %v1818
      %v1820 = vpop.f32.mrf.mxu0
      %v1821 = vadd.f32 %v1492, %v1820
      %1822 = vmatmul.bf16.gmra.mxu0 %v1186
      %v1823 = vpop.f32.mrf.mxu0
      %v1824 = vadd.f32 %v1495, %v1823
      %v1825 = vpop.f32.mrf.mxu0
      %v1826 = vadd.f32 %v1497, %v1825
      %1827 = vmatmul.bf16.gmra.mxu0 %v1189
      %v1828 = vpop.f32.mrf.mxu0
      %v1829 = vadd.f32 %v1500, %v1828
      %v1830 = vpop.f32.mrf.mxu0
      %v1831 = vadd.f32 %v1502, %v1830
      %1832 = vmatmul.bf16.gmra.mxu0 %v1192
      %v1833 = vpop.f32.mrf.mxu0
      %v1834 = vadd.f32 %v1505, %v1833
      %v1835 = vpop.f32.mrf.mxu0
      %v1836 = vadd.f32 %v1507, %v1835
      %1837 = vmatmul.bf16.gmra.mxu0 %v1195
      %v1838 = vpop.f32.mrf.mxu0
      %v1839 = vadd.f32 %v1510, %v1838
      %v1840 = vpop.f32.mrf.mxu0
      %v1841 = vadd.f32 %v1512, %v1840
      %1842 = vmatmul.bf16.gmra.mxu0 %v1198
      %v1843 = vpop.f32.mrf.mxu0
      %v1844 = vadd.f32 %v1515, %v1843
      %v1845 = vpop.f32.mrf.mxu0
      %v1846 = vadd.f32 %v1517, %v1845
      %1847 = vmatmul.bf16.gmra.mxu0 %v1201
      %v1848 = vpop.f32.mrf.mxu0
      %v1849 = vadd.f32 %v1520, %v1848
      %v1850 = vpop.f32.mrf.mxu0
      %v1851 = vadd.f32 %v1522, %v1850
      %1852 = vmatmul.bf16.gmra.mxu0 %v1204
      %v1853 = vpop.f32.mrf.mxu0
      %v1854 = vadd.f32 %v1525, %v1853
      %v1855 = vpop.f32.mrf.mxu0
      %v1856 = vadd.f32 %v1527, %v1855
      %1857 = vmatmul.bf16.gmra.mxu0 %v1207
      %v1858 = vpop.f32.mrf.mxu0
      %v1859 = vadd.f32 %v1530, %v1858
      %v1860 = vpop.f32.mrf.mxu0
      %v1861 = vadd.f32 %v1532, %v1860
      %1862 = vmatmul.bf16.gmra.mxu0 %v1210
      %v1863 = vpop.f32.mrf.mxu0
      %v1864 = vadd.f32 %v1535, %v1863
      %v1865 = vpop.f32.mrf.mxu0
      %v1866 = vadd.f32 %v1537, %v1865
      %1867 = vmatmul.bf16.gmra.mxu0 %v1213
      %v1868 = vpop.f32.mrf.mxu0
      %v1869 = vadd.f32 %v1540, %v1868
      %v1870 = vpop.f32.mrf.mxu0
      %v1871 = vadd.f32 %v1542, %v1870
      %1872 = vdwg.mxu0
      %v1873 = vtanh.pop %v1554
      %v1874 = vtanh.pop %v1556
      %v1875 = vtanh.pop %v1559
      %v1876 = vtanh.pop %v1561
      %v1877 = vtanh.pop %v1564
      %v1878 = vtanh.pop %v1566
      %v1879 = vtanh.pop %v1569
      %v1880 = vtanh.pop %v1571
      %v1881 = vtanh.pop %v1574
      %v1882 = vtanh.pop %v1576
      %v1883 = vtanh.pop %v1579
      %v1884 = vtanh.pop %v1581
      %v1885 = vtanh.pop %v1584
      %v1886 = vtanh.pop %v1586
      %v1887 = vtanh.pop %v1589
      %v1888 = vtanh.pop %v1591
      %v1889 = vtanh.pop %v1594
      %v1890 = vtanh.pop %v1596
      %v1891 = vtanh.pop %v1599
      %v1892 = vtanh.pop %v1601
      %v1893 = vtanh.pop %v1604
      %v1894 = vtanh.pop %v1606
      %v1895 = vtanh.pop %v1609
      %v1896 = vtanh.pop %v1611
      %v1897 = vtanh.pop %v1614
      %v1898 = vtanh.pop %v1616
      %v1899 = vtanh.pop %v1619
      %v1900 = vtanh.pop %v1621
      %v1901 = vtanh.pop %v1624
      %v1902 = vtanh.pop %v1626
      %v1903 = vtanh.pop %v1629
      %v1904 = vtanh.pop %v1631
      %v1905 = vtanh.pop %v1634
      %v1906 = vtanh.pop %v1636
      %v1907 = vtanh.pop %v1639
      %v1908 = vtanh.pop %v1641
      %v1909 = vtanh.pop %v1644
      %v1910 = vtanh.pop %v1646
      %v1911 = vtanh.pop %v1649
      %v1912 = vtanh.pop %v1651
      %v1913 = vtanh.pop %v1654
      %v1914 = vtanh.pop %v1656
      %v1915 = vtanh.pop %v1659
      %v1916 = vtanh.pop %v1661
      %v1917 = vtanh.pop %v1664
      %v1918 = vtanh.pop %v1666
      %v1919 = vtanh.pop %v1669
      %v1920 = vtanh.pop %v1671
      %v1921 = vtanh.pop %v1674
      %v1922 = vtanh.pop %v1676
      %v1923 = vtanh.pop %v1679
      %v1924 = vtanh.pop %v1681
      %v1925 = vtanh.pop %v1684
      %v1926 = vtanh.pop %v1686
      %v1927 = vtanh.pop %v1689
      %v1928 = vtanh.pop %v1691
      %v1929 = vtanh.pop %v1694
      %v1930 = vtanh.pop %v1696
      %v1931 = vtanh.pop %v1699
      %v1932 = vtanh.pop %v1701
      %v1933 = vtanh.pop %v1704
      %v1934 = vtanh.pop %v1706
      %v1935 = vtanh.pop %v1709
      %v1936 = vtanh.pop %v1711
      %v1937 = vtanh.pop %v1714
      %v1938 = vtanh.pop %v1716
      %v1939 = vtanh.pop %v1719
      %v1940 = vtanh.pop %v1721
      %v1941 = vtanh.pop %v1724
      %v1942 = vtanh.pop %v1726
      %v1943 = vtanh.pop %v1729
      %v1944 = vtanh.pop %v1731
      %v1945 = vtanh.pop %v1734
      %v1946 = vtanh.pop %v1736
      %v1947 = vtanh.pop %v1739
      %v1948 = vtanh.pop %v1741
      %v1949 = vtanh.pop %v1744
      %v1950 = vtanh.pop %v1746
      %v1951 = vtanh.pop %v1749
      %v1952 = vtanh.pop %v1751
      %v1953 = vtanh.pop %v1754
      %v1954 = vtanh.pop %v1756
      %v1955 = vtanh.pop %v1759
      %v1956 = vtanh.pop %v1761
      %v1957 = vtanh.pop %v1764
      %v1958 = vtanh.pop %v1766
      %v1959 = vtanh.pop %v1769
      %v1960 = vtanh.pop %v1771
      %v1961 = vtanh.pop %v1774
      %v1962 = vtanh.pop %v1776
      %v1963 = vtanh.pop %v1779
      %v1964 = vtanh.pop %v1781
      %v1965 = vtanh.pop %v1784
      %v1966 = vtanh.pop %v1786
      %v1967 = vtanh.pop %v1789
      %v1968 = vtanh.pop %v1791
      %v1969 = vtanh.pop %v1794
      %v1970 = vtanh.pop %v1796
      %v1971 = vtanh.pop %v1799
      %v1972 = vtanh.pop %v1801
      %v1973 = vtanh.pop %v1804
      %v1974 = vtanh.pop %v1806
      %v1975 = vtanh.pop %v1809
      %v1976 = vtanh.pop %v1811
      %v1977 = vtanh.pop %v1814
      %v1978 = vtanh.pop %v1816
      %v1979 = vtanh.pop %v1819
      %v1980 = vtanh.pop %v1821
      %v1981 = vtanh.pop %v1824
      %v1982 = vtanh.pop %v1826
      %v1983 = vtanh.pop %v1829
      %v1984 = vtanh.pop %v1831
      %v1985 = vtanh.pop %v1834
      %v1986 = vtanh.pop %v1836
      %v1987 = vtanh.pop %v1839
      %v1988 = vtanh.pop %v1841
      %v1989 = vtanh.pop %v1844
      %v1990 = vtanh.pop %v1846
      %v1991 = vtanh.pop %v1849
      %v1992 = vtanh.pop %v1851
      %v1993 = vtanh.pop %v1854
      %v1994 = vtanh.pop %v1856
      %v1995 = vtanh.pop %v1859
      %v1996 = vtanh.pop %v1861
      %v1997 = vtanh.pop %v1864
      %v1998 = vtanh.pop %v1866
      %v1999 = vtanh.pop %v1869
      %v2000 = vtanh.pop %v1871
      %vm2001 = vcmask 97280
      %2002 = vst.msk [vmem:[%s175] sm:$0xff] %vm2001, %v1873
      %2003 = vst.msk [vmem:[%s175 + $0x8] sm:$0xff] %vm2001, %v1874
      %2004 = vst.msk [vmem:[%s175 + $0x10] sm:$0xff] %vm2001, %v1875
      %2005 = vst.msk [vmem:[%s175 + $0x18] sm:$0xff] %vm2001, %v1876
      %2006 = vst.msk [vmem:[%s175 + $0x20] sm:$0xff] %vm2001, %v1877
      %2007 = vst.msk [vmem:[%s175 + $0x28] sm:$0xff] %vm2001, %v1878
      %2008 = vst.msk [vmem:[%s175 + $0x30] sm:$0xff] %vm2001, %v1879
      %2009 = vst.msk [vmem:[%s175 + $0x38] sm:$0xff] %vm2001, %v1880
      %2010 = vst.msk [vmem:[%s175 + $0x40] sm:$0xff] %vm2001, %v1881
      %2011 = vst.msk [vmem:[%s175 + $0x48] sm:$0xff] %vm2001, %v1882
      %2012 = vst.msk [vmem:[%s175 + $0x50] sm:$0xff] %vm2001, %v1883
      %2013 = vst.msk [vmem:[%s175 + $0x58] sm:$0xff] %vm2001, %v1884
      %2014 = vst.msk [vmem:[%s175 + $0x60] sm:$0xff] %vm2001, %v1885
      %2015 = vst.msk [vmem:[%s175 + $0x68] sm:$0xff] %vm2001, %v1886
      %2016 = vst.msk [vmem:[%s175 + $0x70] sm:$0xff] %vm2001, %v1887
      %2017 = vst.msk [vmem:[%s175 + $0x78] sm:$0xff] %vm2001, %v1888
      %2018 = vst.msk [vmem:[%s175 + $0x80] sm:$0xff] %vm2001, %v1889
      %2019 = vst.msk [vmem:[%s175 + $0x88] sm:$0xff] %vm2001, %v1890
      %2020 = vst.msk [vmem:[%s175 + $0x90] sm:$0xff] %vm2001, %v1891
      %2021 = vst.msk [vmem:[%s175 + $0x98] sm:$0xff] %vm2001, %v1892
      %2022 = vst.msk [vmem:[%s175 + $0xa0] sm:$0xff] %vm2001, %v1893
      %2023 = vst.msk [vmem:[%s175 + $0xa8] sm:$0xff] %vm2001, %v1894
      %2024 = vst.msk [vmem:[%s175 + $0xb0] sm:$0xff] %vm2001, %v1895
      %2025 = vst.msk [vmem:[%s175 + $0xb8] sm:$0xff] %vm2001, %v1896
      %2026 = vst.msk [vmem:[%s175 + $0xc0] sm:$0xff] %vm2001, %v1897
      %2027 = vst.msk [vmem:[%s175 + $0xc8] sm:$0xff] %vm2001, %v1898
      %2028 = vst.msk [vmem:[%s175 + $0xd0] sm:$0xff] %vm2001, %v1899
      %2029 = vst.msk [vmem:[%s175 + $0xd8] sm:$0xff] %vm2001, %v1900
      %2030 = vst.msk [vmem:[%s175 + $0xe0] sm:$0xff] %vm2001, %v1901
      %2031 = vst.msk [vmem:[%s175 + $0xe8] sm:$0xff] %vm2001, %v1902
      %2032 = vst.msk [vmem:[%s175 + $0xf0] sm:$0xff] %vm2001, %v1903
      %2033 = vst.msk [vmem:[%s175 + $0xf8] sm:$0xff] %vm2001, %v1904
      %2034 = vst.msk [vmem:[%s175 + $0x100] sm:$0xff] %vm2001, %v1905
      %2035 = vst.msk [vmem:[%s175 + $0x108] sm:$0xff] %vm2001, %v1906
      %2036 = vst.msk [vmem:[%s175 + $0x110] sm:$0xff] %vm2001, %v1907
      %2037 = vst.msk [vmem:[%s175 + $0x118] sm:$0xff] %vm2001, %v1908
      %2038 = vst.msk [vmem:[%s175 + $0x120] sm:$0xff] %vm2001, %v1909
      %2039 = vst.msk [vmem:[%s175 + $0x128] sm:$0xff] %vm2001, %v1910
      %2040 = vst.msk [vmem:[%s175 + $0x130] sm:$0xff] %vm2001, %v1911
      %2041 = vst.msk [vmem:[%s175 + $0x138] sm:$0xff] %vm2001, %v1912
      %2042 = vst.msk [vmem:[%s175 + $0x140] sm:$0xff] %vm2001, %v1913
      %2043 = vst.msk [vmem:[%s175 + $0x148] sm:$0xff] %vm2001, %v1914
      %2044 = vst.msk [vmem:[%s175 + $0x150] sm:$0xff] %vm2001, %v1915
      %2045 = vst.msk [vmem:[%s175 + $0x158] sm:$0xff] %vm2001, %v1916
      %2046 = vst.msk [vmem:[%s175 + $0x160] sm:$0xff] %vm2001, %v1917
      %2047 = vst.msk [vmem:[%s175 + $0x168] sm:$0xff] %vm2001, %v1918
      %2048 = vst.msk [vmem:[%s175 + $0x170] sm:$0xff] %vm2001, %v1919
      %2049 = vst.msk [vmem:[%s175 + $0x178] sm:$0xff] %vm2001, %v1920
      %2050 = vst.msk [vmem:[%s175 + $0x180] sm:$0xff] %vm2001, %v1921
      %2051 = vst.msk [vmem:[%s175 + $0x188] sm:$0xff] %vm2001, %v1922
      %2052 = vst.msk [vmem:[%s175 + $0x190] sm:$0xff] %vm2001, %v1923
      %2053 = vst.msk [vmem:[%s175 + $0x198] sm:$0xff] %vm2001, %v1924
      %2054 = vst.msk [vmem:[%s175 + $0x1a0] sm:$0xff] %vm2001, %v1925
      %2055 = vst.msk [vmem:[%s175 + $0x1a8] sm:$0xff] %vm2001, %v1926
      %2056 = vst.msk [vmem:[%s175 + $0x1b0] sm:$0xff] %vm2001, %v1927
      %2057 = vst.msk [vmem:[%s175 + $0x1b8] sm:$0xff] %vm2001, %v1928
      %2058 = vst.msk [vmem:[%s175 + $0x1c0] sm:$0xff] %vm2001, %v1929
      %2059 = vst.msk [vmem:[%s175 + $0x1c8] sm:$0xff] %vm2001, %v1930
      %2060 = vst.msk [vmem:[%s175 + $0x1d0] sm:$0xff] %vm2001, %v1931
      %2061 = vst.msk [vmem:[%s175 + $0x1d8] sm:$0xff] %vm2001, %v1932
      %2062 = vst.msk [vmem:[%s175 + $0x1e0] sm:$0xff] %vm2001, %v1933
      %2063 = vst.msk [vmem:[%s175 + $0x1e8] sm:$0xff] %vm2001, %v1934
      %2064 = vst.msk [vmem:[%s175 + $0x1f0] sm:$0xff] %vm2001, %v1935
      %2065 = vst.msk [vmem:[%s175 + $0x1f8] sm:$0xff] %vm2001, %v1936
      %2066 = vst.msk [vmem:[%s175 + $0x200] sm:$0xff] %vm2001, %v1937
      %2067 = vst.msk [vmem:[%s175 + $0x208] sm:$0xff] %vm2001, %v1938
      %2068 = vst.msk [vmem:[%s175 + $0x210] sm:$0xff] %vm2001, %v1939
      %2069 = vst.msk [vmem:[%s175 + $0x218] sm:$0xff] %vm2001, %v1940
      %2070 = vst.msk [vmem:[%s175 + $0x220] sm:$0xff] %vm2001, %v1941
      %2071 = vst.msk [vmem:[%s175 + $0x228] sm:$0xff] %vm2001, %v1942
      %2072 = vst.msk [vmem:[%s175 + $0x230] sm:$0xff] %vm2001, %v1943
      %2073 = vst.msk [vmem:[%s175 + $0x238] sm:$0xff] %vm2001, %v1944
      %2074 = vst.msk [vmem:[%s175 + $0x240] sm:$0xff] %vm2001, %v1945
      %2075 = vst.msk [vmem:[%s175 + $0x248] sm:$0xff] %vm2001, %v1946
      %2076 = vst.msk [vmem:[%s175 + $0x250] sm:$0xff] %vm2001, %v1947
      %2077 = vst.msk [vmem:[%s175 + $0x258] sm:$0xff] %vm2001, %v1948
      %2078 = vst.msk [vmem:[%s175 + $0x260] sm:$0xff] %vm2001, %v1949
      %2079 = vst.msk [vmem:[%s175 + $0x268] sm:$0xff] %vm2001, %v1950
      %2080 = vst.msk [vmem:[%s175 + $0x270] sm:$0xff] %vm2001, %v1951
      %2081 = vst.msk [vmem:[%s175 + $0x278] sm:$0xff] %vm2001, %v1952
      %2082 = vst.msk [vmem:[%s175 + $0x280] sm:$0xff] %vm2001, %v1953
      %2083 = vst.msk [vmem:[%s175 + $0x288] sm:$0xff] %vm2001, %v1954
      %2084 = vst.msk [vmem:[%s175 + $0x290] sm:$0xff] %vm2001, %v1955
      %2085 = vst.msk [vmem:[%s175 + $0x298] sm:$0xff] %vm2001, %v1956
      %2086 = vst.msk [vmem:[%s175 + $0x2a0] sm:$0xff] %vm2001, %v1957
      %2087 = vst.msk [vmem:[%s175 + $0x2a8] sm:$0xff] %vm2001, %v1958
      %2088 = vst.msk [vmem:[%s175 + $0x2b0] sm:$0xff] %vm2001, %v1959
      %2089 = vst.msk [vmem:[%s175 + $0x2b8] sm:$0xff] %vm2001, %v1960
      %2090 = vst.msk [vmem:[%s175 + $0x2c0] sm:$0xff] %vm2001, %v1961
      %2091 = vst.msk [vmem:[%s175 + $0x2c8] sm:$0xff] %vm2001, %v1962
      %2092 = vst.msk [vmem:[%s175 + $0x2d0] sm:$0xff] %vm2001, %v1963
      %2093 = vst.msk [vmem:[%s175 + $0x2d8] sm:$0xff] %vm2001, %v1964
      %2094 = vst.msk [vmem:[%s175 + $0x2e0] sm:$0xff] %vm2001, %v1965
      %2095 = vst.msk [vmem:[%s175 + $0x2e8] sm:$0xff] %vm2001, %v1966
      %2096 = vst.msk [vmem:[%s175 + $0x2f0] sm:$0xff] %vm2001, %v1967
      %2097 = vst.msk [vmem:[%s175 + $0x2f8] sm:$0xff] %vm2001, %v1968
      %2098 = vst.msk [vmem:[%s175 + $0x300] sm:$0xff] %vm2001, %v1969
      %2099 = vst.msk [vmem:[%s175 + $0x308] sm:$0xff] %vm2001, %v1970
      %2100 = vst.msk [vmem:[%s175 + $0x310] sm:$0xff] %vm2001, %v1971
      %2101 = vst.msk [vmem:[%s175 + $0x318] sm:$0xff] %vm2001, %v1972
      %2102 = vst.msk [vmem:[%s175 + $0x320] sm:$0xff] %vm2001, %v1973
      %2103 = vst.msk [vmem:[%s175 + $0x328] sm:$0xff] %vm2001, %v1974
      %2104 = vst.msk [vmem:[%s175 + $0x330] sm:$0xff] %vm2001, %v1975
      %2105 = vst.msk [vmem:[%s175 + $0x338] sm:$0xff] %vm2001, %v1976
      %2106 = vst.msk [vmem:[%s175 + $0x340] sm:$0xff] %vm2001, %v1977
      %2107 = vst.msk [vmem:[%s175 + $0x348] sm:$0xff] %vm2001, %v1978
      %2108 = vst.msk [vmem:[%s175 + $0x350] sm:$0xff] %vm2001, %v1979
      %2109 = vst.msk [vmem:[%s175 + $0x358] sm:$0xff] %vm2001, %v1980
      %2110 = vst.msk [vmem:[%s175 + $0x360] sm:$0xff] %vm2001, %v1981
      %2111 = vst.msk [vmem:[%s175 + $0x368] sm:$0xff] %vm2001, %v1982
      %2112 = vst.msk [vmem:[%s175 + $0x370] sm:$0xff] %vm2001, %v1983
      %2113 = vst.msk [vmem:[%s175 + $0x378] sm:$0xff] %vm2001, %v1984
      %2114 = vst.msk [vmem:[%s175 + $0x380] sm:$0xff] %vm2001, %v1985
      %2115 = vst.msk [vmem:[%s175 + $0x388] sm:$0xff] %vm2001, %v1986
      %2116 = vst.msk [vmem:[%s175 + $0x390] sm:$0xff] %vm2001, %v1987
      %2117 = vst.msk [vmem:[%s175 + $0x398] sm:$0xff] %vm2001, %v1988
      %2118 = vst.msk [vmem:[%s175 + $0x3a0] sm:$0xff] %vm2001, %v1989
      %2119 = vst.msk [vmem:[%s175 + $0x3a8] sm:$0xff] %vm2001, %v1990
      %2120 = vst.msk [vmem:[%s175 + $0x3b0] sm:$0xff] %vm2001, %v1991
      %2121 = vst.msk [vmem:[%s175 + $0x3b8] sm:$0xff] %vm2001, %v1992
      %2122 = vst.msk [vmem:[%s175 + $0x3c0] sm:$0xff] %vm2001, %v1993
      %2123 = vst.msk [vmem:[%s175 + $0x3c8] sm:$0xff] %vm2001, %v1994
      %2124 = vst.msk [vmem:[%s175 + $0x3d0] sm:$0xff] %vm2001, %v1995
      %2125 = vst.msk [vmem:[%s175 + $0x3d8] sm:$0xff] %vm2001, %v1996
      %2126 = vst.msk [vmem:[%s175 + $0x3e0] sm:$0xff] %vm2001, %v1997
      %2127 = vst.msk [vmem:[%s175 + $0x3e8] sm:$0xff] %vm2001, %v1998
      %2128 = vst.msk [vmem:[%s175 + $0x3f0] sm:$0xff] %vm2001, %v1999
      %2129 = vst.msk [vmem:[%s175 + $0x3f8] sm:$0xff] %vm2001, %v2000
      %s2130 = smul.u32 128, %s14
      %p2131 = scmp.lt.s32.totalorder %s2130, 255
      %s2132 = scalar_select %p2131, %s2130, 255
      %s2133 = smul.addr %s2132, 8
      %s2134 = scalar_lea.vmem %s3, %s2133
      // Predicated region
      $region33: #{g_unet_add_all_forward.23} parent=31 // pred_check
        %p2135 = pneg %p100
      $region34: #{g_unet_add_all_forward.23} parent=31 // pred_check_branch
        %2137 = sbr.rel (%p2135) target = $region36
      $region35: #{g_unet_add_all_forward.23} parent=31 // pred_region
        %s2138 = smul.u32 128, %s14
      $region36: #{g_unet_add_all_forward.23} parent=31 // pred_fallthru
        _
    $region32: #{g_unet_add_all_forward.23} parent=5 // pred_fallthru
      _
    %p2139 = scmp.le.s32.totalorder 2, %s9
    // Predicated region
    $region37: #{g_unet_add_all_forward.23} parent=5 // pred_check
      %p2140 = pneg %p2139
    $region38: #{g_unet_add_all_forward.23} parent=5 // pred_check_branch
      %2142 = sbr.rel (%p2140) target = $region40
    $region39: #{g_unet_add_all_forward.23} parent=5 // pred_region
      %s2143 = ssub.s32 %s9, 2
      // Predicated region
      $region41: #{g_unet_add_all_forward.23} parent=39 // pred_check
        %p2144 = pneg %p106
      $region42: #{g_unet_add_all_forward.23} parent=39 // pred_check_branch
        %2146 = sbr.rel (%p2144) target = $region44
      $region43: #{g_unet_add_all_forward.23} parent=39 // pred_region
        %s2147 = smul.u32 128, %s15
        %p2148 = scmp.lt.s32.totalorder %s2147, 255
        %s2149 = scalar_select %p2148, %s2147, 255
        %s2150 = smul.addr %s2149, 8
        %s2151 = scalar_lea.vmem %s3, %s2150
      $region44: #{g_unet_add_all_forward.23} parent=39 // pred_fallthru
        _
    $region40: #{g_unet_add_all_forward.23} parent=5 // pred_fallthru
      _
  $region6: #{g_unet_add_all_forward.23} parent=0 // loop_footer
    %s13 = sadd.s32 1, %s9
  $region7: #{g_unet_add_all_forward.23} parent=0 // loop_footer_branch
    %8 = sbr.rel target = $region3
  $region8: #{g_unet_add_all_forward.23} parent=0 // loop_exit
    _

</llo_original>
